<compile_context>
chip_gen: v7x
topology: tpu7x:2x2x1
jax: 0.10.0
libtpu: 0.0.40
codegen_flags: <defaults>
</compile_context>

<pallas_src>
from functools import partial

import jax
import jax.numpy as jnp
from jax.experimental import pallas as pl
from jax.experimental.pallas import tpu as pltpu

NEG_SLOPE = 0.2


def _round_up(x, m):
    return ((x + m - 1) // m) * m


def _device_kind():
    try:
        return jax.devices()[0].device_kind.lower()
    except Exception:
        return ""


def _spec(shape, index_map, buffers=None):
    """BlockSpec, optionally with explicit buffer count (fallback if unsupported)."""
    if buffers is not None and hasattr(pl, "Buffered"):
        try:
            return pl.BlockSpec(shape, index_map, pipeline_mode=pl.Buffered(buffers))
        except TypeError:
            pass
    return pl.BlockSpec(shape, index_map)


def gat_kernel(adj_ref, attn_dst_ref, attn_src_ref, feat_dst_fc_ref, feat_src_fc_ref,
               w_fc1_ref, b_fc1_ref, w_fc2_ref, b_fc2_ref,
               out_ref, m_sc, l_sc, acc_sc, *, n_heads, out_feats, bf16_exp):
    j = pl.program_id(1)                      # src-block index (reduction axis, "arbitrary")
    d = out_feats
    tn = attn_src_ref.shape[1]

    @pl.when(j == 0)
    def _init():
        m_sc[...] = jnp.full_like(m_sc, -1e30)
        l_sc[...] = jnp.zeros_like(l_sc)
        acc_sc[...] = jnp.zeros_like(acc_sc)

    # --- per src-block tensors, shared by all heads ---
    adj_f = adj_ref[...].astype(jnp.float32)                   # [TM, TN] 0/1 (int8 stream)
    mask = adj_f.astype(jnp.bfloat16) if bf16_exp else adj_f   # 0/1 multiply, no selects
    attn_dst = attn_dst_ref[...]                               # [TM, H]  f32
    attn_src = attn_src_ref[...]                               # [H, TN]  f32
    src0 = pl.multiple_of(j * tn, tn)
    v_blk = feat_src_fc_ref[pl.ds(src0, tn), :]                # [TN, HD] bf16 resident slab slice

    # TODO(synk): for n_heads >= 4 switch to lax.fori_loop over heads so only one head's
    # [TM, TN] temps are live at a time (bounds vreg/VMEM pressure).
    for h in range(n_heads):
        e = attn_dst[:, h:h + 1] + attn_src[h:h + 1, :]        # [TM, TN] attn_src[u]+attn_dst[v]
        e = jnp.maximum(e, NEG_SLOPE * e)                      # leaky_relu (slope in (0,1))
        m_old = m_sc[:, h:h + 1]
        # Unmasked row max is a valid (>=) softmax shift: exp(-m) cancels between the
        # weighted sum and the denominator, so no per-head mask bias/select is needed.
        m_new = jnp.maximum(m_old, jnp.max(e, axis=-1, keepdims=True))
        alpha = jnp.exp(m_old - m_new)                         # [TM, 1] online rescale
        s = e - m_new
        if bf16_exp:
            p = jnp.exp(s.astype(jnp.bfloat16)) * mask         # bf16 EUP path (v6e/v7x)
        else:
            p = jnp.exp(s) * mask                              # f32 path (v5e)
        l_sc[:, h:h + 1] = alpha * l_sc[:, h:h + 1] + jnp.sum(
            p.astype(jnp.float32), axis=-1, keepdims=True)     # denom stays f32
        pv = jnp.dot(p.astype(jnp.bfloat16), v_blk[:, h * d:(h + 1) * d],
                     preferred_element_type=jnp.float32)       # [TM, D] f32 accumulate
        acc_sc[:, h * d:(h + 1) * d] = alpha * acc_sc[:, h * d:(h + 1) * d] + pv
        m_sc[:, h:h + 1] = m_new

    # --- finalize on the last src block: normalize, post-MLP, residual, dense store ---
    @pl.when(j == pl.num_programs(1) - 1)
    def _finalize():
        l = l_sc[...]                                          # [TM, H]
        inv = jnp.where(l > 0, pl.reciprocal(l, approx=True), 0.0)   # zero in-degree -> 0
        rst = jnp.concatenate(
            [acc_sc[:, h * d:(h + 1) * d] * inv[:, h:h + 1] for h in range(n_heads)],
            axis=-1)                                           # [TM, HD]
        rst = jnp.maximum(
            jnp.dot(rst, w_fc1_ref[...], preferred_element_type=jnp.float32)
            + b_fc1_ref[...], 0.0)
        rst = jnp.maximum(
            jnp.dot(rst, w_fc2_ref[...], preferred_element_type=jnp.float32)
            + b_fc2_ref[...], 0.0)
        res = rst + feat_dst_fc_ref[...]                       # residual (dst_fc + bias)
        pad = out_ref.shape[1] - res.shape[1]
        if pad > 0:                                            # lane-dense, unmasked stores
            res = jnp.concatenate(
                [res, jnp.zeros((res.shape[0], pad), res.dtype)], axis=-1)
        out_ref[...] = res


def _vmem_budget_bytes(tile_m, tile_n, ns_pad, hd, n_heads, kind):
    lane, f32b = 128, 4
    hd_l = max(hd, lane)
    est = (
        2 * tile_m * tile_n                                    # adj int8 (double-buffered)
        + 2 * n_heads * tile_n * f32b                          # attn_src tiles
        + 2 * tile_m * lane * f32b                             # attn_dst tiles (lane-padded)
        + 2 * tile_m * hd_l * f32b                             # feat_dst_fc tiles
        + ns_pad * hd_l * 2                                    # resident feat_src_fc slab (bf16)
        + 4 * hd * hd_l * f32b + 4 * lane * f32b               # MLP weights + biases
        + 2 * tile_m * max(_round_up(hd, lane), lane) * f32b   # output tiles
        + tile_m * (2 * lane + hd_l) * f32b                    # m/l/acc scratch
        + 6 * tile_m * tile_n * f32b                           # live per-head temps + headroom
        + (4 << 20)
    )
    if "v7" in kind:
        cap = 52 << 20          # leave headroom under v7x's 64 MiB physical VMEM
    elif "v5" in kind or "v6" in kind:
        cap = 104 << 20         # 128 MiB physical on v5e/v6e
    else:
        cap = 64 << 20
    return int(min(max(est, 32 << 20), cap))


def gat_conv_forward(feat, adj, params, *, n_heads, out_feats,
                     tile_m=None, tile_n=None, bf16_exp=None):
    N, F = feat.shape
    H = n_heads
    HD = n_heads * out_feats
    kind = _device_kind()
    if bf16_exp is None:
        bf16_exp = ("v6" in kind) or ("v7" in kind)     # v5e has no bf16 EUP/VPU
    if tile_m is None:
        tile_m = 128 if "v7" in kind else 256           # bigger dst tiles where VMEM allows
    if tile_n is None:
        tile_n = 512

    # --- wrapper-side projections (wide, fused XLA matmuls; attn_dst folded into dst_fc) ---
    w_cat = jnp.concatenate([params["w_dst"], params["w_attn_dst"]], axis=1)   # [F, HD+H]
    dst_proj = feat @ w_cat
    feat_dst_fc = dst_proj[:, :HD] + params["b_dst"]                           # [N, HD]
    attn_dst = dst_proj[:, HD:]                                                # [N, H]
    feat_src_fc = (feat @ params["w_src"]).astype(jnp.bfloat16)                # [N, HD] lane-dense
    attn_src = (feat @ params["w_attn_src"].T).T                               # [H, N]
    adj_i8 = adj.astype(jnp.int8)                                              # 0/1 exact
    # TODO(synk): bit-pack adj into uint32 (+ in-kernel shift/and unpack) for another 8x
    # reduction of the O(N^2) stream if it shows up as HBM-bound.

    # --- tiling / padding (dst rows multiple of 32 for int8 sublane packing; src multiple of 128) ---
    tile_m = _round_up(min(tile_m, _round_up(N, 32)), 32)
    tile_n = _round_up(min(tile_n, _round_up(N, 128)), 128)
    nd_pad = _round_up(N, tile_m)
    ns_pad = _round_up(N, tile_n)
    HD_pad = _round_up(HD, 128)                                # lane-dense output stores

    adj_p = jnp.pad(adj_i8, ((0, nd_pad - N), (0, ns_pad - N)))
    attn_dst_p = jnp.pad(attn_dst, ((0, nd_pad - N), (0, 0)))
    feat_dst_fc_p = jnp.pad(feat_dst_fc, ((0, nd_pad - N), (0, 0)))
    attn_src_p = jnp.pad(attn_src, ((0, 0), (0, ns_pad - N)))
    feat_src_fc_p = jnp.pad(feat_src_fc, ((0, ns_pad - N), (0, 0)))

    grid = (nd_pad // tile_m, ns_pad // tile_n)   # dst "parallel" (megacore), src reduction last

    def run(use_buffered):
        buf1 = 1 if use_buffered else None        # single-buffer the resident inputs
        in_specs = [
            _spec((tile_m, tile_n), lambda i, j: (i, j)),       # adj tile (streamed int8)
            _spec((tile_m, H), lambda i, j: (i, 0)),            # attn_dst (per dst tile)
            _spec((H, tile_n), lambda i, j: (0, j)),            # attn_src (per src tile, tiny)
            _spec((tile_m, HD), lambda i, j: (i, 0)),           # feat_dst_fc (per dst tile)
            _spec((ns_pad, HD), lambda i, j: (0, 0), buf1),     # feat_src_fc slab (resident)
            _spec((HD, HD), lambda i, j: (0, 0), buf1),         # w_fc1
            _spec((1, HD), lambda i, j: (0, 0), buf1),          # b_fc1
            _spec((HD, HD), lambda i, j: (0, 0), buf1),         # w_fc2
            _spec((1, HD), lambda i, j: (0, 0), buf1),          # b_fc2
        ]
        # TODO(synk): if profiling on v5e shows the adj DMA exposed, bump only the adj
        # spec to pipeline_mode=pl.Buffered(3).
        return pl.pallas_call(
            partial(gat_kernel, n_heads=n_heads, out_feats=out_feats, bf16_exp=bf16_exp),
            out_shape=jax.ShapeDtypeStruct((nd_pad, HD_pad), jnp.float32),
            grid_spec=pltpu.PrefetchScalarGridSpec(
                num_scalar_prefetch=0,
                grid=grid,
                in_specs=in_specs,
                out_specs=pl.BlockSpec((tile_m, HD_pad), lambda i, j: (i, 0)),
                scratch_shapes=[
                    pltpu.VMEM((tile_m, H), jnp.float32),     # running max
                    pltpu.VMEM((tile_m, H), jnp.float32),     # running denominator
                    pltpu.VMEM((tile_m, HD), jnp.float32),    # running weighted sum
                ],
            ),
            compiler_params=pltpu.CompilerParams(
                dimension_semantics=("parallel", "arbitrary"),
                vmem_limit_bytes=_vmem_budget_bytes(tile_m, tile_n, ns_pad, HD, H, kind),
            ),
        )(adj_p, attn_dst_p, attn_src_p, feat_dst_fc_p, feat_src_fc_p,
          params["w_fc1"], params["b_fc1"], params["w_fc2"], params["b_fc2"])

    try:
        out = run(True)
    except Exception:            # pipeline_mode / Buffered(1) unsupported -> default buffering
        out = run(False)

    return out[:N, :HD].reshape(N, n_heads, out_feats)


def reference_forward(feat, adj, params, *, n_heads, out_feats):
    """Pure-JAX (f32) reference mirroring the PyTorch GATConv.forward semantics."""
    feat_src_fc = feat @ params["w_src"]
    feat_dst_fc = feat @ params["w_dst"] + params["b_dst"]
    attn_src = feat @ params["w_attn_src"].T        # [N, H]
    attn_dst = feat @ params["w_attn_dst"]          # [N, H]
    head_outs = []
    for h in range(n_heads):
        e = attn_dst[:, h:h + 1] + attn_src[:, h][None, :]
        e = jnp.where(e > 0, e, NEG_SLOPE * e)
        e = jnp.where(adj > 0, e, -1e30)
        p = jnp.exp(e - jnp.max(e, axis=-1, keepdims=True)) * adj
        denom = jnp.sum(p, axis=-1, keepdims=True)
        a = p * jnp.where(denom > 0, 1.0 / denom, 0.0)
        head_outs.append(a @ feat_src_fc[:, h * out_feats:(h + 1) * out_feats])
    rst = jnp.concatenate(head_outs, axis=-1)
    rst = jnp.maximum(rst @ params["w_fc1"] + params["b_fc1"], 0.0)
    rst = jnp.maximum(rst @ params["w_fc2"] + params["b_fc2"], 0.0)
    rst = rst + feat_dst_fc
    return rst.reshape(feat.shape[0], n_heads, out_feats)


def xavier_normal(key, shape, fan_in, fan_out, gain):
    std = gain * (2.0 / (fan_in + fan_out)) ** 0.5
    return std * jax.random.normal(key, shape, dtype=jnp.float32)


if __name__ == "__main__":
    # Small, module-consistent shapes; tile_m=128 / tile_n=128 -> a 2x2 grid so both the
    # dst ("parallel") tiling and the flash-style online-softmax src accumulation are exercised.
    N = 256           # number of nodes
    F_IN = 32         # node_feats
    OUT = 16          # out_feats
    H = 2             # n_heads
    HD = H * OUT
    gain = 2.0 ** 0.5  # nn.init.calculate_gain('relu')

    key = jax.random.PRNGKey(0)
    ks = jax.random.split(key, 10)

    params = {
        # src_fc.weight is [HD, F] in torch; stored transposed [F, HD] for x @ W
        "w_src": xavier_normal(ks[0], (F_IN, HD), F_IN, HD, gain),
        "w_dst": xavier_normal(ks[1], (F_IN, HD), F_IN, HD, gain),
        "b_dst": 0.01 * jax.random.normal(ks[2], (1, HD), dtype=jnp.float32),
        # attn_src kept in torch layout [H, F]
        "w_attn_src": xavier_normal(ks[3], (H, F_IN), F_IN, H, gain),
        "w_attn_dst": xavier_normal(ks[4], (F_IN, H), F_IN, H, gain),
        "w_fc1": xavier_normal(ks[5], (HD, HD), HD, HD, gain),
        "b_fc1": 0.01 * jax.random.normal(ks[6], (1, HD), dtype=jnp.float32),
        "w_fc2": xavier_normal(ks[7], (HD, HD), HD, HD, gain),
        "b_fc2": 0.01 * jax.random.normal(ks[8], (1, HD), dtype=jnp.float32),
    }

    feat = jax.random.normal(ks[9], (N, F_IN), dtype=jnp.float32)

    # deterministic dense adjacency: random edges + self loops (every node has in-degree >= 1)
    adj_key = jax.random.PRNGKey(42)
    adj = jax.random.bernoulli(adj_key, p=0.1, shape=(N, N)).astype(jnp.float32)
    adj = jnp.maximum(adj, jnp.eye(N, dtype=jnp.float32))

    out = gat_conv_forward(feat, adj, params, n_heads=H, out_feats=OUT,
                           tile_m=128, tile_n=128)
    out = jax.block_until_ready(out)

    ref = reference_forward(feat, adj, params, n_heads=H, out_feats=OUT)
    assert out.shape == (N, H, OUT), out.shape
    # tolerance covers bf16 MXU operands (attention probs / feat_src_fc) and the bf16
    # exp path on v6e/v7x; all accumulations stay f32.
    assert jnp.allclose(out, ref, rtol=1e-1, atol=1e-1), "mismatch vs JAX reference"

    # TODO(synk): training-time edge_drop / attn_drop are eval-mode no-ops here;
    # use_symmetric_norm=True path is not implemented in the kernel.
    print("KERNEL_OK")
</pallas_src>

<mosaic_0001>
module attributes {stable_mosaic.version = 11 : i64} {
  func.func @gat_kernel(%arg0: i32, %arg1: i32, %arg2: memref<128x128xi8, #tpu.memory_space<vmem>>, %arg3: memref<128x2xf32, #tpu.memory_space<vmem>>, %arg4: memref<2x128xf32, #tpu.memory_space<vmem>>, %arg5: memref<128x32xf32, #tpu.memory_space<vmem>>, %arg6: memref<256x32xbf16, #tpu.memory_space<vmem>>, %arg7: memref<32x32xf32, #tpu.memory_space<vmem>>, %arg8: memref<1x32xf32, #tpu.memory_space<vmem>>, %arg9: memref<32x32xf32, #tpu.memory_space<vmem>>, %arg10: memref<1x32xf32, #tpu.memory_space<vmem>>, %arg11: memref<128x128xf32, #tpu.memory_space<vmem>>, %arg12: memref<128x2xf32, #tpu.memory_space<vmem>>, %arg13: memref<128x2xf32, #tpu.memory_space<vmem>>, %arg14: memref<128x32xf32, #tpu.memory_space<vmem>>) attributes {dimension_semantics = [#tpu.dimension_semantics<parallel>, #tpu.dimension_semantics<arbitrary>], iteration_bounds = array<i64: 2, 2>, scalar_prefetch = 0 : i64, scratch_operands = 3 : i64, tpu.core_type = #tpu.core_type<tc>, window_params = [{transform_indices = @transform_0, window_bounds = array<i64: 128, 128>}, {transform_indices = @transform_1, window_bounds = array<i64: 128, 2>}, {transform_indices = @transform_2, window_bounds = array<i64: 2, 128>}, {transform_indices = @transform_3, window_bounds = array<i64: 128, 32>}, {pipeline_mode = #tpu.pipeline_mode<synchronous>, transform_indices = @transform_4, window_bounds = array<i64: 256, 32>}, {pipeline_mode = #tpu.pipeline_mode<synchronous>, transform_indices = @transform_5, window_bounds = array<i64: 32, 32>}, {pipeline_mode = #tpu.pipeline_mode<synchronous>, transform_indices = @transform_6, window_bounds = array<i64: 1, 32>}, {pipeline_mode = #tpu.pipeline_mode<synchronous>, transform_indices = @transform_7, window_bounds = array<i64: 32, 32>}, {pipeline_mode = #tpu.pipeline_mode<synchronous>, transform_indices = @transform_8, window_bounds = array<i64: 1, 32>}, {transform_indices = @transform_9, window_bounds = array<i64: 128, 128>}]} {
    %c0_i32 = arith.constant 0 : i32
    %0 = arith.cmpi eq, %arg1, %c0_i32 : i32
    %1 = arith.extui %0 : i1 to i32
    %c0_i32_0 = arith.constant 0 : i32
    %2 = arith.cmpi ne, %1, %c0_i32_0 : i32
    scf.if %2 {
      %cst_37 = arith.constant -1.000000e+30 : f32
      %80 = vector.broadcast %cst_37 : f32 to vector<128x2xf32>
      %c0_38 = arith.constant 0 : index
      %c0_39 = arith.constant 0 : index
      %81 = vector.load %arg12[%c0_38, %c0_39] : memref<128x2xf32, #tpu.memory_space<vmem>>, vector<128x2xf32>
      tpu.vector_store %arg12[%c0_38, %c0_39], %80 {strides = array<i32>} : memref<128x2xf32, #tpu.memory_space<vmem>>, vector<128x2xf32>,
      %cst_40 = arith.constant 0.000000e+00 : f32
      %82 = vector.broadcast %cst_40 : f32 to vector<128x2xf32>
      %c0_41 = arith.constant 0 : index
      %c0_42 = arith.constant 0 : index
      %83 = vector.load %arg13[%c0_41, %c0_42] : memref<128x2xf32, #tpu.memory_space<vmem>>, vector<128x2xf32>
      tpu.vector_store %arg13[%c0_41, %c0_42], %82 {strides = array<i32>} : memref<128x2xf32, #tpu.memory_space<vmem>>, vector<128x2xf32>,
      %cst_43 = arith.constant 0.000000e+00 : f32
      %84 = vector.broadcast %cst_43 : f32 to vector<128x32xf32>
      %c0_44 = arith.constant 0 : index
      %c0_45 = arith.constant 0 : index
      %85 = vector.load %arg14[%c0_44, %c0_45] : memref<128x32xf32, #tpu.memory_space<vmem>>, vector<128x32xf32>
      tpu.vector_store %arg14[%c0_44, %c0_45], %84 {strides = array<i32>} : memref<128x32xf32, #tpu.memory_space<vmem>>, vector<128x32xf32>,
    } else {
    }
    %c0 = arith.constant 0 : index
    %c0_1 = arith.constant 0 : index
    %3 = vector.load %arg2[%c0, %c0_1] : memref<128x128xi8, #tpu.memory_space<vmem>>, vector<128x128xi8>
    %4 = arith.sitofp %3 : vector<128x128xi8> to vector<128x128xf32>
    %c0_2 = arith.constant 0 : index
    %c0_3 = arith.constant 0 : index
    %5 = vector.load %arg3[%c0_2, %c0_3] : memref<128x2xf32, #tpu.memory_space<vmem>>, vector<128x2xf32>
    %c0_4 = arith.constant 0 : index
    %c0_5 = arith.constant 0 : index
    %6 = vector.load %arg4[%c0_4, %c0_5] : memref<2x128xf32, #tpu.memory_space<vmem>>, vector<2x128xf32>
    %c128_i32 = arith.constant 128 : i32
    %7 = arith.muli %arg1, %c128_i32 : i32
    %8 = tpu.assume_multiple %7, 128 : i32
    %9 = arith.index_cast %8 : i32 to index
    %c0_6 = arith.constant 0 : index
    %10 = vector.load %arg6[%9, %c0_6] : memref<256x32xbf16, #tpu.memory_space<vmem>>, vector<128x32xbf16>
    %11 = vector.extract_strided_slice %5 {offsets = [0, 0], sizes = [128, 1], strides = [1, 1]} : vector<128x2xf32> to vector<128x1xf32>
    %12 = vector.extract_strided_slice %6 {offsets = [0, 0], sizes = [1, 128], strides = [1, 1]} : vector<2x128xf32> to vector<1x128xf32>
    %13 = vector.broadcast %11 : vector<128x1xf32> to vector<128x128xf32>
    %14 = vector.broadcast %12 : vector<1x128xf32> to vector<128x128xf32>
    %15 = arith.addf %13, %14 : vector<128x128xf32>
    %cst = arith.constant 2.000000e-01 : f32
    %16 = vector.broadcast %cst : f32 to vector<128x128xf32>
    %17 = arith.mulf %16, %15 : vector<128x128xf32>
    %18 = arith.maximumf %15, %17 : vector<128x128xf32>
    %c0_7 = arith.constant 0 : index
    %c0_8 = arith.constant 0 : index
    %19 = vector.load %arg12[%c0_7, %c0_8] : memref<128x2xf32, #tpu.memory_space<vmem>>, vector<128x1xf32>
    %cst_9 = arith.constant dense<0xFF800000> : vector<128xf32>
    %20 = vector.multi_reduction <maximumf>, %18, %cst_9 [1] : vector<128x128xf32> to vector<128xf32>
    %21 = vector.shape_cast %20 : vector<128xf32> to vector<128x1xf32>
    %22 = arith.maximumf %19, %21 : vector<128x1xf32>
    %23 = arith.subf %19, %22 : vector<128x1xf32>
    %24 = math.exp %23 : vector<128x1xf32>
    %25 = vector.broadcast %22 : vector<128x1xf32> to vector<128x128xf32>
    %26 = arith.subf %18, %25 : vector<128x128xf32>
    %27 = math.exp %26 : vector<128x128xf32>
    %28 = arith.mulf %27, %4 : vector<128x128xf32>
    %c0_10 = arith.constant 0 : index
    %c0_11 = arith.constant 0 : index
    %29 = vector.load %arg13[%c0_10, %c0_11] : memref<128x2xf32, #tpu.memory_space<vmem>>, vector<128x1xf32>
    %30 = arith.mulf %24, %29 : vector<128x1xf32>
    %cst_12 = arith.constant dense<0.000000e+00> : vector<128xf32>
    %31 = vector.multi_reduction <add>, %28, %cst_12 [1] : vector<128x128xf32> to vector<128xf32>
    %32 = vector.shape_cast %31 : vector<128xf32> to vector<128x1xf32>
    %33 = arith.addf %30, %32 : vector<128x1xf32>
    %c0_13 = arith.constant 0 : index
    %c0_14 = arith.constant 0 : index
    %34 = vector.load %arg13[%c0_13, %c0_14] : memref<128x2xf32, #tpu.memory_space<vmem>>, vector<128x1xf32>
    tpu.vector_store %arg13[%c0_13, %c0_14], %33 {strides = array<i32>} : memref<128x2xf32, #tpu.memory_space<vmem>>, vector<128x1xf32>,
    %35 = arith.truncf %28 : vector<128x128xf32> to vector<128x128xbf16>
    %36 = vector.extract_strided_slice %10 {offsets = [0, 0], sizes = [128, 16], strides = [1, 1]} : vector<128x32xbf16> to vector<128x16xbf16>
    %cst_15 = arith.constant dense<0.000000e+00> : vector<128x16xf32>
    %37 = tpu.matmul %35, %36, %cst_15 {dimension_numbers = #tpu.dot_dimension_numbers<[1], [0], [0], [1], [0, 0, 1, 1], [], []>} : vector<128x128xbf16>, vector<128x16xbf16>, vector<128x16xf32> -> vector<128x16xf32>
    %c0_16 = arith.constant 0 : index
    %c0_17 = arith.constant 0 : index
    %38 = vector.load %arg14[%c0_16, %c0_17] : memref<128x32xf32, #tpu.memory_space<vmem>>, vector<128x16xf32>
    %39 = vector.broadcast %24 : vector<128x1xf32> to vector<128x16xf32>
    %40 = arith.mulf %39, %38 : vector<128x16xf32>
    %41 = arith.addf %40, %37 : vector<128x16xf32>
    %c0_18 = arith.constant 0 : index
    %c0_19 = arith.constant 0 : index
    %42 = vector.load %arg14[%c0_18, %c0_19] : memref<128x32xf32, #tpu.memory_space<vmem>>, vector<128x16xf32>
    tpu.vector_store %arg14[%c0_18, %c0_19], %41 {strides = array<i32>} : memref<128x32xf32, #tpu.memory_space<vmem>>, vector<128x16xf32>,
    %c0_20 = arith.constant 0 : index
    %c0_21 = arith.constant 0 : index
    %43 = vector.load %arg12[%c0_20, %c0_21] : memref<128x2xf32, #tpu.memory_space<vmem>>, vector<128x1xf32>
    tpu.vector_store %arg12[%c0_20, %c0_21], %22 {strides = array<i32>} : memref<128x2xf32, #tpu.memory_space<vmem>>, vector<128x1xf32>,
    %44 = vector.extract_strided_slice %5 {offsets = [0, 1], sizes = [128, 1], strides = [1, 1]} : vector<128x2xf32> to vector<128x1xf32>
    %45 = vector.extract_strided_slice %6 {offsets = [1, 0], sizes = [1, 128], strides = [1, 1]} : vector<2x128xf32> to vector<1x128xf32>
    %46 = vector.broadcast %44 : vector<128x1xf32> to vector<128x128xf32>
    %47 = vector.broadcast %45 : vector<1x128xf32> to vector<128x128xf32>
    %48 = arith.addf %46, %47 : vector<128x128xf32>
    %cst_22 = arith.constant 2.000000e-01 : f32
    %49 = vector.broadcast %cst_22 : f32 to vector<128x128xf32>
    %50 = arith.mulf %49, %48 : vector<128x128xf32>
    %51 = arith.maximumf %48, %50 : vector<128x128xf32>
    %c0_23 = arith.constant 0 : index
    %c1 = arith.constant 1 : index
    %52 = vector.load %arg12[%c0_23, %c1] : memref<128x2xf32, #tpu.memory_space<vmem>>, vector<128x1xf32>
    %cst_24 = arith.constant dense<0xFF800000> : vector<128xf32>
    %53 = vector.multi_reduction <maximumf>, %51, %cst_24 [1] : vector<128x128xf32> to vector<128xf32>
    %54 = vector.shape_cast %53 : vector<128xf32> to vector<128x1xf32>
    %55 = arith.maximumf %52, %54 : vector<128x1xf32>
    %56 = arith.subf %52, %55 : vector<128x1xf32>
    %57 = math.exp %56 : vector<128x1xf32>
    %58 = vector.broadcast %55 : vector<128x1xf32> to vector<128x128xf32>
    %59 = arith.subf %51, %58 : vector<128x128xf32>
    %60 = math.exp %59 : vector<128x128xf32>
    %61 = arith.mulf %60, %4 : vector<128x128xf32>
    %c0_25 = arith.constant 0 : index
    %c1_26 = arith.constant 1 : index
    %62 = vector.load %arg13[%c0_25, %c1_26] : memref<128x2xf32, #tpu.memory_space<vmem>>, vector<128x1xf32>
    %63 = arith.mulf %57, %62 : vector<128x1xf32>
    %cst_27 = arith.constant dense<0.000000e+00> : vector<128xf32>
    %64 = vector.multi_reduction <add>, %61, %cst_27 [1] : vector<128x128xf32> to vector<128xf32>
    %65 = vector.shape_cast %64 : vector<128xf32> to vector<128x1xf32>
    %66 = arith.addf %63, %65 : vector<128x1xf32>
    %c0_28 = arith.constant 0 : index
    %c1_29 = arith.constant 1 : index
    %67 = vector.load %arg13[%c0_28, %c1_29] : memref<128x2xf32, #tpu.memory_space<vmem>>, vector<128x1xf32>
    tpu.vector_store %arg13[%c0_28, %c1_29], %66 {strides = array<i32>} : memref<128x2xf32, #tpu.memory_space<vmem>>, vector<128x1xf32>,
    %68 = arith.truncf %61 : vector<128x128xf32> to vector<128x128xbf16>
    %69 = vector.extract_strided_slice %10 {offsets = [0, 16], sizes = [128, 16], strides = [1, 1]} : vector<128x32xbf16> to vector<128x16xbf16>
    %cst_30 = arith.constant dense<0.000000e+00> : vector<128x16xf32>
    %70 = tpu.matmul %68, %69, %cst_30 {dimension_numbers = #tpu.dot_dimension_numbers<[1], [0], [0], [1], [0, 0, 1, 1], [], []>} : vector<128x128xbf16>, vector<128x16xbf16>, vector<128x16xf32> -> vector<128x16xf32>
    %c0_31 = arith.constant 0 : index
    %c16 = arith.constant 16 : index
    %71 = vector.load %arg14[%c0_31, %c16] : memref<128x32xf32, #tpu.memory_space<vmem>>, vector<128x16xf32>
    %72 = vector.broadcast %57 : vector<128x1xf32> to vector<128x16xf32>
    %73 = arith.mulf %72, %71 : vector<128x16xf32>
    %74 = arith.addf %73, %70 : vector<128x16xf32>
    %c0_32 = arith.constant 0 : index
    %c16_33 = arith.constant 16 : index
    %75 = vector.load %arg14[%c0_32, %c16_33] : memref<128x32xf32, #tpu.memory_space<vmem>>, vector<128x16xf32>
    tpu.vector_store %arg14[%c0_32, %c16_33], %74 {strides = array<i32>} : memref<128x32xf32, #tpu.memory_space<vmem>>, vector<128x16xf32>,
    %c0_34 = arith.constant 0 : index
    %c1_35 = arith.constant 1 : index
    %76 = vector.load %arg12[%c0_34, %c1_35] : memref<128x2xf32, #tpu.memory_space<vmem>>, vector<128x1xf32>
    tpu.vector_store %arg12[%c0_34, %c1_35], %55 {strides = array<i32>} : memref<128x2xf32, #tpu.memory_space<vmem>>, vector<128x1xf32>,
    %c1_i32 = arith.constant 1 : i32
    %77 = arith.cmpi eq, %arg1, %c1_i32 : i32
    %78 = arith.extui %77 : i1 to i32
    %c0_i32_36 = arith.constant 0 : i32
    %79 = arith.cmpi ne, %78, %c0_i32_36 : i32
    scf.if %79 {
      %c0_37 = arith.constant 0 : index
      %c0_38 = arith.constant 0 : index
      %80 = vector.load %arg13[%c0_37, %c0_38] : memref<128x2xf32, #tpu.memory_space<vmem>>, vector<128x2xf32>
      %cst_39 = arith.constant 0.000000e+00 : f32
      %81 = vector.broadcast %cst_39 : f32 to vector<128x2xf32>
      %82 = arith.cmpf ogt, %80, %81 : vector<128x2xf32>
      %83 = tpu.reciprocal %80 {approx = true} : vector<128x2xf32> -> vector<128x2xf32>
      %cst_40 = arith.constant 0.000000e+00 : f32
      %84 = vector.broadcast %cst_40 : f32 to vector<128x2xf32>
      %85 = arith.select %82, %83, %84 : vector<128x2xi1>, vector<128x2xf32>
      %c0_41 = arith.constant 0 : index
      %c0_42 = arith.constant 0 : index
      %86 = vector.load %arg14[%c0_41, %c0_42] : memref<128x32xf32, #tpu.memory_space<vmem>>, vector<128x16xf32>
      %87 = vector.extract_strided_slice %85 {offsets = [0, 0], sizes = [128, 1], strides = [1, 1]} : vector<128x2xf32> to vector<128x1xf32>
      %88 = vector.broadcast %87 : vector<128x1xf32> to vector<128x16xf32>
      %89 = arith.mulf %86, %88 : vector<128x16xf32>
      %c0_43 = arith.constant 0 : index
      %c16_44 = arith.constant 16 : index
      %90 = vector.load %arg14[%c0_43, %c16_44] : memref<128x32xf32, #tpu.memory_space<vmem>>, vector<128x16xf32>
      %91 = vector.extract_strided_slice %85 {offsets = [0, 1], sizes = [128, 1], strides = [1, 1]} : vector<128x2xf32> to vector<128x1xf32>
      %92 = vector.broadcast %91 : vector<128x1xf32> to vector<128x16xf32>
      %93 = arith.mulf %90, %92 : vector<128x16xf32>
      %94 = tpu.concatenate %89, %93 in 1 : vector<128x16xf32>, vector<128x16xf32> -> vector<128x32xf32>
      %c0_45 = arith.constant 0 : index
      %c0_46 = arith.constant 0 : index
      %95 = vector.load %arg7[%c0_45, %c0_46] : memref<32x32xf32, #tpu.memory_space<vmem>>, vector<32x32xf32>
      %cst_47 = arith.constant dense<0.000000e+00> : vector<128x32xf32>
      %96 = tpu.matmul %94, %95, %cst_47 {dimension_numbers = #tpu.dot_dimension_numbers<[1], [0], [0], [1], [0, 0, 1, 1], [], []>} : vector<128x32xf32>, vector<32x32xf32>, vector<128x32xf32> -> vector<128x32xf32>
      %c0_48 = arith.constant 0 : index
      %c0_49 = arith.constant 0 : index
      %97 = vector.load %arg8[%c0_48, %c0_49] : memref<1x32xf32, #tpu.memory_space<vmem>>, vector<1x32xf32>
      %98 = vector.broadcast %97 : vector<1x32xf32> to vector<128x32xf32>
      %99 = arith.addf %96, %98 : vector<128x32xf32>
      %cst_50 = arith.constant 0.000000e+00 : f32
      %100 = vector.broadcast %cst_50 : f32 to vector<128x32xf32>
      %101 = arith.maximumf %99, %100 : vector<128x32xf32>
      %c0_51 = arith.constant 0 : index
      %c0_52 = arith.constant 0 : index
      %102 = vector.load %arg9[%c0_51, %c0_52] : memref<32x32xf32, #tpu.memory_space<vmem>>, vector<32x32xf32>
      %cst_53 = arith.constant dense<0.000000e+00> : vector<128x32xf32>
      %103 = tpu.matmul %101, %102, %cst_53 {dimension_numbers = #tpu.dot_dimension_numbers<[1], [0], [0], [1], [0, 0, 1, 1], [], []>} : vector<128x32xf32>, vector<32x32xf32>, vector<128x32xf32> -> vector<128x32xf32>
      %c0_54 = arith.constant 0 : index
      %c0_55 = arith.constant 0 : index
      %104 = vector.load %arg10[%c0_54, %c0_55] : memref<1x32xf32, #tpu.memory_space<vmem>>, vector<1x32xf32>
      %105 = vector.broadcast %104 : vector<1x32xf32> to vector<128x32xf32>
      %106 = arith.addf %103, %105 : vector<128x32xf32>
      %cst_56 = arith.constant 0.000000e+00 : f32
      %107 = vector.broadcast %cst_56 : f32 to vector<128x32xf32>
      %108 = arith.maximumf %106, %107 : vector<128x32xf32>
      %c0_57 = arith.constant 0 : index
      %c0_58 = arith.constant 0 : index
      %109 = vector.load %arg5[%c0_57, %c0_58] : memref<128x32xf32, #tpu.memory_space<vmem>>, vector<128x32xf32>
      %110 = arith.addf %108, %109 : vector<128x32xf32>
      %cst_59 = arith.constant 0.000000e+00 : f32
      %111 = vector.broadcast %cst_59 : f32 to vector<128x96xf32>
      %112 = tpu.concatenate %110, %111 in 1 : vector<128x32xf32>, vector<128x96xf32> -> vector<128x128xf32>
      %c0_60 = arith.constant 0 : index
      %c0_61 = arith.constant 0 : index
      %113 = vector.load %arg11[%c0_60, %c0_61] : memref<128x128xf32, #tpu.memory_space<vmem>>, vector<128x128xf32>
      tpu.vector_store %arg11[%c0_60, %c0_61], %112 {strides = array<i32>} : memref<128x128xf32, #tpu.memory_space<vmem>>, vector<128x128xf32>,
    } else {
    }
    return
  }
  func.func @transform_0(%arg0: i32, %arg1: i32) -> (i32, i32) {
    %c0_i32 = arith.constant 0 : i32
    return %arg0, %arg1 : i32, i32
  }
  func.func @transform_1(%arg0: i32, %arg1: i32) -> (i32, i32) {
    %c0_i32 = arith.constant 0 : i32
    %c0_i32_0 = arith.constant 0 : i32
    return %arg0, %c0_i32 : i32, i32
  }
  func.func @transform_2(%arg0: i32, %arg1: i32) -> (i32, i32) {
    %c0_i32 = arith.constant 0 : i32
    %c0_i32_0 = arith.constant 0 : i32
    return %c0_i32, %arg1 : i32, i32
  }
  func.func @transform_3(%arg0: i32, %arg1: i32) -> (i32, i32) {
    %c0_i32 = arith.constant 0 : i32
    %c0_i32_0 = arith.constant 0 : i32
    return %arg0, %c0_i32 : i32, i32
  }
  func.func @transform_4(%arg0: i32, %arg1: i32) -> (i32, i32) {
    %c0_i32 = arith.constant 0 : i32
    %c0_i32_0 = arith.constant 0 : i32
    %c0_i32_1 = arith.constant 0 : i32
    return %c0_i32, %c0_i32_0 : i32, i32
  }
  func.func @transform_5(%arg0: i32, %arg1: i32) -> (i32, i32) {
    %c0_i32 = arith.constant 0 : i32
    %c0_i32_0 = arith.constant 0 : i32
    %c0_i32_1 = arith.constant 0 : i32
    return %c0_i32, %c0_i32_0 : i32, i32
  }
  func.func @transform_6(%arg0: i32, %arg1: i32) -> (i32, i32) {
    %c0_i32 = arith.constant 0 : i32
    %c0_i32_0 = arith.constant 0 : i32
    %c0_i32_1 = arith.constant 0 : i32
    return %c0_i32, %c0_i32_0 : i32, i32
  }
  func.func @transform_7(%arg0: i32, %arg1: i32) -> (i32, i32) {
    %c0_i32 = arith.constant 0 : i32
    %c0_i32_0 = arith.constant 0 : i32
    %c0_i32_1 = arith.constant 0 : i32
    return %c0_i32, %c0_i32_0 : i32, i32
  }
  func.func @transform_8(%arg0: i32, %arg1: i32) -> (i32, i32) {
    %c0_i32 = arith.constant 0 : i32
    %c0_i32_0 = arith.constant 0 : i32
    %c0_i32_1 = arith.constant 0 : i32
    return %c0_i32, %c0_i32_0 : i32, i32
  }
  func.func @transform_9(%arg0: i32, %arg1: i32) -> (i32, i32) {
    %c0_i32 = arith.constant 0 : i32
    %c0_i32_0 = arith.constant 0 : i32
    return %arg0, %c0_i32 : i32, i32
  }
}

module attributes {stable_mosaic.version = 11 : i64} {
  func.func @gat_kernel(%arg0: i32, %arg1: i32, %arg2: memref<128x128xi8, #tpu.memory_space<vmem>>, %arg3: memref<128x2xf32, #tpu.memory_space<vmem>>, %arg4: memref<2x128xf32, #tpu.memory_space<vmem>>, %arg5: memref<128x32xf32, #tpu.memory_space<vmem>>, %arg6: memref<256x32xbf16, #tpu.memory_space<vmem>>, %arg7: memref<32x32xf32, #tpu.memory_space<vmem>>, %arg8: memref<1x32xf32, #tpu.memory_space<vmem>>, %arg9: memref<32x32xf32, #tpu.memory_space<vmem>>, %arg10: memref<1x32xf32, #tpu.memory_space<vmem>>, %arg11: memref<128x128xf32, #tpu.memory_space<vmem>>, %arg12: memref<128x2xf32, #tpu.memory_space<vmem>>, %arg13: memref<128x2xf32, #tpu.memory_space<vmem>>, %arg14: memref<128x32xf32, #tpu.memory_space<vmem>>) attributes {dimension_semantics = [#tpu.dimension_semantics<parallel>, #tpu.dimension_semantics<arbitrary>], iteration_bounds = array<i64: 2, 2>, scalar_prefetch = 0 : i64, scratch_operands = 3 : i64, tpu.core_type = #tpu.core_type<tc>, window_params = [{transform_indices = @transform_0, window_bounds = array<i64: 128, 128>}, {transform_indices = @transform_1, window_bounds = array<i64: 128, 2>}, {transform_indices = @transform_2, window_bounds = array<i64: 2, 128>}, {transform_indices = @transform_3, window_bounds = array<i64: 128, 32>}, {pipeline_mode = #tpu.pipeline_mode<synchronous>, transform_indices = @transform_4, window_bounds = array<i64: 256, 32>}, {pipeline_mode = #tpu.pipeline_mode<synchronous>, transform_indices = @transform_5, window_bounds = array<i64: 32, 32>}, {pipeline_mode = #tpu.pipeline_mode<synchronous>, transform_indices = @transform_6, window_bounds = array<i64: 1, 32>}, {pipeline_mode = #tpu.pipeline_mode<synchronous>, transform_indices = @transform_7, window_bounds = array<i64: 32, 32>}, {pipeline_mode = #tpu.pipeline_mode<synchronous>, transform_indices = @transform_8, window_bounds = array<i64: 1, 32>}, {transform_indices = @transform_9, window_bounds = array<i64: 128, 128>}]} {
    %c0_i32 = arith.constant 0 : i32
    %0 = arith.cmpi eq, %arg1, %c0_i32 : i32
    %1 = arith.extui %0 : i1 to i32
    %c0_i32_0 = arith.constant 0 : i32
    %2 = arith.cmpi ne, %1, %c0_i32_0 : i32
    scf.if %2 {
      %cst_37 = arith.constant -1.000000e+30 : f32
      %80 = vector.broadcast %cst_37 : f32 to vector<128x2xf32>
      %c0_38 = arith.constant 0 : index
      %c0_39 = arith.constant 0 : index
      %81 = vector.load %arg12[%c0_38, %c0_39] : memref<128x2xf32, #tpu.memory_space<vmem>>, vector<128x2xf32>
      tpu.vector_store %arg12[%c0_38, %c0_39], %80 {strides = array<i32>} : memref<128x2xf32, #tpu.memory_space<vmem>>, vector<128x2xf32>,
      %cst_40 = arith.constant 0.000000e+00 : f32
      %82 = vector.broadcast %cst_40 : f32 to vector<128x2xf32>
      %c0_41 = arith.constant 0 : index
      %c0_42 = arith.constant 0 : index
      %83 = vector.load %arg13[%c0_41, %c0_42] : memref<128x2xf32, #tpu.memory_space<vmem>>, vector<128x2xf32>
      tpu.vector_store %arg13[%c0_41, %c0_42], %82 {strides = array<i32>} : memref<128x2xf32, #tpu.memory_space<vmem>>, vector<128x2xf32>,
      %cst_43 = arith.constant 0.000000e+00 : f32
      %84 = vector.broadcast %cst_43 : f32 to vector<128x32xf32>
      %c0_44 = arith.constant 0 : index
      %c0_45 = arith.constant 0 : index
      %85 = vector.load %arg14[%c0_44, %c0_45] : memref<128x32xf32, #tpu.memory_space<vmem>>, vector<128x32xf32>
      tpu.vector_store %arg14[%c0_44, %c0_45], %84 {strides = array<i32>} : memref<128x32xf32, #tpu.memory_space<vmem>>, vector<128x32xf32>,
    } else {
    }
    %c0 = arith.constant 0 : index
    %c0_1 = arith.constant 0 : index
    %3 = vector.load %arg2[%c0, %c0_1] : memref<128x128xi8, #tpu.memory_space<vmem>>, vector<128x128xi8>
    %4 = arith.sitofp %3 : vector<128x128xi8> to vector<128x128xf32>
    %c0_2 = arith.constant 0 : index
    %c0_3 = arith.constant 0 : index
    %5 = vector.load %arg3[%c0_2, %c0_3] : memref<128x2xf32, #tpu.memory_space<vmem>>, vector<128x2xf32>
    %c0_4 = arith.constant 0 : index
    %c0_5 = arith.constant 0 : index
    %6 = vector.load %arg4[%c0_4, %c0_5] : memref<2x128xf32, #tpu.memory_space<vmem>>, vector<2x128xf32>
    %c128_i32 = arith.constant 128 : i32
    %7 = arith.muli %arg1, %c128_i32 : i32
    %8 = tpu.assume_multiple %7, 128 : i32
    %9 = arith.index_cast %8 : i32 to index
    %c0_6 = arith.constant 0 : index
    %10 = vector.load %arg6[%9, %c0_6] : memref<256x32xbf16, #tpu.memory_space<vmem>>, vector<128x32xbf16>
    %11 = vector.extract_strided_slice %5 {offsets = [0, 0], sizes = [128, 1], strides = [1, 1]} : vector<128x2xf32> to vector<128x1xf32>
    %12 = vector.extract_strided_slice %6 {offsets = [0, 0], sizes = [1, 128], strides = [1, 1]} : vector<2x128xf32> to vector<1x128xf32>
    %13 = vector.broadcast %11 : vector<128x1xf32> to vector<128x128xf32>
    %14 = vector.broadcast %12 : vector<1x128xf32> to vector<128x128xf32>
    %15 = arith.addf %13, %14 : vector<128x128xf32>
    %cst = arith.constant 2.000000e-01 : f32
    %16 = vector.broadcast %cst : f32 to vector<128x128xf32>
    %17 = arith.mulf %16, %15 : vector<128x128xf32>
    %18 = arith.maximumf %15, %17 : vector<128x128xf32>
    %c0_7 = arith.constant 0 : index
    %c0_8 = arith.constant 0 : index
    %19 = vector.load %arg12[%c0_7, %c0_8] : memref<128x2xf32, #tpu.memory_space<vmem>>, vector<128x1xf32>
    %cst_9 = arith.constant dense<0xFF800000> : vector<128xf32>
    %20 = vector.multi_reduction <maximumf>, %18, %cst_9 [1] : vector<128x128xf32> to vector<128xf32>
    %21 = vector.shape_cast %20 : vector<128xf32> to vector<128x1xf32>
    %22 = arith.maximumf %19, %21 : vector<128x1xf32>
    %23 = arith.subf %19, %22 : vector<128x1xf32>
    %24 = math.exp %23 : vector<128x1xf32>
    %25 = vector.broadcast %22 : vector<128x1xf32> to vector<128x128xf32>
    %26 = arith.subf %18, %25 : vector<128x128xf32>
    %27 = math.exp %26 : vector<128x128xf32>
    %28 = arith.mulf %27, %4 : vector<128x128xf32>
    %c0_10 = arith.constant 0 : index
    %c0_11 = arith.constant 0 : index
    %29 = vector.load %arg13[%c0_10, %c0_11] : memref<128x2xf32, #tpu.memory_space<vmem>>, vector<128x1xf32>
    %30 = arith.mulf %24, %29 : vector<128x1xf32>
    %cst_12 = arith.constant dense<0.000000e+00> : vector<128xf32>
    %31 = vector.multi_reduction <add>, %28, %cst_12 [1] : vector<128x128xf32> to vector<128xf32>
    %32 = vector.shape_cast %31 : vector<128xf32> to vector<128x1xf32>
    %33 = arith.addf %30, %32 : vector<128x1xf32>
    %c0_13 = arith.constant 0 : index
    %c0_14 = arith.constant 0 : index
    %34 = vector.load %arg13[%c0_13, %c0_14] : memref<128x2xf32, #tpu.memory_space<vmem>>, vector<128x1xf32>
    tpu.vector_store %arg13[%c0_13, %c0_14], %33 {strides = array<i32>} : memref<128x2xf32, #tpu.memory_space<vmem>>, vector<128x1xf32>,
    %35 = arith.truncf %28 : vector<128x128xf32> to vector<128x128xbf16>
    %36 = vector.extract_strided_slice %10 {offsets = [0, 0], sizes = [128, 16], strides = [1, 1]} : vector<128x32xbf16> to vector<128x16xbf16>
    %cst_15 = arith.constant dense<0.000000e+00> : vector<128x16xf32>
    %37 = tpu.matmul %35, %36, %cst_15 {dimension_numbers = #tpu.dot_dimension_numbers<[1], [0], [0], [1], [0, 0, 1, 1], [], []>} : vector<128x128xbf16>, vector<128x16xbf16>, vector<128x16xf32> -> vector<128x16xf32>
    %c0_16 = arith.constant 0 : index
    %c0_17 = arith.constant 0 : index
    %38 = vector.load %arg14[%c0_16, %c0_17] : memref<128x32xf32, #tpu.memory_space<vmem>>, vector<128x16xf32>
    %39 = vector.broadcast %24 : vector<128x1xf32> to vector<128x16xf32>
    %40 = arith.mulf %39, %38 : vector<128x16xf32>
    %41 = arith.addf %40, %37 : vector<128x16xf32>
    %c0_18 = arith.constant 0 : index
    %c0_19 = arith.constant 0 : index
    %42 = vector.load %arg14[%c0_18, %c0_19] : memref<128x32xf32, #tpu.memory_space<vmem>>, vector<128x16xf32>
    tpu.vector_store %arg14[%c0_18, %c0_19], %41 {strides = array<i32>} : memref<128x32xf32, #tpu.memory_space<vmem>>, vector<128x16xf32>,
    %c0_20 = arith.constant 0 : index
    %c0_21 = arith.constant 0 : index
    %43 = vector.load %arg12[%c0_20, %c0_21] : memref<128x2xf32, #tpu.memory_space<vmem>>, vector<128x1xf32>
    tpu.vector_store %arg12[%c0_20, %c0_21], %22 {strides = array<i32>} : memref<128x2xf32, #tpu.memory_space<vmem>>, vector<128x1xf32>,
    %44 = vector.extract_strided_slice %5 {offsets = [0, 1], sizes = [128, 1], strides = [1, 1]} : vector<128x2xf32> to vector<128x1xf32>
    %45 = vector.extract_strided_slice %6 {offsets = [1, 0], sizes = [1, 128], strides = [1, 1]} : vector<2x128xf32> to vector<1x128xf32>
    %46 = vector.broadcast %44 : vector<128x1xf32> to vector<128x128xf32>
    %47 = vector.broadcast %45 : vector<1x128xf32> to vector<128x128xf32>
    %48 = arith.addf %46, %47 : vector<128x128xf32>
    %cst_22 = arith.constant 2.000000e-01 : f32
    %49 = vector.broadcast %cst_22 : f32 to vector<128x128xf32>
    %50 = arith.mulf %49, %48 : vector<128x128xf32>
    %51 = arith.maximumf %48, %50 : vector<128x128xf32>
    %c0_23 = arith.constant 0 : index
    %c1 = arith.constant 1 : index
    %52 = vector.load %arg12[%c0_23, %c1] : memref<128x2xf32, #tpu.memory_space<vmem>>, vector<128x1xf32>
    %cst_24 = arith.constant dense<0xFF800000> : vector<128xf32>
    %53 = vector.multi_reduction <maximumf>, %51, %cst_24 [1] : vector<128x128xf32> to vector<128xf32>
    %54 = vector.shape_cast %53 : vector<128xf32> to vector<128x1xf32>
    %55 = arith.maximumf %52, %54 : vector<128x1xf32>
    %56 = arith.subf %52, %55 : vector<128x1xf32>
    %57 = math.exp %56 : vector<128x1xf32>
    %58 = vector.broadcast %55 : vector<128x1xf32> to vector<128x128xf32>
    %59 = arith.subf %51, %58 : vector<128x128xf32>
    %60 = math.exp %59 : vector<128x128xf32>
    %61 = arith.mulf %60, %4 : vector<128x128xf32>
    %c0_25 = arith.constant 0 : index
    %c1_26 = arith.constant 1 : index
    %62 = vector.load %arg13[%c0_25, %c1_26] : memref<128x2xf32, #tpu.memory_space<vmem>>, vector<128x1xf32>
    %63 = arith.mulf %57, %62 : vector<128x1xf32>
    %cst_27 = arith.constant dense<0.000000e+00> : vector<128xf32>
    %64 = vector.multi_reduction <add>, %61, %cst_27 [1] : vector<128x128xf32> to vector<128xf32>
    %65 = vector.shape_cast %64 : vector<128xf32> to vector<128x1xf32>
    %66 = arith.addf %63, %65 : vector<128x1xf32>
    %c0_28 = arith.constant 0 : index
    %c1_29 = arith.constant 1 : index
    %67 = vector.load %arg13[%c0_28, %c1_29] : memref<128x2xf32, #tpu.memory_space<vmem>>, vector<128x1xf32>
    tpu.vector_store %arg13[%c0_28, %c1_29], %66 {strides = array<i32>} : memref<128x2xf32, #tpu.memory_space<vmem>>, vector<128x1xf32>,
    %68 = arith.truncf %61 : vector<128x128xf32> to vector<128x128xbf16>
    %69 = vector.extract_strided_slice %10 {offsets = [0, 16], sizes = [128, 16], strides = [1, 1]} : vector<128x32xbf16> to vector<128x16xbf16>
    %cst_30 = arith.constant dense<0.000000e+00> : vector<128x16xf32>
    %70 = tpu.matmul %68, %69, %cst_30 {dimension_numbers = #tpu.dot_dimension_numbers<[1], [0], [0], [1], [0, 0, 1, 1], [], []>} : vector<128x128xbf16>, vector<128x16xbf16>, vector<128x16xf32> -> vector<128x16xf32>
    %c0_31 = arith.constant 0 : index
    %c16 = arith.constant 16 : index
    %71 = vector.load %arg14[%c0_31, %c16] : memref<128x32xf32, #tpu.memory_space<vmem>>, vector<128x16xf32>
    %72 = vector.broadcast %57 : vector<128x1xf32> to vector<128x16xf32>
    %73 = arith.mulf %72, %71 : vector<128x16xf32>
    %74 = arith.addf %73, %70 : vector<128x16xf32>
    %c0_32 = arith.constant 0 : index
    %c16_33 = arith.constant 16 : index
    %75 = vector.load %arg14[%c0_32, %c16_33] : memref<128x32xf32, #tpu.memory_space<vmem>>, vector<128x16xf32>
    tpu.vector_store %arg14[%c0_32, %c16_33], %74 {strides = array<i32>} : memref<128x32xf32, #tpu.memory_space<vmem>>, vector<128x16xf32>,
    %c0_34 = arith.constant 0 : index
    %c1_35 = arith.constant 1 : index
    %76 = vector.load %arg12[%c0_34, %c1_35] : memref<128x2xf32, #tpu.memory_space<vmem>>, vector<128x1xf32>
    tpu.vector_store %arg12[%c0_34, %c1_35], %55 {strides = array<i32>} : memref<128x2xf32, #tpu.memory_space<vmem>>, vector<128x1xf32>,
    %c1_i32 = arith.constant 1 : i32
    %77 = arith.cmpi eq, %arg1, %c1_i32 : i32
    %78 = arith.extui %77 : i1 to i32
    %c0_i32_36 = arith.constant 0 : i32
    %79 = arith.cmpi ne, %78, %c0_i32_36 : i32
    scf.if %79 {
      %c0_37 = arith.constant 0 : index
      %c0_38 = arith.constant 0 : index
      %80 = vector.load %arg13[%c0_37, %c0_38] : memref<128x2xf32, #tpu.memory_space<vmem>>, vector<128x2xf32>
      %cst_39 = arith.constant 0.000000e+00 : f32
      %81 = vector.broadcast %cst_39 : f32 to vector<128x2xf32>
      %82 = arith.cmpf ogt, %80, %81 : vector<128x2xf32>
      %83 = tpu.reciprocal %80 {approx = true} : vector<128x2xf32> -> vector<128x2xf32>
      %cst_40 = arith.constant 0.000000e+00 : f32
      %84 = vector.broadcast %cst_40 : f32 to vector<128x2xf32>
      %85 = arith.select %82, %83, %84 : vector<128x2xi1>, vector<128x2xf32>
      %c0_41 = arith.constant 0 : index
      %c0_42 = arith.constant 0 : index
      %86 = vector.load %arg14[%c0_41, %c0_42] : memref<128x32xf32, #tpu.memory_space<vmem>>, vector<128x16xf32>
      %87 = vector.extract_strided_slice %85 {offsets = [0, 0], sizes = [128, 1], strides = [1, 1]} : vector<128x2xf32> to vector<128x1xf32>
      %88 = vector.broadcast %87 : vector<128x1xf32> to vector<128x16xf32>
      %89 = arith.mulf %86, %88 : vector<128x16xf32>
      %c0_43 = arith.constant 0 : index
      %c16_44 = arith.constant 16 : index
      %90 = vector.load %arg14[%c0_43, %c16_44] : memref<128x32xf32, #tpu.memory_space<vmem>>, vector<128x16xf32>
      %91 = vector.extract_strided_slice %85 {offsets = [0, 1], sizes = [128, 1], strides = [1, 1]} : vector<128x2xf32> to vector<128x1xf32>
      %92 = vector.broadcast %91 : vector<128x1xf32> to vector<128x16xf32>
      %93 = arith.mulf %90, %92 : vector<128x16xf32>
      %94 = tpu.concatenate %89, %93 in 1 : vector<128x16xf32>, vector<128x16xf32> -> vector<128x32xf32>
      %c0_45 = arith.constant 0 : index
      %c0_46 = arith.constant 0 : index
      %95 = vector.load %arg7[%c0_45, %c0_46] : memref<32x32xf32, #tpu.memory_space<vmem>>, vector<32x32xf32>
      %cst_47 = arith.constant dense<0.000000e+00> : vector<128x32xf32>
      %96 = tpu.matmul %94, %95, %cst_47 {dimension_numbers = #tpu.dot_dimension_numbers<[1], [0], [0], [1], [0, 0, 1, 1], [], []>} : vector<128x32xf32>, vector<32x32xf32>, vector<128x32xf32> -> vector<128x32xf32>
      %c0_48 = arith.constant 0 : index
      %c0_49 = arith.constant 0 : index
      %97 = vector.load %arg8[%c0_48, %c0_49] : memref<1x32xf32, #tpu.memory_space<vmem>>, vector<1x32xf32>
      %98 = vector.broadcast %97 : vector<1x32xf32> to vector<128x32xf32>
      %99 = arith.addf %96, %98 : vector<128x32xf32>
      %cst_50 = arith.constant 0.000000e+00 : f32
      %100 = vector.broadcast %cst_50 : f32 to vector<128x32xf32>
      %101 = arith.maximumf %99, %100 : vector<128x32xf32>
      %c0_51 = arith.constant 0 : index
      %c0_52 = arith.constant 0 : index
      %102 = vector.load %arg9[%c0_51, %c0_52] : memref<32x32xf32, #tpu.memory_space<vmem>>, vector<32x32xf32>
      %cst_53 = arith.constant dense<0.000000e+00> : vector<128x32xf32>
      %103 = tpu.matmul %101, %102, %cst_53 {dimension_numbers = #tpu.dot_dimension_numbers<[1], [0], [0], [1], [0, 0, 1, 1], [], []>} : vector<128x32xf32>, vector<32x32xf32>, vector<128x32xf32> -> vector<128x32xf32>
      %c0_54 = arith.constant 0 : index
      %c0_55 = arith.constant 0 : index
      %104 = vector.load %arg10[%c0_54, %c0_55] : memref<1x32xf32, #tpu.memory_space<vmem>>, vector<1x32xf32>
      %105 = vector.broadcast %104 : vector<1x32xf32> to vector<128x32xf32>
      %106 = arith.addf %103, %105 : vector<128x32xf32>
      %cst_56 = arith.constant 0.000000e+00 : f32
      %107 = vector.broadcast %cst_56 : f32 to vector<128x32xf32>
      %108 = arith.maximumf %106, %107 : vector<128x32xf32>
      %c0_57 = arith.constant 0 : index
      %c0_58 = arith.constant 0 : index
      %109 = vector.load %arg5[%c0_57, %c0_58] : memref<128x32xf32, #tpu.memory_space<vmem>>, vector<128x32xf32>
      %110 = arith.addf %108, %109 : vector<128x32xf32>
      %cst_59 = arith.constant 0.000000e+00 : f32
      %111 = vector.broadcast %cst_59 : f32 to vector<128x96xf32>
      %112 = tpu.concatenate %110, %111 in 1 : vector<128x32xf32>, vector<128x96xf32> -> vector<128x128xf32>
      %c0_60 = arith.constant 0 : index
      %c0_61 = arith.constant 0 : index
      %113 = vector.load %arg11[%c0_60, %c0_61] : memref<128x128xf32, #tpu.memory_space<vmem>>, vector<128x128xf32>
      tpu.vector_store %arg11[%c0_60, %c0_61], %112 {strides = array<i32>} : memref<128x128xf32, #tpu.memory_space<vmem>>, vector<128x128xf32>,
    } else {
    }
    return
  }
  func.func @transform_0(%arg0: i32, %arg1: i32) -> (i32, i32) {
    %c0_i32 = arith.constant 0 : i32
    return %arg0, %arg1 : i32, i32
  }
  func.func @transform_1(%arg0: i32, %arg1: i32) -> (i32, i32) {
    %c0_i32 = arith.constant 0 : i32
    %c0_i32_0 = arith.constant 0 : i32
    return %arg0, %c0_i32 : i32, i32
  }
  func.func @transform_2(%arg0: i32, %arg1: i32) -> (i32, i32) {
    %c0_i32 = arith.constant 0 : i32
    %c0_i32_0 = arith.constant 0 : i32
    return %c0_i32, %arg1 : i32, i32
  }
  func.func @transform_3(%arg0: i32, %arg1: i32) -> (i32, i32) {
    %c0_i32 = arith.constant 0 : i32
    %c0_i32_0 = arith.constant 0 : i32
    return %arg0, %c0_i32 : i32, i32
  }
  func.func @transform_4(%arg0: i32, %arg1: i32) -> (i32, i32) {
    %c0_i32 = arith.constant 0 : i32
    %c0_i32_0 = arith.constant 0 : i32
    %c0_i32_1 = arith.constant 0 : i32
    return %c0_i32, %c0_i32_0 : i32, i32
  }
  func.func @transform_5(%arg0: i32, %arg1: i32) -> (i32, i32) {
    %c0_i32 = arith.constant 0 : i32
    %c0_i32_0 = arith.constant 0 : i32
    %c0_i32_1 = arith.constant 0 : i32
    return %c0_i32, %c0_i32_0 : i32, i32
  }
  func.func @transform_6(%arg0: i32, %arg1: i32) -> (i32, i32) {
    %c0_i32 = arith.constant 0 : i32
    %c0_i32_0 = arith.constant 0 : i32
    %c0_i32_1 = arith.constant 0 : i32
    return %c0_i32, %c0_i32_0 : i32, i32
  }
  func.func @transform_7(%arg0: i32, %arg1: i32) -> (i32, i32) {
    %c0_i32 = arith.constant 0 : i32
    %c0_i32_0 = arith.constant 0 : i32
    %c0_i32_1 = arith.constant 0 : i32
    return %c0_i32, %c0_i32_0 : i32, i32
  }
  func.func @transform_8(%arg0: i32, %arg1: i32) -> (i32, i32) {
    %c0_i32 = arith.constant 0 : i32
    %c0_i32_0 = arith.constant 0 : i32
    %c0_i32_1 = arith.constant 0 : i32
    return %c0_i32, %c0_i32_0 : i32, i32
  }
  func.func @transform_9(%arg0: i32, %arg1: i32) -> (i32, i32) {
    %c0_i32 = arith.constant 0 : i32
    %c0_i32_0 = arith.constant 0 : i32
    return %arg0, %c0_i32 : i32, i32
  }
}

</mosaic_0001>

<llo_original>
// kernel: tpu_custom_call.1
$region0: #{tpu_custom_call.1}
  #allocation0 [shape = 'u32[]', space=smem, size = 0x4, offset = 0x4, fixed_abs, tag = 'smem constant byte address 0x4 - core index']
  #allocation1 [shape = 'u32[144,128]{1,0:T(1,128)}', space=vmem, size = 0x12000, scoped, tag = 'internal scratch']
  #allocation2 [shape = 'f32[128,2]{1,0:T(8,128)}', space=vmem, size = 0x10000, scoped, tag = 'scratch operand']
  #allocation3 [shape = 'f32[128,2]{1,0:T(8,128)}', space=vmem, size = 0x10000, scoped, tag = 'scratch operand']
  #allocation4 [shape = 'f32[128,32]{1,0:T(8,128)}', space=vmem, size = 0x10000, scoped, tag = 'scratch operand']
  %s0 = inlined_call_operand.vmem [shape: s8[256,256], index: 0, kind: input, shape index: {}]
  %s1 = inlined_call_operand.vmem [shape: f32[256,2], index: 1, kind: input, shape index: {}]
  %s2 = inlined_call_operand.vmem [shape: f32[2,256], index: 2, kind: input, shape index: {}]
  %s3 = inlined_call_operand.vmem [shape: f32[256,32], index: 3, kind: input, shape index: {}]
  %s4 = inlined_call_operand.vmem [shape: bf16[256,32], index: 4, kind: input, shape index: {}]
  %s5 = inlined_call_operand.vmem [shape: f32[32,32], index: 5, kind: input, shape index: {}]
  %s6 = inlined_call_operand.vmem [shape: f32[1,32], index: 6, kind: input, shape index: {}]
  %s7 = inlined_call_operand.vmem [shape: f32[32,32], index: 7, kind: input, shape index: {}]
  %s8 = inlined_call_operand.vmem [shape: f32[1,32], index: 8, kind: input, shape index: {}]
  %s9 = inlined_call_operand.hbm [shape: f32[256,128], index: 9, kind: output, shape index: {}]
  %s10 = sld [smem:[#allocation0]]
  $region115: #{tpu_custom_call.1} parent=0
    _
  %s12 = ssub.s32 1, %s10
  %s13 = scalar_select 0, %s12, %s10
  $region1: #{tpu_custom_call.1} parent=0
    #allocation5 [shape = 'u8[32768]{0}', space=vmem, size = 0x8000, scoped, tag = 'input window, operand 0']
    #allocation6 [shape = 'u8[131072]{0}', space=vmem, size = 0x20000, scoped, tag = 'output window, operand 0']
    #allocation7 [shape = 's32[2]{0}', space=sflag, size = 0x8, scoped, tag = 'scoped memory for tpu_custom_call.1']
    %14 = vsyncpa [#allocation7], 0
    %s15 = scalar_lea.sflag [#allocation7], 1
    %16 = vsyncpa %s15, 0
    loop: start=0, step=1, limit=6
    $region2: #{tpu_custom_call.1} parent=1 // loop_pre_header
      _
    $region3: #{tpu_custom_call.1} parent=1 // loop_header
      %s18 = sphi 0, %s22
      %p19 = scmp.ge.s32.totalorder %s18, 6
      %s25 = sphi 0, %s37
      %s26 = sphi 0, %s33
      %s27 = sphi 0, %s25
      %s28 = sphi 0, %s26
      %s29 = sphi 0, %s27
      %s30 = sphi 0, %s28
      %s42 = sphi 0, %s44
      %s45 = sphi 0, %s42
      %s46 = sphi 0, %s45
      %s62 = sphi 0, %s46
      %s68 = sphi 0, %s70
      %s71 = sphi 0, %s68
      %s72 = sphi 0, %s71
      %s88 = sphi 0, %s72
      %s94 = sphi 0, %s96
      %s97 = sphi 0, %s94
      %s98 = sphi 0, %s97
      %s114 = sphi 0, %s98
      %s120 = sphi 0, %s122
      %s123 = sphi 0, %s120
      %s124 = sphi 0, %s123
      %s140 = sphi 0, %s124
      %s144 = sphi 0, %s144
      %s146 = sphi 0, %s144
      %s147 = sphi 0, %s146
      %s161 = sphi 0, %s147
      %s165 = sphi 0, %s165
      %s167 = sphi 0, %s165
      %s168 = sphi 0, %s167
      %s182 = sphi 0, %s168
      %s186 = sphi 0, %s186
      %s188 = sphi 0, %s186
      %s189 = sphi 0, %s188
      %s203 = sphi 0, %s189
      %s207 = sphi 0, %s207
      %s209 = sphi 0, %s207
      %s210 = sphi 0, %s209
      %s224 = sphi 0, %s210
      %s228 = sphi 0, %s228
      %s230 = sphi 0, %s228
      %s231 = sphi 0, %s230
      %s245 = sphi 0, %s231
      %s251 = sphi 0, %s253
      %s254 = sphi 0, %s251
      %s255 = sphi 0, %s254
      %s271 = sphi 0, %s255
    $region4: #{tpu_custom_call.1} parent=1 // loop_header_branch
      %21 = sbr.rel (%p19) target = $region8
    $region5: #{tpu_custom_call.1} parent=1 // loop_body
      %s23 = ssub.s32 %s18, 1
      %s24 = ssub.s32 %s18, 2
      %s31 = sadd.s32 1, %s26
      %p32 = scmp.ge.s32.totalorder %s31, 2
      %s33 = scalar_select %p32, 0, %s31
      %s34 = sadd.s32 1, %s25
      %s35 = scalar_select %p32, %s34, %s25
      %p36 = scmp.ge.s32.totalorder %s35, 2
      %s37 = scalar_select %p36, 0, %s35
      %s38 = ssub.s32 %s25, %s37
      %s39 = ssub.s32 %s26, %s33
      %s40 = sor.u32 %s38, %s39
      %p41 = scmp.eq.s32.totalorder %s40, 0
      %s43 = sadd.s32 %s42, 1
      %s44 = scalar_select %p41, %s42, %s43
      %p47 = pneg %p41
      %p48 = scmp.eq.s32.totalorder %s18, 3
      %p49 = por %p47, %p48
      %p50 = scmp.ne.s32.totalorder %s42, %s45
      %p51 = scmp.eq.s32.totalorder %s18, 0
      %p52 = por %p50, %p51
      %p53 = scmp.ne.s32.totalorder %s42, %s45
      %p54 = scmp.eq.s32.totalorder %s23, 3
      %p55 = por %p53, %p54
      %p56 = scmp.ne.s32.totalorder %s45, %s46
      %p57 = scmp.eq.s32.totalorder %s23, 0
      %p58 = por %p56, %p57
      %p59 = scmp.ne.s32.totalorder %s45, %s46
      %p60 = scmp.eq.s32.totalorder %s24, 3
      %p61 = por %p59, %p60
      %p63 = scmp.ne.s32.totalorder %s46, %s62
      %p64 = scmp.eq.s32.totalorder %s24, 0
      %p65 = por %p63, %p64
      %s66 = ssub.s32 %s25, %s37
      %p67 = scmp.eq.s32.totalorder %s66, 0
      %s69 = sadd.s32 %s68, 1
      %s70 = scalar_select %p67, %s68, %s69
      %p73 = pneg %p67
      %p74 = scmp.eq.s32.totalorder %s18, 3
      %p75 = por %p73, %p74
      %p76 = scmp.ne.s32.totalorder %s68, %s71
      %p77 = scmp.eq.s32.totalorder %s18, 0
      %p78 = por %p76, %p77
      %p79 = scmp.ne.s32.totalorder %s68, %s71
      %p80 = scmp.eq.s32.totalorder %s23, 3
      %p81 = por %p79, %p80
      %p82 = scmp.ne.s32.totalorder %s71, %s72
      %p83 = scmp.eq.s32.totalorder %s23, 0
      %p84 = por %p82, %p83
      %p85 = scmp.ne.s32.totalorder %s71, %s72
      %p86 = scmp.eq.s32.totalorder %s24, 3
      %p87 = por %p85, %p86
      %p89 = scmp.ne.s32.totalorder %s72, %s88
      %p90 = scmp.eq.s32.totalorder %s24, 0
      %p91 = por %p89, %p90
      %s92 = ssub.s32 %s26, %s33
      %p93 = scmp.eq.s32.totalorder %s92, 0
      %s95 = sadd.s32 %s94, 1
      %s96 = scalar_select %p93, %s94, %s95
      %p99 = pneg %p93
      %p100 = scmp.eq.s32.totalorder %s18, 3
      %p101 = por %p99, %p100
      %p102 = scmp.ne.s32.totalorder %s94, %s97
      %p103 = scmp.eq.s32.totalorder %s18, 0
      %p104 = por %p102, %p103
      %p105 = scmp.ne.s32.totalorder %s94, %s97
      %p106 = scmp.eq.s32.totalorder %s23, 3
      %p107 = por %p105, %p106
      %p108 = scmp.ne.s32.totalorder %s97, %s98
      %p109 = scmp.eq.s32.totalorder %s23, 0
      %p110 = por %p108, %p109
      %p111 = scmp.ne.s32.totalorder %s97, %s98
      %p112 = scmp.eq.s32.totalorder %s24, 3
      %p113 = por %p111, %p112
      %p115 = scmp.ne.s32.totalorder %s98, %s114
      %p116 = scmp.eq.s32.totalorder %s24, 0
      %p117 = por %p115, %p116
      %s118 = ssub.s32 %s25, %s37
      %p119 = scmp.eq.s32.totalorder %s118, 0
      %s121 = sadd.s32 %s120, 1
      %s122 = scalar_select %p119, %s120, %s121
      %p125 = pneg %p119
      %p126 = scmp.eq.s32.totalorder %s18, 3
      %p127 = por %p125, %p126
      %p128 = scmp.ne.s32.totalorder %s120, %s123
      %p129 = scmp.eq.s32.totalorder %s18, 0
      %p130 = por %p128, %p129
      %p131 = scmp.ne.s32.totalorder %s120, %s123
      %p132 = scmp.eq.s32.totalorder %s23, 3
      %p133 = por %p131, %p132
      %p134 = scmp.ne.s32.totalorder %s123, %s124
      %p135 = scmp.eq.s32.totalorder %s23, 0
      %p136 = por %p134, %p135
      %p137 = scmp.ne.s32.totalorder %s123, %s124
      %p138 = scmp.eq.s32.totalorder %s24, 3
      %p139 = por %p137, %p138
      %p141 = scmp.ne.s32.totalorder %s124, %s140
      %p142 = scmp.eq.s32.totalorder %s24, 0
      %p143 = por %p141, %p142
      %s145 = sadd.s32 %s144, 1
      %p148 = scmp.eq.s32.totalorder %s18, 3
      %p149 = scmp.ne.s32.totalorder %s144, %s146
      %p150 = scmp.eq.s32.totalorder %s18, 0
      %p151 = por %p149, %p150
      %p152 = scmp.ne.s32.totalorder %s144, %s146
      %p153 = scmp.eq.s32.totalorder %s23, 3
      %p154 = por %p152, %p153
      %p155 = scmp.ne.s32.totalorder %s146, %s147
      %p156 = scmp.eq.s32.totalorder %s23, 0
      %p157 = por %p155, %p156
      %p158 = scmp.ne.s32.totalorder %s146, %s147
      %p159 = scmp.eq.s32.totalorder %s24, 3
      %p160 = por %p158, %p159
      %p162 = scmp.ne.s32.totalorder %s147, %s161
      %p163 = scmp.eq.s32.totalorder %s24, 0
      %p164 = por %p162, %p163
      %s166 = sadd.s32 %s165, 1
      %p169 = scmp.eq.s32.totalorder %s18, 3
      %p170 = scmp.ne.s32.totalorder %s165, %s167
      %p171 = scmp.eq.s32.totalorder %s18, 0
      %p172 = por %p170, %p171
      %p173 = scmp.ne.s32.totalorder %s165, %s167
      %p174 = scmp.eq.s32.totalorder %s23, 3
      %p175 = por %p173, %p174
      %p176 = scmp.ne.s32.totalorder %s167, %s168
      %p177 = scmp.eq.s32.totalorder %s23, 0
      %p178 = por %p176, %p177
      %p179 = scmp.ne.s32.totalorder %s167, %s168
      %p180 = scmp.eq.s32.totalorder %s24, 3
      %p181 = por %p179, %p180
      %p183 = scmp.ne.s32.totalorder %s168, %s182
      %p184 = scmp.eq.s32.totalorder %s24, 0
      %p185 = por %p183, %p184
      %s187 = sadd.s32 %s186, 1
      %p190 = scmp.eq.s32.totalorder %s18, 3
      %p191 = scmp.ne.s32.totalorder %s186, %s188
      %p192 = scmp.eq.s32.totalorder %s18, 0
      %p193 = por %p191, %p192
      %p194 = scmp.ne.s32.totalorder %s186, %s188
      %p195 = scmp.eq.s32.totalorder %s23, 3
      %p196 = por %p194, %p195
      %p197 = scmp.ne.s32.totalorder %s188, %s189
      %p198 = scmp.eq.s32.totalorder %s23, 0
      %p199 = por %p197, %p198
      %p200 = scmp.ne.s32.totalorder %s188, %s189
      %p201 = scmp.eq.s32.totalorder %s24, 3
      %p202 = por %p200, %p201
      %p204 = scmp.ne.s32.totalorder %s189, %s203
      %p205 = scmp.eq.s32.totalorder %s24, 0
      %p206 = por %p204, %p205
      %s208 = sadd.s32 %s207, 1
      %p211 = scmp.eq.s32.totalorder %s18, 3
      %p212 = scmp.ne.s32.totalorder %s207, %s209
      %p213 = scmp.eq.s32.totalorder %s18, 0
      %p214 = por %p212, %p213
      %p215 = scmp.ne.s32.totalorder %s207, %s209
      %p216 = scmp.eq.s32.totalorder %s23, 3
      %p217 = por %p215, %p216
      %p218 = scmp.ne.s32.totalorder %s209, %s210
      %p219 = scmp.eq.s32.totalorder %s23, 0
      %p220 = por %p218, %p219
      %p221 = scmp.ne.s32.totalorder %s209, %s210
      %p222 = scmp.eq.s32.totalorder %s24, 3
      %p223 = por %p221, %p222
      %p225 = scmp.ne.s32.totalorder %s210, %s224
      %p226 = scmp.eq.s32.totalorder %s24, 0
      %p227 = por %p225, %p226
      %s229 = sadd.s32 %s228, 1
      %p232 = scmp.eq.s32.totalorder %s18, 3
      %p233 = scmp.ne.s32.totalorder %s228, %s230
      %p234 = scmp.eq.s32.totalorder %s18, 0
      %p235 = por %p233, %p234
      %p236 = scmp.ne.s32.totalorder %s228, %s230
      %p237 = scmp.eq.s32.totalorder %s23, 3
      %p238 = por %p236, %p237
      %p239 = scmp.ne.s32.totalorder %s230, %s231
      %p240 = scmp.eq.s32.totalorder %s23, 0
      %p241 = por %p239, %p240
      %p242 = scmp.ne.s32.totalorder %s230, %s231
      %p243 = scmp.eq.s32.totalorder %s24, 3
      %p244 = por %p242, %p243
      %p246 = scmp.ne.s32.totalorder %s231, %s245
      %p247 = scmp.eq.s32.totalorder %s24, 0
      %p248 = por %p246, %p247
      %s249 = ssub.s32 %s25, %s37
      %p250 = scmp.eq.s32.totalorder %s249, 0
      %s252 = sadd.s32 %s251, 1
      %s253 = scalar_select %p250, %s251, %s252
      %p256 = pneg %p250
      %p257 = scmp.eq.s32.totalorder %s18, 3
      %p258 = por %p256, %p257
      %p259 = scmp.ne.s32.totalorder %s251, %s254
      %p260 = scmp.eq.s32.totalorder %s18, 0
      %p261 = por %p259, %p260
      %p262 = scmp.ne.s32.totalorder %s251, %s254
      %p263 = scmp.eq.s32.totalorder %s23, 3
      %p264 = por %p262, %p263
      %p265 = scmp.ne.s32.totalorder %s254, %s255
      %p266 = scmp.eq.s32.totalorder %s23, 0
      %p267 = por %p265, %p266
      %p268 = scmp.ne.s32.totalorder %s254, %s255
      %p269 = scmp.eq.s32.totalorder %s24, 3
      %p270 = por %p268, %p269
      %p272 = scmp.ne.s32.totalorder %s255, %s271
      %p273 = scmp.eq.s32.totalorder %s24, 0
      %p274 = por %p272, %p273
      %p275 = scmp.le.s32.totalorder 1, %s18
      %p276 = scmp.lt.s32.totalorder %s18, 5
      %p277 = pnand %p275, %p276
      %p278 = pneg %p277
      // Predicated region
      $region9: #{tpu_custom_call.1} parent=5 // pred_check
        _
      $region10: #{tpu_custom_call.1} parent=5 // pred_check_branch
        %280 = sbr.rel (%p277) target = $region12
      $region11: #{tpu_custom_call.1} parent=5 // pred_region
        %s281 = ssub.s32 %s18, 1
        // Predicated region
        $region13: #{tpu_custom_call.1} parent=11 // pred_check
          %p282 = pneg %p157
        $region14: #{tpu_custom_call.1} parent=11 // pred_check_branch
          %284 = sbr.rel (%p282) target = $region16
        $region15: #{tpu_custom_call.1} parent=11 // pred_region
          _
        $region16: #{tpu_custom_call.1} parent=11 // pred_fallthru
          _
        // Predicated region
        $region17: #{tpu_custom_call.1} parent=11 // pred_check
          %p285 = pneg %p178
        $region18: #{tpu_custom_call.1} parent=11 // pred_check_branch
          %287 = sbr.rel (%p285) target = $region20
        $region19: #{tpu_custom_call.1} parent=11 // pred_region
          _
        $region20: #{tpu_custom_call.1} parent=11 // pred_fallthru
          _
        // Predicated region
        $region21: #{tpu_custom_call.1} parent=11 // pred_check
          %p288 = pneg %p199
        $region22: #{tpu_custom_call.1} parent=11 // pred_check_branch
          %290 = sbr.rel (%p288) target = $region24
        $region23: #{tpu_custom_call.1} parent=11 // pred_region
          _
        $region24: #{tpu_custom_call.1} parent=11 // pred_fallthru
          _
        // Predicated region
        $region25: #{tpu_custom_call.1} parent=11 // pred_check
          %p291 = pneg %p220
        $region26: #{tpu_custom_call.1} parent=11 // pred_check_branch
          %293 = sbr.rel (%p291) target = $region28
        $region27: #{tpu_custom_call.1} parent=11 // pred_region
          _
        $region28: #{tpu_custom_call.1} parent=11 // pred_fallthru
          _
        // Predicated region
        $region29: #{tpu_custom_call.1} parent=11 // pred_check
          %p294 = pneg %p241
        $region30: #{tpu_custom_call.1} parent=11 // pred_check_branch
          %296 = sbr.rel (%p294) target = $region32
        $region31: #{tpu_custom_call.1} parent=11 // pred_region
          _
        $region32: #{tpu_custom_call.1} parent=11 // pred_fallthru
          _
      $region12: #{tpu_custom_call.1} parent=5 // pred_fallthru
        _
      %p297 = scmp.lt.s32.totalorder %s18, 4
      // Predicated region
      $region33: #{tpu_custom_call.1} parent=5 // pred_check
        %p298 = pneg %p297
      $region34: #{tpu_custom_call.1} parent=5 // pred_check_branch
        %300 = sbr.rel (%p298) target = $region36
      $region35: #{tpu_custom_call.1} parent=5 // pred_region
        // Predicated region
        $region37: #{tpu_custom_call.1} parent=35 // pred_check
          %p301 = pneg %p52
        $region38: #{tpu_custom_call.1} parent=35 // pred_check_branch
          %303 = sbr.rel (%p301) target = $region40
        $region39: #{tpu_custom_call.1} parent=35 // pred_region
          %s304 = sand.u32 %s42, 1
          %s305 = sand.u32 %s42, 1
          %s306 = smul.addr %s305, 32
          %s307 = scalar_lea.vmem [#allocation5], %s306
          %s308 = smul.u32 4, %s25
          %s309 = smul.addr %s308, 2
          %s310 = sadd.s32 %s26, %s309
          %s311 = smul.addr %s310, 8
          %s312 = scalar_lea.vmem %s0, %s311
          // Predicated region
          $region41: #{tpu_custom_call.1} parent=39 // pred_check
            _
          $region42: #{tpu_custom_call.1} parent=39 // pred_check_branch
            %314 = sbr.rel (0) target = $region44
          $region43: #{tpu_custom_call.1} parent=39 // pred_region
            // Predicated region
            $region45: #{tpu_custom_call.1} parent=43 // pred_check
              _
            $region46: #{tpu_custom_call.1} parent=43 // pred_check_branch
              %316 = sbr.rel (0) target = $region48
            $region47: #{tpu_custom_call.1} parent=43 // pred_region
              // Predicated region
              $region60: #{tpu_custom_call.1} parent=47 // pred_check
                _
              $region61: #{tpu_custom_call.1} parent=47 // pred_check_branch
                %337 = sbr.rel (0) target = $region63
              $region62: #{tpu_custom_call.1} parent=47 // pred_region
                loop: start=0, step=1, limit=1
                $region64: #{tpu_custom_call.1} parent=62 // loop_pre_header
                  _
                $region65: #{tpu_custom_call.1} parent=62 // loop_header
                  %s339 = sphi 0, %s343
                  %p340 = scmp.ge.s32.totalorder %s339, 1
                  %s344 = sphi %s312, %s312
                  %s345 = sphi %s307, %s307
                $region66: #{tpu_custom_call.1} parent=62 // loop_header_branch
                  %342 = sbr.rel (%p340) target = $region70
                $region67: #{tpu_custom_call.1} parent=62 // loop_body
                  %v346 = vld [vmem:[%s344] sm:$0xff]
                  %347 = vst [vmem:[%s345] sm:$0xff] %v346
                  %v348 = vld [vmem:[%s344 + $0x10] sm:$0xff]
                  %349 = vst [vmem:[%s345 + $0x8] sm:$0xff] %v348
                  %v350 = vld [vmem:[%s344 + $0x20] sm:$0xff]
                  %351 = vst [vmem:[%s345 + $0x10] sm:$0xff] %v350
                  %v352 = vld [vmem:[%s344 + $0x30] sm:$0xff]
                  %353 = vst [vmem:[%s345 + $0x18] sm:$0xff] %v352
                $region68: #{tpu_custom_call.1} parent=62 // loop_footer
                  %s343 = sadd.s32 1, %s339
                $region69: #{tpu_custom_call.1} parent=62 // loop_footer_branch
                  %338 = sbr.rel target = $region65
                $region70: #{tpu_custom_call.1} parent=62 // loop_exit
                  _
              $region63: #{tpu_custom_call.1} parent=47 // pred_fallthru
                _
              // Predicated region
              $region71: #{tpu_custom_call.1} parent=47 // pred_check
                _
              $region72: #{tpu_custom_call.1} parent=47 // pred_check_branch
                %355 = sbr.rel target = $region74
              $region73: #{tpu_custom_call.1} parent=47 // pred_region
                _
              $region74: #{tpu_custom_call.1} parent=47 // pred_fallthru
                _
            $region48: #{tpu_custom_call.1} parent=43 // pred_fallthru
              _
            // Predicated region
            $region49: #{tpu_custom_call.1} parent=43 // pred_check
              _
            $region50: #{tpu_custom_call.1} parent=43 // pred_check_branch
              %318 = sbr.rel target = $region52
            $region51: #{tpu_custom_call.1} parent=43 // pred_region
              loop: start=0, step=1, limit=1
              $region53: #{tpu_custom_call.1} parent=51 // loop_pre_header
                _
              $region54: #{tpu_custom_call.1} parent=51 // loop_header
                %s321 = sphi 0, %s325
                %p322 = scmp.ge.s32.totalorder %s321, 1
                %s326 = sphi %s312, %s312
                %s327 = sphi %s307, %s307
              $region55: #{tpu_custom_call.1} parent=51 // loop_header_branch
                %324 = sbr.rel (%p322) target = $region59
              $region56: #{tpu_custom_call.1} parent=51 // loop_body
                %v328 = vld [vmem:[%s326] sm:$0xff]
                %329 = vst [vmem:[%s327] sm:$0xff] %v328
                %v330 = vld [vmem:[%s326 + $0x10] sm:$0xff]
                %331 = vst [vmem:[%s327 + $0x8] sm:$0xff] %v330
                %v332 = vld [vmem:[%s326 + $0x20] sm:$0xff]
                %333 = vst [vmem:[%s327 + $0x10] sm:$0xff] %v332
                %v334 = vld [vmem:[%s326 + $0x30] sm:$0xff]
                %335 = vst [vmem:[%s327 + $0x18] sm:$0xff] %v334
              $region57: #{tpu_custom_call.1} parent=51 // loop_footer
                %s325 = sadd.s32 1, %s321
              $region58: #{tpu_custom_call.1} parent=51 // loop_footer_branch
                %320 = sbr.rel target = $region54
              $region59: #{tpu_custom_call.1} parent=51 // loop_exit
                _
            $region52: #{tpu_custom_call.1} parent=43 // pred_fallthru
              _
          $region44: #{tpu_custom_call.1} parent=39 // pred_fallthru
            _
          %356 = vnop
        $region40: #{tpu_custom_call.1} parent=35 // pred_fallthru
          _
        // Predicated region
        $region75: #{tpu_custom_call.1} parent=35 // pred_check
          %p357 = pneg %p78
        $region76: #{tpu_custom_call.1} parent=35 // pred_check_branch
          %359 = sbr.rel (%p357) target = $region78
        $region77: #{tpu_custom_call.1} parent=35 // pred_region
          %s360 = smul.u32 16, %s25
          %p361 = scmp.lt.s32.totalorder %s360, 31
          %s362 = scalar_select %p361, %s360, 31
          %s363 = smul.addr %s362, 8
          %s364 = scalar_lea.vmem %s1, %s363
          %s365 = smul.u32 16, %s25
        $region78: #{tpu_custom_call.1} parent=35 // pred_fallthru
          _
        // Predicated region
        $region79: #{tpu_custom_call.1} parent=35 // pred_check
          %p366 = pneg %p104
        $region80: #{tpu_custom_call.1} parent=35 // pred_check_branch
          %368 = sbr.rel (%p366) target = $region82
        $region81: #{tpu_custom_call.1} parent=35 // pred_region
          %p369 = scmp.lt.s32.totalorder %s26, 1
          %s370 = scalar_select %p369, %s26, 1
          %s371 = smul.addr %s370, 2
          %s372 = scalar_lea.vmem %s2, %s371
        $region82: #{tpu_custom_call.1} parent=35 // pred_fallthru
          _
        // Predicated region
        $region83: #{tpu_custom_call.1} parent=35 // pred_check
          %p373 = pneg %p130
        $region84: #{tpu_custom_call.1} parent=35 // pred_check_branch
          %375 = sbr.rel (%p373) target = $region86
        $region85: #{tpu_custom_call.1} parent=35 // pred_region
          %s376 = smul.u32 16, %s25
          %p377 = scmp.lt.s32.totalorder %s376, 31
          %s378 = scalar_select %p377, %s376, 31
          %s379 = smul.addr %s378, 8
          %s380 = scalar_lea.vmem %s3, %s379
          %s381 = smul.u32 16, %s25
        $region86: #{tpu_custom_call.1} parent=35 // pred_fallthru
          _
      $region36: #{tpu_custom_call.1} parent=5 // pred_fallthru
        _
      %p382 = scmp.le.s32.totalorder 1, %s18
      %p383 = scmp.lt.s32.totalorder %s18, 5
      %p384 = pnand %p382, %p383
      %p385 = pneg %p384
      // Predicated region
      $region87: #{tpu_custom_call.1} parent=5 // pred_check
        _
      $region88: #{tpu_custom_call.1} parent=5 // pred_check_branch
        %387 = sbr.rel (%p384) target = $region90
      $region89: #{tpu_custom_call.1} parent=5 // pred_region
        %s388 = ssub.s32 %s18, 1
        %s389 = sand.u32 %s45, 1
        %s390 = sand.u32 %s45, 1
        %s391 = smul.addr %s390, 32
        %s392 = scalar_lea.vmem [#allocation5], %s391
        // Predicated region
        $region91: #{tpu_custom_call.1} parent=89 // pred_check
          %p393 = pneg %p58
        $region92: #{tpu_custom_call.1} parent=89 // pred_check_branch
          %395 = sbr.rel (%p393) target = $region94
        $region93: #{tpu_custom_call.1} parent=89 // pred_region
          _
        $region94: #{tpu_custom_call.1} parent=89 // pred_fallthru
          _
        %s396 = sand.u32 %s45, 1
        %s397 = sand.u32 %s45, 1
        %s398 = smul.addr %s397, 32
        %s399 = scalar_lea.vmem [#allocation5], %s398
        %p400 = pneg %p58
        %p401 = pneg %p55
        %s402 = smul.u32 16, %s27
        %p403 = scmp.lt.s32.totalorder %s402, 31
        %s404 = scalar_select %p403, %s402, 31
        %s405 = smul.addr %s404, 8
        %s406 = scalar_lea.vmem %s1, %s405
        %p407 = pneg %p84
        %p408 = pneg %p81
        %p409 = scmp.lt.s32.totalorder %s28, 1
        %s410 = scalar_select %p409, %s28, 1
        %s411 = smul.addr %s410, 2
        %s412 = scalar_lea.vmem %s2, %s411
        %p413 = pneg %p110
        %p414 = pneg %p107
        %s415 = smul.u32 16, %s27
        %p416 = scmp.lt.s32.totalorder %s415, 31
        %s417 = scalar_select %p416, %s415, 31
        %s418 = smul.addr %s417, 8
        %s419 = scalar_lea.vmem %s3, %s418
        %p420 = pneg %p136
        %p421 = pneg %p133
        %p422 = pneg %p157
        %p423 = pneg %p154
        %p424 = pneg %p178
        %p425 = pneg %p175
        %p426 = pneg %p199
        %p427 = pneg %p196
        %p428 = pneg %p220
        %p429 = pneg %p217
        %p430 = pneg %p241
        %p431 = pneg %p238
        %p432 = pneg %p267
        %p433 = pneg %p264
        %s434 = sand.u32 %s254, 1
        %s435 = scalar_lea.sflag [#allocation7], %s434
        %s436 = sand.u32 %s254, 1
        %s437 = smul.addr %s436, 128
        %s438 = scalar_lea.vmem [#allocation6], %s437
        %s439 = smul.u32 4, %s27
        %s440 = smul.u32 16, %s27
        %p441 = scmp.lt.s32.totalorder %s440, 31
        %s442 = scalar_select %p441, %s440, 31
        %s443 = smul.addr %s442, 8
        %s444 = scalar_lea.vmem %s1, %s443
        %s445 = smul.u32 16, %s27
        %p446 = scmp.lt.s32.totalorder %s28, 1
        %s447 = scalar_select %p446, %s28, 1
        %s448 = smul.addr %s447, 2
        %s449 = scalar_lea.vmem %s2, %s448
        %s450 = smul.u32 16, %s27
        %p451 = scmp.lt.s32.totalorder %s450, 31
        %s452 = scalar_select %p451, %s450, 31
        %s453 = smul.addr %s452, 8
        %s454 = scalar_lea.vmem %s3, %s453
        %s455 = smul.u32 16, %s27
        %s456 = smul.u32 16, %s27
        %p458 = scmp.eq.s32.totalorder %s28, 0
        // Predicated region
        $region95: #{tpu_custom_call.1} parent=89 // pred_check
          %p459 = pneg %p458
        $region96: #{tpu_custom_call.1} parent=89 // pred_check_branch
          %461 = sbr.rel (%p459) target = $region98
        $region97: #{tpu_custom_call.1} parent=89 // pred_region
          %vm462 = vcmask 15360
          %463 = vst.msk [vmem:[#allocation2] sm:$0xff] %vm462, -1e+30
          %464 = vst.msk [vmem:[#allocation2 + $0x8] sm:$0xff] %vm462, -1e+30
          %465 = vst.msk [vmem:[#allocation2 + $0x10] sm:$0xff] %vm462, -1e+30
          %466 = vst.msk [vmem:[#allocation2 + $0x18] sm:$0xff] %vm462, -1e+30
          %467 = vst.msk [vmem:[#allocation2 + $0x20] sm:$0xff] %vm462, -1e+30
          %468 = vst.msk [vmem:[#allocation2 + $0x28] sm:$0xff] %vm462, -1e+30
          %469 = vst.msk [vmem:[#allocation2 + $0x30] sm:$0xff] %vm462, -1e+30
          %470 = vst.msk [vmem:[#allocation2 + $0x38] sm:$0xff] %vm462, -1e+30
          %471 = vst.msk [vmem:[#allocation2 + $0x40] sm:$0xff] %vm462, -1e+30
          %472 = vst.msk [vmem:[#allocation2 + $0x48] sm:$0xff] %vm462, -1e+30
          %473 = vst.msk [vmem:[#allocation2 + $0x50] sm:$0xff] %vm462, -1e+30
          %474 = vst.msk [vmem:[#allocation2 + $0x58] sm:$0xff] %vm462, -1e+30
          %475 = vst.msk [vmem:[#allocation2 + $0x60] sm:$0xff] %vm462, -1e+30
          %476 = vst.msk [vmem:[#allocation2 + $0x68] sm:$0xff] %vm462, -1e+30
          %477 = vst.msk [vmem:[#allocation2 + $0x70] sm:$0xff] %vm462, -1e+30
          %478 = vst.msk [vmem:[#allocation2 + $0x78] sm:$0xff] %vm462, -1e+30
          %479 = vst.msk [vmem:[#allocation3] sm:$0xff] %vm462, 0.0
          %480 = vst.msk [vmem:[#allocation3 + $0x8] sm:$0xff] %vm462, 0.0
          %481 = vst.msk [vmem:[#allocation3 + $0x10] sm:$0xff] %vm462, 0.0
          %482 = vst.msk [vmem:[#allocation3 + $0x18] sm:$0xff] %vm462, 0.0
          %483 = vst.msk [vmem:[#allocation3 + $0x20] sm:$0xff] %vm462, 0.0
          %484 = vst.msk [vmem:[#allocation3 + $0x28] sm:$0xff] %vm462, 0.0
          %485 = vst.msk [vmem:[#allocation3 + $0x30] sm:$0xff] %vm462, 0.0
          %486 = vst.msk [vmem:[#allocation3 + $0x38] sm:$0xff] %vm462, 0.0
          %487 = vst.msk [vmem:[#allocation3 + $0x40] sm:$0xff] %vm462, 0.0
          %488 = vst.msk [vmem:[#allocation3 + $0x48] sm:$0xff] %vm462, 0.0
          %489 = vst.msk [vmem:[#allocation3 + $0x50] sm:$0xff] %vm462, 0.0
          %490 = vst.msk [vmem:[#allocation3 + $0x58] sm:$0xff] %vm462, 0.0
          %491 = vst.msk [vmem:[#allocation3 + $0x60] sm:$0xff] %vm462, 0.0
          %492 = vst.msk [vmem:[#allocation3 + $0x68] sm:$0xff] %vm462, 0.0
          %493 = vst.msk [vmem:[#allocation3 + $0x70] sm:$0xff] %vm462, 0.0
          %494 = vst.msk [vmem:[#allocation3 + $0x78] sm:$0xff] %vm462, 0.0
          %vm495 = vcmask 261120
          %496 = vst.msk [vmem:[#allocation4] sm:$0xff] %vm495, 0.0
          %497 = vst.msk [vmem:[#allocation4 + $0x8] sm:$0xff] %vm495, 0.0
          %498 = vst.msk [vmem:[#allocation4 + $0x10] sm:$0xff] %vm495, 0.0
          %499 = vst.msk [vmem:[#allocation4 + $0x18] sm:$0xff] %vm495, 0.0
          %500 = vst.msk [vmem:[#allocation4 + $0x20] sm:$0xff] %vm495, 0.0
          %501 = vst.msk [vmem:[#allocation4 + $0x28] sm:$0xff] %vm495, 0.0
          %502 = vst.msk [vmem:[#allocation4 + $0x30] sm:$0xff] %vm495, 0.0
          %503 = vst.msk [vmem:[#allocation4 + $0x38] sm:$0xff] %vm495, 0.0
          %504 = vst.msk [vmem:[#allocation4 + $0x40] sm:$0xff] %vm495, 0.0
          %505 = vst.msk [vmem:[#allocation4 + $0x48] sm:$0xff] %vm495, 0.0
          %506 = vst.msk [vmem:[#allocation4 + $0x50] sm:$0xff] %vm495, 0.0
          %507 = vst.msk [vmem:[#allocation4 + $0x58] sm:$0xff] %vm495, 0.0
          %508 = vst.msk [vmem:[#allocation4 + $0x60] sm:$0xff] %vm495, 0.0
          %509 = vst.msk [vmem:[#allocation4 + $0x68] sm:$0xff] %vm495, 0.0
          %510 = vst.msk [vmem:[#allocation4 + $0x70] sm:$0xff] %vm495, 0.0
          %511 = vst.msk [vmem:[#allocation4 + $0x78] sm:$0xff] %vm495, 0.0
        $region98: #{tpu_custom_call.1} parent=89 // pred_fallthru
          _
        %v512 = vld [vmem:[%s392] sm:$0xff]
        %v513 = vld [vmem:[%s392 + $0x8] sm:$0xff]
        %v514 = vld [vmem:[%s392 + $0x10] sm:$0xff]
        %v515 = vld [vmem:[%s392 + $0x18] sm:$0xff]
        %v516 = vunpack.c.0.s8 %v512
        %v517 = vunpack.c.1.s8 %v512
        %v518 = vunpack.c.2.s8 %v512
        %v519 = vunpack.c.3.s8 %v512
        %v520 = vunpack.c.0.s8 %v513
        %v521 = vunpack.c.1.s8 %v513
        %v522 = vunpack.c.2.s8 %v513
        %v523 = vunpack.c.3.s8 %v513
        %v524 = vunpack.c.0.s8 %v514
        %v525 = vunpack.c.1.s8 %v514
        %v526 = vunpack.c.2.s8 %v514
        %v527 = vunpack.c.3.s8 %v514
        %v528 = vunpack.c.0.s8 %v515
        %v529 = vunpack.c.1.s8 %v515
        %v530 = vunpack.c.2.s8 %v515
        %v531 = vunpack.c.3.s8 %v515
        %v532 = vcvt.s32.f32 %v516
        %v533 = vcvt.s32.f32 %v517
        %v534 = vcvt.s32.f32 %v518
        %v535 = vcvt.s32.f32 %v519
        %v536 = vcvt.s32.f32 %v520
        %v537 = vcvt.s32.f32 %v521
        %v538 = vcvt.s32.f32 %v522
        %v539 = vcvt.s32.f32 %v523
        %v540 = vcvt.s32.f32 %v524
        %v541 = vcvt.s32.f32 %v525
        %v542 = vcvt.s32.f32 %v526
        %v543 = vcvt.s32.f32 %v527
        %v544 = vcvt.s32.f32 %v528
        %v545 = vcvt.s32.f32 %v529
        %v546 = vcvt.s32.f32 %v530
        %v547 = vcvt.s32.f32 %v531
        %v548 = vld [vmem:[%s444] sm:$0xff]
        %v549 = vld [vmem:[%s444 + $0x8] sm:$0xff]
        %v550 = vld [vmem:[%s444 + $0x10] sm:$0xff]
        %v551 = vld [vmem:[%s444 + $0x18] sm:$0xff]
        %v552 = vld [vmem:[%s444 + $0x20] sm:$0xff]
        %v553 = vld [vmem:[%s444 + $0x28] sm:$0xff]
        %v554 = vld [vmem:[%s444 + $0x30] sm:$0xff]
        %v555 = vld [vmem:[%s444 + $0x38] sm:$0xff]
        %v556 = vld [vmem:[%s444 + $0x40] sm:$0xff]
        %v557 = vld [vmem:[%s444 + $0x48] sm:$0xff]
        %v558 = vld [vmem:[%s444 + $0x50] sm:$0xff]
        %v559 = vld [vmem:[%s444 + $0x58] sm:$0xff]
        %v560 = vld [vmem:[%s444 + $0x60] sm:$0xff]
        %v561 = vld [vmem:[%s444 + $0x68] sm:$0xff]
        %v562 = vld [vmem:[%s444 + $0x70] sm:$0xff]
        %v563 = vld [vmem:[%s444 + $0x78] sm:$0xff]
        %v564 = vld [vmem:[%s449] sm:$0x3]
        %s565 = smul.u32 %s28, 128
        %s566 = sshra.s32 %s565, 3
        %s567 = sand.u32 %s565, 7
        %s568 = smul.addr %s566, 4
        %s569 = scalar_lea.vmem %s4, %s568
        %v570 = vld [vmem:[%s569] sm:$0xf]
        %v571 = vld [vmem:[%s569 + $0x4] sm:$0xf]
        %v572 = vld [vmem:[%s569 + $0x8] sm:$0xf]
        %v573 = vld [vmem:[%s569 + $0xc] sm:$0xf]
        %v574 = vld [vmem:[%s569 + $0x10] sm:$0xf]
        %v575 = vld [vmem:[%s569 + $0x14] sm:$0xf]
        %v576 = vld [vmem:[%s569 + $0x18] sm:$0xf]
        %v577 = vld [vmem:[%s569 + $0x1c] sm:$0xf]
        %v578 = vld [vmem:[%s569 + $0x20] sm:$0xf]
        %v579 = vld [vmem:[%s569 + $0x24] sm:$0xf]
        %v580 = vld [vmem:[%s569 + $0x28] sm:$0xf]
        %v581 = vld [vmem:[%s569 + $0x2c] sm:$0xf]
        %v582 = vld [vmem:[%s569 + $0x30] sm:$0xf]
        %v583 = vld [vmem:[%s569 + $0x34] sm:$0xf]
        %v584 = vld [vmem:[%s569 + $0x38] sm:$0xf]
        %v585 = vld [vmem:[%s569 + $0x3c] sm:$0xf]
        %587 = vset.pattern.permute.xlu0 0
        %588 = vperm.xlu0 %587, %v548
        %v589 = vpop.permute.xlu0 %588
        %592 = vset.pattern.permute.xlu0 0
        %593 = vperm.xlu0 %592, %v549
        %v594 = vpop.permute.xlu0 %593
        %597 = vset.pattern.permute.xlu0 0
        %598 = vperm.xlu0 %597, %v550
        %v599 = vpop.permute.xlu0 %598
        %602 = vset.pattern.permute.xlu0 0
        %603 = vperm.xlu0 %602, %v551
        %v604 = vpop.permute.xlu0 %603
        %607 = vset.pattern.permute.xlu0 0
        %608 = vperm.xlu0 %607, %v552
        %v609 = vpop.permute.xlu0 %608
        %612 = vset.pattern.permute.xlu0 0
        %613 = vperm.xlu0 %612, %v553
        %v614 = vpop.permute.xlu0 %613
        %617 = vset.pattern.permute.xlu0 0
        %618 = vperm.xlu0 %617, %v554
        %v619 = vpop.permute.xlu0 %618
        %622 = vset.pattern.permute.xlu0 0
        %623 = vperm.xlu0 %622, %v555
        %v624 = vpop.permute.xlu0 %623
        %627 = vset.pattern.permute.xlu0 0
        %628 = vperm.xlu0 %627, %v556
        %v629 = vpop.permute.xlu0 %628
        %632 = vset.pattern.permute.xlu0 0
        %633 = vperm.xlu0 %632, %v557
        %v634 = vpop.permute.xlu0 %633
        %637 = vset.pattern.permute.xlu0 0
        %638 = vperm.xlu0 %637, %v558
        %v639 = vpop.permute.xlu0 %638
        %642 = vset.pattern.permute.xlu0 0
        %643 = vperm.xlu0 %642, %v559
        %v644 = vpop.permute.xlu0 %643
        %647 = vset.pattern.permute.xlu0 0
        %648 = vperm.xlu0 %647, %v560
        %v649 = vpop.permute.xlu0 %648
        %652 = vset.pattern.permute.xlu0 0
        %653 = vperm.xlu0 %652, %v561
        %v654 = vpop.permute.xlu0 %653
        %657 = vset.pattern.permute.xlu0 0
        %658 = vperm.xlu0 %657, %v562
        %v659 = vpop.permute.xlu0 %658
        %662 = vset.pattern.permute.xlu0 0
        %663 = vperm.xlu0 %662, %v563
        %v664 = vpop.permute.xlu0 %663
        %v666 = vlaneseq
        %v667 = vshrl.u32 %v666, 7
        %v668 = vsub.s32 0, %v667
        %v669 = vrot.slane %v564, %v668
        %v670 = vadd.f32 %v589, %v669
        %v671 = vadd.f32 %v594, %v669
        %v672 = vadd.f32 %v599, %v669
        %v673 = vadd.f32 %v604, %v669
        %v674 = vadd.f32 %v609, %v669
        %v675 = vadd.f32 %v614, %v669
        %v676 = vadd.f32 %v619, %v669
        %v677 = vadd.f32 %v624, %v669
        %v678 = vadd.f32 %v629, %v669
        %v679 = vadd.f32 %v634, %v669
        %v680 = vadd.f32 %v639, %v669
        %v681 = vadd.f32 %v644, %v669
        %v682 = vadd.f32 %v649, %v669
        %v683 = vadd.f32 %v654, %v669
        %v684 = vadd.f32 %v659, %v669
        %v685 = vadd.f32 %v664, %v669
        %v686 = vmul.f32 %v670, 0.2
        %v687 = vmul.f32 %v671, 0.2
        %v688 = vmul.f32 %v672, 0.2
        %v689 = vmul.f32 %v673, 0.2
        %v690 = vmul.f32 %v674, 0.2
        %v691 = vmul.f32 %v675, 0.2
        %v692 = vmul.f32 %v676, 0.2
        %v693 = vmul.f32 %v677, 0.2
        %v694 = vmul.f32 %v678, 0.2
        %v695 = vmul.f32 %v679, 0.2
        %v696 = vmul.f32 %v680, 0.2
        %v697 = vmul.f32 %v681, 0.2
        %v698 = vmul.f32 %v682, 0.2
        %v699 = vmul.f32 %v683, 0.2
        %v700 = vmul.f32 %v684, 0.2
        %v701 = vmul.f32 %v685, 0.2
        %v702 = vmax.f32 %v670, %v686
        %v703 = vmax.f32 %v671, %v687
        %v704 = vmax.f32 %v672, %v688
        %v705 = vmax.f32 %v673, %v689
        %v706 = vmax.f32 %v674, %v690
        %v707 = vmax.f32 %v675, %v691
        %v708 = vmax.f32 %v676, %v692
        %v709 = vmax.f32 %v677, %v693
        %v710 = vmax.f32 %v678, %v694
        %v711 = vmax.f32 %v679, %v695
        %v712 = vmax.f32 %v680, %v696
        %v713 = vmax.f32 %v681, %v697
        %v714 = vmax.f32 %v682, %v698
        %v715 = vmax.f32 %v683, %v699
        %v716 = vmax.f32 %v684, %v700
        %v717 = vmax.f32 %v685, %v701
        %v718 = vld [vmem:[#allocation2] sm:$0xff]
        %v719 = vld [vmem:[#allocation2 + $0x8] sm:$0xff]
        %v720 = vld [vmem:[#allocation2 + $0x10] sm:$0xff]
        %v721 = vld [vmem:[#allocation2 + $0x18] sm:$0xff]
        %v722 = vld [vmem:[#allocation2 + $0x20] sm:$0xff]
        %v723 = vld [vmem:[#allocation2 + $0x28] sm:$0xff]
        %v724 = vld [vmem:[#allocation2 + $0x30] sm:$0xff]
        %v725 = vld [vmem:[#allocation2 + $0x38] sm:$0xff]
        %v726 = vld [vmem:[#allocation2 + $0x40] sm:$0xff]
        %v727 = vld [vmem:[#allocation2 + $0x48] sm:$0xff]
        %v728 = vld [vmem:[#allocation2 + $0x50] sm:$0xff]
        %v729 = vld [vmem:[#allocation2 + $0x58] sm:$0xff]
        %v730 = vld [vmem:[#allocation2 + $0x60] sm:$0xff]
        %v731 = vld [vmem:[#allocation2 + $0x68] sm:$0xff]
        %v732 = vld [vmem:[#allocation2 + $0x70] sm:$0xff]
        %v733 = vld [vmem:[#allocation2 + $0x78] sm:$0xff]
        %734 = vmax.xlane.f32.xlu0 %v702
        %v735 = vpop.xlane.xlu0 %734
        %736 = vmax.xlane.f32.xlu0 %v703
        %v737 = vpop.xlane.xlu0 %736
        %738 = vmax.xlane.f32.xlu0 %v704
        %v739 = vpop.xlane.xlu0 %738
        %740 = vmax.xlane.f32.xlu0 %v705
        %v741 = vpop.xlane.xlu0 %740
        %742 = vmax.xlane.f32.xlu0 %v706
        %v743 = vpop.xlane.xlu0 %742
        %744 = vmax.xlane.f32.xlu0 %v707
        %v745 = vpop.xlane.xlu0 %744
        %746 = vmax.xlane.f32.xlu0 %v708
        %v747 = vpop.xlane.xlu0 %746
        %748 = vmax.xlane.f32.xlu0 %v709
        %v749 = vpop.xlane.xlu0 %748
        %750 = vmax.xlane.f32.xlu0 %v710
        %v751 = vpop.xlane.xlu0 %750
        %752 = vmax.xlane.f32.xlu0 %v711
        %v753 = vpop.xlane.xlu0 %752
        %754 = vmax.xlane.f32.xlu0 %v712
        %v755 = vpop.xlane.xlu0 %754
        %756 = vmax.xlane.f32.xlu0 %v713
        %v757 = vpop.xlane.xlu0 %756
        %758 = vmax.xlane.f32.xlu0 %v714
        %v759 = vpop.xlane.xlu0 %758
        %760 = vmax.xlane.f32.xlu0 %v715
        %v761 = vpop.xlane.xlu0 %760
        %762 = vmax.xlane.f32.xlu0 %v716
        %v763 = vpop.xlane.xlu0 %762
        %764 = vmax.xlane.f32.xlu0 %v717
        %v765 = vpop.xlane.xlu0 %764
        %v766 = vmax.f32 %v718, %v735
        %v767 = vmax.f32 %v719, %v737
        %v768 = vmax.f32 %v720, %v739
        %v769 = vmax.f32 %v721, %v741
        %v770 = vmax.f32 %v722, %v743
        %v771 = vmax.f32 %v723, %v745
        %v772 = vmax.f32 %v724, %v747
        %v773 = vmax.f32 %v725, %v749
        %v774 = vmax.f32 %v726, %v751
        %v775 = vmax.f32 %v727, %v753
        %v776 = vmax.f32 %v728, %v755
        %v777 = vmax.f32 %v729, %v757
        %v778 = vmax.f32 %v730, %v759
        %v779 = vmax.f32 %v731, %v761
        %v780 = vmax.f32 %v732, %v763
        %v781 = vmax.f32 %v733, %v765
        %v782 = vsub.f32 %v718, %v766
        %v783 = vsub.f32 %v719, %v767
        %v784 = vsub.f32 %v720, %v768
        %v785 = vsub.f32 %v721, %v769
        %v786 = vsub.f32 %v722, %v770
        %v787 = vsub.f32 %v723, %v771
        %v788 = vsub.f32 %v724, %v772
        %v789 = vsub.f32 %v725, %v773
        %v790 = vsub.f32 %v726, %v774
        %v791 = vsub.f32 %v727, %v775
        %v792 = vsub.f32 %v728, %v776
        %v793 = vsub.f32 %v729, %v777
        %v794 = vsub.f32 %v730, %v778
        %v795 = vsub.f32 %v731, %v779
        %v796 = vsub.f32 %v732, %v780
        %v797 = vsub.f32 %v733, %v781
        %v798 = vmul.f32 %v782, 1.442695
        %v799 = vpow.pop %v798
        %v800 = vmul.f32 %v783, 1.442695
        %v801 = vpow.pop %v800
        %v802 = vmul.f32 %v784, 1.442695
        %v803 = vpow.pop %v802
        %v804 = vmul.f32 %v785, 1.442695
        %v805 = vpow.pop %v804
        %v806 = vmul.f32 %v786, 1.442695
        %v807 = vpow.pop %v806
        %v808 = vmul.f32 %v787, 1.442695
        %v809 = vpow.pop %v808
        %v810 = vmul.f32 %v788, 1.442695
        %v811 = vpow.pop %v810
        %v812 = vmul.f32 %v789, 1.442695
        %v813 = vpow.pop %v812
        %v814 = vmul.f32 %v790, 1.442695
        %v815 = vpow.pop %v814
        %v816 = vmul.f32 %v791, 1.442695
        %v817 = vpow.pop %v816
        %v818 = vmul.f32 %v792, 1.442695
        %v819 = vpow.pop %v818
        %v820 = vmul.f32 %v793, 1.442695
        %v821 = vpow.pop %v820
        %v822 = vmul.f32 %v794, 1.442695
        %v823 = vpow.pop %v822
        %v824 = vmul.f32 %v795, 1.442695
        %v825 = vpow.pop %v824
        %v826 = vmul.f32 %v796, 1.442695
        %v827 = vpow.pop %v826
        %v828 = vmul.f32 %v797, 1.442695
        %v829 = vpow.pop %v828
        %831 = vset.pattern.permute.xlu0 0
        %832 = vperm.xlu0 %831, %v766
        %v833 = vpop.permute.xlu0 %832
        %836 = vset.pattern.permute.xlu0 0
        %837 = vperm.xlu0 %836, %v767
        %v838 = vpop.permute.xlu0 %837
        %841 = vset.pattern.permute.xlu0 0
        %842 = vperm.xlu0 %841, %v768
        %v843 = vpop.permute.xlu0 %842
        %846 = vset.pattern.permute.xlu0 0
        %847 = vperm.xlu0 %846, %v769
        %v848 = vpop.permute.xlu0 %847
        %851 = vset.pattern.permute.xlu0 0
        %852 = vperm.xlu0 %851, %v770
        %v853 = vpop.permute.xlu0 %852
        %856 = vset.pattern.permute.xlu0 0
        %857 = vperm.xlu0 %856, %v771
        %v858 = vpop.permute.xlu0 %857
        %861 = vset.pattern.permute.xlu0 0
        %862 = vperm.xlu0 %861, %v772
        %v863 = vpop.permute.xlu0 %862
        %866 = vset.pattern.permute.xlu0 0
        %867 = vperm.xlu0 %866, %v773
        %v868 = vpop.permute.xlu0 %867
        %871 = vset.pattern.permute.xlu0 0
        %872 = vperm.xlu0 %871, %v774
        %v873 = vpop.permute.xlu0 %872
        %876 = vset.pattern.permute.xlu0 0
        %877 = vperm.xlu0 %876, %v775
        %v878 = vpop.permute.xlu0 %877
        %881 = vset.pattern.permute.xlu0 0
        %882 = vperm.xlu0 %881, %v776
        %v883 = vpop.permute.xlu0 %882
        %886 = vset.pattern.permute.xlu0 0
        %887 = vperm.xlu0 %886, %v777
        %v888 = vpop.permute.xlu0 %887
        %891 = vset.pattern.permute.xlu0 0
        %892 = vperm.xlu0 %891, %v778
        %v893 = vpop.permute.xlu0 %892
        %896 = vset.pattern.permute.xlu0 0
        %897 = vperm.xlu0 %896, %v779
        %v898 = vpop.permute.xlu0 %897
        %901 = vset.pattern.permute.xlu0 0
        %902 = vperm.xlu0 %901, %v780
        %v903 = vpop.permute.xlu0 %902
        %906 = vset.pattern.permute.xlu0 0
        %907 = vperm.xlu0 %906, %v781
        %v908 = vpop.permute.xlu0 %907
        %v910 = vsub.f32 %v702, %v833
        %v911 = vsub.f32 %v703, %v838
        %v912 = vsub.f32 %v704, %v843
        %v913 = vsub.f32 %v705, %v848
        %v914 = vsub.f32 %v706, %v853
        %v915 = vsub.f32 %v707, %v858
        %v916 = vsub.f32 %v708, %v863
        %v917 = vsub.f32 %v709, %v868
        %v918 = vsub.f32 %v710, %v873
        %v919 = vsub.f32 %v711, %v878
        %v920 = vsub.f32 %v712, %v883
        %v921 = vsub.f32 %v713, %v888
        %v922 = vsub.f32 %v714, %v893
        %v923 = vsub.f32 %v715, %v898
        %v924 = vsub.f32 %v716, %v903
        %v925 = vsub.f32 %v717, %v908
        %v926 = vmul.f32 %v910, 1.442695
        %v927 = vpow.pop %v926
        %v928 = vmul.f32 %v911, 1.442695
        %v929 = vpow.pop %v928
        %v930 = vmul.f32 %v912, 1.442695
        %v931 = vpow.pop %v930
        %v932 = vmul.f32 %v913, 1.442695
        %v933 = vpow.pop %v932
        %v934 = vmul.f32 %v914, 1.442695
        %v935 = vpow.pop %v934
        %v936 = vmul.f32 %v915, 1.442695
        %v937 = vpow.pop %v936
        %v938 = vmul.f32 %v916, 1.442695
        %v939 = vpow.pop %v938
        %v940 = vmul.f32 %v917, 1.442695
        %v941 = vpow.pop %v940
        %v942 = vmul.f32 %v918, 1.442695
        %v943 = vpow.pop %v942
        %v944 = vmul.f32 %v919, 1.442695
        %v945 = vpow.pop %v944
        %v946 = vmul.f32 %v920, 1.442695
        %v947 = vpow.pop %v946
        %v948 = vmul.f32 %v921, 1.442695
        %v949 = vpow.pop %v948
        %v950 = vmul.f32 %v922, 1.442695
        %v951 = vpow.pop %v950
        %v952 = vmul.f32 %v923, 1.442695
        %v953 = vpow.pop %v952
        %v954 = vmul.f32 %v924, 1.442695
        %v955 = vpow.pop %v954
        %v956 = vmul.f32 %v925, 1.442695
        %v957 = vpow.pop %v956
        %v958 = vmul.f32 %v927, %v532
        %v959 = vmul.f32 %v929, %v533
        %v960 = vmul.f32 %v931, %v534
        %v961 = vmul.f32 %v933, %v535
        %v962 = vmul.f32 %v935, %v536
        %v963 = vmul.f32 %v937, %v537
        %v964 = vmul.f32 %v939, %v538
        %v965 = vmul.f32 %v941, %v539
        %v966 = vmul.f32 %v943, %v540
        %v967 = vmul.f32 %v945, %v541
        %v968 = vmul.f32 %v947, %v542
        %v969 = vmul.f32 %v949, %v543
        %v970 = vmul.f32 %v951, %v544
        %v971 = vmul.f32 %v953, %v545
        %v972 = vmul.f32 %v955, %v546
        %v973 = vmul.f32 %v957, %v547
        %v974 = vld [vmem:[#allocation3] sm:$0xff]
        %v975 = vld [vmem:[#allocation3 + $0x8] sm:$0xff]
        %v976 = vld [vmem:[#allocation3 + $0x10] sm:$0xff]
        %v977 = vld [vmem:[#allocation3 + $0x18] sm:$0xff]
        %v978 = vld [vmem:[#allocation3 + $0x20] sm:$0xff]
        %v979 = vld [vmem:[#allocation3 + $0x28] sm:$0xff]
        %v980 = vld [vmem:[#allocation3 + $0x30] sm:$0xff]
        %v981 = vld [vmem:[#allocation3 + $0x38] sm:$0xff]
        %v982 = vld [vmem:[#allocation3 + $0x40] sm:$0xff]
        %v983 = vld [vmem:[#allocation3 + $0x48] sm:$0xff]
        %v984 = vld [vmem:[#allocation3 + $0x50] sm:$0xff]
        %v985 = vld [vmem:[#allocation3 + $0x58] sm:$0xff]
        %v986 = vld [vmem:[#allocation3 + $0x60] sm:$0xff]
        %v987 = vld [vmem:[#allocation3 + $0x68] sm:$0xff]
        %v988 = vld [vmem:[#allocation3 + $0x70] sm:$0xff]
        %v989 = vld [vmem:[#allocation3 + $0x78] sm:$0xff]
        %v990 = vmul.f32 %v799, %v974
        %v991 = vmul.f32 %v801, %v975
        %v992 = vmul.f32 %v803, %v976
        %v993 = vmul.f32 %v805, %v977
        %v994 = vmul.f32 %v807, %v978
        %v995 = vmul.f32 %v809, %v979
        %v996 = vmul.f32 %v811, %v980
        %v997 = vmul.f32 %v813, %v981
        %v998 = vmul.f32 %v815, %v982
        %v999 = vmul.f32 %v817, %v983
        %v1000 = vmul.f32 %v819, %v984
        %v1001 = vmul.f32 %v821, %v985
        %v1002 = vmul.f32 %v823, %v986
        %v1003 = vmul.f32 %v825, %v987
        %v1004 = vmul.f32 %v827, %v988
        %v1005 = vmul.f32 %v829, %v989
        %1006 = vadd.xlane.f32.xlu0 %v958
        %v1007 = vpop.xlane.xlu0 %1006
        %1008 = vadd.xlane.f32.xlu0 %v959
        %v1009 = vpop.xlane.xlu0 %1008
        %1010 = vadd.xlane.f32.xlu0 %v960
        %v1011 = vpop.xlane.xlu0 %1010
        %1012 = vadd.xlane.f32.xlu0 %v961
        %v1013 = vpop.xlane.xlu0 %1012
        %1014 = vadd.xlane.f32.xlu0 %v962
        %v1015 = vpop.xlane.xlu0 %1014
        %1016 = vadd.xlane.f32.xlu0 %v963
        %v1017 = vpop.xlane.xlu0 %1016
        %1018 = vadd.xlane.f32.xlu0 %v964
        %v1019 = vpop.xlane.xlu0 %1018
        %1020 = vadd.xlane.f32.xlu0 %v965
        %v1021 = vpop.xlane.xlu0 %1020
        %1022 = vadd.xlane.f32.xlu0 %v966
        %v1023 = vpop.xlane.xlu0 %1022
        %1024 = vadd.xlane.f32.xlu0 %v967
        %v1025 = vpop.xlane.xlu0 %1024
        %1026 = vadd.xlane.f32.xlu0 %v968
        %v1027 = vpop.xlane.xlu0 %1026
        %1028 = vadd.xlane.f32.xlu0 %v969
        %v1029 = vpop.xlane.xlu0 %1028
        %1030 = vadd.xlane.f32.xlu0 %v970
        %v1031 = vpop.xlane.xlu0 %1030
        %1032 = vadd.xlane.f32.xlu0 %v971
        %v1033 = vpop.xlane.xlu0 %1032
        %1034 = vadd.xlane.f32.xlu0 %v972
        %v1035 = vpop.xlane.xlu0 %1034
        %1036 = vadd.xlane.f32.xlu0 %v973
        %v1037 = vpop.xlane.xlu0 %1036
        %v1038 = vadd.f32 %v990, %v1007
        %v1039 = vadd.f32 %v991, %v1009
        %v1040 = vadd.f32 %v992, %v1011
        %v1041 = vadd.f32 %v993, %v1013
        %v1042 = vadd.f32 %v994, %v1015
        %v1043 = vadd.f32 %v995, %v1017
        %v1044 = vadd.f32 %v996, %v1019
        %v1045 = vadd.f32 %v997, %v1021
        %v1046 = vadd.f32 %v998, %v1023
        %v1047 = vadd.f32 %v999, %v1025
        %v1048 = vadd.f32 %v1000, %v1027
        %v1049 = vadd.f32 %v1001, %v1029
        %v1050 = vadd.f32 %v1002, %v1031
        %v1051 = vadd.f32 %v1003, %v1033
        %v1052 = vadd.f32 %v1004, %v1035
        %v1053 = vadd.f32 %v1005, %v1037
        %vm1054 = vcmask 7168
        %1055 = vst.msk [vmem:[#allocation3] sm:$0xff] %vm1054, %v1038
        %1056 = vst.msk [vmem:[#allocation3 + $0x8] sm:$0xff] %vm1054, %v1039
        %1057 = vst.msk [vmem:[#allocation3 + $0x10] sm:$0xff] %vm1054, %v1040
        %1058 = vst.msk [vmem:[#allocation3 + $0x18] sm:$0xff] %vm1054, %v1041
        %1059 = vst.msk [vmem:[#allocation3 + $0x20] sm:$0xff] %vm1054, %v1042
        %1060 = vst.msk [vmem:[#allocation3 + $0x28] sm:$0xff] %vm1054, %v1043
        %1061 = vst.msk [vmem:[#allocation3 + $0x30] sm:$0xff] %vm1054, %v1044
        %1062 = vst.msk [vmem:[#allocation3 + $0x38] sm:$0xff] %vm1054, %v1045
        %1063 = vst.msk [vmem:[#allocation3 + $0x40] sm:$0xff] %vm1054, %v1046
        %1064 = vst.msk [vmem:[#allocation3 + $0x48] sm:$0xff] %vm1054, %v1047
        %1065 = vst.msk [vmem:[#allocation3 + $0x50] sm:$0xff] %vm1054, %v1048
        %1066 = vst.msk [vmem:[#allocation3 + $0x58] sm:$0xff] %vm1054, %v1049
        %1067 = vst.msk [vmem:[#allocation3 + $0x60] sm:$0xff] %vm1054, %v1050
        %1068 = vst.msk [vmem:[#allocation3 + $0x68] sm:$0xff] %vm1054, %v1051
        %1069 = vst.msk [vmem:[#allocation3 + $0x70] sm:$0xff] %vm1054, %v1052
        %1070 = vst.msk [vmem:[#allocation3 + $0x78] sm:$0xff] %vm1054, %v1053
        %v1071 = vpack.c.bf16 %v959, %v958
        %v1072 = vpack.c.bf16 %v961, %v960
        %v1073 = vpack.c.bf16 %v963, %v962
        %v1074 = vpack.c.bf16 %v965, %v964
        %v1075 = vpack.c.bf16 %v967, %v966
        %v1076 = vpack.c.bf16 %v969, %v968
        %v1077 = vpack.c.bf16 %v971, %v970
        %v1078 = vpack.c.bf16 %v973, %v972
        %v1095 = vunpack.c.l.b16 %v570
        %v1096 = vunpack.c.l.b16 %v571
        %v1097 = vunpack.c.l.b16 %v572
        %v1098 = vunpack.c.l.b16 %v573
        %v1099 = vunpack.c.l.b16 %v574
        %v1100 = vunpack.c.l.b16 %v575
        %v1101 = vunpack.c.l.b16 %v576
        %v1102 = vunpack.c.l.b16 %v577
        %v1103 = vunpack.c.l.b16 %v578
        %v1104 = vunpack.c.l.b16 %v579
        %v1105 = vunpack.c.l.b16 %v580
        %v1106 = vunpack.c.l.b16 %v581
        %v1107 = vunpack.c.l.b16 %v582
        %v1108 = vunpack.c.l.b16 %v583
        %v1109 = vunpack.c.l.b16 %v584
        %v1110 = vunpack.c.l.b16 %v585
        %v1111 = vpack.c.b16 %v1096, %v1095
        %v1112 = vpack.c.b16 %v1098, %v1097
        %v1113 = vpack.c.b16 %v1100, %v1099
        %v1114 = vpack.c.b16 %v1102, %v1101
        %v1115 = vpack.c.b16 %v1104, %v1103
        %v1116 = vpack.c.b16 %v1106, %v1105
        %v1117 = vpack.c.b16 %v1108, %v1107
        %v1118 = vpack.c.b16 %v1110, %v1109
        %1127 = vmatprep.subr.bf16.mxu0 0
        %1128 = vmatpush1.bf16.msra.mxu0 %v1111
        %1129 = vmatprep.subr.bf16.mxu0 0
        %1130 = vmatpush1.bf16.msra.mxu0 %v1112
        %1131 = vmatprep.subr.bf16.mxu0 0
        %1132 = vmatpush1.bf16.msra.mxu0 %v1113
        %1133 = vmatprep.subr.bf16.mxu0 0
        %1134 = vmatpush1.bf16.msra.mxu0 %v1114
        %1135 = vmatprep.subr.bf16.mxu0 0
        %1136 = vmatpush1.bf16.msra.mxu0 %v1115
        %1137 = vmatprep.subr.bf16.mxu0 0
        %1138 = vmatpush1.bf16.msra.mxu0 %v1116
        %1139 = vmatprep.subr.bf16.mxu0 0
        %1140 = vmatpush1.bf16.msra.mxu0 %v1117
        %1141 = vmatprep.subr.bf16.mxu0 0
        %1142 = vmatpush1.bf16.msra.mxu0 %v1118
        %1143 = vmatprep.subr.bf16.mxu0 0
        %1144 = vmatpush1.bf16.msra.mxu0 0
        %1145 = vmatprep.subr.bf16.mxu0 0
        %1146 = vmatpush1.bf16.msra.mxu0 0
        %1147 = vmatprep.subr.bf16.mxu0 0
        %1148 = vmatpush1.bf16.msra.mxu0 0
        %1149 = vmatprep.subr.bf16.mxu0 0
        %1150 = vmatpush1.bf16.msra.mxu0 0
        %1151 = vmatprep.subr.bf16.mxu0 0
        %1152 = vmatpush1.bf16.msra.mxu0 0
        %1153 = vmatprep.subr.bf16.mxu0 0
        %1154 = vmatpush1.bf16.msra.mxu0 0
        %1155 = vmatprep.subr.bf16.mxu0 0
        %1156 = vmatpush1.bf16.msra.mxu0 0
        %1157 = vmatprep.subr.bf16.mxu0 0
        %1158 = vmatpush1.bf16.msra.mxu0 0
        %1159 = vmatprep.mubr.bf16.mxu0 0
        %1160 = vmatmul.mubr.bf16.gmra.mrb[0].mxu0 %v1071
        %v1161 = vpop.f32.mrb[0].mxu0
        %v1162 = vadd.f32 0.0, %v1161
        %v1163 = vpop.f32.mrb[0].mxu0
        %v1164 = vpop.f32.mrb[0].mxu0
        %v1165 = vadd.f32 0.0, %v1164
        %v1166 = vpop.f32.mrb[0].mxu0
        %1167 = vmatprep.mubr.bf16.mxu0 0
        %1168 = vmatmul.mubr.bf16.gmra.mrb[0].mxu0 %v1072
        %v1169 = vpop.f32.mrb[0].mxu0
        %v1170 = vadd.f32 0.0, %v1169
        %v1171 = vpop.f32.mrb[0].mxu0
        %v1172 = vpop.f32.mrb[0].mxu0
        %v1173 = vadd.f32 0.0, %v1172
        %v1174 = vpop.f32.mrb[0].mxu0
        %1175 = vmatprep.mubr.bf16.mxu0 0
        %1176 = vmatmul.mubr.bf16.gmra.mrb[0].mxu0 %v1073
        %v1177 = vpop.f32.mrb[0].mxu0
        %v1178 = vadd.f32 0.0, %v1177
        %v1179 = vpop.f32.mrb[0].mxu0
        %v1180 = vpop.f32.mrb[0].mxu0
        %v1181 = vadd.f32 0.0, %v1180
        %v1182 = vpop.f32.mrb[0].mxu0
        %1183 = vmatprep.mubr.bf16.mxu0 0
        %1184 = vmatmul.mubr.bf16.gmra.mrb[0].mxu0 %v1074
        %v1185 = vpop.f32.mrb[0].mxu0
        %v1186 = vadd.f32 0.0, %v1185
        %v1187 = vpop.f32.mrb[0].mxu0
        %v1188 = vpop.f32.mrb[0].mxu0
        %v1189 = vadd.f32 0.0, %v1188
        %v1190 = vpop.f32.mrb[0].mxu0
        %1191 = vmatprep.mubr.bf16.mxu0 0
        %1192 = vmatmul.mubr.bf16.gmra.mrb[0].mxu0 %v1075
        %v1193 = vpop.f32.mrb[0].mxu0
        %v1194 = vadd.f32 0.0, %v1193
        %v1195 = vpop.f32.mrb[0].mxu0
        %v1196 = vpop.f32.mrb[0].mxu0
        %v1197 = vadd.f32 0.0, %v1196
        %v1198 = vpop.f32.mrb[0].mxu0
        %1199 = vmatprep.mubr.bf16.mxu0 0
        %1200 = vmatmul.mubr.bf16.gmra.mrb[0].mxu0 %v1076
        %v1201 = vpop.f32.mrb[0].mxu0
        %v1202 = vadd.f32 0.0, %v1201
        %v1203 = vpop.f32.mrb[0].mxu0
        %v1204 = vpop.f32.mrb[0].mxu0
        %v1205 = vadd.f32 0.0, %v1204
        %v1206 = vpop.f32.mrb[0].mxu0
        %1207 = vmatprep.mubr.bf16.mxu0 0
        %1208 = vmatmul.mubr.bf16.gmra.mrb[0].mxu0 %v1077
        %v1209 = vpop.f32.mrb[0].mxu0
        %v1210 = vadd.f32 0.0, %v1209
        %v1211 = vpop.f32.mrb[0].mxu0
        %v1212 = vpop.f32.mrb[0].mxu0
        %v1213 = vadd.f32 0.0, %v1212
        %v1214 = vpop.f32.mrb[0].mxu0
        %1215 = vmatprep.mubr.bf16.mxu0 0
        %1216 = vmatmul.mubr.bf16.gmra.mrb[0].mxu0 %v1078
        %v1217 = vpop.f32.mrb[0].mxu0
        %v1218 = vadd.f32 0.0, %v1217
        %v1219 = vpop.f32.mrb[0].mxu0
        %v1220 = vpop.f32.mrb[0].mxu0
        %v1221 = vadd.f32 0.0, %v1220
        %v1222 = vpop.f32.mrb[0].mxu0
        %1223 = vdwg.mxu0
        %v1224 = vld [vmem:[#allocation4] sm:$0xff]
        %v1225 = vld [vmem:[#allocation4 + $0x8] sm:$0xff]
        %v1226 = vld [vmem:[#allocation4 + $0x10] sm:$0xff]
        %v1227 = vld [vmem:[#allocation4 + $0x18] sm:$0xff]
        %v1228 = vld [vmem:[#allocation4 + $0x20] sm:$0xff]
        %v1229 = vld [vmem:[#allocation4 + $0x28] sm:$0xff]
        %v1230 = vld [vmem:[#allocation4 + $0x30] sm:$0xff]
        %v1231 = vld [vmem:[#allocation4 + $0x38] sm:$0xff]
        %v1232 = vld [vmem:[#allocation4 + $0x40] sm:$0xff]
        %v1233 = vld [vmem:[#allocation4 + $0x48] sm:$0xff]
        %v1234 = vld [vmem:[#allocation4 + $0x50] sm:$0xff]
        %v1235 = vld [vmem:[#allocation4 + $0x58] sm:$0xff]
        %v1236 = vld [vmem:[#allocation4 + $0x60] sm:$0xff]
        %v1237 = vld [vmem:[#allocation4 + $0x68] sm:$0xff]
        %v1238 = vld [vmem:[#allocation4 + $0x70] sm:$0xff]
        %v1239 = vld [vmem:[#allocation4 + $0x78] sm:$0xff]
        %1241 = vset.pattern.permute.xlu0 0
        %1242 = vperm.xlu0 %1241, %v799
        %v1243 = vpop.permute.xlu0 %1242
        %1246 = vset.pattern.permute.xlu0 0
        %1247 = vperm.xlu0 %1246, %v801
        %v1248 = vpop.permute.xlu0 %1247
        %1251 = vset.pattern.permute.xlu0 0
        %1252 = vperm.xlu0 %1251, %v803
        %v1253 = vpop.permute.xlu0 %1252
        %1256 = vset.pattern.permute.xlu0 0
        %1257 = vperm.xlu0 %1256, %v805
        %v1258 = vpop.permute.xlu0 %1257
        %1261 = vset.pattern.permute.xlu0 0
        %1262 = vperm.xlu0 %1261, %v807
        %v1263 = vpop.permute.xlu0 %1262
        %1266 = vset.pattern.permute.xlu0 0
        %1267 = vperm.xlu0 %1266, %v809
        %v1268 = vpop.permute.xlu0 %1267
        %1271 = vset.pattern.permute.xlu0 0
        %1272 = vperm.xlu0 %1271, %v811
        %v1273 = vpop.permute.xlu0 %1272
        %1276 = vset.pattern.permute.xlu0 0
        %1277 = vperm.xlu0 %1276, %v813
        %v1278 = vpop.permute.xlu0 %1277
        %1281 = vset.pattern.permute.xlu0 0
        %1282 = vperm.xlu0 %1281, %v815
        %v1283 = vpop.permute.xlu0 %1282
        %1286 = vset.pattern.permute.xlu0 0
        %1287 = vperm.xlu0 %1286, %v817
        %v1288 = vpop.permute.xlu0 %1287
        %1291 = vset.pattern.permute.xlu0 0
        %1292 = vperm.xlu0 %1291, %v819
        %v1293 = vpop.permute.xlu0 %1292
        %1296 = vset.pattern.permute.xlu0 0
        %1297 = vperm.xlu0 %1296, %v821
        %v1298 = vpop.permute.xlu0 %1297
        %1301 = vset.pattern.permute.xlu0 0
        %1302 = vperm.xlu0 %1301, %v823
        %v1303 = vpop.permute.xlu0 %1302
        %1306 = vset.pattern.permute.xlu0 0
        %1307 = vperm.xlu0 %1306, %v825
        %v1308 = vpop.permute.xlu0 %1307
        %1311 = vset.pattern.permute.xlu0 0
        %1312 = vperm.xlu0 %1311, %v827
        %v1313 = vpop.permute.xlu0 %1312
        %1316 = vset.pattern.permute.xlu0 0
        %1317 = vperm.xlu0 %1316, %v829
        %v1318 = vpop.permute.xlu0 %1317
        %v1320 = vmul.f32 %v1243, %v1224
        %v1321 = vmul.f32 %v1248, %v1225
        %v1322 = vmul.f32 %v1253, %v1226
        %v1323 = vmul.f32 %v1258, %v1227
        %v1324 = vmul.f32 %v1263, %v1228
        %v1325 = vmul.f32 %v1268, %v1229
        %v1326 = vmul.f32 %v1273, %v1230
        %v1327 = vmul.f32 %v1278, %v1231
        %v1328 = vmul.f32 %v1283, %v1232
        %v1329 = vmul.f32 %v1288, %v1233
        %v1330 = vmul.f32 %v1293, %v1234
        %v1331 = vmul.f32 %v1298, %v1235
        %v1332 = vmul.f32 %v1303, %v1236
        %v1333 = vmul.f32 %v1308, %v1237
        %v1334 = vmul.f32 %v1313, %v1238
        %v1335 = vmul.f32 %v1318, %v1239
        %v1336 = vadd.f32 %v1320, %v1162
        %v1337 = vadd.f32 %v1321, %v1165
        %v1338 = vadd.f32 %v1322, %v1170
        %v1339 = vadd.f32 %v1323, %v1173
        %v1340 = vadd.f32 %v1324, %v1178
        %v1341 = vadd.f32 %v1325, %v1181
        %v1342 = vadd.f32 %v1326, %v1186
        %v1343 = vadd.f32 %v1327, %v1189
        %v1344 = vadd.f32 %v1328, %v1194
        %v1345 = vadd.f32 %v1329, %v1197
        %v1346 = vadd.f32 %v1330, %v1202
        %v1347 = vadd.f32 %v1331, %v1205
        %v1348 = vadd.f32 %v1332, %v1210
        %v1349 = vadd.f32 %v1333, %v1213
        %v1350 = vadd.f32 %v1334, %v1218
        %v1351 = vadd.f32 %v1335, %v1221
        %vm1352 = vcmask 130048
        %1353 = vst.msk [vmem:[#allocation4] sm:$0xff] %vm1352, %v1336
        %1354 = vst.msk [vmem:[#allocation4 + $0x8] sm:$0xff] %vm1352, %v1337
        %1355 = vst.msk [vmem:[#allocation4 + $0x10] sm:$0xff] %vm1352, %v1338
        %1356 = vst.msk [vmem:[#allocation4 + $0x18] sm:$0xff] %vm1352, %v1339
        %1357 = vst.msk [vmem:[#allocation4 + $0x20] sm:$0xff] %vm1352, %v1340
        %1358 = vst.msk [vmem:[#allocation4 + $0x28] sm:$0xff] %vm1352, %v1341
        %1359 = vst.msk [vmem:[#allocation4 + $0x30] sm:$0xff] %vm1352, %v1342
        %1360 = vst.msk [vmem:[#allocation4 + $0x38] sm:$0xff] %vm1352, %v1343
        %1361 = vst.msk [vmem:[#allocation4 + $0x40] sm:$0xff] %vm1352, %v1344
        %1362 = vst.msk [vmem:[#allocation4 + $0x48] sm:$0xff] %vm1352, %v1345
        %1363 = vst.msk [vmem:[#allocation4 + $0x50] sm:$0xff] %vm1352, %v1346
        %1364 = vst.msk [vmem:[#allocation4 + $0x58] sm:$0xff] %vm1352, %v1347
        %1365 = vst.msk [vmem:[#allocation4 + $0x60] sm:$0xff] %vm1352, %v1348
        %1366 = vst.msk [vmem:[#allocation4 + $0x68] sm:$0xff] %vm1352, %v1349
        %1367 = vst.msk [vmem:[#allocation4 + $0x70] sm:$0xff] %vm1352, %v1350
        %1368 = vst.msk [vmem:[#allocation4 + $0x78] sm:$0xff] %vm1352, %v1351
        %1369 = vst.msk [vmem:[#allocation2] sm:$0xff] %vm1054, %v766
        %1370 = vst.msk [vmem:[#allocation2 + $0x8] sm:$0xff] %vm1054, %v767
        %1371 = vst.msk [vmem:[#allocation2 + $0x10] sm:$0xff] %vm1054, %v768
        %1372 = vst.msk [vmem:[#allocation2 + $0x18] sm:$0xff] %vm1054, %v769
        %1373 = vst.msk [vmem:[#allocation2 + $0x20] sm:$0xff] %vm1054, %v770
        %1374 = vst.msk [vmem:[#allocation2 + $0x28] sm:$0xff] %vm1054, %v771
        %1375 = vst.msk [vmem:[#allocation2 + $0x30] sm:$0xff] %vm1054, %v772
        %1376 = vst.msk [vmem:[#allocation2 + $0x38] sm:$0xff] %vm1054, %v773
        %1377 = vst.msk [vmem:[#allocation2 + $0x40] sm:$0xff] %vm1054, %v774
        %1378 = vst.msk [vmem:[#allocation2 + $0x48] sm:$0xff] %vm1054, %v775
        %1379 = vst.msk [vmem:[#allocation2 + $0x50] sm:$0xff] %vm1054, %v776
        %1380 = vst.msk [vmem:[#allocation2 + $0x58] sm:$0xff] %vm1054, %v777
        %1381 = vst.msk [vmem:[#allocation2 + $0x60] sm:$0xff] %vm1054, %v778
        %1382 = vst.msk [vmem:[#allocation2 + $0x68] sm:$0xff] %vm1054, %v779
        %1383 = vst.msk [vmem:[#allocation2 + $0x70] sm:$0xff] %vm1054, %v780
        %1384 = vst.msk [vmem:[#allocation2 + $0x78] sm:$0xff] %vm1054, %v781
        %1385 = vset.pattern.permute.xlu0 1
        %1386 = vperm.xlu0 %1385, %v548
        %v1387 = vpop.permute.xlu0 %1386
        %1389 = vset.pattern.permute.xlu0 1
        %1390 = vperm.xlu0 %1389, %v549
        %v1391 = vpop.permute.xlu0 %1390
        %1393 = vset.pattern.permute.xlu0 1
        %1394 = vperm.xlu0 %1393, %v550
        %v1395 = vpop.permute.xlu0 %1394
        %1397 = vset.pattern.permute.xlu0 1
        %1398 = vperm.xlu0 %1397, %v551
        %v1399 = vpop.permute.xlu0 %1398
        %1401 = vset.pattern.permute.xlu0 1
        %1402 = vperm.xlu0 %1401, %v552
        %v1403 = vpop.permute.xlu0 %1402
        %1405 = vset.pattern.permute.xlu0 1
        %1406 = vperm.xlu0 %1405, %v553
        %v1407 = vpop.permute.xlu0 %1406
        %1409 = vset.pattern.permute.xlu0 1
        %1410 = vperm.xlu0 %1409, %v554
        %v1411 = vpop.permute.xlu0 %1410
        %1413 = vset.pattern.permute.xlu0 1
        %1414 = vperm.xlu0 %1413, %v555
        %v1415 = vpop.permute.xlu0 %1414
        %1417 = vset.pattern.permute.xlu0 1
        %1418 = vperm.xlu0 %1417, %v556
        %v1419 = vpop.permute.xlu0 %1418
        %1421 = vset.pattern.permute.xlu0 1
        %1422 = vperm.xlu0 %1421, %v557
        %v1423 = vpop.permute.xlu0 %1422
        %1425 = vset.pattern.permute.xlu0 1
        %1426 = vperm.xlu0 %1425, %v558
        %v1427 = vpop.permute.xlu0 %1426
        %1429 = vset.pattern.permute.xlu0 1
        %1430 = vperm.xlu0 %1429, %v559
        %v1431 = vpop.permute.xlu0 %1430
        %1433 = vset.pattern.permute.xlu0 1
        %1434 = vperm.xlu0 %1433, %v560
        %v1435 = vpop.permute.xlu0 %1434
        %1437 = vset.pattern.permute.xlu0 1
        %1438 = vperm.xlu0 %1437, %v561
        %v1439 = vpop.permute.xlu0 %1438
        %1441 = vset.pattern.permute.xlu0 1
        %1442 = vperm.xlu0 %1441, %v562
        %v1443 = vpop.permute.xlu0 %1442
        %1445 = vset.pattern.permute.xlu0 1
        %1446 = vperm.xlu0 %1445, %v563
        %v1447 = vpop.permute.xlu0 %1446
        %v1449 = vlaneseq
        %v1450 = vshrl.u32 %v1449, 7
        %v1451 = vsub.s32 1, %v1450
        %v1452 = vrot.slane %v564, %v1451
        %v1453 = vadd.f32 %v1387, %v1452
        %v1454 = vadd.f32 %v1391, %v1452
        %v1455 = vadd.f32 %v1395, %v1452
        %v1456 = vadd.f32 %v1399, %v1452
        %v1457 = vadd.f32 %v1403, %v1452
        %v1458 = vadd.f32 %v1407, %v1452
        %v1459 = vadd.f32 %v1411, %v1452
        %v1460 = vadd.f32 %v1415, %v1452
        %v1461 = vadd.f32 %v1419, %v1452
        %v1462 = vadd.f32 %v1423, %v1452
        %v1463 = vadd.f32 %v1427, %v1452
        %v1464 = vadd.f32 %v1431, %v1452
        %v1465 = vadd.f32 %v1435, %v1452
        %v1466 = vadd.f32 %v1439, %v1452
        %v1467 = vadd.f32 %v1443, %v1452
        %v1468 = vadd.f32 %v1447, %v1452
        %v1469 = vmul.f32 %v1453, 0.2
        %v1470 = vmul.f32 %v1454, 0.2
        %v1471 = vmul.f32 %v1455, 0.2
        %v1472 = vmul.f32 %v1456, 0.2
        %v1473 = vmul.f32 %v1457, 0.2
        %v1474 = vmul.f32 %v1458, 0.2
        %v1475 = vmul.f32 %v1459, 0.2
        %v1476 = vmul.f32 %v1460, 0.2
        %v1477 = vmul.f32 %v1461, 0.2
        %v1478 = vmul.f32 %v1462, 0.2
        %v1479 = vmul.f32 %v1463, 0.2
        %v1480 = vmul.f32 %v1464, 0.2
        %v1481 = vmul.f32 %v1465, 0.2
        %v1482 = vmul.f32 %v1466, 0.2
        %v1483 = vmul.f32 %v1467, 0.2
        %v1484 = vmul.f32 %v1468, 0.2
        %v1485 = vmax.f32 %v1453, %v1469
        %v1486 = vmax.f32 %v1454, %v1470
        %v1487 = vmax.f32 %v1455, %v1471
        %v1488 = vmax.f32 %v1456, %v1472
        %v1489 = vmax.f32 %v1457, %v1473
        %v1490 = vmax.f32 %v1458, %v1474
        %v1491 = vmax.f32 %v1459, %v1475
        %v1492 = vmax.f32 %v1460, %v1476
        %v1493 = vmax.f32 %v1461, %v1477
        %v1494 = vmax.f32 %v1462, %v1478
        %v1495 = vmax.f32 %v1463, %v1479
        %v1496 = vmax.f32 %v1464, %v1480
        %v1497 = vmax.f32 %v1465, %v1481
        %v1498 = vmax.f32 %v1466, %v1482
        %v1499 = vmax.f32 %v1467, %v1483
        %v1500 = vmax.f32 %v1468, %v1484
        %v1501 = vld [vmem:[#allocation2] sm:$0xff]
        %v1502 = vld [vmem:[#allocation2 + $0x8] sm:$0xff]
        %v1503 = vld [vmem:[#allocation2 + $0x10] sm:$0xff]
        %v1504 = vld [vmem:[#allocation2 + $0x18] sm:$0xff]
        %v1505 = vld [vmem:[#allocation2 + $0x20] sm:$0xff]
        %v1506 = vld [vmem:[#allocation2 + $0x28] sm:$0xff]
        %v1507 = vld [vmem:[#allocation2 + $0x30] sm:$0xff]
        %v1508 = vld [vmem:[#allocation2 + $0x38] sm:$0xff]
        %v1509 = vld [vmem:[#allocation2 + $0x40] sm:$0xff]
        %v1510 = vld [vmem:[#allocation2 + $0x48] sm:$0xff]
        %v1511 = vld [vmem:[#allocation2 + $0x50] sm:$0xff]
        %v1512 = vld [vmem:[#allocation2 + $0x58] sm:$0xff]
        %v1513 = vld [vmem:[#allocation2 + $0x60] sm:$0xff]
        %v1514 = vld [vmem:[#allocation2 + $0x68] sm:$0xff]
        %v1515 = vld [vmem:[#allocation2 + $0x70] sm:$0xff]
        %v1516 = vld [vmem:[#allocation2 + $0x78] sm:$0xff]
        %1517 = vmax.xlane.f32.xlu0 %v1485
        %v1518 = vpop.xlane.xlu0 %1517
        %1519 = vmax.xlane.f32.xlu0 %v1486
        %v1520 = vpop.xlane.xlu0 %1519
        %1521 = vmax.xlane.f32.xlu0 %v1487
        %v1522 = vpop.xlane.xlu0 %1521
        %1523 = vmax.xlane.f32.xlu0 %v1488
        %v1524 = vpop.xlane.xlu0 %1523
        %1525 = vmax.xlane.f32.xlu0 %v1489
        %v1526 = vpop.xlane.xlu0 %1525
        %1527 = vmax.xlane.f32.xlu0 %v1490
        %v1528 = vpop.xlane.xlu0 %1527
        %1529 = vmax.xlane.f32.xlu0 %v1491
        %v1530 = vpop.xlane.xlu0 %1529
        %1531 = vmax.xlane.f32.xlu0 %v1492
        %v1532 = vpop.xlane.xlu0 %1531
        %1533 = vmax.xlane.f32.xlu0 %v1493
        %v1534 = vpop.xlane.xlu0 %1533
        %1535 = vmax.xlane.f32.xlu0 %v1494
        %v1536 = vpop.xlane.xlu0 %1535
        %1537 = vmax.xlane.f32.xlu0 %v1495
        %v1538 = vpop.xlane.xlu0 %1537
        %1539 = vmax.xlane.f32.xlu0 %v1496
        %v1540 = vpop.xlane.xlu0 %1539
        %1541 = vmax.xlane.f32.xlu0 %v1497
        %v1542 = vpop.xlane.xlu0 %1541
        %1543 = vmax.xlane.f32.xlu0 %v1498
        %v1544 = vpop.xlane.xlu0 %1543
        %1545 = vmax.xlane.f32.xlu0 %v1499
        %v1546 = vpop.xlane.xlu0 %1545
        %1547 = vmax.xlane.f32.xlu0 %v1500
        %v1548 = vpop.xlane.xlu0 %1547
        %v1549 = vmax.f32 %v1501, %v1518
        %v1550 = vmax.f32 %v1502, %v1520
        %v1551 = vmax.f32 %v1503, %v1522
        %v1552 = vmax.f32 %v1504, %v1524
        %v1553 = vmax.f32 %v1505, %v1526
        %v1554 = vmax.f32 %v1506, %v1528
        %v1555 = vmax.f32 %v1507, %v1530
        %v1556 = vmax.f32 %v1508, %v1532
        %v1557 = vmax.f32 %v1509, %v1534
        %v1558 = vmax.f32 %v1510, %v1536
        %v1559 = vmax.f32 %v1511, %v1538
        %v1560 = vmax.f32 %v1512, %v1540
        %v1561 = vmax.f32 %v1513, %v1542
        %v1562 = vmax.f32 %v1514, %v1544
        %v1563 = vmax.f32 %v1515, %v1546
        %v1564 = vmax.f32 %v1516, %v1548
        %v1565 = vsub.f32 %v1501, %v1549
        %v1566 = vsub.f32 %v1502, %v1550
        %v1567 = vsub.f32 %v1503, %v1551
        %v1568 = vsub.f32 %v1504, %v1552
        %v1569 = vsub.f32 %v1505, %v1553
        %v1570 = vsub.f32 %v1506, %v1554
        %v1571 = vsub.f32 %v1507, %v1555
        %v1572 = vsub.f32 %v1508, %v1556
        %v1573 = vsub.f32 %v1509, %v1557
        %v1574 = vsub.f32 %v1510, %v1558
        %v1575 = vsub.f32 %v1511, %v1559
        %v1576 = vsub.f32 %v1512, %v1560
        %v1577 = vsub.f32 %v1513, %v1561
        %v1578 = vsub.f32 %v1514, %v1562
        %v1579 = vsub.f32 %v1515, %v1563
        %v1580 = vsub.f32 %v1516, %v1564
        %v1581 = vmul.f32 %v1565, 1.442695
        %v1582 = vpow.pop %v1581
        %v1583 = vmul.f32 %v1566, 1.442695
        %v1584 = vpow.pop %v1583
        %v1585 = vmul.f32 %v1567, 1.442695
        %v1586 = vpow.pop %v1585
        %v1587 = vmul.f32 %v1568, 1.442695
        %v1588 = vpow.pop %v1587
        %v1589 = vmul.f32 %v1569, 1.442695
        %v1590 = vpow.pop %v1589
        %v1591 = vmul.f32 %v1570, 1.442695
        %v1592 = vpow.pop %v1591
        %v1593 = vmul.f32 %v1571, 1.442695
        %v1594 = vpow.pop %v1593
        %v1595 = vmul.f32 %v1572, 1.442695
        %v1596 = vpow.pop %v1595
        %v1597 = vmul.f32 %v1573, 1.442695
        %v1598 = vpow.pop %v1597
        %v1599 = vmul.f32 %v1574, 1.442695
        %v1600 = vpow.pop %v1599
        %v1601 = vmul.f32 %v1575, 1.442695
        %v1602 = vpow.pop %v1601
        %v1603 = vmul.f32 %v1576, 1.442695
        %v1604 = vpow.pop %v1603
        %v1605 = vmul.f32 %v1577, 1.442695
        %v1606 = vpow.pop %v1605
        %v1607 = vmul.f32 %v1578, 1.442695
        %v1608 = vpow.pop %v1607
        %v1609 = vmul.f32 %v1579, 1.442695
        %v1610 = vpow.pop %v1609
        %v1611 = vmul.f32 %v1580, 1.442695
        %v1612 = vpow.pop %v1611
        %1614 = vset.pattern.permute.xlu0 1
        %1615 = vperm.xlu0 %1614, %v1549
        %v1616 = vpop.permute.xlu0 %1615
        %1619 = vset.pattern.permute.xlu0 1
        %1620 = vperm.xlu0 %1619, %v1550
        %v1621 = vpop.permute.xlu0 %1620
        %1624 = vset.pattern.permute.xlu0 1
        %1625 = vperm.xlu0 %1624, %v1551
        %v1626 = vpop.permute.xlu0 %1625
        %1629 = vset.pattern.permute.xlu0 1
        %1630 = vperm.xlu0 %1629, %v1552
        %v1631 = vpop.permute.xlu0 %1630
        %1634 = vset.pattern.permute.xlu0 1
        %1635 = vperm.xlu0 %1634, %v1553
        %v1636 = vpop.permute.xlu0 %1635
        %1639 = vset.pattern.permute.xlu0 1
        %1640 = vperm.xlu0 %1639, %v1554
        %v1641 = vpop.permute.xlu0 %1640
        %1644 = vset.pattern.permute.xlu0 1
        %1645 = vperm.xlu0 %1644, %v1555
        %v1646 = vpop.permute.xlu0 %1645
        %1649 = vset.pattern.permute.xlu0 1
        %1650 = vperm.xlu0 %1649, %v1556
        %v1651 = vpop.permute.xlu0 %1650
        %1654 = vset.pattern.permute.xlu0 1
        %1655 = vperm.xlu0 %1654, %v1557
        %v1656 = vpop.permute.xlu0 %1655
        %1659 = vset.pattern.permute.xlu0 1
        %1660 = vperm.xlu0 %1659, %v1558
        %v1661 = vpop.permute.xlu0 %1660
        %1664 = vset.pattern.permute.xlu0 1
        %1665 = vperm.xlu0 %1664, %v1559
        %v1666 = vpop.permute.xlu0 %1665
        %1669 = vset.pattern.permute.xlu0 1
        %1670 = vperm.xlu0 %1669, %v1560
        %v1671 = vpop.permute.xlu0 %1670
        %1674 = vset.pattern.permute.xlu0 1
        %1675 = vperm.xlu0 %1674, %v1561
        %v1676 = vpop.permute.xlu0 %1675
        %1679 = vset.pattern.permute.xlu0 1
        %1680 = vperm.xlu0 %1679, %v1562
        %v1681 = vpop.permute.xlu0 %1680
        %1684 = vset.pattern.permute.xlu0 1
        %1685 = vperm.xlu0 %1684, %v1563
        %v1686 = vpop.permute.xlu0 %1685
        %1689 = vset.pattern.permute.xlu0 1
        %1690 = vperm.xlu0 %1689, %v1564
        %v1691 = vpop.permute.xlu0 %1690
        %v1693 = vsub.f32 %v1485, %v1616
        %v1694 = vsub.f32 %v1486, %v1621
        %v1695 = vsub.f32 %v1487, %v1626
        %v1696 = vsub.f32 %v1488, %v1631
        %v1697 = vsub.f32 %v1489, %v1636
        %v1698 = vsub.f32 %v1490, %v1641
        %v1699 = vsub.f32 %v1491, %v1646
        %v1700 = vsub.f32 %v1492, %v1651
        %v1701 = vsub.f32 %v1493, %v1656
        %v1702 = vsub.f32 %v1494, %v1661
        %v1703 = vsub.f32 %v1495, %v1666
        %v1704 = vsub.f32 %v1496, %v1671
        %v1705 = vsub.f32 %v1497, %v1676
        %v1706 = vsub.f32 %v1498, %v1681
        %v1707 = vsub.f32 %v1499, %v1686
        %v1708 = vsub.f32 %v1500, %v1691
        %v1709 = vmul.f32 %v1693, 1.442695
        %v1710 = vpow.pop %v1709
        %v1711 = vmul.f32 %v1694, 1.442695
        %v1712 = vpow.pop %v1711
        %v1713 = vmul.f32 %v1695, 1.442695
        %v1714 = vpow.pop %v1713
        %v1715 = vmul.f32 %v1696, 1.442695
        %v1716 = vpow.pop %v1715
        %v1717 = vmul.f32 %v1697, 1.442695
        %v1718 = vpow.pop %v1717
        %v1719 = vmul.f32 %v1698, 1.442695
        %v1720 = vpow.pop %v1719
        %v1721 = vmul.f32 %v1699, 1.442695
        %v1722 = vpow.pop %v1721
        %v1723 = vmul.f32 %v1700, 1.442695
        %v1724 = vpow.pop %v1723
        %v1725 = vmul.f32 %v1701, 1.442695
        %v1726 = vpow.pop %v1725
        %v1727 = vmul.f32 %v1702, 1.442695
        %v1728 = vpow.pop %v1727
        %v1729 = vmul.f32 %v1703, 1.442695
        %v1730 = vpow.pop %v1729
        %v1731 = vmul.f32 %v1704, 1.442695
        %v1732 = vpow.pop %v1731
        %v1733 = vmul.f32 %v1705, 1.442695
        %v1734 = vpow.pop %v1733
        %v1735 = vmul.f32 %v1706, 1.442695
        %v1736 = vpow.pop %v1735
        %v1737 = vmul.f32 %v1707, 1.442695
        %v1738 = vpow.pop %v1737
        %v1739 = vmul.f32 %v1708, 1.442695
        %v1740 = vpow.pop %v1739
        %v1741 = vmul.f32 %v1710, %v532
        %v1742 = vmul.f32 %v1712, %v533
        %v1743 = vmul.f32 %v1714, %v534
        %v1744 = vmul.f32 %v1716, %v535
        %v1745 = vmul.f32 %v1718, %v536
        %v1746 = vmul.f32 %v1720, %v537
        %v1747 = vmul.f32 %v1722, %v538
        %v1748 = vmul.f32 %v1724, %v539
        %v1749 = vmul.f32 %v1726, %v540
        %v1750 = vmul.f32 %v1728, %v541
        %v1751 = vmul.f32 %v1730, %v542
        %v1752 = vmul.f32 %v1732, %v543
        %v1753 = vmul.f32 %v1734, %v544
        %v1754 = vmul.f32 %v1736, %v545
        %v1755 = vmul.f32 %v1738, %v546
        %v1756 = vmul.f32 %v1740, %v547
        %v1757 = vld [vmem:[#allocation3] sm:$0xff]
        %v1758 = vld [vmem:[#allocation3 + $0x8] sm:$0xff]
        %v1759 = vld [vmem:[#allocation3 + $0x10] sm:$0xff]
        %v1760 = vld [vmem:[#allocation3 + $0x18] sm:$0xff]
        %v1761 = vld [vmem:[#allocation3 + $0x20] sm:$0xff]
        %v1762 = vld [vmem:[#allocation3 + $0x28] sm:$0xff]
        %v1763 = vld [vmem:[#allocation3 + $0x30] sm:$0xff]
        %v1764 = vld [vmem:[#allocation3 + $0x38] sm:$0xff]
        %v1765 = vld [vmem:[#allocation3 + $0x40] sm:$0xff]
        %v1766 = vld [vmem:[#allocation3 + $0x48] sm:$0xff]
        %v1767 = vld [vmem:[#allocation3 + $0x50] sm:$0xff]
        %v1768 = vld [vmem:[#allocation3 + $0x58] sm:$0xff]
        %v1769 = vld [vmem:[#allocation3 + $0x60] sm:$0xff]
        %v1770 = vld [vmem:[#allocation3 + $0x68] sm:$0xff]
        %v1771 = vld [vmem:[#allocation3 + $0x70] sm:$0xff]
        %v1772 = vld [vmem:[#allocation3 + $0x78] sm:$0xff]
        %v1773 = vmul.f32 %v1582, %v1757
        %v1774 = vmul.f32 %v1584, %v1758
        %v1775 = vmul.f32 %v1586, %v1759
        %v1776 = vmul.f32 %v1588, %v1760
        %v1777 = vmul.f32 %v1590, %v1761
        %v1778 = vmul.f32 %v1592, %v1762
        %v1779 = vmul.f32 %v1594, %v1763
        %v1780 = vmul.f32 %v1596, %v1764
        %v1781 = vmul.f32 %v1598, %v1765
        %v1782 = vmul.f32 %v1600, %v1766
        %v1783 = vmul.f32 %v1602, %v1767
        %v1784 = vmul.f32 %v1604, %v1768
        %v1785 = vmul.f32 %v1606, %v1769
        %v1786 = vmul.f32 %v1608, %v1770
        %v1787 = vmul.f32 %v1610, %v1771
        %v1788 = vmul.f32 %v1612, %v1772
        %1789 = vadd.xlane.f32.xlu0 %v1741
        %v1790 = vpop.xlane.xlu0 %1789
        %1791 = vadd.xlane.f32.xlu0 %v1742
        %v1792 = vpop.xlane.xlu0 %1791
        %1793 = vadd.xlane.f32.xlu0 %v1743
        %v1794 = vpop.xlane.xlu0 %1793
        %1795 = vadd.xlane.f32.xlu0 %v1744
        %v1796 = vpop.xlane.xlu0 %1795
        %1797 = vadd.xlane.f32.xlu0 %v1745
        %v1798 = vpop.xlane.xlu0 %1797
        %1799 = vadd.xlane.f32.xlu0 %v1746
        %v1800 = vpop.xlane.xlu0 %1799
        %1801 = vadd.xlane.f32.xlu0 %v1747
        %v1802 = vpop.xlane.xlu0 %1801
        %1803 = vadd.xlane.f32.xlu0 %v1748
        %v1804 = vpop.xlane.xlu0 %1803
        %1805 = vadd.xlane.f32.xlu0 %v1749
        %v1806 = vpop.xlane.xlu0 %1805
        %1807 = vadd.xlane.f32.xlu0 %v1750
        %v1808 = vpop.xlane.xlu0 %1807
        %1809 = vadd.xlane.f32.xlu0 %v1751
        %v1810 = vpop.xlane.xlu0 %1809
        %1811 = vadd.xlane.f32.xlu0 %v1752
        %v1812 = vpop.xlane.xlu0 %1811
        %1813 = vadd.xlane.f32.xlu0 %v1753
        %v1814 = vpop.xlane.xlu0 %1813
        %1815 = vadd.xlane.f32.xlu0 %v1754
        %v1816 = vpop.xlane.xlu0 %1815
        %1817 = vadd.xlane.f32.xlu0 %v1755
        %v1818 = vpop.xlane.xlu0 %1817
        %1819 = vadd.xlane.f32.xlu0 %v1756
        %v1820 = vpop.xlane.xlu0 %1819
        %v1821 = vadd.f32 %v1773, %v1790
        %v1822 = vadd.f32 %v1774, %v1792
        %v1823 = vadd.f32 %v1775, %v1794
        %v1824 = vadd.f32 %v1776, %v1796
        %v1825 = vadd.f32 %v1777, %v1798
        %v1826 = vadd.f32 %v1778, %v1800
        %v1827 = vadd.f32 %v1779, %v1802
        %v1828 = vadd.f32 %v1780, %v1804
        %v1829 = vadd.f32 %v1781, %v1806
        %v1830 = vadd.f32 %v1782, %v1808
        %v1831 = vadd.f32 %v1783, %v1810
        %v1832 = vadd.f32 %v1784, %v1812
        %v1833 = vadd.f32 %v1785, %v1814
        %v1834 = vadd.f32 %v1786, %v1816
        %v1835 = vadd.f32 %v1787, %v1818
        %v1836 = vadd.f32 %v1788, %v1820
        %vm1837 = vcmask 15368
        %1838 = vst.msk [vmem:[#allocation3] sm:$0xff] %vm1837, %v1821
        %1839 = vst.msk [vmem:[#allocation3 + $0x8] sm:$0xff] %vm1837, %v1822
        %1840 = vst.msk [vmem:[#allocation3 + $0x10] sm:$0xff] %vm1837, %v1823
        %1841 = vst.msk [vmem:[#allocation3 + $0x18] sm:$0xff] %vm1837, %v1824
        %1842 = vst.msk [vmem:[#allocation3 + $0x20] sm:$0xff] %vm1837, %v1825
        %1843 = vst.msk [vmem:[#allocation3 + $0x28] sm:$0xff] %vm1837, %v1826
        %1844 = vst.msk [vmem:[#allocation3 + $0x30] sm:$0xff] %vm1837, %v1827
        %1845 = vst.msk [vmem:[#allocation3 + $0x38] sm:$0xff] %vm1837, %v1828
        %1846 = vst.msk [vmem:[#allocation3 + $0x40] sm:$0xff] %vm1837, %v1829
        %1847 = vst.msk [vmem:[#allocation3 + $0x48] sm:$0xff] %vm1837, %v1830
        %1848 = vst.msk [vmem:[#allocation3 + $0x50] sm:$0xff] %vm1837, %v1831
        %1849 = vst.msk [vmem:[#allocation3 + $0x58] sm:$0xff] %vm1837, %v1832
        %1850 = vst.msk [vmem:[#allocation3 + $0x60] sm:$0xff] %vm1837, %v1833
        %1851 = vst.msk [vmem:[#allocation3 + $0x68] sm:$0xff] %vm1837, %v1834
        %1852 = vst.msk [vmem:[#allocation3 + $0x70] sm:$0xff] %vm1837, %v1835
        %1853 = vst.msk [vmem:[#allocation3 + $0x78] sm:$0xff] %vm1837, %v1836
        %v1854 = vpack.c.bf16 %v1742, %v1741
        %v1855 = vpack.c.bf16 %v1744, %v1743
        %v1856 = vpack.c.bf16 %v1746, %v1745
        %v1857 = vpack.c.bf16 %v1748, %v1747
        %v1858 = vpack.c.bf16 %v1750, %v1749
        %v1859 = vpack.c.bf16 %v1752, %v1751
        %v1860 = vpack.c.bf16 %v1754, %v1753
        %v1861 = vpack.c.bf16 %v1756, %v1755
        %1862 = vrot.lane.b32.xlu0 %v1111, 112
        %v1863 = vpop.permute.xlu0 %1862
        %1864 = vrot.lane.b32.xlu0 %v1112, 112
        %v1865 = vpop.permute.xlu0 %1864
        %1866 = vrot.lane.b32.xlu0 %v1113, 112
        %v1867 = vpop.permute.xlu0 %1866
        %1868 = vrot.lane.b32.xlu0 %v1114, 112
        %v1869 = vpop.permute.xlu0 %1868
        %1870 = vrot.lane.b32.xlu0 %v1115, 112
        %v1871 = vpop.permute.xlu0 %1870
        %1872 = vrot.lane.b32.xlu0 %v1116, 112
        %v1873 = vpop.permute.xlu0 %1872
        %1874 = vrot.lane.b32.xlu0 %v1117, 112
        %v1875 = vpop.permute.xlu0 %1874
        %1876 = vrot.lane.b32.xlu0 %v1118, 112
        %v1877 = vpop.permute.xlu0 %1876
        %1886 = vmatprep.subr.bf16.mxu0 0
        %1887 = vmatpush1.bf16.msra.mxu0 %v1863
        %1888 = vmatprep.subr.bf16.mxu0 0
        %1889 = vmatpush1.bf16.msra.mxu0 %v1865
        %1890 = vmatprep.subr.bf16.mxu0 0
        %1891 = vmatpush1.bf16.msra.mxu0 %v1867
        %1892 = vmatprep.subr.bf16.mxu0 0
        %1893 = vmatpush1.bf16.msra.mxu0 %v1869
        %1894 = vmatprep.subr.bf16.mxu0 0
        %1895 = vmatpush1.bf16.msra.mxu0 %v1871
        %1896 = vmatprep.subr.bf16.mxu0 0
        %1897 = vmatpush1.bf16.msra.mxu0 %v1873
        %1898 = vmatprep.subr.bf16.mxu0 0
        %1899 = vmatpush1.bf16.msra.mxu0 %v1875
        %1900 = vmatprep.subr.bf16.mxu0 0
        %1901 = vmatpush1.bf16.msra.mxu0 %v1877
        %1902 = vmatprep.subr.bf16.mxu0 0
        %1903 = vmatpush1.bf16.msra.mxu0 0
        %1904 = vmatprep.subr.bf16.mxu0 0
        %1905 = vmatpush1.bf16.msra.mxu0 0
        %1906 = vmatprep.subr.bf16.mxu0 0
        %1907 = vmatpush1.bf16.msra.mxu0 0
        %1908 = vmatprep.subr.bf16.mxu0 0
        %1909 = vmatpush1.bf16.msra.mxu0 0
        %1910 = vmatprep.subr.bf16.mxu0 0
        %1911 = vmatpush1.bf16.msra.mxu0 0
        %1912 = vmatprep.subr.bf16.mxu0 0
        %1913 = vmatpush1.bf16.msra.mxu0 0
        %1914 = vmatprep.subr.bf16.mxu0 0
        %1915 = vmatpush1.bf16.msra.mxu0 0
        %1916 = vmatprep.subr.bf16.mxu0 0
        %1917 = vmatpush1.bf16.msra.mxu0 0
        %1918 = vmatprep.mubr.bf16.mxu0 0
        %1919 = vmatmul.mubr.bf16.gmra.mrb[0].mxu0 %v1854
        %v1920 = vpop.f32.mrb[0].mxu0
        %v1921 = vadd.f32 0.0, %v1920
        %v1922 = vpop.f32.mrb[0].mxu0
        %v1923 = vpop.f32.mrb[0].mxu0
        %v1924 = vadd.f32 0.0, %v1923
        %v1925 = vpop.f32.mrb[0].mxu0
        %1926 = vmatprep.mubr.bf16.mxu0 0
        %1927 = vmatmul.mubr.bf16.gmra.mrb[0].mxu0 %v1855
        %v1928 = vpop.f32.mrb[0].mxu0
        %v1929 = vadd.f32 0.0, %v1928
        %v1930 = vpop.f32.mrb[0].mxu0
        %v1931 = vpop.f32.mrb[0].mxu0
        %v1932 = vadd.f32 0.0, %v1931
        %v1933 = vpop.f32.mrb[0].mxu0
        %1934 = vmatprep.mubr.bf16.mxu0 0
        %1935 = vmatmul.mubr.bf16.gmra.mrb[0].mxu0 %v1856
        %v1936 = vpop.f32.mrb[0].mxu0
        %v1937 = vadd.f32 0.0, %v1936
        %v1938 = vpop.f32.mrb[0].mxu0
        %v1939 = vpop.f32.mrb[0].mxu0
        %v1940 = vadd.f32 0.0, %v1939
        %v1941 = vpop.f32.mrb[0].mxu0
        %1942 = vmatprep.mubr.bf16.mxu0 0
        %1943 = vmatmul.mubr.bf16.gmra.mrb[0].mxu0 %v1857
        %v1944 = vpop.f32.mrb[0].mxu0
        %v1945 = vadd.f32 0.0, %v1944
        %v1946 = vpop.f32.mrb[0].mxu0
        %v1947 = vpop.f32.mrb[0].mxu0
        %v1948 = vadd.f32 0.0, %v1947
        %v1949 = vpop.f32.mrb[0].mxu0
        %1950 = vmatprep.mubr.bf16.mxu0 0
        %1951 = vmatmul.mubr.bf16.gmra.mrb[0].mxu0 %v1858
        %v1952 = vpop.f32.mrb[0].mxu0
        %v1953 = vadd.f32 0.0, %v1952
        %v1954 = vpop.f32.mrb[0].mxu0
        %v1955 = vpop.f32.mrb[0].mxu0
        %v1956 = vadd.f32 0.0, %v1955
        %v1957 = vpop.f32.mrb[0].mxu0
        %1958 = vmatprep.mubr.bf16.mxu0 0
        %1959 = vmatmul.mubr.bf16.gmra.mrb[0].mxu0 %v1859
        %v1960 = vpop.f32.mrb[0].mxu0
        %v1961 = vadd.f32 0.0, %v1960
        %v1962 = vpop.f32.mrb[0].mxu0
        %v1963 = vpop.f32.mrb[0].mxu0
        %v1964 = vadd.f32 0.0, %v1963
        %v1965 = vpop.f32.mrb[0].mxu0
        %1966 = vmatprep.mubr.bf16.mxu0 0
        %1967 = vmatmul.mubr.bf16.gmra.mrb[0].mxu0 %v1860
        %v1968 = vpop.f32.mrb[0].mxu0
        %v1969 = vadd.f32 0.0, %v1968
        %v1970 = vpop.f32.mrb[0].mxu0
        %v1971 = vpop.f32.mrb[0].mxu0
        %v1972 = vadd.f32 0.0, %v1971
        %v1973 = vpop.f32.mrb[0].mxu0
        %1974 = vmatprep.mubr.bf16.mxu0 0
        %1975 = vmatmul.mubr.bf16.gmra.mrb[0].mxu0 %v1861
        %v1976 = vpop.f32.mrb[0].mxu0
        %v1977 = vadd.f32 0.0, %v1976
        %v1978 = vpop.f32.mrb[0].mxu0
        %v1979 = vpop.f32.mrb[0].mxu0
        %v1980 = vadd.f32 0.0, %v1979
        %v1981 = vpop.f32.mrb[0].mxu0
        %1982 = vdwg.mxu0
        %v1983 = vld [vmem:[#allocation4] sm:$0xff]
        %v1984 = vld [vmem:[#allocation4 + $0x8] sm:$0xff]
        %v1985 = vld [vmem:[#allocation4 + $0x10] sm:$0xff]
        %v1986 = vld [vmem:[#allocation4 + $0x18] sm:$0xff]
        %v1987 = vld [vmem:[#allocation4 + $0x20] sm:$0xff]
        %v1988 = vld [vmem:[#allocation4 + $0x28] sm:$0xff]
        %v1989 = vld [vmem:[#allocation4 + $0x30] sm:$0xff]
        %v1990 = vld [vmem:[#allocation4 + $0x38] sm:$0xff]
        %v1991 = vld [vmem:[#allocation4 + $0x40] sm:$0xff]
        %v1992 = vld [vmem:[#allocation4 + $0x48] sm:$0xff]
        %v1993 = vld [vmem:[#allocation4 + $0x50] sm:$0xff]
        %v1994 = vld [vmem:[#allocation4 + $0x58] sm:$0xff]
        %v1995 = vld [vmem:[#allocation4 + $0x60] sm:$0xff]
        %v1996 = vld [vmem:[#allocation4 + $0x68] sm:$0xff]
        %v1997 = vld [vmem:[#allocation4 + $0x70] sm:$0xff]
        %v1998 = vld [vmem:[#allocation4 + $0x78] sm:$0xff]
        %2000 = vset.pattern.permute.xlu0 1
        %2001 = vperm.xlu0 %2000, %v1582
        %v2002 = vpop.permute.xlu0 %2001
        %2005 = vset.pattern.permute.xlu0 1
        %2006 = vperm.xlu0 %2005, %v1584
        %v2007 = vpop.permute.xlu0 %2006
        %2010 = vset.pattern.permute.xlu0 1
        %2011 = vperm.xlu0 %2010, %v1586
        %v2012 = vpop.permute.xlu0 %2011
        %2015 = vset.pattern.permute.xlu0 1
        %2016 = vperm.xlu0 %2015, %v1588
        %v2017 = vpop.permute.xlu0 %2016
        %2020 = vset.pattern.permute.xlu0 1
        %2021 = vperm.xlu0 %2020, %v1590
        %v2022 = vpop.permute.xlu0 %2021
        %2025 = vset.pattern.permute.xlu0 1
        %2026 = vperm.xlu0 %2025, %v1592
        %v2027 = vpop.permute.xlu0 %2026
        %2030 = vset.pattern.permute.xlu0 1
        %2031 = vperm.xlu0 %2030, %v1594
        %v2032 = vpop.permute.xlu0 %2031
        %2035 = vset.pattern.permute.xlu0 1
        %2036 = vperm.xlu0 %2035, %v1596
        %v2037 = vpop.permute.xlu0 %2036
        %2040 = vset.pattern.permute.xlu0 1
        %2041 = vperm.xlu0 %2040, %v1598
        %v2042 = vpop.permute.xlu0 %2041
        %2045 = vset.pattern.permute.xlu0 1
        %2046 = vperm.xlu0 %2045, %v1600
        %v2047 = vpop.permute.xlu0 %2046
        %2050 = vset.pattern.permute.xlu0 1
        %2051 = vperm.xlu0 %2050, %v1602
        %v2052 = vpop.permute.xlu0 %2051
        %2055 = vset.pattern.permute.xlu0 1
        %2056 = vperm.xlu0 %2055, %v1604
        %v2057 = vpop.permute.xlu0 %2056
        %2060 = vset.pattern.permute.xlu0 1
        %2061 = vperm.xlu0 %2060, %v1606
        %v2062 = vpop.permute.xlu0 %2061
        %2065 = vset.pattern.permute.xlu0 1
        %2066 = vperm.xlu0 %2065, %v1608
        %v2067 = vpop.permute.xlu0 %2066
        %2070 = vset.pattern.permute.xlu0 1
        %2071 = vperm.xlu0 %2070, %v1610
        %v2072 = vpop.permute.xlu0 %2071
        %2075 = vset.pattern.permute.xlu0 1
        %2076 = vperm.xlu0 %2075, %v1612
        %v2077 = vpop.permute.xlu0 %2076
        %v2079 = vmul.f32 %v2002, %v1983
        %v2080 = vmul.f32 %v2007, %v1984
        %v2081 = vmul.f32 %v2012, %v1985
        %v2082 = vmul.f32 %v2017, %v1986
        %v2083 = vmul.f32 %v2022, %v1987
        %v2084 = vmul.f32 %v2027, %v1988
        %v2085 = vmul.f32 %v2032, %v1989
        %v2086 = vmul.f32 %v2037, %v1990
        %v2087 = vmul.f32 %v2042, %v1991
        %v2088 = vmul.f32 %v2047, %v1992
        %v2089 = vmul.f32 %v2052, %v1993
        %v2090 = vmul.f32 %v2057, %v1994
        %v2091 = vmul.f32 %v2062, %v1995
        %v2092 = vmul.f32 %v2067, %v1996
        %v2093 = vmul.f32 %v2072, %v1997
        %v2094 = vmul.f32 %v2077, %v1998
        %2111 = vrot.lane.b32.xlu0 %v1921, 16
        %v2112 = vpop.permute.xlu0 %2111
        %2113 = vrot.lane.b32.xlu0 %v1924, 16
        %v2114 = vpop.permute.xlu0 %2113
        %2115 = vrot.lane.b32.xlu0 %v1929, 16
        %v2116 = vpop.permute.xlu0 %2115
        %2117 = vrot.lane.b32.xlu0 %v1932, 16
        %v2118 = vpop.permute.xlu0 %2117
        %2119 = vrot.lane.b32.xlu0 %v1937, 16
        %v2120 = vpop.permute.xlu0 %2119
        %2121 = vrot.lane.b32.xlu0 %v1940, 16
        %v2122 = vpop.permute.xlu0 %2121
        %2123 = vrot.lane.b32.xlu0 %v1945, 16
        %v2124 = vpop.permute.xlu0 %2123
        %2125 = vrot.lane.b32.xlu0 %v1948, 16
        %v2126 = vpop.permute.xlu0 %2125
        %2127 = vrot.lane.b32.xlu0 %v1953, 16
        %v2128 = vpop.permute.xlu0 %2127
        %2129 = vrot.lane.b32.xlu0 %v1956, 16
        %v2130 = vpop.permute.xlu0 %2129
        %2131 = vrot.lane.b32.xlu0 %v1961, 16
        %v2132 = vpop.permute.xlu0 %2131
        %2133 = vrot.lane.b32.xlu0 %v1964, 16
        %v2134 = vpop.permute.xlu0 %2133
        %2135 = vrot.lane.b32.xlu0 %v1969, 16
        %v2136 = vpop.permute.xlu0 %2135
        %2137 = vrot.lane.b32.xlu0 %v1972, 16
        %v2138 = vpop.permute.xlu0 %2137
        %2139 = vrot.lane.b32.xlu0 %v1977, 16
        %v2140 = vpop.permute.xlu0 %2139
        %2141 = vrot.lane.b32.xlu0 %v1980, 16
        %v2142 = vpop.permute.xlu0 %2141
        %v2159 = vadd.f32 %v2079, %v2112
        %v2160 = vadd.f32 %v2080, %v2114
        %v2161 = vadd.f32 %v2081, %v2116
        %v2162 = vadd.f32 %v2082, %v2118
        %v2163 = vadd.f32 %v2083, %v2120
        %v2164 = vadd.f32 %v2084, %v2122
        %v2165 = vadd.f32 %v2085, %v2124
        %v2166 = vadd.f32 %v2086, %v2126
        %v2167 = vadd.f32 %v2087, %v2128
        %v2168 = vadd.f32 %v2088, %v2130
        %v2169 = vadd.f32 %v2089, %v2132
        %v2170 = vadd.f32 %v2090, %v2134
        %v2171 = vadd.f32 %v2091, %v2136
        %v2172 = vadd.f32 %v2092, %v2138
        %v2173 = vadd.f32 %v2093, %v2140
        %v2174 = vadd.f32 %v2094, %v2142
        %vm2175 = vcmask 261248
        %2176 = vst.msk [vmem:[#allocation4] sm:$0xff] %vm2175, %v2159
        %2177 = vst.msk [vmem:[#allocation4 + $0x8] sm:$0xff] %vm2175, %v2160
        %2178 = vst.msk [vmem:[#allocation4 + $0x10] sm:$0xff] %vm2175, %v2161
        %2179 = vst.msk [vmem:[#allocation4 + $0x18] sm:$0xff] %vm2175, %v2162
        %2180 = vst.msk [vmem:[#allocation4 + $0x20] sm:$0xff] %vm2175, %v2163
        %2181 = vst.msk [vmem:[#allocation4 + $0x28] sm:$0xff] %vm2175, %v2164
        %2182 = vst.msk [vmem:[#allocation4 + $0x30] sm:$0xff] %vm2175, %v2165
        %2183 = vst.msk [vmem:[#allocation4 + $0x38] sm:$0xff] %vm2175, %v2166
        %2184 = vst.msk [vmem:[#allocation4 + $0x40] sm:$0xff] %vm2175, %v2167
        %2185 = vst.msk [vmem:[#allocation4 + $0x48] sm:$0xff] %vm2175, %v2168
        %2186 = vst.msk [vmem:[#allocation4 + $0x50] sm:$0xff] %vm2175, %v2169
        %2187 = vst.msk [vmem:[#allocation4 + $0x58] sm:$0xff] %vm2175, %v2170
        %2188 = vst.msk [vmem:[#allocation4 + $0x60] sm:$0xff] %vm2175, %v2171
        %2189 = vst.msk [vmem:[#allocation4 + $0x68] sm:$0xff] %vm2175, %v2172
        %2190 = vst.msk [vmem:[#allocation4 + $0x70] sm:$0xff] %vm2175, %v2173
        %2191 = vst.msk [vmem:[#allocation4 + $0x78] sm:$0xff] %vm2175, %v2174
        %2192 = vst.msk [vmem:[#allocation2] sm:$0xff] %vm1837, %v1549
        %2193 = vst.msk [vmem:[#allocation2 + $0x8] sm:$0xff] %vm1837, %v1550
        %2194 = vst.msk [vmem:[#allocation2 + $0x10] sm:$0xff] %vm1837, %v1551
        %2195 = vst.msk [vmem:[#allocation2 + $0x18] sm:$0xff] %vm1837, %v1552
        %2196 = vst.msk [vmem:[#allocation2 + $0x20] sm:$0xff] %vm1837, %v1553
        %2197 = vst.msk [vmem:[#allocation2 + $0x28] sm:$0xff] %vm1837, %v1554
        %2198 = vst.msk [vmem:[#allocation2 + $0x30] sm:$0xff] %vm1837, %v1555
        %2199 = vst.msk [vmem:[#allocation2 + $0x38] sm:$0xff] %vm1837, %v1556
        %2200 = vst.msk [vmem:[#allocation2 + $0x40] sm:$0xff] %vm1837, %v1557
        %2201 = vst.msk [vmem:[#allocation2 + $0x48] sm:$0xff] %vm1837, %v1558
        %2202 = vst.msk [vmem:[#allocation2 + $0x50] sm:$0xff] %vm1837, %v1559
        %2203 = vst.msk [vmem:[#allocation2 + $0x58] sm:$0xff] %vm1837, %v1560
        %2204 = vst.msk [vmem:[#allocation2 + $0x60] sm:$0xff] %vm1837, %v1561
        %2205 = vst.msk [vmem:[#allocation2 + $0x68] sm:$0xff] %vm1837, %v1562
        %2206 = vst.msk [vmem:[#allocation2 + $0x70] sm:$0xff] %vm1837, %v1563
        %2207 = vst.msk [vmem:[#allocation2 + $0x78] sm:$0xff] %vm1837, %v1564
        %p2208 = scmp.eq.s32.totalorder %s28, 1
        // Predicated region
        $region99: #{tpu_custom_call.1} parent=89 // pred_check
          %p2209 = pneg %p2208
        $region100: #{tpu_custom_call.1} parent=89 // pred_check_branch
          %2211 = sbr.rel (%p2209) target = $region102
        $region101: #{tpu_custom_call.1} parent=89 // pred_region
          %v2212 = vld [vmem:[#allocation3] sm:$0xff]
          %v2213 = vld [vmem:[#allocation3 + $0x8] sm:$0xff]
          %v2214 = vld [vmem:[#allocation3 + $0x10] sm:$0xff]
          %v2215 = vld [vmem:[#allocation3 + $0x18] sm:$0xff]
          %v2216 = vld [vmem:[#allocation3 + $0x20] sm:$0xff]
          %v2217 = vld [vmem:[#allocation3 + $0x28] sm:$0xff]
          %v2218 = vld [vmem:[#allocation3 + $0x30] sm:$0xff]
          %v2219 = vld [vmem:[#allocation3 + $0x38] sm:$0xff]
          %v2220 = vld [vmem:[#allocation3 + $0x40] sm:$0xff]
          %v2221 = vld [vmem:[#allocation3 + $0x48] sm:$0xff]
          %v2222 = vld [vmem:[#allocation3 + $0x50] sm:$0xff]
          %v2223 = vld [vmem:[#allocation3 + $0x58] sm:$0xff]
          %v2224 = vld [vmem:[#allocation3 + $0x60] sm:$0xff]
          %v2225 = vld [vmem:[#allocation3 + $0x68] sm:$0xff]
          %v2226 = vld [vmem:[#allocation3 + $0x70] sm:$0xff]
          %v2227 = vld [vmem:[#allocation3 + $0x78] sm:$0xff]
          %vm2228 = vcmp.gt.f32.partialorder %v2212, 0.0
          %vm2229 = vcmp.gt.f32.partialorder %v2213, 0.0
          %vm2230 = vcmp.gt.f32.partialorder %v2214, 0.0
          %vm2231 = vcmp.gt.f32.partialorder %v2215, 0.0
          %vm2232 = vcmp.gt.f32.partialorder %v2216, 0.0
          %vm2233 = vcmp.gt.f32.partialorder %v2217, 0.0
          %vm2234 = vcmp.gt.f32.partialorder %v2218, 0.0
          %vm2235 = vcmp.gt.f32.partialorder %v2219, 0.0
          %vm2236 = vcmp.gt.f32.partialorder %v2220, 0.0
          %vm2237 = vcmp.gt.f32.partialorder %v2221, 0.0
          %vm2238 = vcmp.gt.f32.partialorder %v2222, 0.0
          %vm2239 = vcmp.gt.f32.partialorder %v2223, 0.0
          %vm2240 = vcmp.gt.f32.partialorder %v2224, 0.0
          %vm2241 = vcmp.gt.f32.partialorder %v2225, 0.0
          %vm2242 = vcmp.gt.f32.partialorder %v2226, 0.0
          %vm2243 = vcmp.gt.f32.partialorder %v2227, 0.0
          %v2244 = vrcp.pop %v2212
          %v2245 = vrcp.pop %v2213
          %v2246 = vrcp.pop %v2214
          %v2247 = vrcp.pop %v2215
          %v2248 = vrcp.pop %v2216
          %v2249 = vrcp.pop %v2217
          %v2250 = vrcp.pop %v2218
          %v2251 = vrcp.pop %v2219
          %v2252 = vrcp.pop %v2220
          %v2253 = vrcp.pop %v2221
          %v2254 = vrcp.pop %v2222
          %v2255 = vrcp.pop %v2223
          %v2256 = vrcp.pop %v2224
          %v2257 = vrcp.pop %v2225
          %v2258 = vrcp.pop %v2226
          %v2259 = vrcp.pop %v2227
          %v2260 = vsel %vm2228, %v2244, 0.0
          %v2261 = vsel %vm2229, %v2245, 0.0
          %v2262 = vsel %vm2230, %v2246, 0.0
          %v2263 = vsel %vm2231, %v2247, 0.0
          %v2264 = vsel %vm2232, %v2248, 0.0
          %v2265 = vsel %vm2233, %v2249, 0.0
          %v2266 = vsel %vm2234, %v2250, 0.0
          %v2267 = vsel %vm2235, %v2251, 0.0
          %v2268 = vsel %vm2236, %v2252, 0.0
          %v2269 = vsel %vm2237, %v2253, 0.0
          %v2270 = vsel %vm2238, %v2254, 0.0
          %v2271 = vsel %vm2239, %v2255, 0.0
          %v2272 = vsel %vm2240, %v2256, 0.0
          %v2273 = vsel %vm2241, %v2257, 0.0
          %v2274 = vsel %vm2242, %v2258, 0.0
          %v2275 = vsel %vm2243, %v2259, 0.0
          %v2276 = vld [vmem:[#allocation4] sm:$0xff]
          %v2277 = vld [vmem:[#allocation4 + $0x8] sm:$0xff]
          %v2278 = vld [vmem:[#allocation4 + $0x10] sm:$0xff]
          %v2279 = vld [vmem:[#allocation4 + $0x18] sm:$0xff]
          %v2280 = vld [vmem:[#allocation4 + $0x20] sm:$0xff]
          %v2281 = vld [vmem:[#allocation4 + $0x28] sm:$0xff]
          %v2282 = vld [vmem:[#allocation4 + $0x30] sm:$0xff]
          %v2283 = vld [vmem:[#allocation4 + $0x38] sm:$0xff]
          %v2284 = vld [vmem:[#allocation4 + $0x40] sm:$0xff]
          %v2285 = vld [vmem:[#allocation4 + $0x48] sm:$0xff]
          %v2286 = vld [vmem:[#allocation4 + $0x50] sm:$0xff]
          %v2287 = vld [vmem:[#allocation4 + $0x58] sm:$0xff]
          %v2288 = vld [vmem:[#allocation4 + $0x60] sm:$0xff]
          %v2289 = vld [vmem:[#allocation4 + $0x68] sm:$0xff]
          %v2290 = vld [vmem:[#allocation4 + $0x70] sm:$0xff]
          %v2291 = vld [vmem:[#allocation4 + $0x78] sm:$0xff]
          %2293 = vset.pattern.permute.xlu0 0
          %2294 = vperm.xlu0 %2293, %v2260
          %v2295 = vpop.permute.xlu0 %2294
          %2298 = vset.pattern.permute.xlu0 0
          %2299 = vperm.xlu0 %2298, %v2261
          %v2300 = vpop.permute.xlu0 %2299
          %2303 = vset.pattern.permute.xlu0 0
          %2304 = vperm.xlu0 %2303, %v2262
          %v2305 = vpop.permute.xlu0 %2304
          %2308 = vset.pattern.permute.xlu0 0
          %2309 = vperm.xlu0 %2308, %v2263
          %v2310 = vpop.permute.xlu0 %2309
          %2313 = vset.pattern.permute.xlu0 0
          %2314 = vperm.xlu0 %2313, %v2264
          %v2315 = vpop.permute.xlu0 %2314
          %2318 = vset.pattern.permute.xlu0 0
          %2319 = vperm.xlu0 %2318, %v2265
          %v2320 = vpop.permute.xlu0 %2319
          %2323 = vset.pattern.permute.xlu0 0
          %2324 = vperm.xlu0 %2323, %v2266
          %v2325 = vpop.permute.xlu0 %2324
          %2328 = vset.pattern.permute.xlu0 0
          %2329 = vperm.xlu0 %2328, %v2267
          %v2330 = vpop.permute.xlu0 %2329
          %2333 = vset.pattern.permute.xlu0 0
          %2334 = vperm.xlu0 %2333, %v2268
          %v2335 = vpop.permute.xlu0 %2334
          %2338 = vset.pattern.permute.xlu0 0
          %2339 = vperm.xlu0 %2338, %v2269
          %v2340 = vpop.permute.xlu0 %2339
          %2343 = vset.pattern.permute.xlu0 0
          %2344 = vperm.xlu0 %2343, %v2270
          %v2345 = vpop.permute.xlu0 %2344
          %2348 = vset.pattern.permute.xlu0 0
          %2349 = vperm.xlu0 %2348, %v2271
          %v2350 = vpop.permute.xlu0 %2349
          %2353 = vset.pattern.permute.xlu0 0
          %2354 = vperm.xlu0 %2353, %v2272
          %v2355 = vpop.permute.xlu0 %2354
          %2358 = vset.pattern.permute.xlu0 0
          %2359 = vperm.xlu0 %2358, %v2273
          %v2360 = vpop.permute.xlu0 %2359
          %2363 = vset.pattern.permute.xlu0 0
          %2364 = vperm.xlu0 %2363, %v2274
          %v2365 = vpop.permute.xlu0 %2364
          %2368 = vset.pattern.permute.xlu0 0
          %2369 = vperm.xlu0 %2368, %v2275
          %v2370 = vpop.permute.xlu0 %2369
          %v2372 = vmul.f32 %v2276, %v2295
          %v2373 = vmul.f32 %v2277, %v2300
          %v2374 = vmul.f32 %v2278, %v2305
          %v2375 = vmul.f32 %v2279, %v2310
          %v2376 = vmul.f32 %v2280, %v2315
          %v2377 = vmul.f32 %v2281, %v2320
          %v2378 = vmul.f32 %v2282, %v2325
          %v2379 = vmul.f32 %v2283, %v2330
          %v2380 = vmul.f32 %v2284, %v2335
          %v2381 = vmul.f32 %v2285, %v2340
          %v2382 = vmul.f32 %v2286, %v2345
          %v2383 = vmul.f32 %v2287, %v2350
          %v2384 = vmul.f32 %v2288, %v2355
          %v2385 = vmul.f32 %v2289, %v2360
          %v2386 = vmul.f32 %v2290, %v2365
          %v2387 = vmul.f32 %v2291, %v2370
          %2388 = vset.pattern.permute.xlu0 1
          %2389 = vperm.xlu0 %2388, %v2260
          %v2390 = vpop.permute.xlu0 %2389
          %2392 = vset.pattern.permute.xlu0 1
          %2393 = vperm.xlu0 %2392, %v2261
          %v2394 = vpop.permute.xlu0 %2393
          %2396 = vset.pattern.permute.xlu0 1
          %2397 = vperm.xlu0 %2396, %v2262
          %v2398 = vpop.permute.xlu0 %2397
          %2400 = vset.pattern.permute.xlu0 1
          %2401 = vperm.xlu0 %2400, %v2263
          %v2402 = vpop.permute.xlu0 %2401
          %2404 = vset.pattern.permute.xlu0 1
          %2405 = vperm.xlu0 %2404, %v2264
          %v2406 = vpop.permute.xlu0 %2405
          %2408 = vset.pattern.permute.xlu0 1
          %2409 = vperm.xlu0 %2408, %v2265
          %v2410 = vpop.permute.xlu0 %2409
          %2412 = vset.pattern.permute.xlu0 1
          %2413 = vperm.xlu0 %2412, %v2266
          %v2414 = vpop.permute.xlu0 %2413
          %2416 = vset.pattern.permute.xlu0 1
          %2417 = vperm.xlu0 %2416, %v2267
          %v2418 = vpop.permute.xlu0 %2417
          %2420 = vset.pattern.permute.xlu0 1
          %2421 = vperm.xlu0 %2420, %v2268
          %v2422 = vpop.permute.xlu0 %2421
          %2424 = vset.pattern.permute.xlu0 1
          %2425 = vperm.xlu0 %2424, %v2269
          %v2426 = vpop.permute.xlu0 %2425
          %2428 = vset.pattern.permute.xlu0 1
          %2429 = vperm.xlu0 %2428, %v2270
          %v2430 = vpop.permute.xlu0 %2429
          %2432 = vset.pattern.permute.xlu0 1
          %2433 = vperm.xlu0 %2432, %v2271
          %v2434 = vpop.permute.xlu0 %2433
          %2436 = vset.pattern.permute.xlu0 1
          %2437 = vperm.xlu0 %2436, %v2272
          %v2438 = vpop.permute.xlu0 %2437
          %2440 = vset.pattern.permute.xlu0 1
          %2441 = vperm.xlu0 %2440, %v2273
          %v2442 = vpop.permute.xlu0 %2441
          %2444 = vset.pattern.permute.xlu0 1
          %2445 = vperm.xlu0 %2444, %v2274
          %v2446 = vpop.permute.xlu0 %2445
          %2448 = vset.pattern.permute.xlu0 1
          %2449 = vperm.xlu0 %2448, %v2275
          %v2450 = vpop.permute.xlu0 %2449
          %v2452 = vmul.f32 %v2276, %v2390
          %v2453 = vmul.f32 %v2277, %v2394
          %v2454 = vmul.f32 %v2278, %v2398
          %v2455 = vmul.f32 %v2279, %v2402
          %v2456 = vmul.f32 %v2280, %v2406
          %v2457 = vmul.f32 %v2281, %v2410
          %v2458 = vmul.f32 %v2282, %v2414
          %v2459 = vmul.f32 %v2283, %v2418
          %v2460 = vmul.f32 %v2284, %v2422
          %v2461 = vmul.f32 %v2285, %v2426
          %v2462 = vmul.f32 %v2286, %v2430
          %v2463 = vmul.f32 %v2287, %v2434
          %v2464 = vmul.f32 %v2288, %v2438
          %v2465 = vmul.f32 %v2289, %v2442
          %v2466 = vmul.f32 %v2290, %v2446
          %v2467 = vmul.f32 %v2291, %v2450
          %v2468 = vsel %vm1352, %v2372, %v2452
          %v2469 = vsel %vm1352, %v2373, %v2453
          %v2470 = vsel %vm1352, %v2374, %v2454
          %v2471 = vsel %vm1352, %v2375, %v2455
          %v2472 = vsel %vm1352, %v2376, %v2456
          %v2473 = vsel %vm1352, %v2377, %v2457
          %v2474 = vsel %vm1352, %v2378, %v2458
          %v2475 = vsel %vm1352, %v2379, %v2459
          %v2476 = vsel %vm1352, %v2380, %v2460
          %v2477 = vsel %vm1352, %v2381, %v2461
          %v2478 = vsel %vm1352, %v2382, %v2462
          %v2479 = vsel %vm1352, %v2383, %v2463
          %v2480 = vsel %vm1352, %v2384, %v2464
          %v2481 = vsel %vm1352, %v2385, %v2465
          %v2482 = vsel %vm1352, %v2386, %v2466
          %v2483 = vsel %vm1352, %v2387, %v2467
          %v2484 = vld [vmem:[%s5] sm:$0xff]
          %v2485 = vld [vmem:[%s5 + $0x8] sm:$0xff]
          %v2486 = vld [vmem:[%s5 + $0x10] sm:$0xff]
          %v2487 = vld [vmem:[%s5 + $0x18] sm:$0xff]
          %v2488 = vld [vmem:[%s6] sm:$0x1]
          %v2490 = vlaneseq
          %v2491 = vshrl.u32 %v2490, 7
          %v2492 = vsub.s32 0, %v2491
          %v2493 = vrot.slane %v2488, %v2492
          %vm2495 = vcmask 261120
          %v2497 = vsel %vm2495, %v2468, 0
          %v2500 = vsel %vm2495, %v2469, 0
          %v2503 = vsel %vm2495, %v2470, 0
          %v2506 = vsel %vm2495, %v2471, 0
          %v2509 = vsel %vm2495, %v2472, 0
          %v2512 = vsel %vm2495, %v2473, 0
          %v2515 = vsel %vm2495, %v2474, 0
          %v2518 = vsel %vm2495, %v2475, 0
          %v2521 = vsel %vm2495, %v2476, 0
          %v2524 = vsel %vm2495, %v2477, 0
          %v2527 = vsel %vm2495, %v2478, 0
          %v2530 = vsel %vm2495, %v2479, 0
          %v2533 = vsel %vm2495, %v2480, 0
          %v2536 = vsel %vm2495, %v2481, 0
          %v2539 = vsel %vm2495, %v2482, 0
          %v2542 = vsel %vm2495, %v2483, 0
          %2544 = vmatprep.subr.mxu0 0.0
          %2545 = vmatpush1.msra.mxu0 %v2484
          %2546 = vmatprep.subr.mxu0 0.0
          %2547 = vmatpush1.msra.mxu0 %v2485
          %2548 = vmatprep.subr.mxu0 0.0
          %2549 = vmatpush1.msra.mxu0 %v2486
          %2550 = vmatprep.subr.mxu0 0.0
          %2551 = vmatpush1.msra.mxu0 %v2487
          %2552 = vmatprep.subr.mxu0 0.0
          %2553 = vmatpush1.msra.mxu0 0.0
          %2554 = vmatprep.subr.mxu0 0.0
          %2555 = vmatpush1.msra.mxu0 0.0
          %2556 = vmatprep.subr.mxu0 0.0
          %2557 = vmatpush1.msra.mxu0 0.0
          %2558 = vmatprep.subr.mxu0 0.0
          %2559 = vmatpush1.msra.mxu0 0.0
          %2560 = vmatprep.subr.mxu0 0.0
          %2561 = vmatpush1.msra.mxu0 0.0
          %2562 = vmatprep.subr.mxu0 0.0
          %2563 = vmatpush1.msra.mxu0 0.0
          %2564 = vmatprep.subr.mxu0 0.0
          %2565 = vmatpush1.msra.mxu0 0.0
          %2566 = vmatprep.subr.mxu0 0.0
          %2567 = vmatpush1.msra.mxu0 0.0
          %2568 = vmatprep.subr.mxu0 0.0
          %2569 = vmatpush1.msra.mxu0 0.0
          %2570 = vmatprep.subr.mxu0 0.0
          %2571 = vmatpush1.msra.mxu0 0.0
          %2572 = vmatprep.subr.mxu0 0.0
          %2573 = vmatpush1.msra.mxu0 0.0
          %2574 = vmatprep.subr.mxu0 0.0
          %2575 = vmatpush1.msra.mxu0 0.0
          %2576 = vmatprep.subr.mxu0 0.0
          %2577 = vmatpush1.msra.mxu0 0.0
          %2578 = vmatprep.subr.mxu0 0.0
          %2579 = vmatpush1.msra.mxu0 0.0
          %2580 = vmatprep.subr.mxu0 0.0
          %2581 = vmatpush1.msra.mxu0 0.0
          %2582 = vmatprep.subr.mxu0 0.0
          %2583 = vmatpush1.msra.mxu0 0.0
          %2584 = vmatprep.subr.mxu0 0.0
          %2585 = vmatpush1.msra.mxu0 0.0
          %2586 = vmatprep.subr.mxu0 0.0
          %2587 = vmatpush1.msra.mxu0 0.0
          %2588 = vmatprep.subr.mxu0 0.0
          %2589 = vmatpush1.msra.mxu0 0.0
          %2590 = vmatprep.subr.mxu0 0.0
          %2591 = vmatpush1.msra.mxu0 0.0
          %2592 = vmatprep.subr.mxu0 0.0
          %2593 = vmatpush1.msra.mxu0 0.0
          %2594 = vmatprep.subr.mxu0 0.0
          %2595 = vmatpush1.msra.mxu0 0.0
          %2596 = vmatprep.subr.mxu0 0.0
          %2597 = vmatpush1.msra.mxu0 0.0
          %2598 = vmatprep.subr.mxu0 0.0
          %2599 = vmatpush1.msra.mxu0 0.0
          %2600 = vmatprep.subr.mxu0 0.0
          %2601 = vmatpush1.msra.mxu0 0.0
          %2602 = vmatprep.subr.mxu0 0.0
          %2603 = vmatpush1.msra.mxu0 0.0
          %2604 = vmatprep.subr.mxu0 0.0
          %2605 = vmatpush1.msra.mxu0 0.0
          %2606 = vmatprep.subr.mxu0 0.0
          %2607 = vmatpush1.msra.mxu0 0.0
          %2608 = vmatprep.mubr.f32.mxu0 0.0
          %2609 = vmatmul.mubr.f32.gmra.mrb[0].mxu0 %v2497
          %v2610 = vpop.f32.mrb[0].mxu0
          %v2611 = vadd.f32 %v2493, %v2610
          %v2612 = vpop.f32.mrb[0].mxu0
          %2613 = vmatprep.mubr.f32.mxu0 0.0
          %2614 = vmatmul.mubr.f32.gmra.mrb[0].mxu0 %v2500
          %v2615 = vpop.f32.mrb[0].mxu0
          %v2616 = vadd.f32 %v2493, %v2615
          %v2617 = vpop.f32.mrb[0].mxu0
          %2618 = vmatprep.mubr.f32.mxu0 0.0
          %2619 = vmatmul.mubr.f32.gmra.mrb[0].mxu0 %v2503
          %v2620 = vpop.f32.mrb[0].mxu0
          %v2621 = vadd.f32 %v2493, %v2620
          %v2622 = vpop.f32.mrb[0].mxu0
          %2623 = vmatprep.mubr.f32.mxu0 0.0
          %2624 = vmatmul.mubr.f32.gmra.mrb[0].mxu0 %v2506
          %v2625 = vpop.f32.mrb[0].mxu0
          %v2626 = vadd.f32 %v2493, %v2625
          %v2627 = vpop.f32.mrb[0].mxu0
          %2628 = vmatprep.mubr.f32.mxu0 0.0
          %2629 = vmatmul.mubr.f32.gmra.mrb[0].mxu0 %v2509
          %v2630 = vpop.f32.mrb[0].mxu0
          %v2631 = vadd.f32 %v2493, %v2630
          %v2632 = vpop.f32.mrb[0].mxu0
          %2633 = vmatprep.mubr.f32.mxu0 0.0
          %2634 = vmatmul.mubr.f32.gmra.mrb[0].mxu0 %v2512
          %v2635 = vpop.f32.mrb[0].mxu0
          %v2636 = vadd.f32 %v2493, %v2635
          %v2637 = vpop.f32.mrb[0].mxu0
          %2638 = vmatprep.mubr.f32.mxu0 0.0
          %2639 = vmatmul.mubr.f32.gmra.mrb[0].mxu0 %v2515
          %v2640 = vpop.f32.mrb[0].mxu0
          %v2641 = vadd.f32 %v2493, %v2640
          %v2642 = vpop.f32.mrb[0].mxu0
          %2643 = vmatprep.mubr.f32.mxu0 0.0
          %2644 = vmatmul.mubr.f32.gmra.mrb[0].mxu0 %v2518
          %v2645 = vpop.f32.mrb[0].mxu0
          %v2646 = vadd.f32 %v2493, %v2645
          %v2647 = vpop.f32.mrb[0].mxu0
          %2648 = vmatprep.mubr.f32.mxu0 0.0
          %2649 = vmatmul.mubr.f32.gmra.mrb[0].mxu0 %v2521
          %v2650 = vpop.f32.mrb[0].mxu0
          %v2651 = vadd.f32 %v2493, %v2650
          %v2652 = vpop.f32.mrb[0].mxu0
          %2653 = vmatprep.mubr.f32.mxu0 0.0
          %2654 = vmatmul.mubr.f32.gmra.mrb[0].mxu0 %v2524
          %v2655 = vpop.f32.mrb[0].mxu0
          %v2656 = vadd.f32 %v2493, %v2655
          %v2657 = vpop.f32.mrb[0].mxu0
          %2658 = vmatprep.mubr.f32.mxu0 0.0
          %2659 = vmatmul.mubr.f32.gmra.mrb[0].mxu0 %v2527
          %v2660 = vpop.f32.mrb[0].mxu0
          %v2661 = vadd.f32 %v2493, %v2660
          %v2662 = vpop.f32.mrb[0].mxu0
          %2663 = vmatprep.mubr.f32.mxu0 0.0
          %2664 = vmatmul.mubr.f32.gmra.mrb[0].mxu0 %v2530
          %v2665 = vpop.f32.mrb[0].mxu0
          %v2666 = vadd.f32 %v2493, %v2665
          %v2667 = vpop.f32.mrb[0].mxu0
          %2668 = vmatprep.mubr.f32.mxu0 0.0
          %2669 = vmatmul.mubr.f32.gmra.mrb[0].mxu0 %v2533
          %v2670 = vpop.f32.mrb[0].mxu0
          %v2671 = vadd.f32 %v2493, %v2670
          %v2672 = vpop.f32.mrb[0].mxu0
          %2673 = vmatprep.mubr.f32.mxu0 0.0
          %2674 = vmatmul.mubr.f32.gmra.mrb[0].mxu0 %v2536
          %v2675 = vpop.f32.mrb[0].mxu0
          %v2676 = vadd.f32 %v2493, %v2675
          %v2677 = vpop.f32.mrb[0].mxu0
          %2678 = vmatprep.mubr.f32.mxu0 0.0
          %2679 = vmatmul.mubr.f32.gmra.mrb[0].mxu0 %v2539
          %v2680 = vpop.f32.mrb[0].mxu0
          %v2681 = vadd.f32 %v2493, %v2680
          %v2682 = vpop.f32.mrb[0].mxu0
          %2683 = vmatprep.mubr.f32.mxu0 0.0
          %2684 = vmatmul.mubr.f32.gmra.mrb[0].mxu0 %v2542
          %v2685 = vpop.f32.mrb[0].mxu0
          %v2686 = vadd.f32 %v2493, %v2685
          %v2687 = vpop.f32.mrb[0].mxu0
          %2688 = vdwg.mxu0
          %v2689 = vmax.f32 %v2611, 0.0
          %v2690 = vmax.f32 %v2616, 0.0
          %v2691 = vmax.f32 %v2621, 0.0
          %v2692 = vmax.f32 %v2626, 0.0
          %v2693 = vmax.f32 %v2631, 0.0
          %v2694 = vmax.f32 %v2636, 0.0
          %v2695 = vmax.f32 %v2641, 0.0
          %v2696 = vmax.f32 %v2646, 0.0
          %v2697 = vmax.f32 %v2651, 0.0
          %v2698 = vmax.f32 %v2656, 0.0
          %v2699 = vmax.f32 %v2661, 0.0
          %v2700 = vmax.f32 %v2666, 0.0
          %v2701 = vmax.f32 %v2671, 0.0
          %v2702 = vmax.f32 %v2676, 0.0
          %v2703 = vmax.f32 %v2681, 0.0
          %v2704 = vmax.f32 %v2686, 0.0
          %v2705 = vld [vmem:[%s7] sm:$0xff]
          %v2706 = vld [vmem:[%s7 + $0x8] sm:$0xff]
          %v2707 = vld [vmem:[%s7 + $0x10] sm:$0xff]
          %v2708 = vld [vmem:[%s7 + $0x18] sm:$0xff]
          %v2709 = vld [vmem:[%s8] sm:$0x1]
          %v2711 = vlaneseq
          %v2712 = vshrl.u32 %v2711, 7
          %v2713 = vsub.s32 0, %v2712
          %v2714 = vrot.slane %v2709, %v2713
          %v2717 = vsel %vm2495, %v2689, 0
          %v2720 = vsel %vm2495, %v2690, 0
          %v2723 = vsel %vm2495, %v2691, 0
          %v2726 = vsel %vm2495, %v2692, 0
          %v2729 = vsel %vm2495, %v2693, 0
          %v2732 = vsel %vm2495, %v2694, 0
          %v2735 = vsel %vm2495, %v2695, 0
          %v2738 = vsel %vm2495, %v2696, 0
          %v2741 = vsel %vm2495, %v2697, 0
          %v2744 = vsel %vm2495, %v2698, 0
          %v2747 = vsel %vm2495, %v2699, 0
          %v2750 = vsel %vm2495, %v2700, 0
          %v2753 = vsel %vm2495, %v2701, 0
          %v2756 = vsel %vm2495, %v2702, 0
          %v2759 = vsel %vm2495, %v2703, 0
          %v2762 = vsel %vm2495, %v2704, 0
          %2764 = vmatprep.subr.mxu0 0.0
          %2765 = vmatpush1.msra.mxu0 %v2705
          %2766 = vmatprep.subr.mxu0 0.0
          %2767 = vmatpush1.msra.mxu0 %v2706
          %2768 = vmatprep.subr.mxu0 0.0
          %2769 = vmatpush1.msra.mxu0 %v2707
          %2770 = vmatprep.subr.mxu0 0.0
          %2771 = vmatpush1.msra.mxu0 %v2708
          %2772 = vmatprep.subr.mxu0 0.0
          %2773 = vmatpush1.msra.mxu0 0.0
          %2774 = vmatprep.subr.mxu0 0.0
          %2775 = vmatpush1.msra.mxu0 0.0
          %2776 = vmatprep.subr.mxu0 0.0
          %2777 = vmatpush1.msra.mxu0 0.0
          %2778 = vmatprep.subr.mxu0 0.0
          %2779 = vmatpush1.msra.mxu0 0.0
          %2780 = vmatprep.subr.mxu0 0.0
          %2781 = vmatpush1.msra.mxu0 0.0
          %2782 = vmatprep.subr.mxu0 0.0
          %2783 = vmatpush1.msra.mxu0 0.0
          %2784 = vmatprep.subr.mxu0 0.0
          %2785 = vmatpush1.msra.mxu0 0.0
          %2786 = vmatprep.subr.mxu0 0.0
          %2787 = vmatpush1.msra.mxu0 0.0
          %2788 = vmatprep.subr.mxu0 0.0
          %2789 = vmatpush1.msra.mxu0 0.0
          %2790 = vmatprep.subr.mxu0 0.0
          %2791 = vmatpush1.msra.mxu0 0.0
          %2792 = vmatprep.subr.mxu0 0.0
          %2793 = vmatpush1.msra.mxu0 0.0
          %2794 = vmatprep.subr.mxu0 0.0
          %2795 = vmatpush1.msra.mxu0 0.0
          %2796 = vmatprep.subr.mxu0 0.0
          %2797 = vmatpush1.msra.mxu0 0.0
          %2798 = vmatprep.subr.mxu0 0.0
          %2799 = vmatpush1.msra.mxu0 0.0
          %2800 = vmatprep.subr.mxu0 0.0
          %2801 = vmatpush1.msra.mxu0 0.0
          %2802 = vmatprep.subr.mxu0 0.0
          %2803 = vmatpush1.msra.mxu0 0.0
          %2804 = vmatprep.subr.mxu0 0.0
          %2805 = vmatpush1.msra.mxu0 0.0
          %2806 = vmatprep.subr.mxu0 0.0
          %2807 = vmatpush1.msra.mxu0 0.0
          %2808 = vmatprep.subr.mxu0 0.0
          %2809 = vmatpush1.msra.mxu0 0.0
          %2810 = vmatprep.subr.mxu0 0.0
          %2811 = vmatpush1.msra.mxu0 0.0
          %2812 = vmatprep.subr.mxu0 0.0
          %2813 = vmatpush1.msra.mxu0 0.0
          %2814 = vmatprep.subr.mxu0 0.0
          %2815 = vmatpush1.msra.mxu0 0.0
          %2816 = vmatprep.subr.mxu0 0.0
          %2817 = vmatpush1.msra.mxu0 0.0
          %2818 = vmatprep.subr.mxu0 0.0
          %2819 = vmatpush1.msra.mxu0 0.0
          %2820 = vmatprep.subr.mxu0 0.0
          %2821 = vmatpush1.msra.mxu0 0.0
          %2822 = vmatprep.subr.mxu0 0.0
          %2823 = vmatpush1.msra.mxu0 0.0
          %2824 = vmatprep.subr.mxu0 0.0
          %2825 = vmatpush1.msra.mxu0 0.0
          %2826 = vmatprep.subr.mxu0 0.0
          %2827 = vmatpush1.msra.mxu0 0.0
          %2828 = vmatprep.mubr.f32.mxu0 0.0
          %2829 = vmatmul.mubr.f32.gmra.mrb[0].mxu0 %v2717
          %v2830 = vpop.f32.mrb[0].mxu0
          %v2831 = vadd.f32 %v2714, %v2830
          %v2832 = vpop.f32.mrb[0].mxu0
          %2833 = vmatprep.mubr.f32.mxu0 0.0
          %2834 = vmatmul.mubr.f32.gmra.mrb[0].mxu0 %v2720
          %v2835 = vpop.f32.mrb[0].mxu0
          %v2836 = vadd.f32 %v2714, %v2835
          %v2837 = vpop.f32.mrb[0].mxu0
          %2838 = vmatprep.mubr.f32.mxu0 0.0
          %2839 = vmatmul.mubr.f32.gmra.mrb[0].mxu0 %v2723
          %v2840 = vpop.f32.mrb[0].mxu0
          %v2841 = vadd.f32 %v2714, %v2840
          %v2842 = vpop.f32.mrb[0].mxu0
          %2843 = vmatprep.mubr.f32.mxu0 0.0
          %2844 = vmatmul.mubr.f32.gmra.mrb[0].mxu0 %v2726
          %v2845 = vpop.f32.mrb[0].mxu0
          %v2846 = vadd.f32 %v2714, %v2845
          %v2847 = vpop.f32.mrb[0].mxu0
          %2848 = vmatprep.mubr.f32.mxu0 0.0
          %2849 = vmatmul.mubr.f32.gmra.mrb[0].mxu0 %v2729
          %v2850 = vpop.f32.mrb[0].mxu0
          %v2851 = vadd.f32 %v2714, %v2850
          %v2852 = vpop.f32.mrb[0].mxu0
          %2853 = vmatprep.mubr.f32.mxu0 0.0
          %2854 = vmatmul.mubr.f32.gmra.mrb[0].mxu0 %v2732
          %v2855 = vpop.f32.mrb[0].mxu0
          %v2856 = vadd.f32 %v2714, %v2855
          %v2857 = vpop.f32.mrb[0].mxu0
          %2858 = vmatprep.mubr.f32.mxu0 0.0
          %2859 = vmatmul.mubr.f32.gmra.mrb[0].mxu0 %v2735
          %v2860 = vpop.f32.mrb[0].mxu0
          %v2861 = vadd.f32 %v2714, %v2860
          %v2862 = vpop.f32.mrb[0].mxu0
          %2863 = vmatprep.mubr.f32.mxu0 0.0
          %2864 = vmatmul.mubr.f32.gmra.mrb[0].mxu0 %v2738
          %v2865 = vpop.f32.mrb[0].mxu0
          %v2866 = vadd.f32 %v2714, %v2865
          %v2867 = vpop.f32.mrb[0].mxu0
          %2868 = vmatprep.mubr.f32.mxu0 0.0
          %2869 = vmatmul.mubr.f32.gmra.mrb[0].mxu0 %v2741
          %v2870 = vpop.f32.mrb[0].mxu0
          %v2871 = vadd.f32 %v2714, %v2870
          %v2872 = vpop.f32.mrb[0].mxu0
          %2873 = vmatprep.mubr.f32.mxu0 0.0
          %2874 = vmatmul.mubr.f32.gmra.mrb[0].mxu0 %v2744
          %v2875 = vpop.f32.mrb[0].mxu0
          %v2876 = vadd.f32 %v2714, %v2875
          %v2877 = vpop.f32.mrb[0].mxu0
          %2878 = vmatprep.mubr.f32.mxu0 0.0
          %2879 = vmatmul.mubr.f32.gmra.mrb[0].mxu0 %v2747
          %v2880 = vpop.f32.mrb[0].mxu0
          %v2881 = vadd.f32 %v2714, %v2880
          %v2882 = vpop.f32.mrb[0].mxu0
          %2883 = vmatprep.mubr.f32.mxu0 0.0
          %2884 = vmatmul.mubr.f32.gmra.mrb[0].mxu0 %v2750
          %v2885 = vpop.f32.mrb[0].mxu0
          %v2886 = vadd.f32 %v2714, %v2885
          %v2887 = vpop.f32.mrb[0].mxu0
          %2888 = vmatprep.mubr.f32.mxu0 0.0
          %2889 = vmatmul.mubr.f32.gmra.mrb[0].mxu0 %v2753
          %v2890 = vpop.f32.mrb[0].mxu0
          %v2891 = vadd.f32 %v2714, %v2890
          %v2892 = vpop.f32.mrb[0].mxu0
          %2893 = vmatprep.mubr.f32.mxu0 0.0
          %2894 = vmatmul.mubr.f32.gmra.mrb[0].mxu0 %v2756
          %v2895 = vpop.f32.mrb[0].mxu0
          %v2896 = vadd.f32 %v2714, %v2895
          %v2897 = vpop.f32.mrb[0].mxu0
          %2898 = vmatprep.mubr.f32.mxu0 0.0
          %2899 = vmatmul.mubr.f32.gmra.mrb[0].mxu0 %v2759
          %v2900 = vpop.f32.mrb[0].mxu0
          %v2901 = vadd.f32 %v2714, %v2900
          %v2902 = vpop.f32.mrb[0].mxu0
          %2903 = vmatprep.mubr.f32.mxu0 0.0
          %2904 = vmatmul.mubr.f32.gmra.mrb[0].mxu0 %v2762
          %v2905 = vpop.f32.mrb[0].mxu0
          %v2906 = vadd.f32 %v2714, %v2905
          %v2907 = vpop.f32.mrb[0].mxu0
          %2908 = vdwg.mxu0
          %v2909 = vmax.f32 %v2831, 0.0
          %v2910 = vmax.f32 %v2836, 0.0
          %v2911 = vmax.f32 %v2841, 0.0
          %v2912 = vmax.f32 %v2846, 0.0
          %v2913 = vmax.f32 %v2851, 0.0
          %v2914 = vmax.f32 %v2856, 0.0
          %v2915 = vmax.f32 %v2861, 0.0
          %v2916 = vmax.f32 %v2866, 0.0
          %v2917 = vmax.f32 %v2871, 0.0
          %v2918 = vmax.f32 %v2876, 0.0
          %v2919 = vmax.f32 %v2881, 0.0
          %v2920 = vmax.f32 %v2886, 0.0
          %v2921 = vmax.f32 %v2891, 0.0
          %v2922 = vmax.f32 %v2896, 0.0
          %v2923 = vmax.f32 %v2901, 0.0
          %v2924 = vmax.f32 %v2906, 0.0
          %v2925 = vld [vmem:[%s454] sm:$0xff]
          %v2926 = vld [vmem:[%s454 + $0x8] sm:$0xff]
          %v2927 = vld [vmem:[%s454 + $0x10] sm:$0xff]
          %v2928 = vld [vmem:[%s454 + $0x18] sm:$0xff]
          %v2929 = vld [vmem:[%s454 + $0x20] sm:$0xff]
          %v2930 = vld [vmem:[%s454 + $0x28] sm:$0xff]
          %v2931 = vld [vmem:[%s454 + $0x30] sm:$0xff]
          %v2932 = vld [vmem:[%s454 + $0x38] sm:$0xff]
          %v2933 = vld [vmem:[%s454 + $0x40] sm:$0xff]
          %v2934 = vld [vmem:[%s454 + $0x48] sm:$0xff]
          %v2935 = vld [vmem:[%s454 + $0x50] sm:$0xff]
          %v2936 = vld [vmem:[%s454 + $0x58] sm:$0xff]
          %v2937 = vld [vmem:[%s454 + $0x60] sm:$0xff]
          %v2938 = vld [vmem:[%s454 + $0x68] sm:$0xff]
          %v2939 = vld [vmem:[%s454 + $0x70] sm:$0xff]
          %v2940 = vld [vmem:[%s454 + $0x78] sm:$0xff]
          %v2941 = vadd.f32 %v2909, %v2925
          %v2942 = vadd.f32 %v2910, %v2926
          %v2943 = vadd.f32 %v2911, %v2927
          %v2944 = vadd.f32 %v2912, %v2928
          %v2945 = vadd.f32 %v2913, %v2929
          %v2946 = vadd.f32 %v2914, %v2930
          %v2947 = vadd.f32 %v2915, %v2931
          %v2948 = vadd.f32 %v2916, %v2932
          %v2949 = vadd.f32 %v2917, %v2933
          %v2950 = vadd.f32 %v2918, %v2934
          %v2951 = vadd.f32 %v2919, %v2935
          %v2952 = vadd.f32 %v2920, %v2936
          %v2953 = vadd.f32 %v2921, %v2937
          %v2954 = vadd.f32 %v2922, %v2938
          %v2955 = vadd.f32 %v2923, %v2939
          %v2956 = vadd.f32 %v2924, %v2940
          %v2957 = vsel %vm2495, %v2941, 0.0
          %v2958 = vsel %vm2495, %v2942, 0.0
          %v2959 = vsel %vm2495, %v2943, 0.0
          %v2960 = vsel %vm2495, %v2944, 0.0
          %v2961 = vsel %vm2495, %v2945, 0.0
          %v2962 = vsel %vm2495, %v2946, 0.0
          %v2963 = vsel %vm2495, %v2947, 0.0
          %v2964 = vsel %vm2495, %v2948, 0.0
          %v2965 = vsel %vm2495, %v2949, 0.0
          %v2966 = vsel %vm2495, %v2950, 0.0
          %v2967 = vsel %vm2495, %v2951, 0.0
          %v2968 = vsel %vm2495, %v2952, 0.0
          %v2969 = vsel %vm2495, %v2953, 0.0
          %v2970 = vsel %vm2495, %v2954, 0.0
          %v2971 = vsel %vm2495, %v2955, 0.0
          %v2972 = vsel %vm2495, %v2956, 0.0
          %2973 = vst [vmem:[%s438] sm:$0xff] %v2957
          %2974 = vst [vmem:[%s438 + $0x8] sm:$0xff] %v2958
          %2975 = vst [vmem:[%s438 + $0x10] sm:$0xff] %v2959
          %2976 = vst [vmem:[%s438 + $0x18] sm:$0xff] %v2960
          %2977 = vst [vmem:[%s438 + $0x20] sm:$0xff] %v2961
          %2978 = vst [vmem:[%s438 + $0x28] sm:$0xff] %v2962
          %2979 = vst [vmem:[%s438 + $0x30] sm:$0xff] %v2963
          %2980 = vst [vmem:[%s438 + $0x38] sm:$0xff] %v2964
          %2981 = vst [vmem:[%s438 + $0x40] sm:$0xff] %v2965
          %2982 = vst [vmem:[%s438 + $0x48] sm:$0xff] %v2966
          %2983 = vst [vmem:[%s438 + $0x50] sm:$0xff] %v2967
          %2984 = vst [vmem:[%s438 + $0x58] sm:$0xff] %v2968
          %2985 = vst [vmem:[%s438 + $0x60] sm:$0xff] %v2969
          %2986 = vst [vmem:[%s438 + $0x68] sm:$0xff] %v2970
          %2987 = vst [vmem:[%s438 + $0x70] sm:$0xff] %v2971
          %2988 = vst [vmem:[%s438 + $0x78] sm:$0xff] %v2972
        $region102: #{tpu_custom_call.1} parent=89 // pred_fallthru
          _
        %s2989 = sand.u32 %s254, 1
        %s2990 = scalar_lea.sflag [#allocation7], %s2989
        %s2991 = sand.u32 %s254, 1
        %s2992 = smul.addr %s2991, 128
        %s2993 = scalar_lea.vmem [#allocation6], %s2992
        // Predicated region
        $region103: #{tpu_custom_call.1} parent=89 // pred_check
          %p2994 = pneg %p264
        $region104: #{tpu_custom_call.1} parent=89 // pred_check_branch
          %2996 = sbr.rel (%p2994) target = $region106
        $region105: #{tpu_custom_call.1} parent=89 // pred_region
          %s2997 = smul.u32 16, %s27
          %s2999 = ssub.s32 2048, 2048
          %3000 = vsyncadd %s2990, %s2999
          %s3001 = smul.addr %s2997, 128
          %s3002 = scalar_lea.hbm %s9, %s3001
          %s3003 = sshll.u32 %s2993, 4
          %s3004 = int_to_ptr.vmem [resolvable:$true] %s3003
          %3009 = dma.vmem_to_hbm [thread:$0]  %s3004, 2048, %s3002, %s2990, 128, 128, 8
        $region106: #{tpu_custom_call.1} parent=89 // pred_fallthru
          _
      $region90: #{tpu_custom_call.1} parent=5 // pred_fallthru
        _
      %p3010 = scmp.le.s32.totalorder 2, %s18
      // Predicated region
      $region107: #{tpu_custom_call.1} parent=5 // pred_check
        %p3011 = pneg %p3010
      $region108: #{tpu_custom_call.1} parent=5 // pred_check_branch
        %3013 = sbr.rel (%p3011) target = $region110
      $region109: #{tpu_custom_call.1} parent=5 // pred_region
        %s3014 = ssub.s32 %s18, 2
        // Predicated region
        $region111: #{tpu_custom_call.1} parent=109 // pred_check
          %p3015 = pneg %p270
        $region112: #{tpu_custom_call.1} parent=109 // pred_check_branch
          %3017 = sbr.rel (%p3015) target = $region114
        $region113: #{tpu_custom_call.1} parent=109 // pred_region
          %s3018 = sand.u32 %s255, 1
          %s3019 = scalar_lea.sflag [#allocation7], %s3018
          %s3020 = sand.u32 %s255, 1
          %s3021 = smul.addr %s3020, 128
          %s3022 = scalar_lea.vmem [#allocation6], %s3021
          %3023 = dma.done %s3019, 2048
        $region114: #{tpu_custom_call.1} parent=109 // pred_fallthru
          _
      $region110: #{tpu_custom_call.1} parent=5 // pred_fallthru
        _
    $region6: #{tpu_custom_call.1} parent=1 // loop_footer
      %s22 = sadd.s32 1, %s18
    $region7: #{tpu_custom_call.1} parent=1 // loop_footer_branch
      %17 = sbr.rel target = $region3
    $region8: #{tpu_custom_call.1} parent=1 // loop_exit
      _
    %3024 = vsyncpa [#allocation7], 1
    %s3025 = scalar_lea.sflag [#allocation7], 1
    %3026 = vsyncpa %s3025, 1

// kernel: tpu_custom_call.1
$region0: #{tpu_custom_call.1}
  #allocation0 [shape = 'u32[]', space=smem, size = 0x4, offset = 0x4, fixed_abs, tag = 'smem constant byte address 0x4 - core index']
  #allocation1 [shape = 'u32[144,128]{1,0:T(1,128)}', space=vmem, size = 0x12000, scoped, tag = 'internal scratch']
  #allocation2 [shape = 'f32[128,2]{1,0:T(8,128)}', space=vmem, size = 0x10000, scoped, tag = 'scratch operand']
  #allocation3 [shape = 'f32[128,2]{1,0:T(8,128)}', space=vmem, size = 0x10000, scoped, tag = 'scratch operand']
  #allocation4 [shape = 'f32[128,32]{1,0:T(8,128)}', space=vmem, size = 0x10000, scoped, tag = 'scratch operand']
  %s0 = inlined_call_operand.vmem [shape: s8[256,256], index: 0, kind: input, shape index: {}]
  %s1 = inlined_call_operand.vmem [shape: f32[256,2], index: 1, kind: input, shape index: {}]
  %s2 = inlined_call_operand.vmem [shape: f32[2,256], index: 2, kind: input, shape index: {}]
  %s3 = inlined_call_operand.vmem [shape: f32[256,32], index: 3, kind: input, shape index: {}]
  %s4 = inlined_call_operand.vmem [shape: bf16[256,32], index: 4, kind: input, shape index: {}]
  %s5 = inlined_call_operand.vmem [shape: f32[32,32], index: 5, kind: input, shape index: {}]
  %s6 = inlined_call_operand.vmem [shape: f32[1,32], index: 6, kind: input, shape index: {}]
  %s7 = inlined_call_operand.vmem [shape: f32[32,32], index: 7, kind: input, shape index: {}]
  %s8 = inlined_call_operand.vmem [shape: f32[1,32], index: 8, kind: input, shape index: {}]
  %s9 = inlined_call_operand.hbm [shape: f32[256,128], index: 9, kind: output, shape index: {}]
  %s10 = sld [smem:[#allocation0]]
  $region115: #{tpu_custom_call.1} parent=0
    _
  %s12 = ssub.s32 1, %s10
  %s13 = scalar_select 0, %s12, %s10
  $region1: #{tpu_custom_call.1} parent=0
    #allocation5 [shape = 'u8[32768]{0}', space=vmem, size = 0x8000, scoped, tag = 'input window, operand 0']
    #allocation6 [shape = 'u8[131072]{0}', space=vmem, size = 0x20000, scoped, tag = 'output window, operand 0']
    #allocation7 [shape = 's32[2]{0}', space=sflag, size = 0x8, scoped, tag = 'scoped memory for tpu_custom_call.1']
    %14 = vsyncpa [#allocation7], 0
    %s15 = scalar_lea.sflag [#allocation7], 1
    %16 = vsyncpa %s15, 0
    loop: start=0, step=1, limit=6
    $region2: #{tpu_custom_call.1} parent=1 // loop_pre_header
      _
    $region3: #{tpu_custom_call.1} parent=1 // loop_header
      %s18 = sphi 0, %s22
      %p19 = scmp.ge.s32.totalorder %s18, 6
      %s25 = sphi 0, %s37
      %s26 = sphi 0, %s33
      %s27 = sphi 0, %s25
      %s28 = sphi 0, %s26
      %s29 = sphi 0, %s27
      %s30 = sphi 0, %s28
      %s42 = sphi 0, %s44
      %s45 = sphi 0, %s42
      %s46 = sphi 0, %s45
      %s62 = sphi 0, %s46
      %s68 = sphi 0, %s70
      %s71 = sphi 0, %s68
      %s72 = sphi 0, %s71
      %s88 = sphi 0, %s72
      %s94 = sphi 0, %s96
      %s97 = sphi 0, %s94
      %s98 = sphi 0, %s97
      %s114 = sphi 0, %s98
      %s120 = sphi 0, %s122
      %s123 = sphi 0, %s120
      %s124 = sphi 0, %s123
      %s140 = sphi 0, %s124
      %s144 = sphi 0, %s144
      %s146 = sphi 0, %s144
      %s147 = sphi 0, %s146
      %s161 = sphi 0, %s147
      %s165 = sphi 0, %s165
      %s167 = sphi 0, %s165
      %s168 = sphi 0, %s167
      %s182 = sphi 0, %s168
      %s186 = sphi 0, %s186
      %s188 = sphi 0, %s186
      %s189 = sphi 0, %s188
      %s203 = sphi 0, %s189
      %s207 = sphi 0, %s207
      %s209 = sphi 0, %s207
      %s210 = sphi 0, %s209
      %s224 = sphi 0, %s210
      %s228 = sphi 0, %s228
      %s230 = sphi 0, %s228
      %s231 = sphi 0, %s230
      %s245 = sphi 0, %s231
      %s251 = sphi 0, %s253
      %s254 = sphi 0, %s251
      %s255 = sphi 0, %s254
      %s271 = sphi 0, %s255
    $region4: #{tpu_custom_call.1} parent=1 // loop_header_branch
      %21 = sbr.rel (%p19) target = $region8
    $region5: #{tpu_custom_call.1} parent=1 // loop_body
      %s23 = ssub.s32 %s18, 1
      %s24 = ssub.s32 %s18, 2
      %s31 = sadd.s32 1, %s26
      %p32 = scmp.ge.s32.totalorder %s31, 2
      %s33 = scalar_select %p32, 0, %s31
      %s34 = sadd.s32 1, %s25
      %s35 = scalar_select %p32, %s34, %s25
      %p36 = scmp.ge.s32.totalorder %s35, 2
      %s37 = scalar_select %p36, 0, %s35
      %s38 = ssub.s32 %s25, %s37
      %s39 = ssub.s32 %s26, %s33
      %s40 = sor.u32 %s38, %s39
      %p41 = scmp.eq.s32.totalorder %s40, 0
      %s43 = sadd.s32 %s42, 1
      %s44 = scalar_select %p41, %s42, %s43
      %p47 = pneg %p41
      %p48 = scmp.eq.s32.totalorder %s18, 3
      %p49 = por %p47, %p48
      %p50 = scmp.ne.s32.totalorder %s42, %s45
      %p51 = scmp.eq.s32.totalorder %s18, 0
      %p52 = por %p50, %p51
      %p53 = scmp.ne.s32.totalorder %s42, %s45
      %p54 = scmp.eq.s32.totalorder %s23, 3
      %p55 = por %p53, %p54
      %p56 = scmp.ne.s32.totalorder %s45, %s46
      %p57 = scmp.eq.s32.totalorder %s23, 0
      %p58 = por %p56, %p57
      %p59 = scmp.ne.s32.totalorder %s45, %s46
      %p60 = scmp.eq.s32.totalorder %s24, 3
      %p61 = por %p59, %p60
      %p63 = scmp.ne.s32.totalorder %s46, %s62
      %p64 = scmp.eq.s32.totalorder %s24, 0
      %p65 = por %p63, %p64
      %s66 = ssub.s32 %s25, %s37
      %p67 = scmp.eq.s32.totalorder %s66, 0
      %s69 = sadd.s32 %s68, 1
      %s70 = scalar_select %p67, %s68, %s69
      %p73 = pneg %p67
      %p74 = scmp.eq.s32.totalorder %s18, 3
      %p75 = por %p73, %p74
      %p76 = scmp.ne.s32.totalorder %s68, %s71
      %p77 = scmp.eq.s32.totalorder %s18, 0
      %p78 = por %p76, %p77
      %p79 = scmp.ne.s32.totalorder %s68, %s71
      %p80 = scmp.eq.s32.totalorder %s23, 3
      %p81 = por %p79, %p80
      %p82 = scmp.ne.s32.totalorder %s71, %s72
      %p83 = scmp.eq.s32.totalorder %s23, 0
      %p84 = por %p82, %p83
      %p85 = scmp.ne.s32.totalorder %s71, %s72
      %p86 = scmp.eq.s32.totalorder %s24, 3
      %p87 = por %p85, %p86
      %p89 = scmp.ne.s32.totalorder %s72, %s88
      %p90 = scmp.eq.s32.totalorder %s24, 0
      %p91 = por %p89, %p90
      %s92 = ssub.s32 %s26, %s33
      %p93 = scmp.eq.s32.totalorder %s92, 0
      %s95 = sadd.s32 %s94, 1
      %s96 = scalar_select %p93, %s94, %s95
      %p99 = pneg %p93
      %p100 = scmp.eq.s32.totalorder %s18, 3
      %p101 = por %p99, %p100
      %p102 = scmp.ne.s32.totalorder %s94, %s97
      %p103 = scmp.eq.s32.totalorder %s18, 0
      %p104 = por %p102, %p103
      %p105 = scmp.ne.s32.totalorder %s94, %s97
      %p106 = scmp.eq.s32.totalorder %s23, 3
      %p107 = por %p105, %p106
      %p108 = scmp.ne.s32.totalorder %s97, %s98
      %p109 = scmp.eq.s32.totalorder %s23, 0
      %p110 = por %p108, %p109
      %p111 = scmp.ne.s32.totalorder %s97, %s98
      %p112 = scmp.eq.s32.totalorder %s24, 3
      %p113 = por %p111, %p112
      %p115 = scmp.ne.s32.totalorder %s98, %s114
      %p116 = scmp.eq.s32.totalorder %s24, 0
      %p117 = por %p115, %p116
      %s118 = ssub.s32 %s25, %s37
      %p119 = scmp.eq.s32.totalorder %s118, 0
      %s121 = sadd.s32 %s120, 1
      %s122 = scalar_select %p119, %s120, %s121
      %p125 = pneg %p119
      %p126 = scmp.eq.s32.totalorder %s18, 3
      %p127 = por %p125, %p126
      %p128 = scmp.ne.s32.totalorder %s120, %s123
      %p129 = scmp.eq.s32.totalorder %s18, 0
      %p130 = por %p128, %p129
      %p131 = scmp.ne.s32.totalorder %s120, %s123
      %p132 = scmp.eq.s32.totalorder %s23, 3
      %p133 = por %p131, %p132
      %p134 = scmp.ne.s32.totalorder %s123, %s124
      %p135 = scmp.eq.s32.totalorder %s23, 0
      %p136 = por %p134, %p135
      %p137 = scmp.ne.s32.totalorder %s123, %s124
      %p138 = scmp.eq.s32.totalorder %s24, 3
      %p139 = por %p137, %p138
      %p141 = scmp.ne.s32.totalorder %s124, %s140
      %p142 = scmp.eq.s32.totalorder %s24, 0
      %p143 = por %p141, %p142
      %s145 = sadd.s32 %s144, 1
      %p148 = scmp.eq.s32.totalorder %s18, 3
      %p149 = scmp.ne.s32.totalorder %s144, %s146
      %p150 = scmp.eq.s32.totalorder %s18, 0
      %p151 = por %p149, %p150
      %p152 = scmp.ne.s32.totalorder %s144, %s146
      %p153 = scmp.eq.s32.totalorder %s23, 3
      %p154 = por %p152, %p153
      %p155 = scmp.ne.s32.totalorder %s146, %s147
      %p156 = scmp.eq.s32.totalorder %s23, 0
      %p157 = por %p155, %p156
      %p158 = scmp.ne.s32.totalorder %s146, %s147
      %p159 = scmp.eq.s32.totalorder %s24, 3
      %p160 = por %p158, %p159
      %p162 = scmp.ne.s32.totalorder %s147, %s161
      %p163 = scmp.eq.s32.totalorder %s24, 0
      %p164 = por %p162, %p163
      %s166 = sadd.s32 %s165, 1
      %p169 = scmp.eq.s32.totalorder %s18, 3
      %p170 = scmp.ne.s32.totalorder %s165, %s167
      %p171 = scmp.eq.s32.totalorder %s18, 0
      %p172 = por %p170, %p171
      %p173 = scmp.ne.s32.totalorder %s165, %s167
      %p174 = scmp.eq.s32.totalorder %s23, 3
      %p175 = por %p173, %p174
      %p176 = scmp.ne.s32.totalorder %s167, %s168
      %p177 = scmp.eq.s32.totalorder %s23, 0
      %p178 = por %p176, %p177
      %p179 = scmp.ne.s32.totalorder %s167, %s168
      %p180 = scmp.eq.s32.totalorder %s24, 3
      %p181 = por %p179, %p180
      %p183 = scmp.ne.s32.totalorder %s168, %s182
      %p184 = scmp.eq.s32.totalorder %s24, 0
      %p185 = por %p183, %p184
      %s187 = sadd.s32 %s186, 1
      %p190 = scmp.eq.s32.totalorder %s18, 3
      %p191 = scmp.ne.s32.totalorder %s186, %s188
      %p192 = scmp.eq.s32.totalorder %s18, 0
      %p193 = por %p191, %p192
      %p194 = scmp.ne.s32.totalorder %s186, %s188
      %p195 = scmp.eq.s32.totalorder %s23, 3
      %p196 = por %p194, %p195
      %p197 = scmp.ne.s32.totalorder %s188, %s189
      %p198 = scmp.eq.s32.totalorder %s23, 0
      %p199 = por %p197, %p198
      %p200 = scmp.ne.s32.totalorder %s188, %s189
      %p201 = scmp.eq.s32.totalorder %s24, 3
      %p202 = por %p200, %p201
      %p204 = scmp.ne.s32.totalorder %s189, %s203
      %p205 = scmp.eq.s32.totalorder %s24, 0
      %p206 = por %p204, %p205
      %s208 = sadd.s32 %s207, 1
      %p211 = scmp.eq.s32.totalorder %s18, 3
      %p212 = scmp.ne.s32.totalorder %s207, %s209
      %p213 = scmp.eq.s32.totalorder %s18, 0
      %p214 = por %p212, %p213
      %p215 = scmp.ne.s32.totalorder %s207, %s209
      %p216 = scmp.eq.s32.totalorder %s23, 3
      %p217 = por %p215, %p216
      %p218 = scmp.ne.s32.totalorder %s209, %s210
      %p219 = scmp.eq.s32.totalorder %s23, 0
      %p220 = por %p218, %p219
      %p221 = scmp.ne.s32.totalorder %s209, %s210
      %p222 = scmp.eq.s32.totalorder %s24, 3
      %p223 = por %p221, %p222
      %p225 = scmp.ne.s32.totalorder %s210, %s224
      %p226 = scmp.eq.s32.totalorder %s24, 0
      %p227 = por %p225, %p226
      %s229 = sadd.s32 %s228, 1
      %p232 = scmp.eq.s32.totalorder %s18, 3
      %p233 = scmp.ne.s32.totalorder %s228, %s230
      %p234 = scmp.eq.s32.totalorder %s18, 0
      %p235 = por %p233, %p234
      %p236 = scmp.ne.s32.totalorder %s228, %s230
      %p237 = scmp.eq.s32.totalorder %s23, 3
      %p238 = por %p236, %p237
      %p239 = scmp.ne.s32.totalorder %s230, %s231
      %p240 = scmp.eq.s32.totalorder %s23, 0
      %p241 = por %p239, %p240
      %p242 = scmp.ne.s32.totalorder %s230, %s231
      %p243 = scmp.eq.s32.totalorder %s24, 3
      %p244 = por %p242, %p243
      %p246 = scmp.ne.s32.totalorder %s231, %s245
      %p247 = scmp.eq.s32.totalorder %s24, 0
      %p248 = por %p246, %p247
      %s249 = ssub.s32 %s25, %s37
      %p250 = scmp.eq.s32.totalorder %s249, 0
      %s252 = sadd.s32 %s251, 1
      %s253 = scalar_select %p250, %s251, %s252
      %p256 = pneg %p250
      %p257 = scmp.eq.s32.totalorder %s18, 3
      %p258 = por %p256, %p257
      %p259 = scmp.ne.s32.totalorder %s251, %s254
      %p260 = scmp.eq.s32.totalorder %s18, 0
      %p261 = por %p259, %p260
      %p262 = scmp.ne.s32.totalorder %s251, %s254
      %p263 = scmp.eq.s32.totalorder %s23, 3
      %p264 = por %p262, %p263
      %p265 = scmp.ne.s32.totalorder %s254, %s255
      %p266 = scmp.eq.s32.totalorder %s23, 0
      %p267 = por %p265, %p266
      %p268 = scmp.ne.s32.totalorder %s254, %s255
      %p269 = scmp.eq.s32.totalorder %s24, 3
      %p270 = por %p268, %p269
      %p272 = scmp.ne.s32.totalorder %s255, %s271
      %p273 = scmp.eq.s32.totalorder %s24, 0
      %p274 = por %p272, %p273
      %p275 = scmp.le.s32.totalorder 1, %s18
      %p276 = scmp.lt.s32.totalorder %s18, 5
      %p277 = pnand %p275, %p276
      %p278 = pneg %p277
      // Predicated region
      $region9: #{tpu_custom_call.1} parent=5 // pred_check
        _
      $region10: #{tpu_custom_call.1} parent=5 // pred_check_branch
        %280 = sbr.rel (%p277) target = $region12
      $region11: #{tpu_custom_call.1} parent=5 // pred_region
        %s281 = ssub.s32 %s18, 1
        // Predicated region
        $region13: #{tpu_custom_call.1} parent=11 // pred_check
          %p282 = pneg %p157
        $region14: #{tpu_custom_call.1} parent=11 // pred_check_branch
          %284 = sbr.rel (%p282) target = $region16
        $region15: #{tpu_custom_call.1} parent=11 // pred_region
          _
        $region16: #{tpu_custom_call.1} parent=11 // pred_fallthru
          _
        // Predicated region
        $region17: #{tpu_custom_call.1} parent=11 // pred_check
          %p285 = pneg %p178
        $region18: #{tpu_custom_call.1} parent=11 // pred_check_branch
          %287 = sbr.rel (%p285) target = $region20
        $region19: #{tpu_custom_call.1} parent=11 // pred_region
          _
        $region20: #{tpu_custom_call.1} parent=11 // pred_fallthru
          _
        // Predicated region
        $region21: #{tpu_custom_call.1} parent=11 // pred_check
          %p288 = pneg %p199
        $region22: #{tpu_custom_call.1} parent=11 // pred_check_branch
          %290 = sbr.rel (%p288) target = $region24
        $region23: #{tpu_custom_call.1} parent=11 // pred_region
          _
        $region24: #{tpu_custom_call.1} parent=11 // pred_fallthru
          _
        // Predicated region
        $region25: #{tpu_custom_call.1} parent=11 // pred_check
          %p291 = pneg %p220
        $region26: #{tpu_custom_call.1} parent=11 // pred_check_branch
          %293 = sbr.rel (%p291) target = $region28
        $region27: #{tpu_custom_call.1} parent=11 // pred_region
          _
        $region28: #{tpu_custom_call.1} parent=11 // pred_fallthru
          _
        // Predicated region
        $region29: #{tpu_custom_call.1} parent=11 // pred_check
          %p294 = pneg %p241
        $region30: #{tpu_custom_call.1} parent=11 // pred_check_branch
          %296 = sbr.rel (%p294) target = $region32
        $region31: #{tpu_custom_call.1} parent=11 // pred_region
          _
        $region32: #{tpu_custom_call.1} parent=11 // pred_fallthru
          _
      $region12: #{tpu_custom_call.1} parent=5 // pred_fallthru
        _
      %p297 = scmp.lt.s32.totalorder %s18, 4
      // Predicated region
      $region33: #{tpu_custom_call.1} parent=5 // pred_check
        %p298 = pneg %p297
      $region34: #{tpu_custom_call.1} parent=5 // pred_check_branch
        %300 = sbr.rel (%p298) target = $region36
      $region35: #{tpu_custom_call.1} parent=5 // pred_region
        // Predicated region
        $region37: #{tpu_custom_call.1} parent=35 // pred_check
          %p301 = pneg %p52
        $region38: #{tpu_custom_call.1} parent=35 // pred_check_branch
          %303 = sbr.rel (%p301) target = $region40
        $region39: #{tpu_custom_call.1} parent=35 // pred_region
          %s304 = sand.u32 %s42, 1
          %s305 = sand.u32 %s42, 1
          %s306 = smul.addr %s305, 32
          %s307 = scalar_lea.vmem [#allocation5], %s306
          %s308 = smul.u32 4, %s25
          %s309 = smul.addr %s308, 2
          %s310 = sadd.s32 %s26, %s309
          %s311 = smul.addr %s310, 8
          %s312 = scalar_lea.vmem %s0, %s311
          // Predicated region
          $region41: #{tpu_custom_call.1} parent=39 // pred_check
            _
          $region42: #{tpu_custom_call.1} parent=39 // pred_check_branch
            %314 = sbr.rel (0) target = $region44
          $region43: #{tpu_custom_call.1} parent=39 // pred_region
            // Predicated region
            $region45: #{tpu_custom_call.1} parent=43 // pred_check
              _
            $region46: #{tpu_custom_call.1} parent=43 // pred_check_branch
              %316 = sbr.rel (0) target = $region48
            $region47: #{tpu_custom_call.1} parent=43 // pred_region
              // Predicated region
              $region60: #{tpu_custom_call.1} parent=47 // pred_check
                _
              $region61: #{tpu_custom_call.1} parent=47 // pred_check_branch
                %337 = sbr.rel (0) target = $region63
              $region62: #{tpu_custom_call.1} parent=47 // pred_region
                loop: start=0, step=1, limit=1
                $region64: #{tpu_custom_call.1} parent=62 // loop_pre_header
                  _
                $region65: #{tpu_custom_call.1} parent=62 // loop_header
                  %s339 = sphi 0, %s343
                  %p340 = scmp.ge.s32.totalorder %s339, 1
                  %s344 = sphi %s312, %s312
                  %s345 = sphi %s307, %s307
                $region66: #{tpu_custom_call.1} parent=62 // loop_header_branch
                  %342 = sbr.rel (%p340) target = $region70
                $region67: #{tpu_custom_call.1} parent=62 // loop_body
                  %v346 = vld [vmem:[%s344] sm:$0xff]
                  %347 = vst [vmem:[%s345] sm:$0xff] %v346
                  %v348 = vld [vmem:[%s344 + $0x10] sm:$0xff]
                  %349 = vst [vmem:[%s345 + $0x8] sm:$0xff] %v348
                  %v350 = vld [vmem:[%s344 + $0x20] sm:$0xff]
                  %351 = vst [vmem:[%s345 + $0x10] sm:$0xff] %v350
                  %v352 = vld [vmem:[%s344 + $0x30] sm:$0xff]
                  %353 = vst [vmem:[%s345 + $0x18] sm:$0xff] %v352
                $region68: #{tpu_custom_call.1} parent=62 // loop_footer
                  %s343 = sadd.s32 1, %s339
                $region69: #{tpu_custom_call.1} parent=62 // loop_footer_branch
                  %338 = sbr.rel target = $region65
                $region70: #{tpu_custom_call.1} parent=62 // loop_exit
                  _
              $region63: #{tpu_custom_call.1} parent=47 // pred_fallthru
                _
              // Predicated region
              $region71: #{tpu_custom_call.1} parent=47 // pred_check
                _
              $region72: #{tpu_custom_call.1} parent=47 // pred_check_branch
                %355 = sbr.rel target = $region74
              $region73: #{tpu_custom_call.1} parent=47 // pred_region
                _
              $region74: #{tpu_custom_call.1} parent=47 // pred_fallthru
                _
            $region48: #{tpu_custom_call.1} parent=43 // pred_fallthru
              _
            // Predicated region
            $region49: #{tpu_custom_call.1} parent=43 // pred_check
              _
            $region50: #{tpu_custom_call.1} parent=43 // pred_check_branch
              %318 = sbr.rel target = $region52
            $region51: #{tpu_custom_call.1} parent=43 // pred_region
              loop: start=0, step=1, limit=1
              $region53: #{tpu_custom_call.1} parent=51 // loop_pre_header
                _
              $region54: #{tpu_custom_call.1} parent=51 // loop_header
                %s321 = sphi 0, %s325
                %p322 = scmp.ge.s32.totalorder %s321, 1
                %s326 = sphi %s312, %s312
                %s327 = sphi %s307, %s307
              $region55: #{tpu_custom_call.1} parent=51 // loop_header_branch
                %324 = sbr.rel (%p322) target = $region59
              $region56: #{tpu_custom_call.1} parent=51 // loop_body
                %v328 = vld [vmem:[%s326] sm:$0xff]
                %329 = vst [vmem:[%s327] sm:$0xff] %v328
                %v330 = vld [vmem:[%s326 + $0x10] sm:$0xff]
                %331 = vst [vmem:[%s327 + $0x8] sm:$0xff] %v330
                %v332 = vld [vmem:[%s326 + $0x20] sm:$0xff]
                %333 = vst [vmem:[%s327 + $0x10] sm:$0xff] %v332
                %v334 = vld [vmem:[%s326 + $0x30] sm:$0xff]
                %335 = vst [vmem:[%s327 + $0x18] sm:$0xff] %v334
              $region57: #{tpu_custom_call.1} parent=51 // loop_footer
                %s325 = sadd.s32 1, %s321
              $region58: #{tpu_custom_call.1} parent=51 // loop_footer_branch
                %320 = sbr.rel target = $region54
              $region59: #{tpu_custom_call.1} parent=51 // loop_exit
                _
            $region52: #{tpu_custom_call.1} parent=43 // pred_fallthru
              _
          $region44: #{tpu_custom_call.1} parent=39 // pred_fallthru
            _
          %356 = vnop
        $region40: #{tpu_custom_call.1} parent=35 // pred_fallthru
          _
        // Predicated region
        $region75: #{tpu_custom_call.1} parent=35 // pred_check
          %p357 = pneg %p78
        $region76: #{tpu_custom_call.1} parent=35 // pred_check_branch
          %359 = sbr.rel (%p357) target = $region78
        $region77: #{tpu_custom_call.1} parent=35 // pred_region
          %s360 = smul.u32 16, %s25
          %p361 = scmp.lt.s32.totalorder %s360, 31
          %s362 = scalar_select %p361, %s360, 31
          %s363 = smul.addr %s362, 8
          %s364 = scalar_lea.vmem %s1, %s363
          %s365 = smul.u32 16, %s25
        $region78: #{tpu_custom_call.1} parent=35 // pred_fallthru
          _
        // Predicated region
        $region79: #{tpu_custom_call.1} parent=35 // pred_check
          %p366 = pneg %p104
        $region80: #{tpu_custom_call.1} parent=35 // pred_check_branch
          %368 = sbr.rel (%p366) target = $region82
        $region81: #{tpu_custom_call.1} parent=35 // pred_region
          %p369 = scmp.lt.s32.totalorder %s26, 1
          %s370 = scalar_select %p369, %s26, 1
          %s371 = smul.addr %s370, 2
          %s372 = scalar_lea.vmem %s2, %s371
        $region82: #{tpu_custom_call.1} parent=35 // pred_fallthru
          _
        // Predicated region
        $region83: #{tpu_custom_call.1} parent=35 // pred_check
          %p373 = pneg %p130
        $region84: #{tpu_custom_call.1} parent=35 // pred_check_branch
          %375 = sbr.rel (%p373) target = $region86
        $region85: #{tpu_custom_call.1} parent=35 // pred_region
          %s376 = smul.u32 16, %s25
          %p377 = scmp.lt.s32.totalorder %s376, 31
          %s378 = scalar_select %p377, %s376, 31
          %s379 = smul.addr %s378, 8
          %s380 = scalar_lea.vmem %s3, %s379
          %s381 = smul.u32 16, %s25
        $region86: #{tpu_custom_call.1} parent=35 // pred_fallthru
          _
      $region36: #{tpu_custom_call.1} parent=5 // pred_fallthru
        _
      %p382 = scmp.le.s32.totalorder 1, %s18
      %p383 = scmp.lt.s32.totalorder %s18, 5
      %p384 = pnand %p382, %p383
      %p385 = pneg %p384
      // Predicated region
      $region87: #{tpu_custom_call.1} parent=5 // pred_check
        _
      $region88: #{tpu_custom_call.1} parent=5 // pred_check_branch
        %387 = sbr.rel (%p384) target = $region90
      $region89: #{tpu_custom_call.1} parent=5 // pred_region
        %s388 = ssub.s32 %s18, 1
        %s389 = sand.u32 %s45, 1
        %s390 = sand.u32 %s45, 1
        %s391 = smul.addr %s390, 32
        %s392 = scalar_lea.vmem [#allocation5], %s391
        // Predicated region
        $region91: #{tpu_custom_call.1} parent=89 // pred_check
          %p393 = pneg %p58
        $region92: #{tpu_custom_call.1} parent=89 // pred_check_branch
          %395 = sbr.rel (%p393) target = $region94
        $region93: #{tpu_custom_call.1} parent=89 // pred_region
          _
        $region94: #{tpu_custom_call.1} parent=89 // pred_fallthru
          _
        %s396 = sand.u32 %s45, 1
        %s397 = sand.u32 %s45, 1
        %s398 = smul.addr %s397, 32
        %s399 = scalar_lea.vmem [#allocation5], %s398
        %p400 = pneg %p58
        %p401 = pneg %p55
        %s402 = smul.u32 16, %s27
        %p403 = scmp.lt.s32.totalorder %s402, 31
        %s404 = scalar_select %p403, %s402, 31
        %s405 = smul.addr %s404, 8
        %s406 = scalar_lea.vmem %s1, %s405
        %p407 = pneg %p84
        %p408 = pneg %p81
        %p409 = scmp.lt.s32.totalorder %s28, 1
        %s410 = scalar_select %p409, %s28, 1
        %s411 = smul.addr %s410, 2
        %s412 = scalar_lea.vmem %s2, %s411
        %p413 = pneg %p110
        %p414 = pneg %p107
        %s415 = smul.u32 16, %s27
        %p416 = scmp.lt.s32.totalorder %s415, 31
        %s417 = scalar_select %p416, %s415, 31
        %s418 = smul.addr %s417, 8
        %s419 = scalar_lea.vmem %s3, %s418
        %p420 = pneg %p136
        %p421 = pneg %p133
        %p422 = pneg %p157
        %p423 = pneg %p154
        %p424 = pneg %p178
        %p425 = pneg %p175
        %p426 = pneg %p199
        %p427 = pneg %p196
        %p428 = pneg %p220
        %p429 = pneg %p217
        %p430 = pneg %p241
        %p431 = pneg %p238
        %p432 = pneg %p267
        %p433 = pneg %p264
        %s434 = sand.u32 %s254, 1
        %s435 = scalar_lea.sflag [#allocation7], %s434
        %s436 = sand.u32 %s254, 1
        %s437 = smul.addr %s436, 128
        %s438 = scalar_lea.vmem [#allocation6], %s437
        %s439 = smul.u32 4, %s27
        %s440 = smul.u32 16, %s27
        %p441 = scmp.lt.s32.totalorder %s440, 31
        %s442 = scalar_select %p441, %s440, 31
        %s443 = smul.addr %s442, 8
        %s444 = scalar_lea.vmem %s1, %s443
        %s445 = smul.u32 16, %s27
        %p446 = scmp.lt.s32.totalorder %s28, 1
        %s447 = scalar_select %p446, %s28, 1
        %s448 = smul.addr %s447, 2
        %s449 = scalar_lea.vmem %s2, %s448
        %s450 = smul.u32 16, %s27
        %p451 = scmp.lt.s32.totalorder %s450, 31
        %s452 = scalar_select %p451, %s450, 31
        %s453 = smul.addr %s452, 8
        %s454 = scalar_lea.vmem %s3, %s453
        %s455 = smul.u32 16, %s27
        %s456 = smul.u32 16, %s27
        %p458 = scmp.eq.s32.totalorder %s28, 0
        // Predicated region
        $region95: #{tpu_custom_call.1} parent=89 // pred_check
          %p459 = pneg %p458
        $region96: #{tpu_custom_call.1} parent=89 // pred_check_branch
          %461 = sbr.rel (%p459) target = $region98
        $region97: #{tpu_custom_call.1} parent=89 // pred_region
          %vm462 = vcmask 15360
          %463 = vst.msk [vmem:[#allocation2] sm:$0xff] %vm462, -1e+30
          %464 = vst.msk [vmem:[#allocation2 + $0x8] sm:$0xff] %vm462, -1e+30
          %465 = vst.msk [vmem:[#allocation2 + $0x10] sm:$0xff] %vm462, -1e+30
          %466 = vst.msk [vmem:[#allocation2 + $0x18] sm:$0xff] %vm462, -1e+30
          %467 = vst.msk [vmem:[#allocation2 + $0x20] sm:$0xff] %vm462, -1e+30
          %468 = vst.msk [vmem:[#allocation2 + $0x28] sm:$0xff] %vm462, -1e+30
          %469 = vst.msk [vmem:[#allocation2 + $0x30] sm:$0xff] %vm462, -1e+30
          %470 = vst.msk [vmem:[#allocation2 + $0x38] sm:$0xff] %vm462, -1e+30
          %471 = vst.msk [vmem:[#allocation2 + $0x40] sm:$0xff] %vm462, -1e+30
          %472 = vst.msk [vmem:[#allocation2 + $0x48] sm:$0xff] %vm462, -1e+30
          %473 = vst.msk [vmem:[#allocation2 + $0x50] sm:$0xff] %vm462, -1e+30
          %474 = vst.msk [vmem:[#allocation2 + $0x58] sm:$0xff] %vm462, -1e+30
          %475 = vst.msk [vmem:[#allocation2 + $0x60] sm:$0xff] %vm462, -1e+30
          %476 = vst.msk [vmem:[#allocation2 + $0x68] sm:$0xff] %vm462, -1e+30
          %477 = vst.msk [vmem:[#allocation2 + $0x70] sm:$0xff] %vm462, -1e+30
          %478 = vst.msk [vmem:[#allocation2 + $0x78] sm:$0xff] %vm462, -1e+30
          %479 = vst.msk [vmem:[#allocation3] sm:$0xff] %vm462, 0.0
          %480 = vst.msk [vmem:[#allocation3 + $0x8] sm:$0xff] %vm462, 0.0
          %481 = vst.msk [vmem:[#allocation3 + $0x10] sm:$0xff] %vm462, 0.0
          %482 = vst.msk [vmem:[#allocation3 + $0x18] sm:$0xff] %vm462, 0.0
          %483 = vst.msk [vmem:[#allocation3 + $0x20] sm:$0xff] %vm462, 0.0
          %484 = vst.msk [vmem:[#allocation3 + $0x28] sm:$0xff] %vm462, 0.0
          %485 = vst.msk [vmem:[#allocation3 + $0x30] sm:$0xff] %vm462, 0.0
          %486 = vst.msk [vmem:[#allocation3 + $0x38] sm:$0xff] %vm462, 0.0
          %487 = vst.msk [vmem:[#allocation3 + $0x40] sm:$0xff] %vm462, 0.0
          %488 = vst.msk [vmem:[#allocation3 + $0x48] sm:$0xff] %vm462, 0.0
          %489 = vst.msk [vmem:[#allocation3 + $0x50] sm:$0xff] %vm462, 0.0
          %490 = vst.msk [vmem:[#allocation3 + $0x58] sm:$0xff] %vm462, 0.0
          %491 = vst.msk [vmem:[#allocation3 + $0x60] sm:$0xff] %vm462, 0.0
          %492 = vst.msk [vmem:[#allocation3 + $0x68] sm:$0xff] %vm462, 0.0
          %493 = vst.msk [vmem:[#allocation3 + $0x70] sm:$0xff] %vm462, 0.0
          %494 = vst.msk [vmem:[#allocation3 + $0x78] sm:$0xff] %vm462, 0.0
          %vm495 = vcmask 261120
          %496 = vst.msk [vmem:[#allocation4] sm:$0xff] %vm495, 0.0
          %497 = vst.msk [vmem:[#allocation4 + $0x8] sm:$0xff] %vm495, 0.0
          %498 = vst.msk [vmem:[#allocation4 + $0x10] sm:$0xff] %vm495, 0.0
          %499 = vst.msk [vmem:[#allocation4 + $0x18] sm:$0xff] %vm495, 0.0
          %500 = vst.msk [vmem:[#allocation4 + $0x20] sm:$0xff] %vm495, 0.0
          %501 = vst.msk [vmem:[#allocation4 + $0x28] sm:$0xff] %vm495, 0.0
          %502 = vst.msk [vmem:[#allocation4 + $0x30] sm:$0xff] %vm495, 0.0
          %503 = vst.msk [vmem:[#allocation4 + $0x38] sm:$0xff] %vm495, 0.0
          %504 = vst.msk [vmem:[#allocation4 + $0x40] sm:$0xff] %vm495, 0.0
          %505 = vst.msk [vmem:[#allocation4 + $0x48] sm:$0xff] %vm495, 0.0
          %506 = vst.msk [vmem:[#allocation4 + $0x50] sm:$0xff] %vm495, 0.0
          %507 = vst.msk [vmem:[#allocation4 + $0x58] sm:$0xff] %vm495, 0.0
          %508 = vst.msk [vmem:[#allocation4 + $0x60] sm:$0xff] %vm495, 0.0
          %509 = vst.msk [vmem:[#allocation4 + $0x68] sm:$0xff] %vm495, 0.0
          %510 = vst.msk [vmem:[#allocation4 + $0x70] sm:$0xff] %vm495, 0.0
          %511 = vst.msk [vmem:[#allocation4 + $0x78] sm:$0xff] %vm495, 0.0
        $region98: #{tpu_custom_call.1} parent=89 // pred_fallthru
          _
        %v512 = vld [vmem:[%s392] sm:$0xff]
        %v513 = vld [vmem:[%s392 + $0x8] sm:$0xff]
        %v514 = vld [vmem:[%s392 + $0x10] sm:$0xff]
        %v515 = vld [vmem:[%s392 + $0x18] sm:$0xff]
        %v516 = vunpack.c.0.s8 %v512
        %v517 = vunpack.c.1.s8 %v512
        %v518 = vunpack.c.2.s8 %v512
        %v519 = vunpack.c.3.s8 %v512
        %v520 = vunpack.c.0.s8 %v513
        %v521 = vunpack.c.1.s8 %v513
        %v522 = vunpack.c.2.s8 %v513
        %v523 = vunpack.c.3.s8 %v513
        %v524 = vunpack.c.0.s8 %v514
        %v525 = vunpack.c.1.s8 %v514
        %v526 = vunpack.c.2.s8 %v514
        %v527 = vunpack.c.3.s8 %v514
        %v528 = vunpack.c.0.s8 %v515
        %v529 = vunpack.c.1.s8 %v515
        %v530 = vunpack.c.2.s8 %v515
        %v531 = vunpack.c.3.s8 %v515
        %v532 = vcvt.s32.f32 %v516
        %v533 = vcvt.s32.f32 %v517
        %v534 = vcvt.s32.f32 %v518
        %v535 = vcvt.s32.f32 %v519
        %v536 = vcvt.s32.f32 %v520
        %v537 = vcvt.s32.f32 %v521
        %v538 = vcvt.s32.f32 %v522
        %v539 = vcvt.s32.f32 %v523
        %v540 = vcvt.s32.f32 %v524
        %v541 = vcvt.s32.f32 %v525
        %v542 = vcvt.s32.f32 %v526
        %v543 = vcvt.s32.f32 %v527
        %v544 = vcvt.s32.f32 %v528
        %v545 = vcvt.s32.f32 %v529
        %v546 = vcvt.s32.f32 %v530
        %v547 = vcvt.s32.f32 %v531
        %v548 = vld [vmem:[%s444] sm:$0xff]
        %v549 = vld [vmem:[%s444 + $0x8] sm:$0xff]
        %v550 = vld [vmem:[%s444 + $0x10] sm:$0xff]
        %v551 = vld [vmem:[%s444 + $0x18] sm:$0xff]
        %v552 = vld [vmem:[%s444 + $0x20] sm:$0xff]
        %v553 = vld [vmem:[%s444 + $0x28] sm:$0xff]
        %v554 = vld [vmem:[%s444 + $0x30] sm:$0xff]
        %v555 = vld [vmem:[%s444 + $0x38] sm:$0xff]
        %v556 = vld [vmem:[%s444 + $0x40] sm:$0xff]
        %v557 = vld [vmem:[%s444 + $0x48] sm:$0xff]
        %v558 = vld [vmem:[%s444 + $0x50] sm:$0xff]
        %v559 = vld [vmem:[%s444 + $0x58] sm:$0xff]
        %v560 = vld [vmem:[%s444 + $0x60] sm:$0xff]
        %v561 = vld [vmem:[%s444 + $0x68] sm:$0xff]
        %v562 = vld [vmem:[%s444 + $0x70] sm:$0xff]
        %v563 = vld [vmem:[%s444 + $0x78] sm:$0xff]
        %v564 = vld [vmem:[%s449] sm:$0x3]
        %s565 = smul.u32 %s28, 128
        %s566 = sshra.s32 %s565, 3
        %s567 = sand.u32 %s565, 7
        %s568 = smul.addr %s566, 4
        %s569 = scalar_lea.vmem %s4, %s568
        %v570 = vld [vmem:[%s569] sm:$0xf]
        %v571 = vld [vmem:[%s569 + $0x4] sm:$0xf]
        %v572 = vld [vmem:[%s569 + $0x8] sm:$0xf]
        %v573 = vld [vmem:[%s569 + $0xc] sm:$0xf]
        %v574 = vld [vmem:[%s569 + $0x10] sm:$0xf]
        %v575 = vld [vmem:[%s569 + $0x14] sm:$0xf]
        %v576 = vld [vmem:[%s569 + $0x18] sm:$0xf]
        %v577 = vld [vmem:[%s569 + $0x1c] sm:$0xf]
        %v578 = vld [vmem:[%s569 + $0x20] sm:$0xf]
        %v579 = vld [vmem:[%s569 + $0x24] sm:$0xf]
        %v580 = vld [vmem:[%s569 + $0x28] sm:$0xf]
        %v581 = vld [vmem:[%s569 + $0x2c] sm:$0xf]
        %v582 = vld [vmem:[%s569 + $0x30] sm:$0xf]
        %v583 = vld [vmem:[%s569 + $0x34] sm:$0xf]
        %v584 = vld [vmem:[%s569 + $0x38] sm:$0xf]
        %v585 = vld [vmem:[%s569 + $0x3c] sm:$0xf]
        %587 = vset.pattern.permute.xlu0 0
        %588 = vperm.xlu0 %587, %v548
        %v589 = vpop.permute.xlu0 %588
        %592 = vset.pattern.permute.xlu0 0
        %593 = vperm.xlu0 %592, %v549
        %v594 = vpop.permute.xlu0 %593
        %597 = vset.pattern.permute.xlu0 0
        %598 = vperm.xlu0 %597, %v550
        %v599 = vpop.permute.xlu0 %598
        %602 = vset.pattern.permute.xlu0 0
        %603 = vperm.xlu0 %602, %v551
        %v604 = vpop.permute.xlu0 %603
        %607 = vset.pattern.permute.xlu0 0
        %608 = vperm.xlu0 %607, %v552
        %v609 = vpop.permute.xlu0 %608
        %612 = vset.pattern.permute.xlu0 0
        %613 = vperm.xlu0 %612, %v553
        %v614 = vpop.permute.xlu0 %613
        %617 = vset.pattern.permute.xlu0 0
        %618 = vperm.xlu0 %617, %v554
        %v619 = vpop.permute.xlu0 %618
        %622 = vset.pattern.permute.xlu0 0
        %623 = vperm.xlu0 %622, %v555
        %v624 = vpop.permute.xlu0 %623
        %627 = vset.pattern.permute.xlu0 0
        %628 = vperm.xlu0 %627, %v556
        %v629 = vpop.permute.xlu0 %628
        %632 = vset.pattern.permute.xlu0 0
        %633 = vperm.xlu0 %632, %v557
        %v634 = vpop.permute.xlu0 %633
        %637 = vset.pattern.permute.xlu0 0
        %638 = vperm.xlu0 %637, %v558
        %v639 = vpop.permute.xlu0 %638
        %642 = vset.pattern.permute.xlu0 0
        %643 = vperm.xlu0 %642, %v559
        %v644 = vpop.permute.xlu0 %643
        %647 = vset.pattern.permute.xlu0 0
        %648 = vperm.xlu0 %647, %v560
        %v649 = vpop.permute.xlu0 %648
        %652 = vset.pattern.permute.xlu0 0
        %653 = vperm.xlu0 %652, %v561
        %v654 = vpop.permute.xlu0 %653
        %657 = vset.pattern.permute.xlu0 0
        %658 = vperm.xlu0 %657, %v562
        %v659 = vpop.permute.xlu0 %658
        %662 = vset.pattern.permute.xlu0 0
        %663 = vperm.xlu0 %662, %v563
        %v664 = vpop.permute.xlu0 %663
        %v666 = vlaneseq
        %v667 = vshrl.u32 %v666, 7
        %v668 = vsub.s32 0, %v667
        %v669 = vrot.slane %v564, %v668
        %v670 = vadd.f32 %v589, %v669
        %v671 = vadd.f32 %v594, %v669
        %v672 = vadd.f32 %v599, %v669
        %v673 = vadd.f32 %v604, %v669
        %v674 = vadd.f32 %v609, %v669
        %v675 = vadd.f32 %v614, %v669
        %v676 = vadd.f32 %v619, %v669
        %v677 = vadd.f32 %v624, %v669
        %v678 = vadd.f32 %v629, %v669
        %v679 = vadd.f32 %v634, %v669
        %v680 = vadd.f32 %v639, %v669
        %v681 = vadd.f32 %v644, %v669
        %v682 = vadd.f32 %v649, %v669
        %v683 = vadd.f32 %v654, %v669
        %v684 = vadd.f32 %v659, %v669
        %v685 = vadd.f32 %v664, %v669
        %v686 = vmul.f32 %v670, 0.2
        %v687 = vmul.f32 %v671, 0.2
        %v688 = vmul.f32 %v672, 0.2
        %v689 = vmul.f32 %v673, 0.2
        %v690 = vmul.f32 %v674, 0.2
        %v691 = vmul.f32 %v675, 0.2
        %v692 = vmul.f32 %v676, 0.2
        %v693 = vmul.f32 %v677, 0.2
        %v694 = vmul.f32 %v678, 0.2
        %v695 = vmul.f32 %v679, 0.2
        %v696 = vmul.f32 %v680, 0.2
        %v697 = vmul.f32 %v681, 0.2
        %v698 = vmul.f32 %v682, 0.2
        %v699 = vmul.f32 %v683, 0.2
        %v700 = vmul.f32 %v684, 0.2
        %v701 = vmul.f32 %v685, 0.2
        %v702 = vmax.f32 %v670, %v686
        %v703 = vmax.f32 %v671, %v687
        %v704 = vmax.f32 %v672, %v688
        %v705 = vmax.f32 %v673, %v689
        %v706 = vmax.f32 %v674, %v690
        %v707 = vmax.f32 %v675, %v691
        %v708 = vmax.f32 %v676, %v692
        %v709 = vmax.f32 %v677, %v693
        %v710 = vmax.f32 %v678, %v694
        %v711 = vmax.f32 %v679, %v695
        %v712 = vmax.f32 %v680, %v696
        %v713 = vmax.f32 %v681, %v697
        %v714 = vmax.f32 %v682, %v698
        %v715 = vmax.f32 %v683, %v699
        %v716 = vmax.f32 %v684, %v700
        %v717 = vmax.f32 %v685, %v701
        %v718 = vld [vmem:[#allocation2] sm:$0xff]
        %v719 = vld [vmem:[#allocation2 + $0x8] sm:$0xff]
        %v720 = vld [vmem:[#allocation2 + $0x10] sm:$0xff]
        %v721 = vld [vmem:[#allocation2 + $0x18] sm:$0xff]
        %v722 = vld [vmem:[#allocation2 + $0x20] sm:$0xff]
        %v723 = vld [vmem:[#allocation2 + $0x28] sm:$0xff]
        %v724 = vld [vmem:[#allocation2 + $0x30] sm:$0xff]
        %v725 = vld [vmem:[#allocation2 + $0x38] sm:$0xff]
        %v726 = vld [vmem:[#allocation2 + $0x40] sm:$0xff]
        %v727 = vld [vmem:[#allocation2 + $0x48] sm:$0xff]
        %v728 = vld [vmem:[#allocation2 + $0x50] sm:$0xff]
        %v729 = vld [vmem:[#allocation2 + $0x58] sm:$0xff]
        %v730 = vld [vmem:[#allocation2 + $0x60] sm:$0xff]
        %v731 = vld [vmem:[#allocation2 + $0x68] sm:$0xff]
        %v732 = vld [vmem:[#allocation2 + $0x70] sm:$0xff]
        %v733 = vld [vmem:[#allocation2 + $0x78] sm:$0xff]
        %734 = vmax.xlane.f32.xlu0 %v702
        %v735 = vpop.xlane.xlu0 %734
        %736 = vmax.xlane.f32.xlu0 %v703
        %v737 = vpop.xlane.xlu0 %736
        %738 = vmax.xlane.f32.xlu0 %v704
        %v739 = vpop.xlane.xlu0 %738
        %740 = vmax.xlane.f32.xlu0 %v705
        %v741 = vpop.xlane.xlu0 %740
        %742 = vmax.xlane.f32.xlu0 %v706
        %v743 = vpop.xlane.xlu0 %742
        %744 = vmax.xlane.f32.xlu0 %v707
        %v745 = vpop.xlane.xlu0 %744
        %746 = vmax.xlane.f32.xlu0 %v708
        %v747 = vpop.xlane.xlu0 %746
        %748 = vmax.xlane.f32.xlu0 %v709
        %v749 = vpop.xlane.xlu0 %748
        %750 = vmax.xlane.f32.xlu0 %v710
        %v751 = vpop.xlane.xlu0 %750
        %752 = vmax.xlane.f32.xlu0 %v711
        %v753 = vpop.xlane.xlu0 %752
        %754 = vmax.xlane.f32.xlu0 %v712
        %v755 = vpop.xlane.xlu0 %754
        %756 = vmax.xlane.f32.xlu0 %v713
        %v757 = vpop.xlane.xlu0 %756
        %758 = vmax.xlane.f32.xlu0 %v714
        %v759 = vpop.xlane.xlu0 %758
        %760 = vmax.xlane.f32.xlu0 %v715
        %v761 = vpop.xlane.xlu0 %760
        %762 = vmax.xlane.f32.xlu0 %v716
        %v763 = vpop.xlane.xlu0 %762
        %764 = vmax.xlane.f32.xlu0 %v717
        %v765 = vpop.xlane.xlu0 %764
        %v766 = vmax.f32 %v718, %v735
        %v767 = vmax.f32 %v719, %v737
        %v768 = vmax.f32 %v720, %v739
        %v769 = vmax.f32 %v721, %v741
        %v770 = vmax.f32 %v722, %v743
        %v771 = vmax.f32 %v723, %v745
        %v772 = vmax.f32 %v724, %v747
        %v773 = vmax.f32 %v725, %v749
        %v774 = vmax.f32 %v726, %v751
        %v775 = vmax.f32 %v727, %v753
        %v776 = vmax.f32 %v728, %v755
        %v777 = vmax.f32 %v729, %v757
        %v778 = vmax.f32 %v730, %v759
        %v779 = vmax.f32 %v731, %v761
        %v780 = vmax.f32 %v732, %v763
        %v781 = vmax.f32 %v733, %v765
        %v782 = vsub.f32 %v718, %v766
        %v783 = vsub.f32 %v719, %v767
        %v784 = vsub.f32 %v720, %v768
        %v785 = vsub.f32 %v721, %v769
        %v786 = vsub.f32 %v722, %v770
        %v787 = vsub.f32 %v723, %v771
        %v788 = vsub.f32 %v724, %v772
        %v789 = vsub.f32 %v725, %v773
        %v790 = vsub.f32 %v726, %v774
        %v791 = vsub.f32 %v727, %v775
        %v792 = vsub.f32 %v728, %v776
        %v793 = vsub.f32 %v729, %v777
        %v794 = vsub.f32 %v730, %v778
        %v795 = vsub.f32 %v731, %v779
        %v796 = vsub.f32 %v732, %v780
        %v797 = vsub.f32 %v733, %v781
        %v798 = vmul.f32 %v782, 1.442695
        %v799 = vpow.pop %v798
        %v800 = vmul.f32 %v783, 1.442695
        %v801 = vpow.pop %v800
        %v802 = vmul.f32 %v784, 1.442695
        %v803 = vpow.pop %v802
        %v804 = vmul.f32 %v785, 1.442695
        %v805 = vpow.pop %v804
        %v806 = vmul.f32 %v786, 1.442695
        %v807 = vpow.pop %v806
        %v808 = vmul.f32 %v787, 1.442695
        %v809 = vpow.pop %v808
        %v810 = vmul.f32 %v788, 1.442695
        %v811 = vpow.pop %v810
        %v812 = vmul.f32 %v789, 1.442695
        %v813 = vpow.pop %v812
        %v814 = vmul.f32 %v790, 1.442695
        %v815 = vpow.pop %v814
        %v816 = vmul.f32 %v791, 1.442695
        %v817 = vpow.pop %v816
        %v818 = vmul.f32 %v792, 1.442695
        %v819 = vpow.pop %v818
        %v820 = vmul.f32 %v793, 1.442695
        %v821 = vpow.pop %v820
        %v822 = vmul.f32 %v794, 1.442695
        %v823 = vpow.pop %v822
        %v824 = vmul.f32 %v795, 1.442695
        %v825 = vpow.pop %v824
        %v826 = vmul.f32 %v796, 1.442695
        %v827 = vpow.pop %v826
        %v828 = vmul.f32 %v797, 1.442695
        %v829 = vpow.pop %v828
        %831 = vset.pattern.permute.xlu0 0
        %832 = vperm.xlu0 %831, %v766
        %v833 = vpop.permute.xlu0 %832
        %836 = vset.pattern.permute.xlu0 0
        %837 = vperm.xlu0 %836, %v767
        %v838 = vpop.permute.xlu0 %837
        %841 = vset.pattern.permute.xlu0 0
        %842 = vperm.xlu0 %841, %v768
        %v843 = vpop.permute.xlu0 %842
        %846 = vset.pattern.permute.xlu0 0
        %847 = vperm.xlu0 %846, %v769
        %v848 = vpop.permute.xlu0 %847
        %851 = vset.pattern.permute.xlu0 0
        %852 = vperm.xlu0 %851, %v770
        %v853 = vpop.permute.xlu0 %852
        %856 = vset.pattern.permute.xlu0 0
        %857 = vperm.xlu0 %856, %v771
        %v858 = vpop.permute.xlu0 %857
        %861 = vset.pattern.permute.xlu0 0
        %862 = vperm.xlu0 %861, %v772
        %v863 = vpop.permute.xlu0 %862
        %866 = vset.pattern.permute.xlu0 0
        %867 = vperm.xlu0 %866, %v773
        %v868 = vpop.permute.xlu0 %867
        %871 = vset.pattern.permute.xlu0 0
        %872 = vperm.xlu0 %871, %v774
        %v873 = vpop.permute.xlu0 %872
        %876 = vset.pattern.permute.xlu0 0
        %877 = vperm.xlu0 %876, %v775
        %v878 = vpop.permute.xlu0 %877
        %881 = vset.pattern.permute.xlu0 0
        %882 = vperm.xlu0 %881, %v776
        %v883 = vpop.permute.xlu0 %882
        %886 = vset.pattern.permute.xlu0 0
        %887 = vperm.xlu0 %886, %v777
        %v888 = vpop.permute.xlu0 %887
        %891 = vset.pattern.permute.xlu0 0
        %892 = vperm.xlu0 %891, %v778
        %v893 = vpop.permute.xlu0 %892
        %896 = vset.pattern.permute.xlu0 0
        %897 = vperm.xlu0 %896, %v779
        %v898 = vpop.permute.xlu0 %897
        %901 = vset.pattern.permute.xlu0 0
        %902 = vperm.xlu0 %901, %v780
        %v903 = vpop.permute.xlu0 %902
        %906 = vset.pattern.permute.xlu0 0
        %907 = vperm.xlu0 %906, %v781
        %v908 = vpop.permute.xlu0 %907
        %v910 = vsub.f32 %v702, %v833
        %v911 = vsub.f32 %v703, %v838
        %v912 = vsub.f32 %v704, %v843
        %v913 = vsub.f32 %v705, %v848
        %v914 = vsub.f32 %v706, %v853
        %v915 = vsub.f32 %v707, %v858
        %v916 = vsub.f32 %v708, %v863
        %v917 = vsub.f32 %v709, %v868
        %v918 = vsub.f32 %v710, %v873
        %v919 = vsub.f32 %v711, %v878
        %v920 = vsub.f32 %v712, %v883
        %v921 = vsub.f32 %v713, %v888
        %v922 = vsub.f32 %v714, %v893
        %v923 = vsub.f32 %v715, %v898
        %v924 = vsub.f32 %v716, %v903
        %v925 = vsub.f32 %v717, %v908
        %v926 = vmul.f32 %v910, 1.442695
        %v927 = vpow.pop %v926
        %v928 = vmul.f32 %v911, 1.442695
        %v929 = vpow.pop %v928
        %v930 = vmul.f32 %v912, 1.442695
        %v931 = vpow.pop %v930
        %v932 = vmul.f32 %v913, 1.442695
        %v933 = vpow.pop %v932
        %v934 = vmul.f32 %v914, 1.442695
        %v935 = vpow.pop %v934
        %v936 = vmul.f32 %v915, 1.442695
        %v937 = vpow.pop %v936
        %v938 = vmul.f32 %v916, 1.442695
        %v939 = vpow.pop %v938
        %v940 = vmul.f32 %v917, 1.442695
        %v941 = vpow.pop %v940
        %v942 = vmul.f32 %v918, 1.442695
        %v943 = vpow.pop %v942
        %v944 = vmul.f32 %v919, 1.442695
        %v945 = vpow.pop %v944
        %v946 = vmul.f32 %v920, 1.442695
        %v947 = vpow.pop %v946
        %v948 = vmul.f32 %v921, 1.442695
        %v949 = vpow.pop %v948
        %v950 = vmul.f32 %v922, 1.442695
        %v951 = vpow.pop %v950
        %v952 = vmul.f32 %v923, 1.442695
        %v953 = vpow.pop %v952
        %v954 = vmul.f32 %v924, 1.442695
        %v955 = vpow.pop %v954
        %v956 = vmul.f32 %v925, 1.442695
        %v957 = vpow.pop %v956
        %v958 = vmul.f32 %v927, %v532
        %v959 = vmul.f32 %v929, %v533
        %v960 = vmul.f32 %v931, %v534
        %v961 = vmul.f32 %v933, %v535
        %v962 = vmul.f32 %v935, %v536
        %v963 = vmul.f32 %v937, %v537
        %v964 = vmul.f32 %v939, %v538
        %v965 = vmul.f32 %v941, %v539
        %v966 = vmul.f32 %v943, %v540
        %v967 = vmul.f32 %v945, %v541
        %v968 = vmul.f32 %v947, %v542
        %v969 = vmul.f32 %v949, %v543
        %v970 = vmul.f32 %v951, %v544
        %v971 = vmul.f32 %v953, %v545
        %v972 = vmul.f32 %v955, %v546
        %v973 = vmul.f32 %v957, %v547
        %v974 = vld [vmem:[#allocation3] sm:$0xff]
        %v975 = vld [vmem:[#allocation3 + $0x8] sm:$0xff]
        %v976 = vld [vmem:[#allocation3 + $0x10] sm:$0xff]
        %v977 = vld [vmem:[#allocation3 + $0x18] sm:$0xff]
        %v978 = vld [vmem:[#allocation3 + $0x20] sm:$0xff]
        %v979 = vld [vmem:[#allocation3 + $0x28] sm:$0xff]
        %v980 = vld [vmem:[#allocation3 + $0x30] sm:$0xff]
        %v981 = vld [vmem:[#allocation3 + $0x38] sm:$0xff]
        %v982 = vld [vmem:[#allocation3 + $0x40] sm:$0xff]
        %v983 = vld [vmem:[#allocation3 + $0x48] sm:$0xff]
        %v984 = vld [vmem:[#allocation3 + $0x50] sm:$0xff]
        %v985 = vld [vmem:[#allocation3 + $0x58] sm:$0xff]
        %v986 = vld [vmem:[#allocation3 + $0x60] sm:$0xff]
        %v987 = vld [vmem:[#allocation3 + $0x68] sm:$0xff]
        %v988 = vld [vmem:[#allocation3 + $0x70] sm:$0xff]
        %v989 = vld [vmem:[#allocation3 + $0x78] sm:$0xff]
        %v990 = vmul.f32 %v799, %v974
        %v991 = vmul.f32 %v801, %v975
        %v992 = vmul.f32 %v803, %v976
        %v993 = vmul.f32 %v805, %v977
        %v994 = vmul.f32 %v807, %v978
        %v995 = vmul.f32 %v809, %v979
        %v996 = vmul.f32 %v811, %v980
        %v997 = vmul.f32 %v813, %v981
        %v998 = vmul.f32 %v815, %v982
        %v999 = vmul.f32 %v817, %v983
        %v1000 = vmul.f32 %v819, %v984
        %v1001 = vmul.f32 %v821, %v985
        %v1002 = vmul.f32 %v823, %v986
        %v1003 = vmul.f32 %v825, %v987
        %v1004 = vmul.f32 %v827, %v988
        %v1005 = vmul.f32 %v829, %v989
        %1006 = vadd.xlane.f32.xlu0 %v958
        %v1007 = vpop.xlane.xlu0 %1006
        %1008 = vadd.xlane.f32.xlu0 %v959
        %v1009 = vpop.xlane.xlu0 %1008
        %1010 = vadd.xlane.f32.xlu0 %v960
        %v1011 = vpop.xlane.xlu0 %1010
        %1012 = vadd.xlane.f32.xlu0 %v961
        %v1013 = vpop.xlane.xlu0 %1012
        %1014 = vadd.xlane.f32.xlu0 %v962
        %v1015 = vpop.xlane.xlu0 %1014
        %1016 = vadd.xlane.f32.xlu0 %v963
        %v1017 = vpop.xlane.xlu0 %1016
        %1018 = vadd.xlane.f32.xlu0 %v964
        %v1019 = vpop.xlane.xlu0 %1018
        %1020 = vadd.xlane.f32.xlu0 %v965
        %v1021 = vpop.xlane.xlu0 %1020
        %1022 = vadd.xlane.f32.xlu0 %v966
        %v1023 = vpop.xlane.xlu0 %1022
        %1024 = vadd.xlane.f32.xlu0 %v967
        %v1025 = vpop.xlane.xlu0 %1024
        %1026 = vadd.xlane.f32.xlu0 %v968
        %v1027 = vpop.xlane.xlu0 %1026
        %1028 = vadd.xlane.f32.xlu0 %v969
        %v1029 = vpop.xlane.xlu0 %1028
        %1030 = vadd.xlane.f32.xlu0 %v970
        %v1031 = vpop.xlane.xlu0 %1030
        %1032 = vadd.xlane.f32.xlu0 %v971
        %v1033 = vpop.xlane.xlu0 %1032
        %1034 = vadd.xlane.f32.xlu0 %v972
        %v1035 = vpop.xlane.xlu0 %1034
        %1036 = vadd.xlane.f32.xlu0 %v973
        %v1037 = vpop.xlane.xlu0 %1036
        %v1038 = vadd.f32 %v990, %v1007
        %v1039 = vadd.f32 %v991, %v1009
        %v1040 = vadd.f32 %v992, %v1011
        %v1041 = vadd.f32 %v993, %v1013
        %v1042 = vadd.f32 %v994, %v1015
        %v1043 = vadd.f32 %v995, %v1017
        %v1044 = vadd.f32 %v996, %v1019
        %v1045 = vadd.f32 %v997, %v1021
        %v1046 = vadd.f32 %v998, %v1023
        %v1047 = vadd.f32 %v999, %v1025
        %v1048 = vadd.f32 %v1000, %v1027
        %v1049 = vadd.f32 %v1001, %v1029
        %v1050 = vadd.f32 %v1002, %v1031
        %v1051 = vadd.f32 %v1003, %v1033
        %v1052 = vadd.f32 %v1004, %v1035
        %v1053 = vadd.f32 %v1005, %v1037
        %vm1054 = vcmask 7168
        %1055 = vst.msk [vmem:[#allocation3] sm:$0xff] %vm1054, %v1038
        %1056 = vst.msk [vmem:[#allocation3 + $0x8] sm:$0xff] %vm1054, %v1039
        %1057 = vst.msk [vmem:[#allocation3 + $0x10] sm:$0xff] %vm1054, %v1040
        %1058 = vst.msk [vmem:[#allocation3 + $0x18] sm:$0xff] %vm1054, %v1041
        %1059 = vst.msk [vmem:[#allocation3 + $0x20] sm:$0xff] %vm1054, %v1042
        %1060 = vst.msk [vmem:[#allocation3 + $0x28] sm:$0xff] %vm1054, %v1043
        %1061 = vst.msk [vmem:[#allocation3 + $0x30] sm:$0xff] %vm1054, %v1044
        %1062 = vst.msk [vmem:[#allocation3 + $0x38] sm:$0xff] %vm1054, %v1045
        %1063 = vst.msk [vmem:[#allocation3 + $0x40] sm:$0xff] %vm1054, %v1046
        %1064 = vst.msk [vmem:[#allocation3 + $0x48] sm:$0xff] %vm1054, %v1047
        %1065 = vst.msk [vmem:[#allocation3 + $0x50] sm:$0xff] %vm1054, %v1048
        %1066 = vst.msk [vmem:[#allocation3 + $0x58] sm:$0xff] %vm1054, %v1049
        %1067 = vst.msk [vmem:[#allocation3 + $0x60] sm:$0xff] %vm1054, %v1050
        %1068 = vst.msk [vmem:[#allocation3 + $0x68] sm:$0xff] %vm1054, %v1051
        %1069 = vst.msk [vmem:[#allocation3 + $0x70] sm:$0xff] %vm1054, %v1052
        %1070 = vst.msk [vmem:[#allocation3 + $0x78] sm:$0xff] %vm1054, %v1053
        %v1071 = vpack.c.bf16 %v959, %v958
        %v1072 = vpack.c.bf16 %v961, %v960
        %v1073 = vpack.c.bf16 %v963, %v962
        %v1074 = vpack.c.bf16 %v965, %v964
        %v1075 = vpack.c.bf16 %v967, %v966
        %v1076 = vpack.c.bf16 %v969, %v968
        %v1077 = vpack.c.bf16 %v971, %v970
        %v1078 = vpack.c.bf16 %v973, %v972
        %v1095 = vunpack.c.l.b16 %v570
        %v1096 = vunpack.c.l.b16 %v571
        %v1097 = vunpack.c.l.b16 %v572
        %v1098 = vunpack.c.l.b16 %v573
        %v1099 = vunpack.c.l.b16 %v574
        %v1100 = vunpack.c.l.b16 %v575
        %v1101 = vunpack.c.l.b16 %v576
        %v1102 = vunpack.c.l.b16 %v577
        %v1103 = vunpack.c.l.b16 %v578
        %v1104 = vunpack.c.l.b16 %v579
        %v1105 = vunpack.c.l.b16 %v580
        %v1106 = vunpack.c.l.b16 %v581
        %v1107 = vunpack.c.l.b16 %v582
        %v1108 = vunpack.c.l.b16 %v583
        %v1109 = vunpack.c.l.b16 %v584
        %v1110 = vunpack.c.l.b16 %v585
        %v1111 = vpack.c.b16 %v1096, %v1095
        %v1112 = vpack.c.b16 %v1098, %v1097
        %v1113 = vpack.c.b16 %v1100, %v1099
        %v1114 = vpack.c.b16 %v1102, %v1101
        %v1115 = vpack.c.b16 %v1104, %v1103
        %v1116 = vpack.c.b16 %v1106, %v1105
        %v1117 = vpack.c.b16 %v1108, %v1107
        %v1118 = vpack.c.b16 %v1110, %v1109
        %1127 = vmatprep.subr.bf16.mxu0 0
        %1128 = vmatpush1.bf16.msra.mxu0 %v1111
        %1129 = vmatprep.subr.bf16.mxu0 0
        %1130 = vmatpush1.bf16.msra.mxu0 %v1112
        %1131 = vmatprep.subr.bf16.mxu0 0
        %1132 = vmatpush1.bf16.msra.mxu0 %v1113
        %1133 = vmatprep.subr.bf16.mxu0 0
        %1134 = vmatpush1.bf16.msra.mxu0 %v1114
        %1135 = vmatprep.subr.bf16.mxu0 0
        %1136 = vmatpush1.bf16.msra.mxu0 %v1115
        %1137 = vmatprep.subr.bf16.mxu0 0
        %1138 = vmatpush1.bf16.msra.mxu0 %v1116
        %1139 = vmatprep.subr.bf16.mxu0 0
        %1140 = vmatpush1.bf16.msra.mxu0 %v1117
        %1141 = vmatprep.subr.bf16.mxu0 0
        %1142 = vmatpush1.bf16.msra.mxu0 %v1118
        %1143 = vmatprep.subr.bf16.mxu0 0
        %1144 = vmatpush1.bf16.msra.mxu0 0
        %1145 = vmatprep.subr.bf16.mxu0 0
        %1146 = vmatpush1.bf16.msra.mxu0 0
        %1147 = vmatprep.subr.bf16.mxu0 0
        %1148 = vmatpush1.bf16.msra.mxu0 0
        %1149 = vmatprep.subr.bf16.mxu0 0
        %1150 = vmatpush1.bf16.msra.mxu0 0
        %1151 = vmatprep.subr.bf16.mxu0 0
        %1152 = vmatpush1.bf16.msra.mxu0 0
        %1153 = vmatprep.subr.bf16.mxu0 0
        %1154 = vmatpush1.bf16.msra.mxu0 0
        %1155 = vmatprep.subr.bf16.mxu0 0
        %1156 = vmatpush1.bf16.msra.mxu0 0
        %1157 = vmatprep.subr.bf16.mxu0 0
        %1158 = vmatpush1.bf16.msra.mxu0 0
        %1159 = vmatprep.mubr.bf16.mxu0 0
        %1160 = vmatmul.mubr.bf16.gmra.mrb[0].mxu0 %v1071
        %v1161 = vpop.f32.mrb[0].mxu0
        %v1162 = vadd.f32 0.0, %v1161
        %v1163 = vpop.f32.mrb[0].mxu0
        %v1164 = vpop.f32.mrb[0].mxu0
        %v1165 = vadd.f32 0.0, %v1164
        %v1166 = vpop.f32.mrb[0].mxu0
        %1167 = vmatprep.mubr.bf16.mxu0 0
        %1168 = vmatmul.mubr.bf16.gmra.mrb[0].mxu0 %v1072
        %v1169 = vpop.f32.mrb[0].mxu0
        %v1170 = vadd.f32 0.0, %v1169
        %v1171 = vpop.f32.mrb[0].mxu0
        %v1172 = vpop.f32.mrb[0].mxu0
        %v1173 = vadd.f32 0.0, %v1172
        %v1174 = vpop.f32.mrb[0].mxu0
        %1175 = vmatprep.mubr.bf16.mxu0 0
        %1176 = vmatmul.mubr.bf16.gmra.mrb[0].mxu0 %v1073
        %v1177 = vpop.f32.mrb[0].mxu0
        %v1178 = vadd.f32 0.0, %v1177
        %v1179 = vpop.f32.mrb[0].mxu0
        %v1180 = vpop.f32.mrb[0].mxu0
        %v1181 = vadd.f32 0.0, %v1180
        %v1182 = vpop.f32.mrb[0].mxu0
        %1183 = vmatprep.mubr.bf16.mxu0 0
        %1184 = vmatmul.mubr.bf16.gmra.mrb[0].mxu0 %v1074
        %v1185 = vpop.f32.mrb[0].mxu0
        %v1186 = vadd.f32 0.0, %v1185
        %v1187 = vpop.f32.mrb[0].mxu0
        %v1188 = vpop.f32.mrb[0].mxu0
        %v1189 = vadd.f32 0.0, %v1188
        %v1190 = vpop.f32.mrb[0].mxu0
        %1191 = vmatprep.mubr.bf16.mxu0 0
        %1192 = vmatmul.mubr.bf16.gmra.mrb[0].mxu0 %v1075
        %v1193 = vpop.f32.mrb[0].mxu0
        %v1194 = vadd.f32 0.0, %v1193
        %v1195 = vpop.f32.mrb[0].mxu0
        %v1196 = vpop.f32.mrb[0].mxu0
        %v1197 = vadd.f32 0.0, %v1196
        %v1198 = vpop.f32.mrb[0].mxu0
        %1199 = vmatprep.mubr.bf16.mxu0 0
        %1200 = vmatmul.mubr.bf16.gmra.mrb[0].mxu0 %v1076
        %v1201 = vpop.f32.mrb[0].mxu0
        %v1202 = vadd.f32 0.0, %v1201
        %v1203 = vpop.f32.mrb[0].mxu0
        %v1204 = vpop.f32.mrb[0].mxu0
        %v1205 = vadd.f32 0.0, %v1204
        %v1206 = vpop.f32.mrb[0].mxu0
        %1207 = vmatprep.mubr.bf16.mxu0 0
        %1208 = vmatmul.mubr.bf16.gmra.mrb[0].mxu0 %v1077
        %v1209 = vpop.f32.mrb[0].mxu0
        %v1210 = vadd.f32 0.0, %v1209
        %v1211 = vpop.f32.mrb[0].mxu0
        %v1212 = vpop.f32.mrb[0].mxu0
        %v1213 = vadd.f32 0.0, %v1212
        %v1214 = vpop.f32.mrb[0].mxu0
        %1215 = vmatprep.mubr.bf16.mxu0 0
        %1216 = vmatmul.mubr.bf16.gmra.mrb[0].mxu0 %v1078
        %v1217 = vpop.f32.mrb[0].mxu0
        %v1218 = vadd.f32 0.0, %v1217
        %v1219 = vpop.f32.mrb[0].mxu0
        %v1220 = vpop.f32.mrb[0].mxu0
        %v1221 = vadd.f32 0.0, %v1220
        %v1222 = vpop.f32.mrb[0].mxu0
        %1223 = vdwg.mxu0
        %v1224 = vld [vmem:[#allocation4] sm:$0xff]
        %v1225 = vld [vmem:[#allocation4 + $0x8] sm:$0xff]
        %v1226 = vld [vmem:[#allocation4 + $0x10] sm:$0xff]
        %v1227 = vld [vmem:[#allocation4 + $0x18] sm:$0xff]
        %v1228 = vld [vmem:[#allocation4 + $0x20] sm:$0xff]
        %v1229 = vld [vmem:[#allocation4 + $0x28] sm:$0xff]
        %v1230 = vld [vmem:[#allocation4 + $0x30] sm:$0xff]
        %v1231 = vld [vmem:[#allocation4 + $0x38] sm:$0xff]
        %v1232 = vld [vmem:[#allocation4 + $0x40] sm:$0xff]
        %v1233 = vld [vmem:[#allocation4 + $0x48] sm:$0xff]
        %v1234 = vld [vmem:[#allocation4 + $0x50] sm:$0xff]
        %v1235 = vld [vmem:[#allocation4 + $0x58] sm:$0xff]
        %v1236 = vld [vmem:[#allocation4 + $0x60] sm:$0xff]
        %v1237 = vld [vmem:[#allocation4 + $0x68] sm:$0xff]
        %v1238 = vld [vmem:[#allocation4 + $0x70] sm:$0xff]
        %v1239 = vld [vmem:[#allocation4 + $0x78] sm:$0xff]
        %1241 = vset.pattern.permute.xlu0 0
        %1242 = vperm.xlu0 %1241, %v799
        %v1243 = vpop.permute.xlu0 %1242
        %1246 = vset.pattern.permute.xlu0 0
        %1247 = vperm.xlu0 %1246, %v801
        %v1248 = vpop.permute.xlu0 %1247
        %1251 = vset.pattern.permute.xlu0 0
        %1252 = vperm.xlu0 %1251, %v803
        %v1253 = vpop.permute.xlu0 %1252
        %1256 = vset.pattern.permute.xlu0 0
        %1257 = vperm.xlu0 %1256, %v805
        %v1258 = vpop.permute.xlu0 %1257
        %1261 = vset.pattern.permute.xlu0 0
        %1262 = vperm.xlu0 %1261, %v807
        %v1263 = vpop.permute.xlu0 %1262
        %1266 = vset.pattern.permute.xlu0 0
        %1267 = vperm.xlu0 %1266, %v809
        %v1268 = vpop.permute.xlu0 %1267
        %1271 = vset.pattern.permute.xlu0 0
        %1272 = vperm.xlu0 %1271, %v811
        %v1273 = vpop.permute.xlu0 %1272
        %1276 = vset.pattern.permute.xlu0 0
        %1277 = vperm.xlu0 %1276, %v813
        %v1278 = vpop.permute.xlu0 %1277
        %1281 = vset.pattern.permute.xlu0 0
        %1282 = vperm.xlu0 %1281, %v815
        %v1283 = vpop.permute.xlu0 %1282
        %1286 = vset.pattern.permute.xlu0 0
        %1287 = vperm.xlu0 %1286, %v817
        %v1288 = vpop.permute.xlu0 %1287
        %1291 = vset.pattern.permute.xlu0 0
        %1292 = vperm.xlu0 %1291, %v819
        %v1293 = vpop.permute.xlu0 %1292
        %1296 = vset.pattern.permute.xlu0 0
        %1297 = vperm.xlu0 %1296, %v821
        %v1298 = vpop.permute.xlu0 %1297
        %1301 = vset.pattern.permute.xlu0 0
        %1302 = vperm.xlu0 %1301, %v823
        %v1303 = vpop.permute.xlu0 %1302
        %1306 = vset.pattern.permute.xlu0 0
        %1307 = vperm.xlu0 %1306, %v825
        %v1308 = vpop.permute.xlu0 %1307
        %1311 = vset.pattern.permute.xlu0 0
        %1312 = vperm.xlu0 %1311, %v827
        %v1313 = vpop.permute.xlu0 %1312
        %1316 = vset.pattern.permute.xlu0 0
        %1317 = vperm.xlu0 %1316, %v829
        %v1318 = vpop.permute.xlu0 %1317
        %v1320 = vmul.f32 %v1243, %v1224
        %v1321 = vmul.f32 %v1248, %v1225
        %v1322 = vmul.f32 %v1253, %v1226
        %v1323 = vmul.f32 %v1258, %v1227
        %v1324 = vmul.f32 %v1263, %v1228
        %v1325 = vmul.f32 %v1268, %v1229
        %v1326 = vmul.f32 %v1273, %v1230
        %v1327 = vmul.f32 %v1278, %v1231
        %v1328 = vmul.f32 %v1283, %v1232
        %v1329 = vmul.f32 %v1288, %v1233
        %v1330 = vmul.f32 %v1293, %v1234
        %v1331 = vmul.f32 %v1298, %v1235
        %v1332 = vmul.f32 %v1303, %v1236
        %v1333 = vmul.f32 %v1308, %v1237
        %v1334 = vmul.f32 %v1313, %v1238
        %v1335 = vmul.f32 %v1318, %v1239
        %v1336 = vadd.f32 %v1320, %v1162
        %v1337 = vadd.f32 %v1321, %v1165
        %v1338 = vadd.f32 %v1322, %v1170
        %v1339 = vadd.f32 %v1323, %v1173
        %v1340 = vadd.f32 %v1324, %v1178
        %v1341 = vadd.f32 %v1325, %v1181
        %v1342 = vadd.f32 %v1326, %v1186
        %v1343 = vadd.f32 %v1327, %v1189
        %v1344 = vadd.f32 %v1328, %v1194
        %v1345 = vadd.f32 %v1329, %v1197
        %v1346 = vadd.f32 %v1330, %v1202
        %v1347 = vadd.f32 %v1331, %v1205
        %v1348 = vadd.f32 %v1332, %v1210
        %v1349 = vadd.f32 %v1333, %v1213
        %v1350 = vadd.f32 %v1334, %v1218
        %v1351 = vadd.f32 %v1335, %v1221
        %vm1352 = vcmask 130048
        %1353 = vst.msk [vmem:[#allocation4] sm:$0xff] %vm1352, %v1336
        %1354 = vst.msk [vmem:[#allocation4 + $0x8] sm:$0xff] %vm1352, %v1337
        %1355 = vst.msk [vmem:[#allocation4 + $0x10] sm:$0xff] %vm1352, %v1338
        %1356 = vst.msk [vmem:[#allocation4 + $0x18] sm:$0xff] %vm1352, %v1339
        %1357 = vst.msk [vmem:[#allocation4 + $0x20] sm:$0xff] %vm1352, %v1340
        %1358 = vst.msk [vmem:[#allocation4 + $0x28] sm:$0xff] %vm1352, %v1341
        %1359 = vst.msk [vmem:[#allocation4 + $0x30] sm:$0xff] %vm1352, %v1342
        %1360 = vst.msk [vmem:[#allocation4 + $0x38] sm:$0xff] %vm1352, %v1343
        %1361 = vst.msk [vmem:[#allocation4 + $0x40] sm:$0xff] %vm1352, %v1344
        %1362 = vst.msk [vmem:[#allocation4 + $0x48] sm:$0xff] %vm1352, %v1345
        %1363 = vst.msk [vmem:[#allocation4 + $0x50] sm:$0xff] %vm1352, %v1346
        %1364 = vst.msk [vmem:[#allocation4 + $0x58] sm:$0xff] %vm1352, %v1347
        %1365 = vst.msk [vmem:[#allocation4 + $0x60] sm:$0xff] %vm1352, %v1348
        %1366 = vst.msk [vmem:[#allocation4 + $0x68] sm:$0xff] %vm1352, %v1349
        %1367 = vst.msk [vmem:[#allocation4 + $0x70] sm:$0xff] %vm1352, %v1350
        %1368 = vst.msk [vmem:[#allocation4 + $0x78] sm:$0xff] %vm1352, %v1351
        %1369 = vst.msk [vmem:[#allocation2] sm:$0xff] %vm1054, %v766
        %1370 = vst.msk [vmem:[#allocation2 + $0x8] sm:$0xff] %vm1054, %v767
        %1371 = vst.msk [vmem:[#allocation2 + $0x10] sm:$0xff] %vm1054, %v768
        %1372 = vst.msk [vmem:[#allocation2 + $0x18] sm:$0xff] %vm1054, %v769
        %1373 = vst.msk [vmem:[#allocation2 + $0x20] sm:$0xff] %vm1054, %v770
        %1374 = vst.msk [vmem:[#allocation2 + $0x28] sm:$0xff] %vm1054, %v771
        %1375 = vst.msk [vmem:[#allocation2 + $0x30] sm:$0xff] %vm1054, %v772
        %1376 = vst.msk [vmem:[#allocation2 + $0x38] sm:$0xff] %vm1054, %v773
        %1377 = vst.msk [vmem:[#allocation2 + $0x40] sm:$0xff] %vm1054, %v774
        %1378 = vst.msk [vmem:[#allocation2 + $0x48] sm:$0xff] %vm1054, %v775
        %1379 = vst.msk [vmem:[#allocation2 + $0x50] sm:$0xff] %vm1054, %v776
        %1380 = vst.msk [vmem:[#allocation2 + $0x58] sm:$0xff] %vm1054, %v777
        %1381 = vst.msk [vmem:[#allocation2 + $0x60] sm:$0xff] %vm1054, %v778
        %1382 = vst.msk [vmem:[#allocation2 + $0x68] sm:$0xff] %vm1054, %v779
        %1383 = vst.msk [vmem:[#allocation2 + $0x70] sm:$0xff] %vm1054, %v780
        %1384 = vst.msk [vmem:[#allocation2 + $0x78] sm:$0xff] %vm1054, %v781
        %1385 = vset.pattern.permute.xlu0 1
        %1386 = vperm.xlu0 %1385, %v548
        %v1387 = vpop.permute.xlu0 %1386
        %1389 = vset.pattern.permute.xlu0 1
        %1390 = vperm.xlu0 %1389, %v549
        %v1391 = vpop.permute.xlu0 %1390
        %1393 = vset.pattern.permute.xlu0 1
        %1394 = vperm.xlu0 %1393, %v550
        %v1395 = vpop.permute.xlu0 %1394
        %1397 = vset.pattern.permute.xlu0 1
        %1398 = vperm.xlu0 %1397, %v551
        %v1399 = vpop.permute.xlu0 %1398
        %1401 = vset.pattern.permute.xlu0 1
        %1402 = vperm.xlu0 %1401, %v552
        %v1403 = vpop.permute.xlu0 %1402
        %1405 = vset.pattern.permute.xlu0 1
        %1406 = vperm.xlu0 %1405, %v553
        %v1407 = vpop.permute.xlu0 %1406
        %1409 = vset.pattern.permute.xlu0 1
        %1410 = vperm.xlu0 %1409, %v554
        %v1411 = vpop.permute.xlu0 %1410
        %1413 = vset.pattern.permute.xlu0 1
        %1414 = vperm.xlu0 %1413, %v555
        %v1415 = vpop.permute.xlu0 %1414
        %1417 = vset.pattern.permute.xlu0 1
        %1418 = vperm.xlu0 %1417, %v556
        %v1419 = vpop.permute.xlu0 %1418
        %1421 = vset.pattern.permute.xlu0 1
        %1422 = vperm.xlu0 %1421, %v557
        %v1423 = vpop.permute.xlu0 %1422
        %1425 = vset.pattern.permute.xlu0 1
        %1426 = vperm.xlu0 %1425, %v558
        %v1427 = vpop.permute.xlu0 %1426
        %1429 = vset.pattern.permute.xlu0 1
        %1430 = vperm.xlu0 %1429, %v559
        %v1431 = vpop.permute.xlu0 %1430
        %1433 = vset.pattern.permute.xlu0 1
        %1434 = vperm.xlu0 %1433, %v560
        %v1435 = vpop.permute.xlu0 %1434
        %1437 = vset.pattern.permute.xlu0 1
        %1438 = vperm.xlu0 %1437, %v561
        %v1439 = vpop.permute.xlu0 %1438
        %1441 = vset.pattern.permute.xlu0 1
        %1442 = vperm.xlu0 %1441, %v562
        %v1443 = vpop.permute.xlu0 %1442
        %1445 = vset.pattern.permute.xlu0 1
        %1446 = vperm.xlu0 %1445, %v563
        %v1447 = vpop.permute.xlu0 %1446
        %v1449 = vlaneseq
        %v1450 = vshrl.u32 %v1449, 7
        %v1451 = vsub.s32 1, %v1450
        %v1452 = vrot.slane %v564, %v1451
        %v1453 = vadd.f32 %v1387, %v1452
        %v1454 = vadd.f32 %v1391, %v1452
        %v1455 = vadd.f32 %v1395, %v1452
        %v1456 = vadd.f32 %v1399, %v1452
        %v1457 = vadd.f32 %v1403, %v1452
        %v1458 = vadd.f32 %v1407, %v1452
        %v1459 = vadd.f32 %v1411, %v1452
        %v1460 = vadd.f32 %v1415, %v1452
        %v1461 = vadd.f32 %v1419, %v1452
        %v1462 = vadd.f32 %v1423, %v1452
        %v1463 = vadd.f32 %v1427, %v1452
        %v1464 = vadd.f32 %v1431, %v1452
        %v1465 = vadd.f32 %v1435, %v1452
        %v1466 = vadd.f32 %v1439, %v1452
        %v1467 = vadd.f32 %v1443, %v1452
        %v1468 = vadd.f32 %v1447, %v1452
        %v1469 = vmul.f32 %v1453, 0.2
        %v1470 = vmul.f32 %v1454, 0.2
        %v1471 = vmul.f32 %v1455, 0.2
        %v1472 = vmul.f32 %v1456, 0.2
        %v1473 = vmul.f32 %v1457, 0.2
        %v1474 = vmul.f32 %v1458, 0.2
        %v1475 = vmul.f32 %v1459, 0.2
        %v1476 = vmul.f32 %v1460, 0.2
        %v1477 = vmul.f32 %v1461, 0.2
        %v1478 = vmul.f32 %v1462, 0.2
        %v1479 = vmul.f32 %v1463, 0.2
        %v1480 = vmul.f32 %v1464, 0.2
        %v1481 = vmul.f32 %v1465, 0.2
        %v1482 = vmul.f32 %v1466, 0.2
        %v1483 = vmul.f32 %v1467, 0.2
        %v1484 = vmul.f32 %v1468, 0.2
        %v1485 = vmax.f32 %v1453, %v1469
        %v1486 = vmax.f32 %v1454, %v1470
        %v1487 = vmax.f32 %v1455, %v1471
        %v1488 = vmax.f32 %v1456, %v1472
        %v1489 = vmax.f32 %v1457, %v1473
        %v1490 = vmax.f32 %v1458, %v1474
        %v1491 = vmax.f32 %v1459, %v1475
        %v1492 = vmax.f32 %v1460, %v1476
        %v1493 = vmax.f32 %v1461, %v1477
        %v1494 = vmax.f32 %v1462, %v1478
        %v1495 = vmax.f32 %v1463, %v1479
        %v1496 = vmax.f32 %v1464, %v1480
        %v1497 = vmax.f32 %v1465, %v1481
        %v1498 = vmax.f32 %v1466, %v1482
        %v1499 = vmax.f32 %v1467, %v1483
        %v1500 = vmax.f32 %v1468, %v1484
        %v1501 = vld [vmem:[#allocation2] sm:$0xff]
        %v1502 = vld [vmem:[#allocation2 + $0x8] sm:$0xff]
        %v1503 = vld [vmem:[#allocation2 + $0x10] sm:$0xff]
        %v1504 = vld [vmem:[#allocation2 + $0x18] sm:$0xff]
        %v1505 = vld [vmem:[#allocation2 + $0x20] sm:$0xff]
        %v1506 = vld [vmem:[#allocation2 + $0x28] sm:$0xff]
        %v1507 = vld [vmem:[#allocation2 + $0x30] sm:$0xff]
        %v1508 = vld [vmem:[#allocation2 + $0x38] sm:$0xff]
        %v1509 = vld [vmem:[#allocation2 + $0x40] sm:$0xff]
        %v1510 = vld [vmem:[#allocation2 + $0x48] sm:$0xff]
        %v1511 = vld [vmem:[#allocation2 + $0x50] sm:$0xff]
        %v1512 = vld [vmem:[#allocation2 + $0x58] sm:$0xff]
        %v1513 = vld [vmem:[#allocation2 + $0x60] sm:$0xff]
        %v1514 = vld [vmem:[#allocation2 + $0x68] sm:$0xff]
        %v1515 = vld [vmem:[#allocation2 + $0x70] sm:$0xff]
        %v1516 = vld [vmem:[#allocation2 + $0x78] sm:$0xff]
        %1517 = vmax.xlane.f32.xlu0 %v1485
        %v1518 = vpop.xlane.xlu0 %1517
        %1519 = vmax.xlane.f32.xlu0 %v1486
        %v1520 = vpop.xlane.xlu0 %1519
        %1521 = vmax.xlane.f32.xlu0 %v1487
        %v1522 = vpop.xlane.xlu0 %1521
        %1523 = vmax.xlane.f32.xlu0 %v1488
        %v1524 = vpop.xlane.xlu0 %1523
        %1525 = vmax.xlane.f32.xlu0 %v1489
        %v1526 = vpop.xlane.xlu0 %1525
        %1527 = vmax.xlane.f32.xlu0 %v1490
        %v1528 = vpop.xlane.xlu0 %1527
        %1529 = vmax.xlane.f32.xlu0 %v1491
        %v1530 = vpop.xlane.xlu0 %1529
        %1531 = vmax.xlane.f32.xlu0 %v1492
        %v1532 = vpop.xlane.xlu0 %1531
        %1533 = vmax.xlane.f32.xlu0 %v1493
        %v1534 = vpop.xlane.xlu0 %1533
        %1535 = vmax.xlane.f32.xlu0 %v1494
        %v1536 = vpop.xlane.xlu0 %1535
        %1537 = vmax.xlane.f32.xlu0 %v1495
        %v1538 = vpop.xlane.xlu0 %1537
        %1539 = vmax.xlane.f32.xlu0 %v1496
        %v1540 = vpop.xlane.xlu0 %1539
        %1541 = vmax.xlane.f32.xlu0 %v1497
        %v1542 = vpop.xlane.xlu0 %1541
        %1543 = vmax.xlane.f32.xlu0 %v1498
        %v1544 = vpop.xlane.xlu0 %1543
        %1545 = vmax.xlane.f32.xlu0 %v1499
        %v1546 = vpop.xlane.xlu0 %1545
        %1547 = vmax.xlane.f32.xlu0 %v1500
        %v1548 = vpop.xlane.xlu0 %1547
        %v1549 = vmax.f32 %v1501, %v1518
        %v1550 = vmax.f32 %v1502, %v1520
        %v1551 = vmax.f32 %v1503, %v1522
        %v1552 = vmax.f32 %v1504, %v1524
        %v1553 = vmax.f32 %v1505, %v1526
        %v1554 = vmax.f32 %v1506, %v1528
        %v1555 = vmax.f32 %v1507, %v1530
        %v1556 = vmax.f32 %v1508, %v1532
        %v1557 = vmax.f32 %v1509, %v1534
        %v1558 = vmax.f32 %v1510, %v1536
        %v1559 = vmax.f32 %v1511, %v1538
        %v1560 = vmax.f32 %v1512, %v1540
        %v1561 = vmax.f32 %v1513, %v1542
        %v1562 = vmax.f32 %v1514, %v1544
        %v1563 = vmax.f32 %v1515, %v1546
        %v1564 = vmax.f32 %v1516, %v1548
        %v1565 = vsub.f32 %v1501, %v1549
        %v1566 = vsub.f32 %v1502, %v1550
        %v1567 = vsub.f32 %v1503, %v1551
        %v1568 = vsub.f32 %v1504, %v1552
        %v1569 = vsub.f32 %v1505, %v1553
        %v1570 = vsub.f32 %v1506, %v1554
        %v1571 = vsub.f32 %v1507, %v1555
        %v1572 = vsub.f32 %v1508, %v1556
        %v1573 = vsub.f32 %v1509, %v1557
        %v1574 = vsub.f32 %v1510, %v1558
        %v1575 = vsub.f32 %v1511, %v1559
        %v1576 = vsub.f32 %v1512, %v1560
        %v1577 = vsub.f32 %v1513, %v1561
        %v1578 = vsub.f32 %v1514, %v1562
        %v1579 = vsub.f32 %v1515, %v1563
        %v1580 = vsub.f32 %v1516, %v1564
        %v1581 = vmul.f32 %v1565, 1.442695
        %v1582 = vpow.pop %v1581
        %v1583 = vmul.f32 %v1566, 1.442695
        %v1584 = vpow.pop %v1583
        %v1585 = vmul.f32 %v1567, 1.442695
        %v1586 = vpow.pop %v1585
        %v1587 = vmul.f32 %v1568, 1.442695
        %v1588 = vpow.pop %v1587
        %v1589 = vmul.f32 %v1569, 1.442695
        %v1590 = vpow.pop %v1589
        %v1591 = vmul.f32 %v1570, 1.442695
        %v1592 = vpow.pop %v1591
        %v1593 = vmul.f32 %v1571, 1.442695
        %v1594 = vpow.pop %v1593
        %v1595 = vmul.f32 %v1572, 1.442695
        %v1596 = vpow.pop %v1595
        %v1597 = vmul.f32 %v1573, 1.442695
        %v1598 = vpow.pop %v1597
        %v1599 = vmul.f32 %v1574, 1.442695
        %v1600 = vpow.pop %v1599
        %v1601 = vmul.f32 %v1575, 1.442695
        %v1602 = vpow.pop %v1601
        %v1603 = vmul.f32 %v1576, 1.442695
        %v1604 = vpow.pop %v1603
        %v1605 = vmul.f32 %v1577, 1.442695
        %v1606 = vpow.pop %v1605
        %v1607 = vmul.f32 %v1578, 1.442695
        %v1608 = vpow.pop %v1607
        %v1609 = vmul.f32 %v1579, 1.442695
        %v1610 = vpow.pop %v1609
        %v1611 = vmul.f32 %v1580, 1.442695
        %v1612 = vpow.pop %v1611
        %1614 = vset.pattern.permute.xlu0 1
        %1615 = vperm.xlu0 %1614, %v1549
        %v1616 = vpop.permute.xlu0 %1615
        %1619 = vset.pattern.permute.xlu0 1
        %1620 = vperm.xlu0 %1619, %v1550
        %v1621 = vpop.permute.xlu0 %1620
        %1624 = vset.pattern.permute.xlu0 1
        %1625 = vperm.xlu0 %1624, %v1551
        %v1626 = vpop.permute.xlu0 %1625
        %1629 = vset.pattern.permute.xlu0 1
        %1630 = vperm.xlu0 %1629, %v1552
        %v1631 = vpop.permute.xlu0 %1630
        %1634 = vset.pattern.permute.xlu0 1
        %1635 = vperm.xlu0 %1634, %v1553
        %v1636 = vpop.permute.xlu0 %1635
        %1639 = vset.pattern.permute.xlu0 1
        %1640 = vperm.xlu0 %1639, %v1554
        %v1641 = vpop.permute.xlu0 %1640
        %1644 = vset.pattern.permute.xlu0 1
        %1645 = vperm.xlu0 %1644, %v1555
        %v1646 = vpop.permute.xlu0 %1645
        %1649 = vset.pattern.permute.xlu0 1
        %1650 = vperm.xlu0 %1649, %v1556
        %v1651 = vpop.permute.xlu0 %1650
        %1654 = vset.pattern.permute.xlu0 1
        %1655 = vperm.xlu0 %1654, %v1557
        %v1656 = vpop.permute.xlu0 %1655
        %1659 = vset.pattern.permute.xlu0 1
        %1660 = vperm.xlu0 %1659, %v1558
        %v1661 = vpop.permute.xlu0 %1660
        %1664 = vset.pattern.permute.xlu0 1
        %1665 = vperm.xlu0 %1664, %v1559
        %v1666 = vpop.permute.xlu0 %1665
        %1669 = vset.pattern.permute.xlu0 1
        %1670 = vperm.xlu0 %1669, %v1560
        %v1671 = vpop.permute.xlu0 %1670
        %1674 = vset.pattern.permute.xlu0 1
        %1675 = vperm.xlu0 %1674, %v1561
        %v1676 = vpop.permute.xlu0 %1675
        %1679 = vset.pattern.permute.xlu0 1
        %1680 = vperm.xlu0 %1679, %v1562
        %v1681 = vpop.permute.xlu0 %1680
        %1684 = vset.pattern.permute.xlu0 1
        %1685 = vperm.xlu0 %1684, %v1563
        %v1686 = vpop.permute.xlu0 %1685
        %1689 = vset.pattern.permute.xlu0 1
        %1690 = vperm.xlu0 %1689, %v1564
        %v1691 = vpop.permute.xlu0 %1690
        %v1693 = vsub.f32 %v1485, %v1616
        %v1694 = vsub.f32 %v1486, %v1621
        %v1695 = vsub.f32 %v1487, %v1626
        %v1696 = vsub.f32 %v1488, %v1631
        %v1697 = vsub.f32 %v1489, %v1636
        %v1698 = vsub.f32 %v1490, %v1641
        %v1699 = vsub.f32 %v1491, %v1646
        %v1700 = vsub.f32 %v1492, %v1651
        %v1701 = vsub.f32 %v1493, %v1656
        %v1702 = vsub.f32 %v1494, %v1661
        %v1703 = vsub.f32 %v1495, %v1666
        %v1704 = vsub.f32 %v1496, %v1671
        %v1705 = vsub.f32 %v1497, %v1676
        %v1706 = vsub.f32 %v1498, %v1681
        %v1707 = vsub.f32 %v1499, %v1686
        %v1708 = vsub.f32 %v1500, %v1691
        %v1709 = vmul.f32 %v1693, 1.442695
        %v1710 = vpow.pop %v1709
        %v1711 = vmul.f32 %v1694, 1.442695
        %v1712 = vpow.pop %v1711
        %v1713 = vmul.f32 %v1695, 1.442695
        %v1714 = vpow.pop %v1713
        %v1715 = vmul.f32 %v1696, 1.442695
        %v1716 = vpow.pop %v1715
        %v1717 = vmul.f32 %v1697, 1.442695
        %v1718 = vpow.pop %v1717
        %v1719 = vmul.f32 %v1698, 1.442695
        %v1720 = vpow.pop %v1719
        %v1721 = vmul.f32 %v1699, 1.442695
        %v1722 = vpow.pop %v1721
        %v1723 = vmul.f32 %v1700, 1.442695
        %v1724 = vpow.pop %v1723
        %v1725 = vmul.f32 %v1701, 1.442695
        %v1726 = vpow.pop %v1725
        %v1727 = vmul.f32 %v1702, 1.442695
        %v1728 = vpow.pop %v1727
        %v1729 = vmul.f32 %v1703, 1.442695
        %v1730 = vpow.pop %v1729
        %v1731 = vmul.f32 %v1704, 1.442695
        %v1732 = vpow.pop %v1731
        %v1733 = vmul.f32 %v1705, 1.442695
        %v1734 = vpow.pop %v1733
        %v1735 = vmul.f32 %v1706, 1.442695
        %v1736 = vpow.pop %v1735
        %v1737 = vmul.f32 %v1707, 1.442695
        %v1738 = vpow.pop %v1737
        %v1739 = vmul.f32 %v1708, 1.442695
        %v1740 = vpow.pop %v1739
        %v1741 = vmul.f32 %v1710, %v532
        %v1742 = vmul.f32 %v1712, %v533
        %v1743 = vmul.f32 %v1714, %v534
        %v1744 = vmul.f32 %v1716, %v535
        %v1745 = vmul.f32 %v1718, %v536
        %v1746 = vmul.f32 %v1720, %v537
        %v1747 = vmul.f32 %v1722, %v538
        %v1748 = vmul.f32 %v1724, %v539
        %v1749 = vmul.f32 %v1726, %v540
        %v1750 = vmul.f32 %v1728, %v541
        %v1751 = vmul.f32 %v1730, %v542
        %v1752 = vmul.f32 %v1732, %v543
        %v1753 = vmul.f32 %v1734, %v544
        %v1754 = vmul.f32 %v1736, %v545
        %v1755 = vmul.f32 %v1738, %v546
        %v1756 = vmul.f32 %v1740, %v547
        %v1757 = vld [vmem:[#allocation3] sm:$0xff]
        %v1758 = vld [vmem:[#allocation3 + $0x8] sm:$0xff]
        %v1759 = vld [vmem:[#allocation3 + $0x10] sm:$0xff]
        %v1760 = vld [vmem:[#allocation3 + $0x18] sm:$0xff]
        %v1761 = vld [vmem:[#allocation3 + $0x20] sm:$0xff]
        %v1762 = vld [vmem:[#allocation3 + $0x28] sm:$0xff]
        %v1763 = vld [vmem:[#allocation3 + $0x30] sm:$0xff]
        %v1764 = vld [vmem:[#allocation3 + $0x38] sm:$0xff]
        %v1765 = vld [vmem:[#allocation3 + $0x40] sm:$0xff]
        %v1766 = vld [vmem:[#allocation3 + $0x48] sm:$0xff]
        %v1767 = vld [vmem:[#allocation3 + $0x50] sm:$0xff]
        %v1768 = vld [vmem:[#allocation3 + $0x58] sm:$0xff]
        %v1769 = vld [vmem:[#allocation3 + $0x60] sm:$0xff]
        %v1770 = vld [vmem:[#allocation3 + $0x68] sm:$0xff]
        %v1771 = vld [vmem:[#allocation3 + $0x70] sm:$0xff]
        %v1772 = vld [vmem:[#allocation3 + $0x78] sm:$0xff]
        %v1773 = vmul.f32 %v1582, %v1757
        %v1774 = vmul.f32 %v1584, %v1758
        %v1775 = vmul.f32 %v1586, %v1759
        %v1776 = vmul.f32 %v1588, %v1760
        %v1777 = vmul.f32 %v1590, %v1761
        %v1778 = vmul.f32 %v1592, %v1762
        %v1779 = vmul.f32 %v1594, %v1763
        %v1780 = vmul.f32 %v1596, %v1764
        %v1781 = vmul.f32 %v1598, %v1765
        %v1782 = vmul.f32 %v1600, %v1766
        %v1783 = vmul.f32 %v1602, %v1767
        %v1784 = vmul.f32 %v1604, %v1768
        %v1785 = vmul.f32 %v1606, %v1769
        %v1786 = vmul.f32 %v1608, %v1770
        %v1787 = vmul.f32 %v1610, %v1771
        %v1788 = vmul.f32 %v1612, %v1772
        %1789 = vadd.xlane.f32.xlu0 %v1741
        %v1790 = vpop.xlane.xlu0 %1789
        %1791 = vadd.xlane.f32.xlu0 %v1742
        %v1792 = vpop.xlane.xlu0 %1791
        %1793 = vadd.xlane.f32.xlu0 %v1743
        %v1794 = vpop.xlane.xlu0 %1793
        %1795 = vadd.xlane.f32.xlu0 %v1744
        %v1796 = vpop.xlane.xlu0 %1795
        %1797 = vadd.xlane.f32.xlu0 %v1745
        %v1798 = vpop.xlane.xlu0 %1797
        %1799 = vadd.xlane.f32.xlu0 %v1746
        %v1800 = vpop.xlane.xlu0 %1799
        %1801 = vadd.xlane.f32.xlu0 %v1747
        %v1802 = vpop.xlane.xlu0 %1801
        %1803 = vadd.xlane.f32.xlu0 %v1748
        %v1804 = vpop.xlane.xlu0 %1803
        %1805 = vadd.xlane.f32.xlu0 %v1749
        %v1806 = vpop.xlane.xlu0 %1805
        %1807 = vadd.xlane.f32.xlu0 %v1750
        %v1808 = vpop.xlane.xlu0 %1807
        %1809 = vadd.xlane.f32.xlu0 %v1751
        %v1810 = vpop.xlane.xlu0 %1809
        %1811 = vadd.xlane.f32.xlu0 %v1752
        %v1812 = vpop.xlane.xlu0 %1811
        %1813 = vadd.xlane.f32.xlu0 %v1753
        %v1814 = vpop.xlane.xlu0 %1813
        %1815 = vadd.xlane.f32.xlu0 %v1754
        %v1816 = vpop.xlane.xlu0 %1815
        %1817 = vadd.xlane.f32.xlu0 %v1755
        %v1818 = vpop.xlane.xlu0 %1817
        %1819 = vadd.xlane.f32.xlu0 %v1756
        %v1820 = vpop.xlane.xlu0 %1819
        %v1821 = vadd.f32 %v1773, %v1790
        %v1822 = vadd.f32 %v1774, %v1792
        %v1823 = vadd.f32 %v1775, %v1794
        %v1824 = vadd.f32 %v1776, %v1796
        %v1825 = vadd.f32 %v1777, %v1798
        %v1826 = vadd.f32 %v1778, %v1800
        %v1827 = vadd.f32 %v1779, %v1802
        %v1828 = vadd.f32 %v1780, %v1804
        %v1829 = vadd.f32 %v1781, %v1806
        %v1830 = vadd.f32 %v1782, %v1808
        %v1831 = vadd.f32 %v1783, %v1810
        %v1832 = vadd.f32 %v1784, %v1812
        %v1833 = vadd.f32 %v1785, %v1814
        %v1834 = vadd.f32 %v1786, %v1816
        %v1835 = vadd.f32 %v1787, %v1818
        %v1836 = vadd.f32 %v1788, %v1820
        %vm1837 = vcmask 15368
        %1838 = vst.msk [vmem:[#allocation3] sm:$0xff] %vm1837, %v1821
        %1839 = vst.msk [vmem:[#allocation3 + $0x8] sm:$0xff] %vm1837, %v1822
        %1840 = vst.msk [vmem:[#allocation3 + $0x10] sm:$0xff] %vm1837, %v1823
        %1841 = vst.msk [vmem:[#allocation3 + $0x18] sm:$0xff] %vm1837, %v1824
        %1842 = vst.msk [vmem:[#allocation3 + $0x20] sm:$0xff] %vm1837, %v1825
        %1843 = vst.msk [vmem:[#allocation3 + $0x28] sm:$0xff] %vm1837, %v1826
        %1844 = vst.msk [vmem:[#allocation3 + $0x30] sm:$0xff] %vm1837, %v1827
        %1845 = vst.msk [vmem:[#allocation3 + $0x38] sm:$0xff] %vm1837, %v1828
        %1846 = vst.msk [vmem:[#allocation3 + $0x40] sm:$0xff] %vm1837, %v1829
        %1847 = vst.msk [vmem:[#allocation3 + $0x48] sm:$0xff] %vm1837, %v1830
        %1848 = vst.msk [vmem:[#allocation3 + $0x50] sm:$0xff] %vm1837, %v1831
        %1849 = vst.msk [vmem:[#allocation3 + $0x58] sm:$0xff] %vm1837, %v1832
        %1850 = vst.msk [vmem:[#allocation3 + $0x60] sm:$0xff] %vm1837, %v1833
        %1851 = vst.msk [vmem:[#allocation3 + $0x68] sm:$0xff] %vm1837, %v1834
        %1852 = vst.msk [vmem:[#allocation3 + $0x70] sm:$0xff] %vm1837, %v1835
        %1853 = vst.msk [vmem:[#allocation3 + $0x78] sm:$0xff] %vm1837, %v1836
        %v1854 = vpack.c.bf16 %v1742, %v1741
        %v1855 = vpack.c.bf16 %v1744, %v1743
        %v1856 = vpack.c.bf16 %v1746, %v1745
        %v1857 = vpack.c.bf16 %v1748, %v1747
        %v1858 = vpack.c.bf16 %v1750, %v1749
        %v1859 = vpack.c.bf16 %v1752, %v1751
        %v1860 = vpack.c.bf16 %v1754, %v1753
        %v1861 = vpack.c.bf16 %v1756, %v1755
        %1862 = vrot.lane.b32.xlu0 %v1111, 112
        %v1863 = vpop.permute.xlu0 %1862
        %1864 = vrot.lane.b32.xlu0 %v1112, 112
        %v1865 = vpop.permute.xlu0 %1864
        %1866 = vrot.lane.b32.xlu0 %v1113, 112
        %v1867 = vpop.permute.xlu0 %1866
        %1868 = vrot.lane.b32.xlu0 %v1114, 112
        %v1869 = vpop.permute.xlu0 %1868
        %1870 = vrot.lane.b32.xlu0 %v1115, 112
        %v1871 = vpop.permute.xlu0 %1870
        %1872 = vrot.lane.b32.xlu0 %v1116, 112
        %v1873 = vpop.permute.xlu0 %1872
        %1874 = vrot.lane.b32.xlu0 %v1117, 112
        %v1875 = vpop.permute.xlu0 %1874
        %1876 = vrot.lane.b32.xlu0 %v1118, 112
        %v1877 = vpop.permute.xlu0 %1876
        %1886 = vmatprep.subr.bf16.mxu0 0
        %1887 = vmatpush1.bf16.msra.mxu0 %v1863
        %1888 = vmatprep.subr.bf16.mxu0 0
        %1889 = vmatpush1.bf16.msra.mxu0 %v1865
        %1890 = vmatprep.subr.bf16.mxu0 0
        %1891 = vmatpush1.bf16.msra.mxu0 %v1867
        %1892 = vmatprep.subr.bf16.mxu0 0
        %1893 = vmatpush1.bf16.msra.mxu0 %v1869
        %1894 = vmatprep.subr.bf16.mxu0 0
        %1895 = vmatpush1.bf16.msra.mxu0 %v1871
        %1896 = vmatprep.subr.bf16.mxu0 0
        %1897 = vmatpush1.bf16.msra.mxu0 %v1873
        %1898 = vmatprep.subr.bf16.mxu0 0
        %1899 = vmatpush1.bf16.msra.mxu0 %v1875
        %1900 = vmatprep.subr.bf16.mxu0 0
        %1901 = vmatpush1.bf16.msra.mxu0 %v1877
        %1902 = vmatprep.subr.bf16.mxu0 0
        %1903 = vmatpush1.bf16.msra.mxu0 0
        %1904 = vmatprep.subr.bf16.mxu0 0
        %1905 = vmatpush1.bf16.msra.mxu0 0
        %1906 = vmatprep.subr.bf16.mxu0 0
        %1907 = vmatpush1.bf16.msra.mxu0 0
        %1908 = vmatprep.subr.bf16.mxu0 0
        %1909 = vmatpush1.bf16.msra.mxu0 0
        %1910 = vmatprep.subr.bf16.mxu0 0
        %1911 = vmatpush1.bf16.msra.mxu0 0
        %1912 = vmatprep.subr.bf16.mxu0 0
        %1913 = vmatpush1.bf16.msra.mxu0 0
        %1914 = vmatprep.subr.bf16.mxu0 0
        %1915 = vmatpush1.bf16.msra.mxu0 0
        %1916 = vmatprep.subr.bf16.mxu0 0
        %1917 = vmatpush1.bf16.msra.mxu0 0
        %1918 = vmatprep.mubr.bf16.mxu0 0
        %1919 = vmatmul.mubr.bf16.gmra.mrb[0].mxu0 %v1854
        %v1920 = vpop.f32.mrb[0].mxu0
        %v1921 = vadd.f32 0.0, %v1920
        %v1922 = vpop.f32.mrb[0].mxu0
        %v1923 = vpop.f32.mrb[0].mxu0
        %v1924 = vadd.f32 0.0, %v1923
        %v1925 = vpop.f32.mrb[0].mxu0
        %1926 = vmatprep.mubr.bf16.mxu0 0
        %1927 = vmatmul.mubr.bf16.gmra.mrb[0].mxu0 %v1855
        %v1928 = vpop.f32.mrb[0].mxu0
        %v1929 = vadd.f32 0.0, %v1928
        %v1930 = vpop.f32.mrb[0].mxu0
        %v1931 = vpop.f32.mrb[0].mxu0
        %v1932 = vadd.f32 0.0, %v1931
        %v1933 = vpop.f32.mrb[0].mxu0
        %1934 = vmatprep.mubr.bf16.mxu0 0
        %1935 = vmatmul.mubr.bf16.gmra.mrb[0].mxu0 %v1856
        %v1936 = vpop.f32.mrb[0].mxu0
        %v1937 = vadd.f32 0.0, %v1936
        %v1938 = vpop.f32.mrb[0].mxu0
        %v1939 = vpop.f32.mrb[0].mxu0
        %v1940 = vadd.f32 0.0, %v1939
        %v1941 = vpop.f32.mrb[0].mxu0
        %1942 = vmatprep.mubr.bf16.mxu0 0
        %1943 = vmatmul.mubr.bf16.gmra.mrb[0].mxu0 %v1857
        %v1944 = vpop.f32.mrb[0].mxu0
        %v1945 = vadd.f32 0.0, %v1944
        %v1946 = vpop.f32.mrb[0].mxu0
        %v1947 = vpop.f32.mrb[0].mxu0
        %v1948 = vadd.f32 0.0, %v1947
        %v1949 = vpop.f32.mrb[0].mxu0
        %1950 = vmatprep.mubr.bf16.mxu0 0
        %1951 = vmatmul.mubr.bf16.gmra.mrb[0].mxu0 %v1858
        %v1952 = vpop.f32.mrb[0].mxu0
        %v1953 = vadd.f32 0.0, %v1952
        %v1954 = vpop.f32.mrb[0].mxu0
        %v1955 = vpop.f32.mrb[0].mxu0
        %v1956 = vadd.f32 0.0, %v1955
        %v1957 = vpop.f32.mrb[0].mxu0
        %1958 = vmatprep.mubr.bf16.mxu0 0
        %1959 = vmatmul.mubr.bf16.gmra.mrb[0].mxu0 %v1859
        %v1960 = vpop.f32.mrb[0].mxu0
        %v1961 = vadd.f32 0.0, %v1960
        %v1962 = vpop.f32.mrb[0].mxu0
        %v1963 = vpop.f32.mrb[0].mxu0
        %v1964 = vadd.f32 0.0, %v1963
        %v1965 = vpop.f32.mrb[0].mxu0
        %1966 = vmatprep.mubr.bf16.mxu0 0
        %1967 = vmatmul.mubr.bf16.gmra.mrb[0].mxu0 %v1860
        %v1968 = vpop.f32.mrb[0].mxu0
        %v1969 = vadd.f32 0.0, %v1968
        %v1970 = vpop.f32.mrb[0].mxu0
        %v1971 = vpop.f32.mrb[0].mxu0
        %v1972 = vadd.f32 0.0, %v1971
        %v1973 = vpop.f32.mrb[0].mxu0
        %1974 = vmatprep.mubr.bf16.mxu0 0
        %1975 = vmatmul.mubr.bf16.gmra.mrb[0].mxu0 %v1861
        %v1976 = vpop.f32.mrb[0].mxu0
        %v1977 = vadd.f32 0.0, %v1976
        %v1978 = vpop.f32.mrb[0].mxu0
        %v1979 = vpop.f32.mrb[0].mxu0
        %v1980 = vadd.f32 0.0, %v1979
        %v1981 = vpop.f32.mrb[0].mxu0
        %1982 = vdwg.mxu0
        %v1983 = vld [vmem:[#allocation4] sm:$0xff]
        %v1984 = vld [vmem:[#allocation4 + $0x8] sm:$0xff]
        %v1985 = vld [vmem:[#allocation4 + $0x10] sm:$0xff]
        %v1986 = vld [vmem:[#allocation4 + $0x18] sm:$0xff]
        %v1987 = vld [vmem:[#allocation4 + $0x20] sm:$0xff]
        %v1988 = vld [vmem:[#allocation4 + $0x28] sm:$0xff]
        %v1989 = vld [vmem:[#allocation4 + $0x30] sm:$0xff]
        %v1990 = vld [vmem:[#allocation4 + $0x38] sm:$0xff]
        %v1991 = vld [vmem:[#allocation4 + $0x40] sm:$0xff]
        %v1992 = vld [vmem:[#allocation4 + $0x48] sm:$0xff]
        %v1993 = vld [vmem:[#allocation4 + $0x50] sm:$0xff]
        %v1994 = vld [vmem:[#allocation4 + $0x58] sm:$0xff]
        %v1995 = vld [vmem:[#allocation4 + $0x60] sm:$0xff]
        %v1996 = vld [vmem:[#allocation4 + $0x68] sm:$0xff]
        %v1997 = vld [vmem:[#allocation4 + $0x70] sm:$0xff]
        %v1998 = vld [vmem:[#allocation4 + $0x78] sm:$0xff]
        %2000 = vset.pattern.permute.xlu0 1
        %2001 = vperm.xlu0 %2000, %v1582
        %v2002 = vpop.permute.xlu0 %2001
        %2005 = vset.pattern.permute.xlu0 1
        %2006 = vperm.xlu0 %2005, %v1584
        %v2007 = vpop.permute.xlu0 %2006
        %2010 = vset.pattern.permute.xlu0 1
        %2011 = vperm.xlu0 %2010, %v1586
        %v2012 = vpop.permute.xlu0 %2011
        %2015 = vset.pattern.permute.xlu0 1
        %2016 = vperm.xlu0 %2015, %v1588
        %v2017 = vpop.permute.xlu0 %2016
        %2020 = vset.pattern.permute.xlu0 1
        %2021 = vperm.xlu0 %2020, %v1590
        %v2022 = vpop.permute.xlu0 %2021
        %2025 = vset.pattern.permute.xlu0 1
        %2026 = vperm.xlu0 %2025, %v1592
        %v2027 = vpop.permute.xlu0 %2026
        %2030 = vset.pattern.permute.xlu0 1
        %2031 = vperm.xlu0 %2030, %v1594
        %v2032 = vpop.permute.xlu0 %2031
        %2035 = vset.pattern.permute.xlu0 1
        %2036 = vperm.xlu0 %2035, %v1596
        %v2037 = vpop.permute.xlu0 %2036
        %2040 = vset.pattern.permute.xlu0 1
        %2041 = vperm.xlu0 %2040, %v1598
        %v2042 = vpop.permute.xlu0 %2041
        %2045 = vset.pattern.permute.xlu0 1
        %2046 = vperm.xlu0 %2045, %v1600
        %v2047 = vpop.permute.xlu0 %2046
        %2050 = vset.pattern.permute.xlu0 1
        %2051 = vperm.xlu0 %2050, %v1602
        %v2052 = vpop.permute.xlu0 %2051
        %2055 = vset.pattern.permute.xlu0 1
        %2056 = vperm.xlu0 %2055, %v1604
        %v2057 = vpop.permute.xlu0 %2056
        %2060 = vset.pattern.permute.xlu0 1
        %2061 = vperm.xlu0 %2060, %v1606
        %v2062 = vpop.permute.xlu0 %2061
        %2065 = vset.pattern.permute.xlu0 1
        %2066 = vperm.xlu0 %2065, %v1608
        %v2067 = vpop.permute.xlu0 %2066
        %2070 = vset.pattern.permute.xlu0 1
        %2071 = vperm.xlu0 %2070, %v1610
        %v2072 = vpop.permute.xlu0 %2071
        %2075 = vset.pattern.permute.xlu0 1
        %2076 = vperm.xlu0 %2075, %v1612
        %v2077 = vpop.permute.xlu0 %2076
        %v2079 = vmul.f32 %v2002, %v1983
        %v2080 = vmul.f32 %v2007, %v1984
        %v2081 = vmul.f32 %v2012, %v1985
        %v2082 = vmul.f32 %v2017, %v1986
        %v2083 = vmul.f32 %v2022, %v1987
        %v2084 = vmul.f32 %v2027, %v1988
        %v2085 = vmul.f32 %v2032, %v1989
        %v2086 = vmul.f32 %v2037, %v1990
        %v2087 = vmul.f32 %v2042, %v1991
        %v2088 = vmul.f32 %v2047, %v1992
        %v2089 = vmul.f32 %v2052, %v1993
        %v2090 = vmul.f32 %v2057, %v1994
        %v2091 = vmul.f32 %v2062, %v1995
        %v2092 = vmul.f32 %v2067, %v1996
        %v2093 = vmul.f32 %v2072, %v1997
        %v2094 = vmul.f32 %v2077, %v1998
        %2111 = vrot.lane.b32.xlu0 %v1921, 16
        %v2112 = vpop.permute.xlu0 %2111
        %2113 = vrot.lane.b32.xlu0 %v1924, 16
        %v2114 = vpop.permute.xlu0 %2113
        %2115 = vrot.lane.b32.xlu0 %v1929, 16
        %v2116 = vpop.permute.xlu0 %2115
        %2117 = vrot.lane.b32.xlu0 %v1932, 16
        %v2118 = vpop.permute.xlu0 %2117
        %2119 = vrot.lane.b32.xlu0 %v1937, 16
        %v2120 = vpop.permute.xlu0 %2119
        %2121 = vrot.lane.b32.xlu0 %v1940, 16
        %v2122 = vpop.permute.xlu0 %2121
        %2123 = vrot.lane.b32.xlu0 %v1945, 16
        %v2124 = vpop.permute.xlu0 %2123
        %2125 = vrot.lane.b32.xlu0 %v1948, 16
        %v2126 = vpop.permute.xlu0 %2125
        %2127 = vrot.lane.b32.xlu0 %v1953, 16
        %v2128 = vpop.permute.xlu0 %2127
        %2129 = vrot.lane.b32.xlu0 %v1956, 16
        %v2130 = vpop.permute.xlu0 %2129
        %2131 = vrot.lane.b32.xlu0 %v1961, 16
        %v2132 = vpop.permute.xlu0 %2131
        %2133 = vrot.lane.b32.xlu0 %v1964, 16
        %v2134 = vpop.permute.xlu0 %2133
        %2135 = vrot.lane.b32.xlu0 %v1969, 16
        %v2136 = vpop.permute.xlu0 %2135
        %2137 = vrot.lane.b32.xlu0 %v1972, 16
        %v2138 = vpop.permute.xlu0 %2137
        %2139 = vrot.lane.b32.xlu0 %v1977, 16
        %v2140 = vpop.permute.xlu0 %2139
        %2141 = vrot.lane.b32.xlu0 %v1980, 16
        %v2142 = vpop.permute.xlu0 %2141
        %v2159 = vadd.f32 %v2079, %v2112
        %v2160 = vadd.f32 %v2080, %v2114
        %v2161 = vadd.f32 %v2081, %v2116
        %v2162 = vadd.f32 %v2082, %v2118
        %v2163 = vadd.f32 %v2083, %v2120
        %v2164 = vadd.f32 %v2084, %v2122
        %v2165 = vadd.f32 %v2085, %v2124
        %v2166 = vadd.f32 %v2086, %v2126
        %v2167 = vadd.f32 %v2087, %v2128
        %v2168 = vadd.f32 %v2088, %v2130
        %v2169 = vadd.f32 %v2089, %v2132
        %v2170 = vadd.f32 %v2090, %v2134
        %v2171 = vadd.f32 %v2091, %v2136
        %v2172 = vadd.f32 %v2092, %v2138
        %v2173 = vadd.f32 %v2093, %v2140
        %v2174 = vadd.f32 %v2094, %v2142
        %vm2175 = vcmask 261248
        %2176 = vst.msk [vmem:[#allocation4] sm:$0xff] %vm2175, %v2159
        %2177 = vst.msk [vmem:[#allocation4 + $0x8] sm:$0xff] %vm2175, %v2160
        %2178 = vst.msk [vmem:[#allocation4 + $0x10] sm:$0xff] %vm2175, %v2161
        %2179 = vst.msk [vmem:[#allocation4 + $0x18] sm:$0xff] %vm2175, %v2162
        %2180 = vst.msk [vmem:[#allocation4 + $0x20] sm:$0xff] %vm2175, %v2163
        %2181 = vst.msk [vmem:[#allocation4 + $0x28] sm:$0xff] %vm2175, %v2164
        %2182 = vst.msk [vmem:[#allocation4 + $0x30] sm:$0xff] %vm2175, %v2165
        %2183 = vst.msk [vmem:[#allocation4 + $0x38] sm:$0xff] %vm2175, %v2166
        %2184 = vst.msk [vmem:[#allocation4 + $0x40] sm:$0xff] %vm2175, %v2167
        %2185 = vst.msk [vmem:[#allocation4 + $0x48] sm:$0xff] %vm2175, %v2168
        %2186 = vst.msk [vmem:[#allocation4 + $0x50] sm:$0xff] %vm2175, %v2169
        %2187 = vst.msk [vmem:[#allocation4 + $0x58] sm:$0xff] %vm2175, %v2170
        %2188 = vst.msk [vmem:[#allocation4 + $0x60] sm:$0xff] %vm2175, %v2171
        %2189 = vst.msk [vmem:[#allocation4 + $0x68] sm:$0xff] %vm2175, %v2172
        %2190 = vst.msk [vmem:[#allocation4 + $0x70] sm:$0xff] %vm2175, %v2173
        %2191 = vst.msk [vmem:[#allocation4 + $0x78] sm:$0xff] %vm2175, %v2174
        %2192 = vst.msk [vmem:[#allocation2] sm:$0xff] %vm1837, %v1549
        %2193 = vst.msk [vmem:[#allocation2 + $0x8] sm:$0xff] %vm1837, %v1550
        %2194 = vst.msk [vmem:[#allocation2 + $0x10] sm:$0xff] %vm1837, %v1551
        %2195 = vst.msk [vmem:[#allocation2 + $0x18] sm:$0xff] %vm1837, %v1552
        %2196 = vst.msk [vmem:[#allocation2 + $0x20] sm:$0xff] %vm1837, %v1553
        %2197 = vst.msk [vmem:[#allocation2 + $0x28] sm:$0xff] %vm1837, %v1554
        %2198 = vst.msk [vmem:[#allocation2 + $0x30] sm:$0xff] %vm1837, %v1555
        %2199 = vst.msk [vmem:[#allocation2 + $0x38] sm:$0xff] %vm1837, %v1556
        %2200 = vst.msk [vmem:[#allocation2 + $0x40] sm:$0xff] %vm1837, %v1557
        %2201 = vst.msk [vmem:[#allocation2 + $0x48] sm:$0xff] %vm1837, %v1558
        %2202 = vst.msk [vmem:[#allocation2 + $0x50] sm:$0xff] %vm1837, %v1559
        %2203 = vst.msk [vmem:[#allocation2 + $0x58] sm:$0xff] %vm1837, %v1560
        %2204 = vst.msk [vmem:[#allocation2 + $0x60] sm:$0xff] %vm1837, %v1561
        %2205 = vst.msk [vmem:[#allocation2 + $0x68] sm:$0xff] %vm1837, %v1562
        %2206 = vst.msk [vmem:[#allocation2 + $0x70] sm:$0xff] %vm1837, %v1563
        %2207 = vst.msk [vmem:[#allocation2 + $0x78] sm:$0xff] %vm1837, %v1564
        %p2208 = scmp.eq.s32.totalorder %s28, 1
        // Predicated region
        $region99: #{tpu_custom_call.1} parent=89 // pred_check
          %p2209 = pneg %p2208
        $region100: #{tpu_custom_call.1} parent=89 // pred_check_branch
          %2211 = sbr.rel (%p2209) target = $region102
        $region101: #{tpu_custom_call.1} parent=89 // pred_region
          %v2212 = vld [vmem:[#allocation3] sm:$0xff]
          %v2213 = vld [vmem:[#allocation3 + $0x8] sm:$0xff]
          %v2214 = vld [vmem:[#allocation3 + $0x10] sm:$0xff]
          %v2215 = vld [vmem:[#allocation3 + $0x18] sm:$0xff]
          %v2216 = vld [vmem:[#allocation3 + $0x20] sm:$0xff]
          %v2217 = vld [vmem:[#allocation3 + $0x28] sm:$0xff]
          %v2218 = vld [vmem:[#allocation3 + $0x30] sm:$0xff]
          %v2219 = vld [vmem:[#allocation3 + $0x38] sm:$0xff]
          %v2220 = vld [vmem:[#allocation3 + $0x40] sm:$0xff]
          %v2221 = vld [vmem:[#allocation3 + $0x48] sm:$0xff]
          %v2222 = vld [vmem:[#allocation3 + $0x50] sm:$0xff]
          %v2223 = vld [vmem:[#allocation3 + $0x58] sm:$0xff]
          %v2224 = vld [vmem:[#allocation3 + $0x60] sm:$0xff]
          %v2225 = vld [vmem:[#allocation3 + $0x68] sm:$0xff]
          %v2226 = vld [vmem:[#allocation3 + $0x70] sm:$0xff]
          %v2227 = vld [vmem:[#allocation3 + $0x78] sm:$0xff]
          %vm2228 = vcmp.gt.f32.partialorder %v2212, 0.0
          %vm2229 = vcmp.gt.f32.partialorder %v2213, 0.0
          %vm2230 = vcmp.gt.f32.partialorder %v2214, 0.0
          %vm2231 = vcmp.gt.f32.partialorder %v2215, 0.0
          %vm2232 = vcmp.gt.f32.partialorder %v2216, 0.0
          %vm2233 = vcmp.gt.f32.partialorder %v2217, 0.0
          %vm2234 = vcmp.gt.f32.partialorder %v2218, 0.0
          %vm2235 = vcmp.gt.f32.partialorder %v2219, 0.0
          %vm2236 = vcmp.gt.f32.partialorder %v2220, 0.0
          %vm2237 = vcmp.gt.f32.partialorder %v2221, 0.0
          %vm2238 = vcmp.gt.f32.partialorder %v2222, 0.0
          %vm2239 = vcmp.gt.f32.partialorder %v2223, 0.0
          %vm2240 = vcmp.gt.f32.partialorder %v2224, 0.0
          %vm2241 = vcmp.gt.f32.partialorder %v2225, 0.0
          %vm2242 = vcmp.gt.f32.partialorder %v2226, 0.0
          %vm2243 = vcmp.gt.f32.partialorder %v2227, 0.0
          %v2244 = vrcp.pop %v2212
          %v2245 = vrcp.pop %v2213
          %v2246 = vrcp.pop %v2214
          %v2247 = vrcp.pop %v2215
          %v2248 = vrcp.pop %v2216
          %v2249 = vrcp.pop %v2217
          %v2250 = vrcp.pop %v2218
          %v2251 = vrcp.pop %v2219
          %v2252 = vrcp.pop %v2220
          %v2253 = vrcp.pop %v2221
          %v2254 = vrcp.pop %v2222
          %v2255 = vrcp.pop %v2223
          %v2256 = vrcp.pop %v2224
          %v2257 = vrcp.pop %v2225
          %v2258 = vrcp.pop %v2226
          %v2259 = vrcp.pop %v2227
          %v2260 = vsel %vm2228, %v2244, 0.0
          %v2261 = vsel %vm2229, %v2245, 0.0
          %v2262 = vsel %vm2230, %v2246, 0.0
          %v2263 = vsel %vm2231, %v2247, 0.0
          %v2264 = vsel %vm2232, %v2248, 0.0
          %v2265 = vsel %vm2233, %v2249, 0.0
          %v2266 = vsel %vm2234, %v2250, 0.0
          %v2267 = vsel %vm2235, %v2251, 0.0
          %v2268 = vsel %vm2236, %v2252, 0.0
          %v2269 = vsel %vm2237, %v2253, 0.0
          %v2270 = vsel %vm2238, %v2254, 0.0
          %v2271 = vsel %vm2239, %v2255, 0.0
          %v2272 = vsel %vm2240, %v2256, 0.0
          %v2273 = vsel %vm2241, %v2257, 0.0
          %v2274 = vsel %vm2242, %v2258, 0.0
          %v2275 = vsel %vm2243, %v2259, 0.0
          %v2276 = vld [vmem:[#allocation4] sm:$0xff]
          %v2277 = vld [vmem:[#allocation4 + $0x8] sm:$0xff]
          %v2278 = vld [vmem:[#allocation4 + $0x10] sm:$0xff]
          %v2279 = vld [vmem:[#allocation4 + $0x18] sm:$0xff]
          %v2280 = vld [vmem:[#allocation4 + $0x20] sm:$0xff]
          %v2281 = vld [vmem:[#allocation4 + $0x28] sm:$0xff]
          %v2282 = vld [vmem:[#allocation4 + $0x30] sm:$0xff]
          %v2283 = vld [vmem:[#allocation4 + $0x38] sm:$0xff]
          %v2284 = vld [vmem:[#allocation4 + $0x40] sm:$0xff]
          %v2285 = vld [vmem:[#allocation4 + $0x48] sm:$0xff]
          %v2286 = vld [vmem:[#allocation4 + $0x50] sm:$0xff]
          %v2287 = vld [vmem:[#allocation4 + $0x58] sm:$0xff]
          %v2288 = vld [vmem:[#allocation4 + $0x60] sm:$0xff]
          %v2289 = vld [vmem:[#allocation4 + $0x68] sm:$0xff]
          %v2290 = vld [vmem:[#allocation4 + $0x70] sm:$0xff]
          %v2291 = vld [vmem:[#allocation4 + $0x78] sm:$0xff]
          %2293 = vset.pattern.permute.xlu0 0
          %2294 = vperm.xlu0 %2293, %v2260
          %v2295 = vpop.permute.xlu0 %2294
          %2298 = vset.pattern.permute.xlu0 0
          %2299 = vperm.xlu0 %2298, %v2261
          %v2300 = vpop.permute.xlu0 %2299
          %2303 = vset.pattern.permute.xlu0 0
          %2304 = vperm.xlu0 %2303, %v2262
          %v2305 = vpop.permute.xlu0 %2304
          %2308 = vset.pattern.permute.xlu0 0
          %2309 = vperm.xlu0 %2308, %v2263
          %v2310 = vpop.permute.xlu0 %2309
          %2313 = vset.pattern.permute.xlu0 0
          %2314 = vperm.xlu0 %2313, %v2264
          %v2315 = vpop.permute.xlu0 %2314
          %2318 = vset.pattern.permute.xlu0 0
          %2319 = vperm.xlu0 %2318, %v2265
          %v2320 = vpop.permute.xlu0 %2319
          %2323 = vset.pattern.permute.xlu0 0
          %2324 = vperm.xlu0 %2323, %v2266
          %v2325 = vpop.permute.xlu0 %2324
          %2328 = vset.pattern.permute.xlu0 0
          %2329 = vperm.xlu0 %2328, %v2267
          %v2330 = vpop.permute.xlu0 %2329
          %2333 = vset.pattern.permute.xlu0 0
          %2334 = vperm.xlu0 %2333, %v2268
          %v2335 = vpop.permute.xlu0 %2334
          %2338 = vset.pattern.permute.xlu0 0
          %2339 = vperm.xlu0 %2338, %v2269
          %v2340 = vpop.permute.xlu0 %2339
          %2343 = vset.pattern.permute.xlu0 0
          %2344 = vperm.xlu0 %2343, %v2270
          %v2345 = vpop.permute.xlu0 %2344
          %2348 = vset.pattern.permute.xlu0 0
          %2349 = vperm.xlu0 %2348, %v2271
          %v2350 = vpop.permute.xlu0 %2349
          %2353 = vset.pattern.permute.xlu0 0
          %2354 = vperm.xlu0 %2353, %v2272
          %v2355 = vpop.permute.xlu0 %2354
          %2358 = vset.pattern.permute.xlu0 0
          %2359 = vperm.xlu0 %2358, %v2273
          %v2360 = vpop.permute.xlu0 %2359
          %2363 = vset.pattern.permute.xlu0 0
          %2364 = vperm.xlu0 %2363, %v2274
          %v2365 = vpop.permute.xlu0 %2364
          %2368 = vset.pattern.permute.xlu0 0
          %2369 = vperm.xlu0 %2368, %v2275
          %v2370 = vpop.permute.xlu0 %2369
          %v2372 = vmul.f32 %v2276, %v2295
          %v2373 = vmul.f32 %v2277, %v2300
          %v2374 = vmul.f32 %v2278, %v2305
          %v2375 = vmul.f32 %v2279, %v2310
          %v2376 = vmul.f32 %v2280, %v2315
          %v2377 = vmul.f32 %v2281, %v2320
          %v2378 = vmul.f32 %v2282, %v2325
          %v2379 = vmul.f32 %v2283, %v2330
          %v2380 = vmul.f32 %v2284, %v2335
          %v2381 = vmul.f32 %v2285, %v2340
          %v2382 = vmul.f32 %v2286, %v2345
          %v2383 = vmul.f32 %v2287, %v2350
          %v2384 = vmul.f32 %v2288, %v2355
          %v2385 = vmul.f32 %v2289, %v2360
          %v2386 = vmul.f32 %v2290, %v2365
          %v2387 = vmul.f32 %v2291, %v2370
          %2388 = vset.pattern.permute.xlu0 1
          %2389 = vperm.xlu0 %2388, %v2260
          %v2390 = vpop.permute.xlu0 %2389
          %2392 = vset.pattern.permute.xlu0 1
          %2393 = vperm.xlu0 %2392, %v2261
          %v2394 = vpop.permute.xlu0 %2393
          %2396 = vset.pattern.permute.xlu0 1
          %2397 = vperm.xlu0 %2396, %v2262
          %v2398 = vpop.permute.xlu0 %2397
          %2400 = vset.pattern.permute.xlu0 1
          %2401 = vperm.xlu0 %2400, %v2263
          %v2402 = vpop.permute.xlu0 %2401
          %2404 = vset.pattern.permute.xlu0 1
          %2405 = vperm.xlu0 %2404, %v2264
          %v2406 = vpop.permute.xlu0 %2405
          %2408 = vset.pattern.permute.xlu0 1
          %2409 = vperm.xlu0 %2408, %v2265
          %v2410 = vpop.permute.xlu0 %2409
          %2412 = vset.pattern.permute.xlu0 1
          %2413 = vperm.xlu0 %2412, %v2266
          %v2414 = vpop.permute.xlu0 %2413
          %2416 = vset.pattern.permute.xlu0 1
          %2417 = vperm.xlu0 %2416, %v2267
          %v2418 = vpop.permute.xlu0 %2417
          %2420 = vset.pattern.permute.xlu0 1
          %2421 = vperm.xlu0 %2420, %v2268
          %v2422 = vpop.permute.xlu0 %2421
          %2424 = vset.pattern.permute.xlu0 1
          %2425 = vperm.xlu0 %2424, %v2269
          %v2426 = vpop.permute.xlu0 %2425
          %2428 = vset.pattern.permute.xlu0 1
          %2429 = vperm.xlu0 %2428, %v2270
          %v2430 = vpop.permute.xlu0 %2429
          %2432 = vset.pattern.permute.xlu0 1
          %2433 = vperm.xlu0 %2432, %v2271
          %v2434 = vpop.permute.xlu0 %2433
          %2436 = vset.pattern.permute.xlu0 1
          %2437 = vperm.xlu0 %2436, %v2272
          %v2438 = vpop.permute.xlu0 %2437
          %2440 = vset.pattern.permute.xlu0 1
          %2441 = vperm.xlu0 %2440, %v2273
          %v2442 = vpop.permute.xlu0 %2441
          %2444 = vset.pattern.permute.xlu0 1
          %2445 = vperm.xlu0 %2444, %v2274
          %v2446 = vpop.permute.xlu0 %2445
          %2448 = vset.pattern.permute.xlu0 1
          %2449 = vperm.xlu0 %2448, %v2275
          %v2450 = vpop.permute.xlu0 %2449
          %v2452 = vmul.f32 %v2276, %v2390
          %v2453 = vmul.f32 %v2277, %v2394
          %v2454 = vmul.f32 %v2278, %v2398
          %v2455 = vmul.f32 %v2279, %v2402
          %v2456 = vmul.f32 %v2280, %v2406
          %v2457 = vmul.f32 %v2281, %v2410
          %v2458 = vmul.f32 %v2282, %v2414
          %v2459 = vmul.f32 %v2283, %v2418
          %v2460 = vmul.f32 %v2284, %v2422
          %v2461 = vmul.f32 %v2285, %v2426
          %v2462 = vmul.f32 %v2286, %v2430
          %v2463 = vmul.f32 %v2287, %v2434
          %v2464 = vmul.f32 %v2288, %v2438
          %v2465 = vmul.f32 %v2289, %v2442
          %v2466 = vmul.f32 %v2290, %v2446
          %v2467 = vmul.f32 %v2291, %v2450
          %v2468 = vsel %vm1352, %v2372, %v2452
          %v2469 = vsel %vm1352, %v2373, %v2453
          %v2470 = vsel %vm1352, %v2374, %v2454
          %v2471 = vsel %vm1352, %v2375, %v2455
          %v2472 = vsel %vm1352, %v2376, %v2456
          %v2473 = vsel %vm1352, %v2377, %v2457
          %v2474 = vsel %vm1352, %v2378, %v2458
          %v2475 = vsel %vm1352, %v2379, %v2459
          %v2476 = vsel %vm1352, %v2380, %v2460
          %v2477 = vsel %vm1352, %v2381, %v2461
          %v2478 = vsel %vm1352, %v2382, %v2462
          %v2479 = vsel %vm1352, %v2383, %v2463
          %v2480 = vsel %vm1352, %v2384, %v2464
          %v2481 = vsel %vm1352, %v2385, %v2465
          %v2482 = vsel %vm1352, %v2386, %v2466
          %v2483 = vsel %vm1352, %v2387, %v2467
          %v2484 = vld [vmem:[%s5] sm:$0xff]
          %v2485 = vld [vmem:[%s5 + $0x8] sm:$0xff]
          %v2486 = vld [vmem:[%s5 + $0x10] sm:$0xff]
          %v2487 = vld [vmem:[%s5 + $0x18] sm:$0xff]
          %v2488 = vld [vmem:[%s6] sm:$0x1]
          %v2490 = vlaneseq
          %v2491 = vshrl.u32 %v2490, 7
          %v2492 = vsub.s32 0, %v2491
          %v2493 = vrot.slane %v2488, %v2492
          %vm2495 = vcmask 261120
          %v2497 = vsel %vm2495, %v2468, 0
          %v2500 = vsel %vm2495, %v2469, 0
          %v2503 = vsel %vm2495, %v2470, 0
          %v2506 = vsel %vm2495, %v2471, 0
          %v2509 = vsel %vm2495, %v2472, 0
          %v2512 = vsel %vm2495, %v2473, 0
          %v2515 = vsel %vm2495, %v2474, 0
          %v2518 = vsel %vm2495, %v2475, 0
          %v2521 = vsel %vm2495, %v2476, 0
          %v2524 = vsel %vm2495, %v2477, 0
          %v2527 = vsel %vm2495, %v2478, 0
          %v2530 = vsel %vm2495, %v2479, 0
          %v2533 = vsel %vm2495, %v2480, 0
          %v2536 = vsel %vm2495, %v2481, 0
          %v2539 = vsel %vm2495, %v2482, 0
          %v2542 = vsel %vm2495, %v2483, 0
          %2544 = vmatprep.subr.mxu0 0.0
          %2545 = vmatpush1.msra.mxu0 %v2484
          %2546 = vmatprep.subr.mxu0 0.0
          %2547 = vmatpush1.msra.mxu0 %v2485
          %2548 = vmatprep.subr.mxu0 0.0
          %2549 = vmatpush1.msra.mxu0 %v2486
          %2550 = vmatprep.subr.mxu0 0.0
          %2551 = vmatpush1.msra.mxu0 %v2487
          %2552 = vmatprep.subr.mxu0 0.0
          %2553 = vmatpush1.msra.mxu0 0.0
          %2554 = vmatprep.subr.mxu0 0.0
          %2555 = vmatpush1.msra.mxu0 0.0
          %2556 = vmatprep.subr.mxu0 0.0
          %2557 = vmatpush1.msra.mxu0 0.0
          %2558 = vmatprep.subr.mxu0 0.0
          %2559 = vmatpush1.msra.mxu0 0.0
          %2560 = vmatprep.subr.mxu0 0.0
          %2561 = vmatpush1.msra.mxu0 0.0
          %2562 = vmatprep.subr.mxu0 0.0
          %2563 = vmatpush1.msra.mxu0 0.0
          %2564 = vmatprep.subr.mxu0 0.0
          %2565 = vmatpush1.msra.mxu0 0.0
          %2566 = vmatprep.subr.mxu0 0.0
          %2567 = vmatpush1.msra.mxu0 0.0
          %2568 = vmatprep.subr.mxu0 0.0
          %2569 = vmatpush1.msra.mxu0 0.0
          %2570 = vmatprep.subr.mxu0 0.0
          %2571 = vmatpush1.msra.mxu0 0.0
          %2572 = vmatprep.subr.mxu0 0.0
          %2573 = vmatpush1.msra.mxu0 0.0
          %2574 = vmatprep.subr.mxu0 0.0
          %2575 = vmatpush1.msra.mxu0 0.0
          %2576 = vmatprep.subr.mxu0 0.0
          %2577 = vmatpush1.msra.mxu0 0.0
          %2578 = vmatprep.subr.mxu0 0.0
          %2579 = vmatpush1.msra.mxu0 0.0
          %2580 = vmatprep.subr.mxu0 0.0
          %2581 = vmatpush1.msra.mxu0 0.0
          %2582 = vmatprep.subr.mxu0 0.0
          %2583 = vmatpush1.msra.mxu0 0.0
          %2584 = vmatprep.subr.mxu0 0.0
          %2585 = vmatpush1.msra.mxu0 0.0
          %2586 = vmatprep.subr.mxu0 0.0
          %2587 = vmatpush1.msra.mxu0 0.0
          %2588 = vmatprep.subr.mxu0 0.0
          %2589 = vmatpush1.msra.mxu0 0.0
          %2590 = vmatprep.subr.mxu0 0.0
          %2591 = vmatpush1.msra.mxu0 0.0
          %2592 = vmatprep.subr.mxu0 0.0
          %2593 = vmatpush1.msra.mxu0 0.0
          %2594 = vmatprep.subr.mxu0 0.0
          %2595 = vmatpush1.msra.mxu0 0.0
          %2596 = vmatprep.subr.mxu0 0.0
          %2597 = vmatpush1.msra.mxu0 0.0
          %2598 = vmatprep.subr.mxu0 0.0
          %2599 = vmatpush1.msra.mxu0 0.0
          %2600 = vmatprep.subr.mxu0 0.0
          %2601 = vmatpush1.msra.mxu0 0.0
          %2602 = vmatprep.subr.mxu0 0.0
          %2603 = vmatpush1.msra.mxu0 0.0
          %2604 = vmatprep.subr.mxu0 0.0
          %2605 = vmatpush1.msra.mxu0 0.0
          %2606 = vmatprep.subr.mxu0 0.0
          %2607 = vmatpush1.msra.mxu0 0.0
          %2608 = vmatprep.mubr.f32.mxu0 0.0
          %2609 = vmatmul.mubr.f32.gmra.mrb[0].mxu0 %v2497
          %v2610 = vpop.f32.mrb[0].mxu0
          %v2611 = vadd.f32 %v2493, %v2610
          %v2612 = vpop.f32.mrb[0].mxu0
          %2613 = vmatprep.mubr.f32.mxu0 0.0
          %2614 = vmatmul.mubr.f32.gmra.mrb[0].mxu0 %v2500
          %v2615 = vpop.f32.mrb[0].mxu0
          %v2616 = vadd.f32 %v2493, %v2615
          %v2617 = vpop.f32.mrb[0].mxu0
          %2618 = vmatprep.mubr.f32.mxu0 0.0
          %2619 = vmatmul.mubr.f32.gmra.mrb[0].mxu0 %v2503
          %v2620 = vpop.f32.mrb[0].mxu0
          %v2621 = vadd.f32 %v2493, %v2620
          %v2622 = vpop.f32.mrb[0].mxu0
          %2623 = vmatprep.mubr.f32.mxu0 0.0
          %2624 = vmatmul.mubr.f32.gmra.mrb[0].mxu0 %v2506
          %v2625 = vpop.f32.mrb[0].mxu0
          %v2626 = vadd.f32 %v2493, %v2625
          %v2627 = vpop.f32.mrb[0].mxu0
          %2628 = vmatprep.mubr.f32.mxu0 0.0
          %2629 = vmatmul.mubr.f32.gmra.mrb[0].mxu0 %v2509
          %v2630 = vpop.f32.mrb[0].mxu0
          %v2631 = vadd.f32 %v2493, %v2630
          %v2632 = vpop.f32.mrb[0].mxu0
          %2633 = vmatprep.mubr.f32.mxu0 0.0
          %2634 = vmatmul.mubr.f32.gmra.mrb[0].mxu0 %v2512
          %v2635 = vpop.f32.mrb[0].mxu0
          %v2636 = vadd.f32 %v2493, %v2635
          %v2637 = vpop.f32.mrb[0].mxu0
          %2638 = vmatprep.mubr.f32.mxu0 0.0
          %2639 = vmatmul.mubr.f32.gmra.mrb[0].mxu0 %v2515
          %v2640 = vpop.f32.mrb[0].mxu0
          %v2641 = vadd.f32 %v2493, %v2640
          %v2642 = vpop.f32.mrb[0].mxu0
          %2643 = vmatprep.mubr.f32.mxu0 0.0
          %2644 = vmatmul.mubr.f32.gmra.mrb[0].mxu0 %v2518
          %v2645 = vpop.f32.mrb[0].mxu0
          %v2646 = vadd.f32 %v2493, %v2645
          %v2647 = vpop.f32.mrb[0].mxu0
          %2648 = vmatprep.mubr.f32.mxu0 0.0
          %2649 = vmatmul.mubr.f32.gmra.mrb[0].mxu0 %v2521
          %v2650 = vpop.f32.mrb[0].mxu0
          %v2651 = vadd.f32 %v2493, %v2650
          %v2652 = vpop.f32.mrb[0].mxu0
          %2653 = vmatprep.mubr.f32.mxu0 0.0
          %2654 = vmatmul.mubr.f32.gmra.mrb[0].mxu0 %v2524
          %v2655 = vpop.f32.mrb[0].mxu0
          %v2656 = vadd.f32 %v2493, %v2655
          %v2657 = vpop.f32.mrb[0].mxu0
          %2658 = vmatprep.mubr.f32.mxu0 0.0
          %2659 = vmatmul.mubr.f32.gmra.mrb[0].mxu0 %v2527
          %v2660 = vpop.f32.mrb[0].mxu0
          %v2661 = vadd.f32 %v2493, %v2660
          %v2662 = vpop.f32.mrb[0].mxu0
          %2663 = vmatprep.mubr.f32.mxu0 0.0
          %2664 = vmatmul.mubr.f32.gmra.mrb[0].mxu0 %v2530
          %v2665 = vpop.f32.mrb[0].mxu0
          %v2666 = vadd.f32 %v2493, %v2665
          %v2667 = vpop.f32.mrb[0].mxu0
          %2668 = vmatprep.mubr.f32.mxu0 0.0
          %2669 = vmatmul.mubr.f32.gmra.mrb[0].mxu0 %v2533
          %v2670 = vpop.f32.mrb[0].mxu0
          %v2671 = vadd.f32 %v2493, %v2670
          %v2672 = vpop.f32.mrb[0].mxu0
          %2673 = vmatprep.mubr.f32.mxu0 0.0
          %2674 = vmatmul.mubr.f32.gmra.mrb[0].mxu0 %v2536
          %v2675 = vpop.f32.mrb[0].mxu0
          %v2676 = vadd.f32 %v2493, %v2675
          %v2677 = vpop.f32.mrb[0].mxu0
          %2678 = vmatprep.mubr.f32.mxu0 0.0
          %2679 = vmatmul.mubr.f32.gmra.mrb[0].mxu0 %v2539
          %v2680 = vpop.f32.mrb[0].mxu0
          %v2681 = vadd.f32 %v2493, %v2680
          %v2682 = vpop.f32.mrb[0].mxu0
          %2683 = vmatprep.mubr.f32.mxu0 0.0
          %2684 = vmatmul.mubr.f32.gmra.mrb[0].mxu0 %v2542
          %v2685 = vpop.f32.mrb[0].mxu0
          %v2686 = vadd.f32 %v2493, %v2685
          %v2687 = vpop.f32.mrb[0].mxu0
          %2688 = vdwg.mxu0
          %v2689 = vmax.f32 %v2611, 0.0
          %v2690 = vmax.f32 %v2616, 0.0
          %v2691 = vmax.f32 %v2621, 0.0
          %v2692 = vmax.f32 %v2626, 0.0
          %v2693 = vmax.f32 %v2631, 0.0
          %v2694 = vmax.f32 %v2636, 0.0
          %v2695 = vmax.f32 %v2641, 0.0
          %v2696 = vmax.f32 %v2646, 0.0
          %v2697 = vmax.f32 %v2651, 0.0
          %v2698 = vmax.f32 %v2656, 0.0
          %v2699 = vmax.f32 %v2661, 0.0
          %v2700 = vmax.f32 %v2666, 0.0
          %v2701 = vmax.f32 %v2671, 0.0
          %v2702 = vmax.f32 %v2676, 0.0
          %v2703 = vmax.f32 %v2681, 0.0
          %v2704 = vmax.f32 %v2686, 0.0
          %v2705 = vld [vmem:[%s7] sm:$0xff]
          %v2706 = vld [vmem:[%s7 + $0x8] sm:$0xff]
          %v2707 = vld [vmem:[%s7 + $0x10] sm:$0xff]
          %v2708 = vld [vmem:[%s7 + $0x18] sm:$0xff]
          %v2709 = vld [vmem:[%s8] sm:$0x1]
          %v2711 = vlaneseq
          %v2712 = vshrl.u32 %v2711, 7
          %v2713 = vsub.s32 0, %v2712
          %v2714 = vrot.slane %v2709, %v2713
          %v2717 = vsel %vm2495, %v2689, 0
          %v2720 = vsel %vm2495, %v2690, 0
          %v2723 = vsel %vm2495, %v2691, 0
          %v2726 = vsel %vm2495, %v2692, 0
          %v2729 = vsel %vm2495, %v2693, 0
          %v2732 = vsel %vm2495, %v2694, 0
          %v2735 = vsel %vm2495, %v2695, 0
          %v2738 = vsel %vm2495, %v2696, 0
          %v2741 = vsel %vm2495, %v2697, 0
          %v2744 = vsel %vm2495, %v2698, 0
          %v2747 = vsel %vm2495, %v2699, 0
          %v2750 = vsel %vm2495, %v2700, 0
          %v2753 = vsel %vm2495, %v2701, 0
          %v2756 = vsel %vm2495, %v2702, 0
          %v2759 = vsel %vm2495, %v2703, 0
          %v2762 = vsel %vm2495, %v2704, 0
          %2764 = vmatprep.subr.mxu0 0.0
          %2765 = vmatpush1.msra.mxu0 %v2705
          %2766 = vmatprep.subr.mxu0 0.0
          %2767 = vmatpush1.msra.mxu0 %v2706
          %2768 = vmatprep.subr.mxu0 0.0
          %2769 = vmatpush1.msra.mxu0 %v2707
          %2770 = vmatprep.subr.mxu0 0.0
          %2771 = vmatpush1.msra.mxu0 %v2708
          %2772 = vmatprep.subr.mxu0 0.0
          %2773 = vmatpush1.msra.mxu0 0.0
          %2774 = vmatprep.subr.mxu0 0.0
          %2775 = vmatpush1.msra.mxu0 0.0
          %2776 = vmatprep.subr.mxu0 0.0
          %2777 = vmatpush1.msra.mxu0 0.0
          %2778 = vmatprep.subr.mxu0 0.0
          %2779 = vmatpush1.msra.mxu0 0.0
          %2780 = vmatprep.subr.mxu0 0.0
          %2781 = vmatpush1.msra.mxu0 0.0
          %2782 = vmatprep.subr.mxu0 0.0
          %2783 = vmatpush1.msra.mxu0 0.0
          %2784 = vmatprep.subr.mxu0 0.0
          %2785 = vmatpush1.msra.mxu0 0.0
          %2786 = vmatprep.subr.mxu0 0.0
          %2787 = vmatpush1.msra.mxu0 0.0
          %2788 = vmatprep.subr.mxu0 0.0
          %2789 = vmatpush1.msra.mxu0 0.0
          %2790 = vmatprep.subr.mxu0 0.0
          %2791 = vmatpush1.msra.mxu0 0.0
          %2792 = vmatprep.subr.mxu0 0.0
          %2793 = vmatpush1.msra.mxu0 0.0
          %2794 = vmatprep.subr.mxu0 0.0
          %2795 = vmatpush1.msra.mxu0 0.0
          %2796 = vmatprep.subr.mxu0 0.0
          %2797 = vmatpush1.msra.mxu0 0.0
          %2798 = vmatprep.subr.mxu0 0.0
          %2799 = vmatpush1.msra.mxu0 0.0
          %2800 = vmatprep.subr.mxu0 0.0
          %2801 = vmatpush1.msra.mxu0 0.0
          %2802 = vmatprep.subr.mxu0 0.0
          %2803 = vmatpush1.msra.mxu0 0.0
          %2804 = vmatprep.subr.mxu0 0.0
          %2805 = vmatpush1.msra.mxu0 0.0
          %2806 = vmatprep.subr.mxu0 0.0
          %2807 = vmatpush1.msra.mxu0 0.0
          %2808 = vmatprep.subr.mxu0 0.0
          %2809 = vmatpush1.msra.mxu0 0.0
          %2810 = vmatprep.subr.mxu0 0.0
          %2811 = vmatpush1.msra.mxu0 0.0
          %2812 = vmatprep.subr.mxu0 0.0
          %2813 = vmatpush1.msra.mxu0 0.0
          %2814 = vmatprep.subr.mxu0 0.0
          %2815 = vmatpush1.msra.mxu0 0.0
          %2816 = vmatprep.subr.mxu0 0.0
          %2817 = vmatpush1.msra.mxu0 0.0
          %2818 = vmatprep.subr.mxu0 0.0
          %2819 = vmatpush1.msra.mxu0 0.0
          %2820 = vmatprep.subr.mxu0 0.0
          %2821 = vmatpush1.msra.mxu0 0.0
          %2822 = vmatprep.subr.mxu0 0.0
          %2823 = vmatpush1.msra.mxu0 0.0
          %2824 = vmatprep.subr.mxu0 0.0
          %2825 = vmatpush1.msra.mxu0 0.0
          %2826 = vmatprep.subr.mxu0 0.0
          %2827 = vmatpush1.msra.mxu0 0.0
          %2828 = vmatprep.mubr.f32.mxu0 0.0
          %2829 = vmatmul.mubr.f32.gmra.mrb[0].mxu0 %v2717
          %v2830 = vpop.f32.mrb[0].mxu0
          %v2831 = vadd.f32 %v2714, %v2830
          %v2832 = vpop.f32.mrb[0].mxu0
          %2833 = vmatprep.mubr.f32.mxu0 0.0
          %2834 = vmatmul.mubr.f32.gmra.mrb[0].mxu0 %v2720
          %v2835 = vpop.f32.mrb[0].mxu0
          %v2836 = vadd.f32 %v2714, %v2835
          %v2837 = vpop.f32.mrb[0].mxu0
          %2838 = vmatprep.mubr.f32.mxu0 0.0
          %2839 = vmatmul.mubr.f32.gmra.mrb[0].mxu0 %v2723
          %v2840 = vpop.f32.mrb[0].mxu0
          %v2841 = vadd.f32 %v2714, %v2840
          %v2842 = vpop.f32.mrb[0].mxu0
          %2843 = vmatprep.mubr.f32.mxu0 0.0
          %2844 = vmatmul.mubr.f32.gmra.mrb[0].mxu0 %v2726
          %v2845 = vpop.f32.mrb[0].mxu0
          %v2846 = vadd.f32 %v2714, %v2845
          %v2847 = vpop.f32.mrb[0].mxu0
          %2848 = vmatprep.mubr.f32.mxu0 0.0
          %2849 = vmatmul.mubr.f32.gmra.mrb[0].mxu0 %v2729
          %v2850 = vpop.f32.mrb[0].mxu0
          %v2851 = vadd.f32 %v2714, %v2850
          %v2852 = vpop.f32.mrb[0].mxu0
          %2853 = vmatprep.mubr.f32.mxu0 0.0
          %2854 = vmatmul.mubr.f32.gmra.mrb[0].mxu0 %v2732
          %v2855 = vpop.f32.mrb[0].mxu0
          %v2856 = vadd.f32 %v2714, %v2855
          %v2857 = vpop.f32.mrb[0].mxu0
          %2858 = vmatprep.mubr.f32.mxu0 0.0
          %2859 = vmatmul.mubr.f32.gmra.mrb[0].mxu0 %v2735
          %v2860 = vpop.f32.mrb[0].mxu0
          %v2861 = vadd.f32 %v2714, %v2860
          %v2862 = vpop.f32.mrb[0].mxu0
          %2863 = vmatprep.mubr.f32.mxu0 0.0
          %2864 = vmatmul.mubr.f32.gmra.mrb[0].mxu0 %v2738
          %v2865 = vpop.f32.mrb[0].mxu0
          %v2866 = vadd.f32 %v2714, %v2865
          %v2867 = vpop.f32.mrb[0].mxu0
          %2868 = vmatprep.mubr.f32.mxu0 0.0
          %2869 = vmatmul.mubr.f32.gmra.mrb[0].mxu0 %v2741
          %v2870 = vpop.f32.mrb[0].mxu0
          %v2871 = vadd.f32 %v2714, %v2870
          %v2872 = vpop.f32.mrb[0].mxu0
          %2873 = vmatprep.mubr.f32.mxu0 0.0
          %2874 = vmatmul.mubr.f32.gmra.mrb[0].mxu0 %v2744
          %v2875 = vpop.f32.mrb[0].mxu0
          %v2876 = vadd.f32 %v2714, %v2875
          %v2877 = vpop.f32.mrb[0].mxu0
          %2878 = vmatprep.mubr.f32.mxu0 0.0
          %2879 = vmatmul.mubr.f32.gmra.mrb[0].mxu0 %v2747
          %v2880 = vpop.f32.mrb[0].mxu0
          %v2881 = vadd.f32 %v2714, %v2880
          %v2882 = vpop.f32.mrb[0].mxu0
          %2883 = vmatprep.mubr.f32.mxu0 0.0
          %2884 = vmatmul.mubr.f32.gmra.mrb[0].mxu0 %v2750
          %v2885 = vpop.f32.mrb[0].mxu0
          %v2886 = vadd.f32 %v2714, %v2885
          %v2887 = vpop.f32.mrb[0].mxu0
          %2888 = vmatprep.mubr.f32.mxu0 0.0
          %2889 = vmatmul.mubr.f32.gmra.mrb[0].mxu0 %v2753
          %v2890 = vpop.f32.mrb[0].mxu0
          %v2891 = vadd.f32 %v2714, %v2890
          %v2892 = vpop.f32.mrb[0].mxu0
          %2893 = vmatprep.mubr.f32.mxu0 0.0
          %2894 = vmatmul.mubr.f32.gmra.mrb[0].mxu0 %v2756
          %v2895 = vpop.f32.mrb[0].mxu0
          %v2896 = vadd.f32 %v2714, %v2895
          %v2897 = vpop.f32.mrb[0].mxu0
          %2898 = vmatprep.mubr.f32.mxu0 0.0
          %2899 = vmatmul.mubr.f32.gmra.mrb[0].mxu0 %v2759
          %v2900 = vpop.f32.mrb[0].mxu0
          %v2901 = vadd.f32 %v2714, %v2900
          %v2902 = vpop.f32.mrb[0].mxu0
          %2903 = vmatprep.mubr.f32.mxu0 0.0
          %2904 = vmatmul.mubr.f32.gmra.mrb[0].mxu0 %v2762
          %v2905 = vpop.f32.mrb[0].mxu0
          %v2906 = vadd.f32 %v2714, %v2905
          %v2907 = vpop.f32.mrb[0].mxu0
          %2908 = vdwg.mxu0
          %v2909 = vmax.f32 %v2831, 0.0
          %v2910 = vmax.f32 %v2836, 0.0
          %v2911 = vmax.f32 %v2841, 0.0
          %v2912 = vmax.f32 %v2846, 0.0
          %v2913 = vmax.f32 %v2851, 0.0
          %v2914 = vmax.f32 %v2856, 0.0
          %v2915 = vmax.f32 %v2861, 0.0
          %v2916 = vmax.f32 %v2866, 0.0
          %v2917 = vmax.f32 %v2871, 0.0
          %v2918 = vmax.f32 %v2876, 0.0
          %v2919 = vmax.f32 %v2881, 0.0
          %v2920 = vmax.f32 %v2886, 0.0
          %v2921 = vmax.f32 %v2891, 0.0
          %v2922 = vmax.f32 %v2896, 0.0
          %v2923 = vmax.f32 %v2901, 0.0
          %v2924 = vmax.f32 %v2906, 0.0
          %v2925 = vld [vmem:[%s454] sm:$0xff]
          %v2926 = vld [vmem:[%s454 + $0x8] sm:$0xff]
          %v2927 = vld [vmem:[%s454 + $0x10] sm:$0xff]
          %v2928 = vld [vmem:[%s454 + $0x18] sm:$0xff]
          %v2929 = vld [vmem:[%s454 + $0x20] sm:$0xff]
          %v2930 = vld [vmem:[%s454 + $0x28] sm:$0xff]
          %v2931 = vld [vmem:[%s454 + $0x30] sm:$0xff]
          %v2932 = vld [vmem:[%s454 + $0x38] sm:$0xff]
          %v2933 = vld [vmem:[%s454 + $0x40] sm:$0xff]
          %v2934 = vld [vmem:[%s454 + $0x48] sm:$0xff]
          %v2935 = vld [vmem:[%s454 + $0x50] sm:$0xff]
          %v2936 = vld [vmem:[%s454 + $0x58] sm:$0xff]
          %v2937 = vld [vmem:[%s454 + $0x60] sm:$0xff]
          %v2938 = vld [vmem:[%s454 + $0x68] sm:$0xff]
          %v2939 = vld [vmem:[%s454 + $0x70] sm:$0xff]
          %v2940 = vld [vmem:[%s454 + $0x78] sm:$0xff]
          %v2941 = vadd.f32 %v2909, %v2925
          %v2942 = vadd.f32 %v2910, %v2926
          %v2943 = vadd.f32 %v2911, %v2927
          %v2944 = vadd.f32 %v2912, %v2928
          %v2945 = vadd.f32 %v2913, %v2929
          %v2946 = vadd.f32 %v2914, %v2930
          %v2947 = vadd.f32 %v2915, %v2931
          %v2948 = vadd.f32 %v2916, %v2932
          %v2949 = vadd.f32 %v2917, %v2933
          %v2950 = vadd.f32 %v2918, %v2934
          %v2951 = vadd.f32 %v2919, %v2935
          %v2952 = vadd.f32 %v2920, %v2936
          %v2953 = vadd.f32 %v2921, %v2937
          %v2954 = vadd.f32 %v2922, %v2938
          %v2955 = vadd.f32 %v2923, %v2939
          %v2956 = vadd.f32 %v2924, %v2940
          %v2957 = vsel %vm2495, %v2941, 0.0
          %v2958 = vsel %vm2495, %v2942, 0.0
          %v2959 = vsel %vm2495, %v2943, 0.0
          %v2960 = vsel %vm2495, %v2944, 0.0
          %v2961 = vsel %vm2495, %v2945, 0.0
          %v2962 = vsel %vm2495, %v2946, 0.0
          %v2963 = vsel %vm2495, %v2947, 0.0
          %v2964 = vsel %vm2495, %v2948, 0.0
          %v2965 = vsel %vm2495, %v2949, 0.0
          %v2966 = vsel %vm2495, %v2950, 0.0
          %v2967 = vsel %vm2495, %v2951, 0.0
          %v2968 = vsel %vm2495, %v2952, 0.0
          %v2969 = vsel %vm2495, %v2953, 0.0
          %v2970 = vsel %vm2495, %v2954, 0.0
          %v2971 = vsel %vm2495, %v2955, 0.0
          %v2972 = vsel %vm2495, %v2956, 0.0
          %2973 = vst [vmem:[%s438] sm:$0xff] %v2957
          %2974 = vst [vmem:[%s438 + $0x8] sm:$0xff] %v2958
          %2975 = vst [vmem:[%s438 + $0x10] sm:$0xff] %v2959
          %2976 = vst [vmem:[%s438 + $0x18] sm:$0xff] %v2960
          %2977 = vst [vmem:[%s438 + $0x20] sm:$0xff] %v2961
          %2978 = vst [vmem:[%s438 + $0x28] sm:$0xff] %v2962
          %2979 = vst [vmem:[%s438 + $0x30] sm:$0xff] %v2963
          %2980 = vst [vmem:[%s438 + $0x38] sm:$0xff] %v2964
          %2981 = vst [vmem:[%s438 + $0x40] sm:$0xff] %v2965
          %2982 = vst [vmem:[%s438 + $0x48] sm:$0xff] %v2966
          %2983 = vst [vmem:[%s438 + $0x50] sm:$0xff] %v2967
          %2984 = vst [vmem:[%s438 + $0x58] sm:$0xff] %v2968
          %2985 = vst [vmem:[%s438 + $0x60] sm:$0xff] %v2969
          %2986 = vst [vmem:[%s438 + $0x68] sm:$0xff] %v2970
          %2987 = vst [vmem:[%s438 + $0x70] sm:$0xff] %v2971
          %2988 = vst [vmem:[%s438 + $0x78] sm:$0xff] %v2972
        $region102: #{tpu_custom_call.1} parent=89 // pred_fallthru
          _
        %s2989 = sand.u32 %s254, 1
        %s2990 = scalar_lea.sflag [#allocation7], %s2989
        %s2991 = sand.u32 %s254, 1
        %s2992 = smul.addr %s2991, 128
        %s2993 = scalar_lea.vmem [#allocation6], %s2992
        // Predicated region
        $region103: #{tpu_custom_call.1} parent=89 // pred_check
          %p2994 = pneg %p264
        $region104: #{tpu_custom_call.1} parent=89 // pred_check_branch
          %2996 = sbr.rel (%p2994) target = $region106
        $region105: #{tpu_custom_call.1} parent=89 // pred_region
          %s2997 = smul.u32 16, %s27
          %s2999 = ssub.s32 2048, 2048
          %3000 = vsyncadd %s2990, %s2999
          %s3001 = smul.addr %s2997, 128
          %s3002 = scalar_lea.hbm %s9, %s3001
          %s3003 = sshll.u32 %s2993, 4
          %s3004 = int_to_ptr.vmem [resolvable:$true] %s3003
          %3009 = dma.vmem_to_hbm [thread:$0]  %s3004, 2048, %s3002, %s2990, 128, 128, 8
        $region106: #{tpu_custom_call.1} parent=89 // pred_fallthru
          _
      $region90: #{tpu_custom_call.1} parent=5 // pred_fallthru
        _
      %p3010 = scmp.le.s32.totalorder 2, %s18
      // Predicated region
      $region107: #{tpu_custom_call.1} parent=5 // pred_check
        %p3011 = pneg %p3010
      $region108: #{tpu_custom_call.1} parent=5 // pred_check_branch
        %3013 = sbr.rel (%p3011) target = $region110
      $region109: #{tpu_custom_call.1} parent=5 // pred_region
        %s3014 = ssub.s32 %s18, 2
        // Predicated region
        $region111: #{tpu_custom_call.1} parent=109 // pred_check
          %p3015 = pneg %p270
        $region112: #{tpu_custom_call.1} parent=109 // pred_check_branch
          %3017 = sbr.rel (%p3015) target = $region114
        $region113: #{tpu_custom_call.1} parent=109 // pred_region
          %s3018 = sand.u32 %s255, 1
          %s3019 = scalar_lea.sflag [#allocation7], %s3018
          %s3020 = sand.u32 %s255, 1
          %s3021 = smul.addr %s3020, 128
          %s3022 = scalar_lea.vmem [#allocation6], %s3021
          %3023 = dma.done %s3019, 2048
        $region114: #{tpu_custom_call.1} parent=109 // pred_fallthru
          _
      $region110: #{tpu_custom_call.1} parent=5 // pred_fallthru
        _
    $region6: #{tpu_custom_call.1} parent=1 // loop_footer
      %s22 = sadd.s32 1, %s18
    $region7: #{tpu_custom_call.1} parent=1 // loop_footer_branch
      %17 = sbr.rel target = $region3
    $region8: #{tpu_custom_call.1} parent=1 // loop_exit
      _
    %3024 = vsyncpa [#allocation7], 1
    %s3025 = scalar_lea.sflag [#allocation7], 1
    %3026 = vsyncpa %s3025, 1

</llo_original>
